<compile_context>
chip_gen: v5e
topology: v5e:2x2
jax: 0.10.0
libtpu: 0.0.40
codegen_flags: <defaults>
</compile_context>

<pallas_src>
import functools

import jax
import jax.numpy as jnp
from jax.experimental import pallas as pl
from jax.experimental.pallas import tpu as pltpu

IN_F = 28 * 28          # 784
HID = 1000
OUT_F = 10
BN_EPS = 1e-5

# Lane-aligned (multiples of 128) padded sizes.
IN_PAD = 896            # 784 -> 896
HID_PAD = 1024          # 1000 -> 1024
OUT_PAD = 128           # 10  -> 128
TILE_H = 512            # hidden-dim tile per grid step (1024 / 512 = 2 steps)


def bccls_kernel(x_ref, w1_ref, gamma_ref, beta_ref, w2_ref, b2_ref, o_ref):
    t = pl.program_id(0)

    # Output block is resident across the whole (reduction) grid axis: init with
    # the fc2 bias at tile 0, accumulate fc2 partial products every tile.
    @pl.when(t == 0)
    def _init():
        o_ref[...] = jnp.broadcast_to(b2_ref[...], o_ref.shape)

    x = x_ref[...]                                            # (B, IN_PAD) bf16
    # int8 {-1,0,+1} -> bf16 MXU operand (via f32; both converts are cheap VPU
    # filler hidden under the weight DMA).
    w1 = w1_ref[...].astype(jnp.float32).astype(jnp.bfloat16)  # (IN_PAD, TILE_H)
    h = jnp.dot(x, w1, preferred_element_type=jnp.float32)      # (B, TILE_H) f32

    # One-pass training-mode BatchNorm stats for this HID tile.  Stats are
    # per-feature over the batch axis and the full batch is resident, so
    # per-tile stats are exact.  (fc1 bias omitted: it cancels in the mean
    # subtraction exactly.)
    inv_b = 1.0 / h.shape[0]
    mean = jnp.sum(h, axis=0, keepdims=True) * inv_b                       # (1, TILE_H)
    var = jnp.maximum(jnp.sum(h * h, axis=0, keepdims=True) * inv_b
                      - mean * mean, 0.0)                                  # biased var
    scale = gamma_ref[...] * jax.lax.rsqrt(var + BN_EPS)
    shift = beta_ref[...] - mean * scale
    h = jnp.maximum(h * scale + shift, 0.0)                                # fused BN + ReLU

    w2 = w2_ref[...].astype(jnp.float32).astype(jnp.bfloat16)  # (TILE_H, OUT_PAD)
    o_ref[...] += jnp.dot(h.astype(jnp.bfloat16), w2,
                          preferred_element_type=jnp.float32)


def prepare_params(w1, w2, b2, gamma, beta):
    """Parameter-only prep, reusable across forward calls.

    Binarizes the weights once (sign, matching torch.sign: 0 -> 0), transposes
    to [in, out], stores them as int8 (+/-1/0 exact; halves the dominant weight
    DMA) and zero-pads everything to the lane-aligned shapes.  Padded hidden
    units get gamma=0 / zero W2 rows, so they contribute exactly zero to the
    logits; padded logit columns are zero.  fc1's bias is intentionally dropped
    (exact no-op before training-mode BN).
    """
    w1b = jnp.pad(jnp.sign(w1).T.astype(jnp.int8),
                  ((0, IN_PAD - IN_F), (0, HID_PAD - HID)))          # (896, 1024) i8
    w2b = jnp.pad(jnp.sign(w2).T.astype(jnp.int8),
                  ((0, HID_PAD - HID), (0, OUT_PAD - OUT_F)))        # (1024, 128) i8
    gamma_p = jnp.pad(gamma, (0, HID_PAD - HID)).reshape(1, HID_PAD)
    beta_p = jnp.pad(beta, (0, HID_PAD - HID)).reshape(1, HID_PAD)
    b2_p = jnp.pad(b2, (0, OUT_PAD - OUT_F)).reshape(1, OUT_PAD)
    return w1b, gamma_p, beta_p, w2b, b2_p


@functools.partial(jax.jit)
def bccls_forward(x, prepped):
    w1b, gamma_p, beta_p, w2b, b2_p = prepped
    B = x.shape[0]
    x_p = jnp.pad(x, ((0, 0), (0, IN_PAD - IN_F))).astype(jnp.bfloat16)   # (B, 896) bf16

    cost = pl.CostEstimate(
        flops=2 * B * (IN_PAD * HID_PAD + HID_PAD * OUT_PAD),
        transcendentals=HID_PAD,                       # rsqrt per hidden unit
        bytes_accessed=(w1b.size + w2b.size            # int8 weights
                        + x_p.size * 2                 # bf16 activations
                        + B * OUT_PAD * 4              # f32 output
                        + (gamma_p.size + beta_p.size + b2_p.size) * 4))

    out = pl.pallas_call(
        bccls_kernel,
        out_shape=jax.ShapeDtypeStruct((B, OUT_PAD), jnp.float32),
        grid_spec=pltpu.PrefetchScalarGridSpec(
            num_scalar_prefetch=0,
            grid=(HID_PAD // TILE_H,),
            in_specs=[
                pl.BlockSpec((B, IN_PAD), lambda t: (0, 0)),          # x (resident)
                pl.BlockSpec((IN_PAD, TILE_H), lambda t: (0, t)),     # W1 column tile
                pl.BlockSpec((1, TILE_H), lambda t: (0, t)),          # gamma tile
                pl.BlockSpec((1, TILE_H), lambda t: (0, t)),          # beta tile
                pl.BlockSpec((TILE_H, OUT_PAD), lambda t: (t, 0)),    # W2 row tile
                pl.BlockSpec((1, OUT_PAD), lambda t: (0, 0)),         # b2 (resident)
            ],
            out_specs=pl.BlockSpec((B, OUT_PAD), lambda t: (0, 0)),   # accumulator
        ),
        compiler_params=pltpu.CompilerParams(
            dimension_semantics=("arbitrary",)),                      # reduction axis
        cost_estimate=cost,
    )(x_p, w1b, gamma_p, beta_p, w2b, b2_p)

    return out[:, :OUT_F]


def init_params(key):
    """Init mimicking torch.nn.Linear defaults; random BN affine to exercise it."""
    k1, k2, k3, k4, k5, k6 = jax.random.split(key, 6)
    bound1 = 1.0 / jnp.sqrt(IN_F)
    bound2 = 1.0 / jnp.sqrt(HID)
    w1 = jax.random.uniform(k1, (HID, IN_F), jnp.float32, -bound1, bound1)
    b1 = jax.random.uniform(k2, (HID,), jnp.float32, -bound1, bound1)
    w2 = jax.random.uniform(k3, (OUT_F, HID), jnp.float32, -bound2, bound2)
    b2 = jax.random.uniform(k4, (OUT_F,), jnp.float32, -bound2, bound2)
    gamma = jax.random.uniform(k5, (HID,), jnp.float32, 0.5, 1.5)
    beta = 0.1 * jax.random.normal(k6, (HID,), jnp.float32)
    return w1, b1, w2, b2, gamma, beta


def reference_forward(x, w1, b1, w2, b2, gamma, beta):
    """Pure-JAX f32 reference matching the PyTorch forward (training-mode BN)."""
    h = x @ jnp.sign(w1).T + b1
    mean = jnp.mean(h, axis=0, keepdims=True)
    var = jnp.mean((h - mean) ** 2, axis=0, keepdims=True)
    h = (h - mean) / jnp.sqrt(var + BN_EPS)
    h = h * gamma + beta
    h = jnp.maximum(h, 0.0)
    return h @ jnp.sign(w2).T + b2


def reference_forward_bf16(x, w1, w2, b2, gamma, beta):
    """Same math as the kernel (bf16 MXU operands, f32 accumulation, bias-free BN,
    one-pass variance) — isolates the documented bf16-activation rounding."""
    xb = x.astype(jnp.bfloat16)
    w1b = jnp.sign(w1).T.astype(jnp.bfloat16)
    h = jnp.dot(xb, w1b, preferred_element_type=jnp.float32)
    mean = jnp.mean(h, axis=0, keepdims=True)
    var = jnp.maximum(jnp.mean(h * h, axis=0, keepdims=True) - mean * mean, 0.0)
    scale = gamma * jax.lax.rsqrt(var + BN_EPS)
    h = jnp.maximum(h * scale + (beta - mean * scale), 0.0)
    w2b = jnp.sign(w2).T.astype(jnp.bfloat16)
    return jnp.dot(h.astype(jnp.bfloat16), w2b, preferred_element_type=jnp.float32) + b2


if __name__ == "__main__":
    key = jax.random.PRNGKey(0)
    kx, kp = jax.random.split(key)

    B = 256   # fill the 256-row MXU (v6e/v7x); whole batch resident so BN stats stay exact
    x = jax.random.normal(kx, (B, IN_F), jnp.float32)
    w1, b1, w2, b2, gamma, beta = init_params(kp)

    prepped = prepare_params(w1, w2, b2, gamma, beta)   # once per parameter update
    y = jax.block_until_ready(bccls_forward(x, prepped))
    assert y.shape == (B, OUT_F)

    # 1) Tight check against a reference with identical bf16 rounding -> the kernel
    #    implements exactly the intended math.
    y_ref_bf16 = reference_forward_bf16(x, w1, w2, b2, gamma, beta)
    err_bf16 = float(jnp.max(jnp.abs(y - y_ref_bf16)))
    assert jnp.allclose(y, y_ref_bf16, atol=3e-2, rtol=1e-3), \
        f"mismatch vs bf16-equivalent reference (max abs err {err_bf16})"

    # 2) Looser check against the full-f32 PyTorch-equivalent reference; slack only
    #    accounts for bf16 activation rounding (logit scale here is ~O(20)).
    y_ref32 = reference_forward(x, w1, b1, w2, b2, gamma, beta)
    err_f32 = float(jnp.max(jnp.abs(y - y_ref32)))
    assert jnp.allclose(y, y_ref32, atol=3e-1, rtol=2e-2), \
        f"mismatch vs f32 reference (max abs err {err_f32})"

    print("KERNEL_OK")
</pallas_src>

<mosaic_0001>
module attributes {stable_mosaic.version = 11 : i64} {
  func.func @bccls_kernel(%arg0: i32, %arg1: memref<256x896xbf16, #tpu.memory_space<vmem>>, %arg2: memref<896x512xi8, #tpu.memory_space<vmem>>, %arg3: memref<1x512xf32, #tpu.memory_space<vmem>>, %arg4: memref<1x512xf32, #tpu.memory_space<vmem>>, %arg5: memref<512x128xi8, #tpu.memory_space<vmem>>, %arg6: memref<1x128xf32, #tpu.memory_space<vmem>>, %arg7: memref<256x128xf32, #tpu.memory_space<vmem>>) attributes {dimension_semantics = [#tpu.dimension_semantics<arbitrary>], iteration_bounds = array<i64: 2>, scalar_prefetch = 0 : i64, scratch_operands = 0 : i64, tpu.core_type = #tpu.core_type<tc>, window_params = [{pipeline_mode = #tpu.pipeline_mode<synchronous>, transform_indices = @transform_0, window_bounds = array<i64: 256, 896>}, {transform_indices = @transform_1, window_bounds = array<i64: 896, 512>}, {transform_indices = @transform_2, window_bounds = array<i64: 1, 512>}, {transform_indices = @transform_3, window_bounds = array<i64: 1, 512>}, {transform_indices = @transform_4, window_bounds = array<i64: 512, 128>}, {pipeline_mode = #tpu.pipeline_mode<synchronous>, transform_indices = @transform_5, window_bounds = array<i64: 1, 128>}, {pipeline_mode = #tpu.pipeline_mode<synchronous>, transform_indices = @transform_6, window_bounds = array<i64: 256, 128>}]} {
    %c0_i32 = arith.constant 0 : i32
    %0 = arith.cmpi eq, %arg0, %c0_i32 : i32
    %1 = arith.extui %0 : i1 to i32
    %c0_i32_0 = arith.constant 0 : i32
    %2 = arith.cmpi ne, %1, %c0_i32_0 : i32
    scf.if %2 {
      %c0_22 = arith.constant 0 : index
      %c0_23 = arith.constant 0 : index
      %43 = vector.load %arg6[%c0_22, %c0_23] : memref<1x128xf32, #tpu.memory_space<vmem>>, vector<1x128xf32>
      %44 = vector.shape_cast %43 : vector<1x128xf32> to vector<1x128xf32>
      %45 = vector.broadcast %44 : vector<1x128xf32> to vector<256x128xf32>
      %c0_24 = arith.constant 0 : index
      %c0_25 = arith.constant 0 : index
      %46 = vector.load %arg7[%c0_24, %c0_25] : memref<256x128xf32, #tpu.memory_space<vmem>>, vector<256x128xf32>
      tpu.vector_store %arg7[%c0_24, %c0_25], %45 {strides = array<i32>} : memref<256x128xf32, #tpu.memory_space<vmem>>, vector<256x128xf32>,
    } else {
    }
    %c0 = arith.constant 0 : index
    %c0_1 = arith.constant 0 : index
    %3 = vector.load %arg1[%c0, %c0_1] : memref<256x896xbf16, #tpu.memory_space<vmem>>, vector<256x896xbf16>
    %c0_2 = arith.constant 0 : index
    %c0_3 = arith.constant 0 : index
    %4 = vector.load %arg2[%c0_2, %c0_3] : memref<896x512xi8, #tpu.memory_space<vmem>>, vector<896x512xi8>
    %5 = arith.sitofp %4 : vector<896x512xi8> to vector<896x512xf32>
    %6 = arith.truncf %5 : vector<896x512xf32> to vector<896x512xbf16>
    %cst = arith.constant dense<0.000000e+00> : vector<256x512xf32>
    %7 = tpu.matmul %3, %6, %cst {dimension_numbers = #tpu.dot_dimension_numbers<[1], [0], [0], [1], [0, 0, 1, 1], [], []>} : vector<256x896xbf16>, vector<896x512xbf16>, vector<256x512xf32> -> vector<256x512xf32>
    %cst_4 = arith.constant dense<0.000000e+00> : vector<512xf32>
    %8 = vector.multi_reduction <add>, %7, %cst_4 [0] : vector<256x512xf32> to vector<512xf32>
    %9 = vector.shape_cast %8 : vector<512xf32> to vector<1x512xf32>
    %cst_5 = arith.constant 3.906250e-03 : f32
    %10 = vector.broadcast %cst_5 : f32 to vector<1x512xf32>
    %11 = arith.mulf %9, %10 : vector<1x512xf32>
    %12 = arith.mulf %7, %7 : vector<256x512xf32>
    %cst_6 = arith.constant dense<0.000000e+00> : vector<512xf32>
    %13 = vector.multi_reduction <add>, %12, %cst_6 [0] : vector<256x512xf32> to vector<512xf32>
    %14 = vector.shape_cast %13 : vector<512xf32> to vector<1x512xf32>
    %cst_7 = arith.constant 3.906250e-03 : f32
    %15 = vector.broadcast %cst_7 : f32 to vector<1x512xf32>
    %16 = arith.mulf %14, %15 : vector<1x512xf32>
    %17 = arith.mulf %11, %11 : vector<1x512xf32>
    %18 = arith.subf %16, %17 : vector<1x512xf32>
    %cst_8 = arith.constant 0.000000e+00 : f32
    %19 = vector.broadcast %cst_8 : f32 to vector<1x512xf32>
    %20 = arith.maximumf %18, %19 : vector<1x512xf32>
    %c0_9 = arith.constant 0 : index
    %c0_10 = arith.constant 0 : index
    %21 = vector.load %arg3[%c0_9, %c0_10] : memref<1x512xf32, #tpu.memory_space<vmem>>, vector<1x512xf32>
    %cst_11 = arith.constant 9.99999974E-6 : f32
    %22 = vector.broadcast %cst_11 : f32 to vector<1x512xf32>
    %23 = arith.addf %20, %22 : vector<1x512xf32>
    %24 = math.rsqrt %23 : vector<1x512xf32>
    %25 = arith.mulf %21, %24 : vector<1x512xf32>
    %c0_12 = arith.constant 0 : index
    %c0_13 = arith.constant 0 : index
    %26 = vector.load %arg4[%c0_12, %c0_13] : memref<1x512xf32, #tpu.memory_space<vmem>>, vector<1x512xf32>
    %27 = arith.mulf %11, %25 : vector<1x512xf32>
    %28 = arith.subf %26, %27 : vector<1x512xf32>
    %29 = vector.broadcast %25 : vector<1x512xf32> to vector<256x512xf32>
    %30 = arith.mulf %7, %29 : vector<256x512xf32>
    %31 = vector.broadcast %28 : vector<1x512xf32> to vector<256x512xf32>
    %32 = arith.addf %30, %31 : vector<256x512xf32>
    %cst_14 = arith.constant 0.000000e+00 : f32
    %33 = vector.broadcast %cst_14 : f32 to vector<256x512xf32>
    %34 = arith.maximumf %32, %33 : vector<256x512xf32>
    %c0_15 = arith.constant 0 : index
    %c0_16 = arith.constant 0 : index
    %35 = vector.load %arg5[%c0_15, %c0_16] : memref<512x128xi8, #tpu.memory_space<vmem>>, vector<512x128xi8>
    %36 = arith.sitofp %35 : vector<512x128xi8> to vector<512x128xf32>
    %37 = arith.truncf %36 : vector<512x128xf32> to vector<512x128xbf16>
    %c0_17 = arith.constant 0 : index
    %c0_18 = arith.constant 0 : index
    %38 = vector.load %arg7[%c0_17, %c0_18] : memref<256x128xf32, #tpu.memory_space<vmem>>, vector<256x128xf32>
    %39 = arith.truncf %34 : vector<256x512xf32> to vector<256x512xbf16>
    %cst_19 = arith.constant dense<0.000000e+00> : vector<256x128xf32>
    %40 = tpu.matmul %39, %37, %cst_19 {dimension_numbers = #tpu.dot_dimension_numbers<[1], [0], [0], [1], [0, 0, 1, 1], [], []>} : vector<256x512xbf16>, vector<512x128xbf16>, vector<256x128xf32> -> vector<256x128xf32>
    %41 = arith.addf %38, %40 : vector<256x128xf32>
    %c0_20 = arith.constant 0 : index
    %c0_21 = arith.constant 0 : index
    %42 = vector.load %arg7[%c0_20, %c0_21] : memref<256x128xf32, #tpu.memory_space<vmem>>, vector<256x128xf32>
    tpu.vector_store %arg7[%c0_20, %c0_21], %41 {strides = array<i32>} : memref<256x128xf32, #tpu.memory_space<vmem>>, vector<256x128xf32>,
    return
  }
  func.func @transform_0(%arg0: i32) -> (i32, i32) {
    %c0_i32 = arith.constant 0 : i32
    %c0_i32_0 = arith.constant 0 : i32
    %c0_i32_1 = arith.constant 0 : i32
    return %c0_i32, %c0_i32_0 : i32, i32
  }
  func.func @transform_1(%arg0: i32) -> (i32, i32) {
    %c0_i32 = arith.constant 0 : i32
    %c0_i32_0 = arith.constant 0 : i32
    return %c0_i32, %arg0 : i32, i32
  }
  func.func @transform_2(%arg0: i32) -> (i32, i32) {
    %c0_i32 = arith.constant 0 : i32
    %c0_i32_0 = arith.constant 0 : i32
    return %c0_i32, %arg0 : i32, i32
  }
  func.func @transform_3(%arg0: i32) -> (i32, i32) {
    %c0_i32 = arith.constant 0 : i32
    %c0_i32_0 = arith.constant 0 : i32
    return %c0_i32, %arg0 : i32, i32
  }
  func.func @transform_4(%arg0: i32) -> (i32, i32) {
    %c0_i32 = arith.constant 0 : i32
    %c0_i32_0 = arith.constant 0 : i32
    return %arg0, %c0_i32 : i32, i32
  }
  func.func @transform_5(%arg0: i32) -> (i32, i32) {
    %c0_i32 = arith.constant 0 : i32
    %c0_i32_0 = arith.constant 0 : i32
    %c0_i32_1 = arith.constant 0 : i32
    return %c0_i32, %c0_i32_0 : i32, i32
  }
  func.func @transform_6(%arg0: i32) -> (i32, i32) {
    %c0_i32 = arith.constant 0 : i32
    %c0_i32_0 = arith.constant 0 : i32
    %c0_i32_1 = arith.constant 0 : i32
    return %c0_i32, %c0_i32_0 : i32, i32
  }
}

</mosaic_0001>

<llo_original>
// kernel: bccls_forward.1
$region0: #{bccls_forward.1}
  #allocation0 [shape = 'u32[]', space=smem, size = 0x4, offset = 0x4, fixed_abs, tag = 'smem constant byte address 0x4 - core index']
  #allocation1 [shape = 'u32[72,128]{1,0:T(1,128)}', space=vmem, size = 0x9000, scoped, tag = 'internal scratch']
  %s0 = inlined_call_operand.vmem [shape: bf16[256,896], index: 0, kind: input, shape index: {}]
  %s1 = inlined_call_operand.vmem [shape: s8[896,1024], index: 1, kind: input, shape index: {}]
  %s2 = inlined_call_operand.vmem [shape: f32[1,1024], index: 2, kind: input, shape index: {}]
  %s3 = inlined_call_operand.vmem [shape: f32[1,1024], index: 3, kind: input, shape index: {}]
  %s4 = inlined_call_operand.vmem [shape: s8[1024,128], index: 4, kind: input, shape index: {}]
  %s5 = inlined_call_operand.vmem [shape: f32[1,128], index: 5, kind: input, shape index: {}]
  %s6 = inlined_call_operand.vmem [shape: f32[256,128], index: 6, kind: output, shape index: {}]
  %s7 = sld [smem:[#allocation0]]
  $region84: #{bccls_forward.1} parent=0
    _
  %s9 = ssub.s32 1, %s7
  %s10 = scalar_select 0, %s9, %s7
  $region1: #{bccls_forward.1} parent=0
    #allocation2 [shape = 'u8[917504]{0}', space=vmem, size = 0xe0000, scoped, tag = 'input window, operand 1']
    loop: start=0, step=1, limit=4
    $region2: #{bccls_forward.1} parent=1 // loop_pre_header
      _
    $region3: #{bccls_forward.1} parent=1 // loop_header
      %s12 = sphi 0, %s16
      %p13 = scmp.ge.s32.totalorder %s12, 4
      %s20 = sphi 0, %s20
      %s22 = sphi 0, %s20
      %s23 = sphi 0, %s22
      %s37 = sphi 0, %s23
      %s43 = sphi 0, %s45
      %s46 = sphi 0, %s43
      %s47 = sphi 0, %s46
      %s63 = sphi 0, %s47
      %s69 = sphi 0, %s71
      %s72 = sphi 0, %s69
      %s73 = sphi 0, %s72
      %s89 = sphi 0, %s73
      %s95 = sphi 0, %s97
      %s98 = sphi 0, %s95
      %s99 = sphi 0, %s98
      %s115 = sphi 0, %s99
      %s121 = sphi 0, %s123
      %s124 = sphi 0, %s121
      %s125 = sphi 0, %s124
      %s141 = sphi 0, %s125
      %s145 = sphi 0, %s145
      %s147 = sphi 0, %s145
      %s148 = sphi 0, %s147
      %s162 = sphi 0, %s148
      %s166 = sphi 0, %s166
      %s168 = sphi 0, %s166
      %s169 = sphi 0, %s168
      %s183 = sphi 0, %s169
    $region4: #{bccls_forward.1} parent=1 // loop_header_branch
      %15 = sbr.rel (%p13) target = $region8
    $region5: #{bccls_forward.1} parent=1 // loop_body
      %s17 = ssub.s32 %s12, 1
      %s18 = ssub.s32 %s12, 2
      %s19 = sadd.s32 %s12, 1
      %s21 = sadd.s32 %s20, 1
      %p24 = scmp.eq.s32.totalorder %s12, 1
      %p25 = scmp.ne.s32.totalorder %s20, %s22
      %p26 = scmp.eq.s32.totalorder %s12, 0
      %p27 = por %p25, %p26
      %p28 = scmp.ne.s32.totalorder %s20, %s22
      %p29 = scmp.eq.s32.totalorder %s17, 1
      %p30 = por %p28, %p29
      %p31 = scmp.ne.s32.totalorder %s22, %s23
      %p32 = scmp.eq.s32.totalorder %s17, 0
      %p33 = por %p31, %p32
      %p34 = scmp.ne.s32.totalorder %s22, %s23
      %p35 = scmp.eq.s32.totalorder %s18, 1
      %p36 = por %p34, %p35
      %p38 = scmp.ne.s32.totalorder %s23, %s37
      %p39 = scmp.eq.s32.totalorder %s18, 0
      %p40 = por %p38, %p39
      %s41 = ssub.s32 %s12, %s19
      %p42 = scmp.eq.s32.totalorder %s41, 0
      %s44 = sadd.s32 %s43, 1
      %s45 = scalar_select %p42, %s43, %s44
      %p48 = pneg %p42
      %p49 = scmp.eq.s32.totalorder %s12, 1
      %p50 = por %p48, %p49
      %p51 = scmp.ne.s32.totalorder %s43, %s46
      %p52 = scmp.eq.s32.totalorder %s12, 0
      %p53 = por %p51, %p52
      %p54 = scmp.ne.s32.totalorder %s43, %s46
      %p55 = scmp.eq.s32.totalorder %s17, 1
      %p56 = por %p54, %p55
      %p57 = scmp.ne.s32.totalorder %s46, %s47
      %p58 = scmp.eq.s32.totalorder %s17, 0
      %p59 = por %p57, %p58
      %p60 = scmp.ne.s32.totalorder %s46, %s47
      %p61 = scmp.eq.s32.totalorder %s18, 1
      %p62 = por %p60, %p61
      %p64 = scmp.ne.s32.totalorder %s47, %s63
      %p65 = scmp.eq.s32.totalorder %s18, 0
      %p66 = por %p64, %p65
      %s67 = ssub.s32 %s12, %s19
      %p68 = scmp.eq.s32.totalorder %s67, 0
      %s70 = sadd.s32 %s69, 1
      %s71 = scalar_select %p68, %s69, %s70
      %p74 = pneg %p68
      %p75 = scmp.eq.s32.totalorder %s12, 1
      %p76 = por %p74, %p75
      %p77 = scmp.ne.s32.totalorder %s69, %s72
      %p78 = scmp.eq.s32.totalorder %s12, 0
      %p79 = por %p77, %p78
      %p80 = scmp.ne.s32.totalorder %s69, %s72
      %p81 = scmp.eq.s32.totalorder %s17, 1
      %p82 = por %p80, %p81
      %p83 = scmp.ne.s32.totalorder %s72, %s73
      %p84 = scmp.eq.s32.totalorder %s17, 0
      %p85 = por %p83, %p84
      %p86 = scmp.ne.s32.totalorder %s72, %s73
      %p87 = scmp.eq.s32.totalorder %s18, 1
      %p88 = por %p86, %p87
      %p90 = scmp.ne.s32.totalorder %s73, %s89
      %p91 = scmp.eq.s32.totalorder %s18, 0
      %p92 = por %p90, %p91
      %s93 = ssub.s32 %s12, %s19
      %p94 = scmp.eq.s32.totalorder %s93, 0
      %s96 = sadd.s32 %s95, 1
      %s97 = scalar_select %p94, %s95, %s96
      %p100 = pneg %p94
      %p101 = scmp.eq.s32.totalorder %s12, 1
      %p102 = por %p100, %p101
      %p103 = scmp.ne.s32.totalorder %s95, %s98
      %p104 = scmp.eq.s32.totalorder %s12, 0
      %p105 = por %p103, %p104
      %p106 = scmp.ne.s32.totalorder %s95, %s98
      %p107 = scmp.eq.s32.totalorder %s17, 1
      %p108 = por %p106, %p107
      %p109 = scmp.ne.s32.totalorder %s98, %s99
      %p110 = scmp.eq.s32.totalorder %s17, 0
      %p111 = por %p109, %p110
      %p112 = scmp.ne.s32.totalorder %s98, %s99
      %p113 = scmp.eq.s32.totalorder %s18, 1
      %p114 = por %p112, %p113
      %p116 = scmp.ne.s32.totalorder %s99, %s115
      %p117 = scmp.eq.s32.totalorder %s18, 0
      %p118 = por %p116, %p117
      %s119 = ssub.s32 %s12, %s19
      %p120 = scmp.eq.s32.totalorder %s119, 0
      %s122 = sadd.s32 %s121, 1
      %s123 = scalar_select %p120, %s121, %s122
      %p126 = pneg %p120
      %p127 = scmp.eq.s32.totalorder %s12, 1
      %p128 = por %p126, %p127
      %p129 = scmp.ne.s32.totalorder %s121, %s124
      %p130 = scmp.eq.s32.totalorder %s12, 0
      %p131 = por %p129, %p130
      %p132 = scmp.ne.s32.totalorder %s121, %s124
      %p133 = scmp.eq.s32.totalorder %s17, 1
      %p134 = por %p132, %p133
      %p135 = scmp.ne.s32.totalorder %s124, %s125
      %p136 = scmp.eq.s32.totalorder %s17, 0
      %p137 = por %p135, %p136
      %p138 = scmp.ne.s32.totalorder %s124, %s125
      %p139 = scmp.eq.s32.totalorder %s18, 1
      %p140 = por %p138, %p139
      %p142 = scmp.ne.s32.totalorder %s125, %s141
      %p143 = scmp.eq.s32.totalorder %s18, 0
      %p144 = por %p142, %p143
      %s146 = sadd.s32 %s145, 1
      %p149 = scmp.eq.s32.totalorder %s12, 1
      %p150 = scmp.ne.s32.totalorder %s145, %s147
      %p151 = scmp.eq.s32.totalorder %s12, 0
      %p152 = por %p150, %p151
      %p153 = scmp.ne.s32.totalorder %s145, %s147
      %p154 = scmp.eq.s32.totalorder %s17, 1
      %p155 = por %p153, %p154
      %p156 = scmp.ne.s32.totalorder %s147, %s148
      %p157 = scmp.eq.s32.totalorder %s17, 0
      %p158 = por %p156, %p157
      %p159 = scmp.ne.s32.totalorder %s147, %s148
      %p160 = scmp.eq.s32.totalorder %s18, 1
      %p161 = por %p159, %p160
      %p163 = scmp.ne.s32.totalorder %s148, %s162
      %p164 = scmp.eq.s32.totalorder %s18, 0
      %p165 = por %p163, %p164
      %s167 = sadd.s32 %s166, 1
      %p170 = scmp.eq.s32.totalorder %s12, 1
      %p171 = scmp.ne.s32.totalorder %s166, %s168
      %p172 = scmp.eq.s32.totalorder %s12, 0
      %p173 = por %p171, %p172
      %p174 = scmp.ne.s32.totalorder %s166, %s168
      %p175 = scmp.eq.s32.totalorder %s17, 1
      %p176 = por %p174, %p175
      %p177 = scmp.ne.s32.totalorder %s168, %s169
      %p178 = scmp.eq.s32.totalorder %s17, 0
      %p179 = por %p177, %p178
      %p180 = scmp.ne.s32.totalorder %s168, %s169
      %p181 = scmp.eq.s32.totalorder %s18, 1
      %p182 = por %p180, %p181
      %p184 = scmp.ne.s32.totalorder %s169, %s183
      %p185 = scmp.eq.s32.totalorder %s18, 0
      %p186 = por %p184, %p185
      %p187 = scmp.le.s32.totalorder 1, %s12
      %p188 = scmp.lt.s32.totalorder %s12, 3
      %p189 = pnand %p187, %p188
      %p190 = pneg %p189
      // Predicated region
      $region9: #{bccls_forward.1} parent=5 // pred_check
        _
      $region10: #{bccls_forward.1} parent=5 // pred_check_branch
        %192 = sbr.rel (%p189) target = $region12
      $region11: #{bccls_forward.1} parent=5 // pred_region
        %s193 = ssub.s32 %s12, 1
        // Predicated region
        $region13: #{bccls_forward.1} parent=11 // pred_check
          %p194 = pneg %p33
        $region14: #{bccls_forward.1} parent=11 // pred_check_branch
          %196 = sbr.rel (%p194) target = $region16
        $region15: #{bccls_forward.1} parent=11 // pred_region
          _
        $region16: #{bccls_forward.1} parent=11 // pred_fallthru
          _
        // Predicated region
        $region17: #{bccls_forward.1} parent=11 // pred_check
          %p197 = pneg %p158
        $region18: #{bccls_forward.1} parent=11 // pred_check_branch
          %199 = sbr.rel (%p197) target = $region20
        $region19: #{bccls_forward.1} parent=11 // pred_region
          _
        $region20: #{bccls_forward.1} parent=11 // pred_fallthru
          _
      $region12: #{bccls_forward.1} parent=5 // pred_fallthru
        _
      %p200 = scmp.lt.s32.totalorder %s12, 2
      // Predicated region
      $region21: #{bccls_forward.1} parent=5 // pred_check
        %p201 = pneg %p200
      $region22: #{bccls_forward.1} parent=5 // pred_check_branch
        %203 = sbr.rel (%p201) target = $region24
      $region23: #{bccls_forward.1} parent=5 // pred_region
        // Predicated region
        $region25: #{bccls_forward.1} parent=23 // pred_check
          %p204 = pneg %p53
        $region26: #{bccls_forward.1} parent=23 // pred_check_branch
          %206 = sbr.rel (%p204) target = $region28
        $region27: #{bccls_forward.1} parent=23 // pred_region
          %s207 = sand.u32 %s43, 1
          %s208 = sand.u32 %s43, 1
          %s209 = smul.addr %s208, 896
          %s210 = scalar_lea.vmem [#allocation2], %s209
          %s211 = smul.u32 4, %s12
          %s212 = smul.addr %s211, 8
          %s213 = scalar_lea.vmem %s1, %s212
          // Predicated region
          $region29: #{bccls_forward.1} parent=27 // pred_check
            _
          $region30: #{bccls_forward.1} parent=27 // pred_check_branch
            %215 = sbr.rel (0) target = $region32
          $region31: #{bccls_forward.1} parent=27 // pred_region
            // Predicated region
            $region33: #{bccls_forward.1} parent=31 // pred_check
              _
            $region34: #{bccls_forward.1} parent=31 // pred_check_branch
              %217 = sbr.rel (0) target = $region36
            $region35: #{bccls_forward.1} parent=31 // pred_region
              loop: start=0, step=1, limit=1
              $region37: #{bccls_forward.1} parent=35 // loop_pre_header
                _
              $region38: #{bccls_forward.1} parent=35 // loop_header
                %s219 = sphi 0, %s223
                %p220 = scmp.ge.s32.totalorder %s219, 1
                %s224 = sphi %s213, %s213
                %s225 = sphi %s210, %s210
              $region39: #{bccls_forward.1} parent=35 // loop_header_branch
                %222 = sbr.rel (%p220) target = $region43
              $region40: #{bccls_forward.1} parent=35 // loop_body
                %v226 = vld [vmem:[%s224] sm:$0xff]
                %227 = vst [vmem:[%s225] sm:$0xff] %v226
                %v228 = vld [vmem:[%s224 + $0x8] sm:$0xff]
                %229 = vst [vmem:[%s225 + $0x8] sm:$0xff] %v228
                %v230 = vld [vmem:[%s224 + $0x10] sm:$0xff]
                %231 = vst [vmem:[%s225 + $0x10] sm:$0xff] %v230
                %v232 = vld [vmem:[%s224 + $0x18] sm:$0xff]
                %233 = vst [vmem:[%s225 + $0x18] sm:$0xff] %v232
                %v234 = vld [vmem:[%s224 + $0x40] sm:$0xff]
                %235 = vst [vmem:[%s225 + $0x20] sm:$0xff] %v234
                %v236 = vld [vmem:[%s224 + $0x48] sm:$0xff]
                %237 = vst [vmem:[%s225 + $0x28] sm:$0xff] %v236
                %v238 = vld [vmem:[%s224 + $0x50] sm:$0xff]
                %239 = vst [vmem:[%s225 + $0x30] sm:$0xff] %v238
                %v240 = vld [vmem:[%s224 + $0x58] sm:$0xff]
                %241 = vst [vmem:[%s225 + $0x38] sm:$0xff] %v240
                %v242 = vld [vmem:[%s224 + $0x80] sm:$0xff]
                %243 = vst [vmem:[%s225 + $0x40] sm:$0xff] %v242
                %v244 = vld [vmem:[%s224 + $0x88] sm:$0xff]
                %245 = vst [vmem:[%s225 + $0x48] sm:$0xff] %v244
                %v246 = vld [vmem:[%s224 + $0x90] sm:$0xff]
                %247 = vst [vmem:[%s225 + $0x50] sm:$0xff] %v246
                %v248 = vld [vmem:[%s224 + $0x98] sm:$0xff]
                %249 = vst [vmem:[%s225 + $0x58] sm:$0xff] %v248
                %v250 = vld [vmem:[%s224 + $0xc0] sm:$0xff]
                %251 = vst [vmem:[%s225 + $0x60] sm:$0xff] %v250
                %v252 = vld [vmem:[%s224 + $0xc8] sm:$0xff]
                %253 = vst [vmem:[%s225 + $0x68] sm:$0xff] %v252
                %v254 = vld [vmem:[%s224 + $0xd0] sm:$0xff]
                %255 = vst [vmem:[%s225 + $0x70] sm:$0xff] %v254
                %v256 = vld [vmem:[%s224 + $0xd8] sm:$0xff]
                %257 = vst [vmem:[%s225 + $0x78] sm:$0xff] %v256
                %v258 = vld [vmem:[%s224 + $0x100] sm:$0xff]
                %259 = vst [vmem:[%s225 + $0x80] sm:$0xff] %v258
                %v260 = vld [vmem:[%s224 + $0x108] sm:$0xff]
                %261 = vst [vmem:[%s225 + $0x88] sm:$0xff] %v260
                %v262 = vld [vmem:[%s224 + $0x110] sm:$0xff]
                %263 = vst [vmem:[%s225 + $0x90] sm:$0xff] %v262
                %v264 = vld [vmem:[%s224 + $0x118] sm:$0xff]
                %265 = vst [vmem:[%s225 + $0x98] sm:$0xff] %v264
                %v266 = vld [vmem:[%s224 + $0x140] sm:$0xff]
                %267 = vst [vmem:[%s225 + $0xa0] sm:$0xff] %v266
                %v268 = vld [vmem:[%s224 + $0x148] sm:$0xff]
                %269 = vst [vmem:[%s225 + $0xa8] sm:$0xff] %v268
                %v270 = vld [vmem:[%s224 + $0x150] sm:$0xff]
                %271 = vst [vmem:[%s225 + $0xb0] sm:$0xff] %v270
                %v272 = vld [vmem:[%s224 + $0x158] sm:$0xff]
                %273 = vst [vmem:[%s225 + $0xb8] sm:$0xff] %v272
                %v274 = vld [vmem:[%s224 + $0x180] sm:$0xff]
                %275 = vst [vmem:[%s225 + $0xc0] sm:$0xff] %v274
                %v276 = vld [vmem:[%s224 + $0x188] sm:$0xff]
                %277 = vst [vmem:[%s225 + $0xc8] sm:$0xff] %v276
                %v278 = vld [vmem:[%s224 + $0x190] sm:$0xff]
                %279 = vst [vmem:[%s225 + $0xd0] sm:$0xff] %v278
                %v280 = vld [vmem:[%s224 + $0x198] sm:$0xff]
                %281 = vst [vmem:[%s225 + $0xd8] sm:$0xff] %v280
                %v282 = vld [vmem:[%s224 + $0x1c0] sm:$0xff]
                %283 = vst [vmem:[%s225 + $0xe0] sm:$0xff] %v282
                %v284 = vld [vmem:[%s224 + $0x1c8] sm:$0xff]
                %285 = vst [vmem:[%s225 + $0xe8] sm:$0xff] %v284
                %v286 = vld [vmem:[%s224 + $0x1d0] sm:$0xff]
                %287 = vst [vmem:[%s225 + $0xf0] sm:$0xff] %v286
                %v288 = vld [vmem:[%s224 + $0x1d8] sm:$0xff]
                %289 = vst [vmem:[%s225 + $0xf8] sm:$0xff] %v288
                %v290 = vld [vmem:[%s224 + $0x200] sm:$0xff]
                %291 = vst [vmem:[%s225 + $0x100] sm:$0xff] %v290
                %v292 = vld [vmem:[%s224 + $0x208] sm:$0xff]
                %293 = vst [vmem:[%s225 + $0x108] sm:$0xff] %v292
                %v294 = vld [vmem:[%s224 + $0x210] sm:$0xff]
                %295 = vst [vmem:[%s225 + $0x110] sm:$0xff] %v294
                %v296 = vld [vmem:[%s224 + $0x218] sm:$0xff]
                %297 = vst [vmem:[%s225 + $0x118] sm:$0xff] %v296
                %v298 = vld [vmem:[%s224 + $0x240] sm:$0xff]
                %299 = vst [vmem:[%s225 + $0x120] sm:$0xff] %v298
                %v300 = vld [vmem:[%s224 + $0x248] sm:$0xff]
                %301 = vst [vmem:[%s225 + $0x128] sm:$0xff] %v300
                %v302 = vld [vmem:[%s224 + $0x250] sm:$0xff]
                %303 = vst [vmem:[%s225 + $0x130] sm:$0xff] %v302
                %v304 = vld [vmem:[%s224 + $0x258] sm:$0xff]
                %305 = vst [vmem:[%s225 + $0x138] sm:$0xff] %v304
                %v306 = vld [vmem:[%s224 + $0x280] sm:$0xff]
                %307 = vst [vmem:[%s225 + $0x140] sm:$0xff] %v306
                %v308 = vld [vmem:[%s224 + $0x288] sm:$0xff]
                %309 = vst [vmem:[%s225 + $0x148] sm:$0xff] %v308
                %v310 = vld [vmem:[%s224 + $0x290] sm:$0xff]
                %311 = vst [vmem:[%s225 + $0x150] sm:$0xff] %v310
                %v312 = vld [vmem:[%s224 + $0x298] sm:$0xff]
                %313 = vst [vmem:[%s225 + $0x158] sm:$0xff] %v312
                %v314 = vld [vmem:[%s224 + $0x2c0] sm:$0xff]
                %315 = vst [vmem:[%s225 + $0x160] sm:$0xff] %v314
                %v316 = vld [vmem:[%s224 + $0x2c8] sm:$0xff]
                %317 = vst [vmem:[%s225 + $0x168] sm:$0xff] %v316
                %v318 = vld [vmem:[%s224 + $0x2d0] sm:$0xff]
                %319 = vst [vmem:[%s225 + $0x170] sm:$0xff] %v318
                %v320 = vld [vmem:[%s224 + $0x2d8] sm:$0xff]
                %321 = vst [vmem:[%s225 + $0x178] sm:$0xff] %v320
                %v322 = vld [vmem:[%s224 + $0x300] sm:$0xff]
                %323 = vst [vmem:[%s225 + $0x180] sm:$0xff] %v322
                %v324 = vld [vmem:[%s224 + $0x308] sm:$0xff]
                %325 = vst [vmem:[%s225 + $0x188] sm:$0xff] %v324
                %v326 = vld [vmem:[%s224 + $0x310] sm:$0xff]
                %327 = vst [vmem:[%s225 + $0x190] sm:$0xff] %v326
                %v328 = vld [vmem:[%s224 + $0x318] sm:$0xff]
                %329 = vst [vmem:[%s225 + $0x198] sm:$0xff] %v328
                %v330 = vld [vmem:[%s224 + $0x340] sm:$0xff]
                %331 = vst [vmem:[%s225 + $0x1a0] sm:$0xff] %v330
                %v332 = vld [vmem:[%s224 + $0x348] sm:$0xff]
                %333 = vst [vmem:[%s225 + $0x1a8] sm:$0xff] %v332
                %v334 = vld [vmem:[%s224 + $0x350] sm:$0xff]
                %335 = vst [vmem:[%s225 + $0x1b0] sm:$0xff] %v334
                %v336 = vld [vmem:[%s224 + $0x358] sm:$0xff]
                %337 = vst [vmem:[%s225 + $0x1b8] sm:$0xff] %v336
                %v338 = vld [vmem:[%s224 + $0x380] sm:$0xff]
                %339 = vst [vmem:[%s225 + $0x1c0] sm:$0xff] %v338
                %v340 = vld [vmem:[%s224 + $0x388] sm:$0xff]
                %341 = vst [vmem:[%s225 + $0x1c8] sm:$0xff] %v340
                %v342 = vld [vmem:[%s224 + $0x390] sm:$0xff]
                %343 = vst [vmem:[%s225 + $0x1d0] sm:$0xff] %v342
                %v344 = vld [vmem:[%s224 + $0x398] sm:$0xff]
                %345 = vst [vmem:[%s225 + $0x1d8] sm:$0xff] %v344
                %v346 = vld [vmem:[%s224 + $0x3c0] sm:$0xff]
                %347 = vst [vmem:[%s225 + $0x1e0] sm:$0xff] %v346
                %v348 = vld [vmem:[%s224 + $0x3c8] sm:$0xff]
                %349 = vst [vmem:[%s225 + $0x1e8] sm:$0xff] %v348
                %v350 = vld [vmem:[%s224 + $0x3d0] sm:$0xff]
                %351 = vst [vmem:[%s225 + $0x1f0] sm:$0xff] %v350
                %v352 = vld [vmem:[%s224 + $0x3d8] sm:$0xff]
                %353 = vst [vmem:[%s225 + $0x1f8] sm:$0xff] %v352
                %v354 = vld [vmem:[%s224 + $0x400] sm:$0xff]
                %355 = vst [vmem:[%s225 + $0x200] sm:$0xff] %v354
                %v356 = vld [vmem:[%s224 + $0x408] sm:$0xff]
                %357 = vst [vmem:[%s225 + $0x208] sm:$0xff] %v356
                %v358 = vld [vmem:[%s224 + $0x410] sm:$0xff]
                %359 = vst [vmem:[%s225 + $0x210] sm:$0xff] %v358
                %v360 = vld [vmem:[%s224 + $0x418] sm:$0xff]
                %361 = vst [vmem:[%s225 + $0x218] sm:$0xff] %v360
                %v362 = vld [vmem:[%s224 + $0x440] sm:$0xff]
                %363 = vst [vmem:[%s225 + $0x220] sm:$0xff] %v362
                %v364 = vld [vmem:[%s224 + $0x448] sm:$0xff]
                %365 = vst [vmem:[%s225 + $0x228] sm:$0xff] %v364
                %v366 = vld [vmem:[%s224 + $0x450] sm:$0xff]
                %367 = vst [vmem:[%s225 + $0x230] sm:$0xff] %v366
                %v368 = vld [vmem:[%s224 + $0x458] sm:$0xff]
                %369 = vst [vmem:[%s225 + $0x238] sm:$0xff] %v368
                %v370 = vld [vmem:[%s224 + $0x480] sm:$0xff]
                %371 = vst [vmem:[%s225 + $0x240] sm:$0xff] %v370
                %v372 = vld [vmem:[%s224 + $0x488] sm:$0xff]
                %373 = vst [vmem:[%s225 + $0x248] sm:$0xff] %v372
                %v374 = vld [vmem:[%s224 + $0x490] sm:$0xff]
                %375 = vst [vmem:[%s225 + $0x250] sm:$0xff] %v374
                %v376 = vld [vmem:[%s224 + $0x498] sm:$0xff]
                %377 = vst [vmem:[%s225 + $0x258] sm:$0xff] %v376
                %v378 = vld [vmem:[%s224 + $0x4c0] sm:$0xff]
                %379 = vst [vmem:[%s225 + $0x260] sm:$0xff] %v378
                %v380 = vld [vmem:[%s224 + $0x4c8] sm:$0xff]
                %381 = vst [vmem:[%s225 + $0x268] sm:$0xff] %v380
                %v382 = vld [vmem:[%s224 + $0x4d0] sm:$0xff]
                %383 = vst [vmem:[%s225 + $0x270] sm:$0xff] %v382
                %v384 = vld [vmem:[%s224 + $0x4d8] sm:$0xff]
                %385 = vst [vmem:[%s225 + $0x278] sm:$0xff] %v384
                %v386 = vld [vmem:[%s224 + $0x500] sm:$0xff]
                %387 = vst [vmem:[%s225 + $0x280] sm:$0xff] %v386
                %v388 = vld [vmem:[%s224 + $0x508] sm:$0xff]
                %389 = vst [vmem:[%s225 + $0x288] sm:$0xff] %v388
                %v390 = vld [vmem:[%s224 + $0x510] sm:$0xff]
                %391 = vst [vmem:[%s225 + $0x290] sm:$0xff] %v390
                %v392 = vld [vmem:[%s224 + $0x518] sm:$0xff]
                %393 = vst [vmem:[%s225 + $0x298] sm:$0xff] %v392
                %v394 = vld [vmem:[%s224 + $0x540] sm:$0xff]
                %395 = vst [vmem:[%s225 + $0x2a0] sm:$0xff] %v394
                %v396 = vld [vmem:[%s224 + $0x548] sm:$0xff]
                %397 = vst [vmem:[%s225 + $0x2a8] sm:$0xff] %v396
                %v398 = vld [vmem:[%s224 + $0x550] sm:$0xff]
                %399 = vst [vmem:[%s225 + $0x2b0] sm:$0xff] %v398
                %v400 = vld [vmem:[%s224 + $0x558] sm:$0xff]
                %401 = vst [vmem:[%s225 + $0x2b8] sm:$0xff] %v400
                %v402 = vld [vmem:[%s224 + $0x580] sm:$0xff]
                %403 = vst [vmem:[%s225 + $0x2c0] sm:$0xff] %v402
                %v404 = vld [vmem:[%s224 + $0x588] sm:$0xff]
                %405 = vst [vmem:[%s225 + $0x2c8] sm:$0xff] %v404
                %v406 = vld [vmem:[%s224 + $0x590] sm:$0xff]
                %407 = vst [vmem:[%s225 + $0x2d0] sm:$0xff] %v406
                %v408 = vld [vmem:[%s224 + $0x598] sm:$0xff]
                %409 = vst [vmem:[%s225 + $0x2d8] sm:$0xff] %v408
                %v410 = vld [vmem:[%s224 + $0x5c0] sm:$0xff]
                %411 = vst [vmem:[%s225 + $0x2e0] sm:$0xff] %v410
                %v412 = vld [vmem:[%s224 + $0x5c8] sm:$0xff]
                %413 = vst [vmem:[%s225 + $0x2e8] sm:$0xff] %v412
                %v414 = vld [vmem:[%s224 + $0x5d0] sm:$0xff]
                %415 = vst [vmem:[%s225 + $0x2f0] sm:$0xff] %v414
                %v416 = vld [vmem:[%s224 + $0x5d8] sm:$0xff]
                %417 = vst [vmem:[%s225 + $0x2f8] sm:$0xff] %v416
                %v418 = vld [vmem:[%s224 + $0x600] sm:$0xff]
                %419 = vst [vmem:[%s225 + $0x300] sm:$0xff] %v418
                %v420 = vld [vmem:[%s224 + $0x608] sm:$0xff]
                %421 = vst [vmem:[%s225 + $0x308] sm:$0xff] %v420
                %v422 = vld [vmem:[%s224 + $0x610] sm:$0xff]
                %423 = vst [vmem:[%s225 + $0x310] sm:$0xff] %v422
                %v424 = vld [vmem:[%s224 + $0x618] sm:$0xff]
                %425 = vst [vmem:[%s225 + $0x318] sm:$0xff] %v424
                %v426 = vld [vmem:[%s224 + $0x640] sm:$0xff]
                %427 = vst [vmem:[%s225 + $0x320] sm:$0xff] %v426
                %v428 = vld [vmem:[%s224 + $0x648] sm:$0xff]
                %429 = vst [vmem:[%s225 + $0x328] sm:$0xff] %v428
                %v430 = vld [vmem:[%s224 + $0x650] sm:$0xff]
                %431 = vst [vmem:[%s225 + $0x330] sm:$0xff] %v430
                %v432 = vld [vmem:[%s224 + $0x658] sm:$0xff]
                %433 = vst [vmem:[%s225 + $0x338] sm:$0xff] %v432
                %v434 = vld [vmem:[%s224 + $0x680] sm:$0xff]
                %435 = vst [vmem:[%s225 + $0x340] sm:$0xff] %v434
                %v436 = vld [vmem:[%s224 + $0x688] sm:$0xff]
                %437 = vst [vmem:[%s225 + $0x348] sm:$0xff] %v436
                %v438 = vld [vmem:[%s224 + $0x690] sm:$0xff]
                %439 = vst [vmem:[%s225 + $0x350] sm:$0xff] %v438
                %v440 = vld [vmem:[%s224 + $0x698] sm:$0xff]
                %441 = vst [vmem:[%s225 + $0x358] sm:$0xff] %v440
                %v442 = vld [vmem:[%s224 + $0x6c0] sm:$0xff]
                %443 = vst [vmem:[%s225 + $0x360] sm:$0xff] %v442
                %v444 = vld [vmem:[%s224 + $0x6c8] sm:$0xff]
                %445 = vst [vmem:[%s225 + $0x368] sm:$0xff] %v444
                %v446 = vld [vmem:[%s224 + $0x6d0] sm:$0xff]
                %447 = vst [vmem:[%s225 + $0x370] sm:$0xff] %v446
                %v448 = vld [vmem:[%s224 + $0x6d8] sm:$0xff]
                %449 = vst [vmem:[%s225 + $0x378] sm:$0xff] %v448
              $region41: #{bccls_forward.1} parent=35 // loop_footer
                %s223 = sadd.s32 1, %s219
              $region42: #{bccls_forward.1} parent=35 // loop_footer_branch
                %218 = sbr.rel target = $region38
              $region43: #{bccls_forward.1} parent=35 // loop_exit
                _
            $region36: #{bccls_forward.1} parent=31 // pred_fallthru
              _
            // Predicated region
            $region44: #{bccls_forward.1} parent=31 // pred_check
              _
            $region45: #{bccls_forward.1} parent=31 // pred_check_branch
              %451 = sbr.rel target = $region47
            $region46: #{bccls_forward.1} parent=31 // pred_region
              _
            $region47: #{bccls_forward.1} parent=31 // pred_fallthru
              _
          $region32: #{bccls_forward.1} parent=27 // pred_fallthru
            _
          %452 = vnop
        $region28: #{bccls_forward.1} parent=23 // pred_fallthru
          _
        // Predicated region
        $region48: #{bccls_forward.1} parent=23 // pred_check
          %p453 = pneg %p79
        $region49: #{bccls_forward.1} parent=23 // pred_check_branch
          %455 = sbr.rel (%p453) target = $region51
        $region50: #{bccls_forward.1} parent=23 // pred_region
          %s456 = smul.u32 4, %s12
          %p457 = scmp.lt.s32.totalorder %s456, 7
          %s458 = scalar_select %p457, %s456, 7
          %s459 = scalar_lea.vmem %s2, %s458
          %s460 = smul.u32 4, %s12
        $region51: #{bccls_forward.1} parent=23 // pred_fallthru
          _
        // Predicated region
        $region52: #{bccls_forward.1} parent=23 // pred_check
          %p461 = pneg %p105
        $region53: #{bccls_forward.1} parent=23 // pred_check_branch
          %463 = sbr.rel (%p461) target = $region55
        $region54: #{bccls_forward.1} parent=23 // pred_region
          %s464 = smul.u32 4, %s12
          %p465 = scmp.lt.s32.totalorder %s464, 7
          %s466 = scalar_select %p465, %s464, 7
          %s467 = scalar_lea.vmem %s3, %s466
          %s468 = smul.u32 4, %s12
        $region55: #{bccls_forward.1} parent=23 // pred_fallthru
          _
        // Predicated region
        $region56: #{bccls_forward.1} parent=23 // pred_check
          %p469 = pneg %p131
        $region57: #{bccls_forward.1} parent=23 // pred_check_branch
          %471 = sbr.rel (%p469) target = $region59
        $region58: #{bccls_forward.1} parent=23 // pred_region
          %s472 = smul.u32 16, %s12
          %p473 = scmp.lt.s32.totalorder %s472, 31
          %s474 = scalar_select %p473, %s472, 31
          %s475 = smul.addr %s474, 8
          %s476 = scalar_lea.vmem %s4, %s475
          %s477 = smul.u32 16, %s12
        $region59: #{bccls_forward.1} parent=23 // pred_fallthru
          _
      $region24: #{bccls_forward.1} parent=5 // pred_fallthru
        _
      %p478 = scmp.le.s32.totalorder 1, %s12
      %p479 = scmp.lt.s32.totalorder %s12, 3
      %p480 = pnand %p478, %p479
      %p481 = pneg %p480
      // Predicated region
      $region60: #{bccls_forward.1} parent=5 // pred_check
        _
      $region61: #{bccls_forward.1} parent=5 // pred_check_branch
        %483 = sbr.rel (%p480) target = $region63
      $region62: #{bccls_forward.1} parent=5 // pred_region
        %s484 = ssub.s32 %s12, 1
        %s485 = sand.u32 %s46, 1
        %s486 = sand.u32 %s46, 1
        %s487 = smul.addr %s486, 896
        %s488 = scalar_lea.vmem [#allocation2], %s487
        // Predicated region
        $region64: #{bccls_forward.1} parent=62 // pred_check
          %p489 = pneg %p59
        $region65: #{bccls_forward.1} parent=62 // pred_check_branch
          %491 = sbr.rel (%p489) target = $region67
        $region66: #{bccls_forward.1} parent=62 // pred_region
          _
        $region67: #{bccls_forward.1} parent=62 // pred_fallthru
          _
        %p492 = pneg %p33
        %p493 = pneg %p30
        %s494 = sand.u32 %s46, 1
        %s495 = sand.u32 %s46, 1
        %s496 = smul.addr %s495, 896
        %s497 = scalar_lea.vmem [#allocation2], %s496
        %p498 = pneg %p59
        %p499 = pneg %p56
        %s500 = smul.u32 4, %s17
        %p501 = scmp.lt.s32.totalorder %s500, 7
        %s502 = scalar_select %p501, %s500, 7
        %s503 = scalar_lea.vmem %s2, %s502
        %p504 = pneg %p85
        %p505 = pneg %p82
        %s506 = smul.u32 4, %s17
        %p507 = scmp.lt.s32.totalorder %s506, 7
        %s508 = scalar_select %p507, %s506, 7
        %s509 = scalar_lea.vmem %s3, %s508
        %p510 = pneg %p111
        %p511 = pneg %p108
        %s512 = smul.u32 16, %s17
        %p513 = scmp.lt.s32.totalorder %s512, 31
        %s514 = scalar_select %p513, %s512, 31
        %s515 = smul.addr %s514, 8
        %s516 = scalar_lea.vmem %s4, %s515
        %p517 = pneg %p137
        %p518 = pneg %p134
        %p519 = pneg %p158
        %p520 = pneg %p155
        %p521 = pneg %p179
        %p522 = pneg %p176
        %s523 = smul.u32 4, %s17
        %s524 = smul.u32 4, %s17
        %p525 = scmp.lt.s32.totalorder %s524, 7
        %s526 = scalar_select %p525, %s524, 7
        %s527 = scalar_lea.vmem %s2, %s526
        %s528 = smul.u32 4, %s17
        %s529 = smul.u32 4, %s17
        %p530 = scmp.lt.s32.totalorder %s529, 7
        %s531 = scalar_select %p530, %s529, 7
        %s532 = scalar_lea.vmem %s3, %s531
        %s533 = smul.u32 4, %s17
        %s534 = smul.u32 16, %s17
        %p535 = scmp.lt.s32.totalorder %s534, 31
        %s536 = scalar_select %p535, %s534, 31
        %s537 = smul.addr %s536, 8
        %s538 = scalar_lea.vmem %s4, %s537
        %s539 = smul.u32 16, %s17
        %p540 = scmp.eq.s32.totalorder %s17, 0
        // Predicated region
        $region68: #{bccls_forward.1} parent=62 // pred_check
          %p541 = pneg %p540
        $region69: #{bccls_forward.1} parent=62 // pred_check_branch
          %543 = sbr.rel (%p541) target = $region71
        $region70: #{bccls_forward.1} parent=62 // pred_region
          %v544 = vld [vmem:[%s5] sm:$0x1]
          %v546 = vperm.slane %v544, 0
          %548 = vst [vmem:[%s6] sm:$0xff] %v546
          %549 = vst [vmem:[%s6 + $0x8] sm:$0xff] %v546
          %550 = vst [vmem:[%s6 + $0x10] sm:$0xff] %v546
          %551 = vst [vmem:[%s6 + $0x18] sm:$0xff] %v546
          %552 = vst [vmem:[%s6 + $0x20] sm:$0xff] %v546
          %553 = vst [vmem:[%s6 + $0x28] sm:$0xff] %v546
          %554 = vst [vmem:[%s6 + $0x30] sm:$0xff] %v546
          %555 = vst [vmem:[%s6 + $0x38] sm:$0xff] %v546
          %556 = vst [vmem:[%s6 + $0x40] sm:$0xff] %v546
          %557 = vst [vmem:[%s6 + $0x48] sm:$0xff] %v546
          %558 = vst [vmem:[%s6 + $0x50] sm:$0xff] %v546
          %559 = vst [vmem:[%s6 + $0x58] sm:$0xff] %v546
          %560 = vst [vmem:[%s6 + $0x60] sm:$0xff] %v546
          %561 = vst [vmem:[%s6 + $0x68] sm:$0xff] %v546
          %562 = vst [vmem:[%s6 + $0x70] sm:$0xff] %v546
          %563 = vst [vmem:[%s6 + $0x78] sm:$0xff] %v546
          %564 = vst [vmem:[%s6 + $0x80] sm:$0xff] %v546
          %565 = vst [vmem:[%s6 + $0x88] sm:$0xff] %v546
          %566 = vst [vmem:[%s6 + $0x90] sm:$0xff] %v546
          %567 = vst [vmem:[%s6 + $0x98] sm:$0xff] %v546
          %568 = vst [vmem:[%s6 + $0xa0] sm:$0xff] %v546
          %569 = vst [vmem:[%s6 + $0xa8] sm:$0xff] %v546
          %570 = vst [vmem:[%s6 + $0xb0] sm:$0xff] %v546
          %571 = vst [vmem:[%s6 + $0xb8] sm:$0xff] %v546
          %572 = vst [vmem:[%s6 + $0xc0] sm:$0xff] %v546
          %573 = vst [vmem:[%s6 + $0xc8] sm:$0xff] %v546
          %574 = vst [vmem:[%s6 + $0xd0] sm:$0xff] %v546
          %575 = vst [vmem:[%s6 + $0xd8] sm:$0xff] %v546
          %576 = vst [vmem:[%s6 + $0xe0] sm:$0xff] %v546
          %577 = vst [vmem:[%s6 + $0xe8] sm:$0xff] %v546
          %578 = vst [vmem:[%s6 + $0xf0] sm:$0xff] %v546
          %579 = vst [vmem:[%s6 + $0xf8] sm:$0xff] %v546
        $region71: #{bccls_forward.1} parent=62 // pred_fallthru
          _
        %v580 = vld [vmem:[%s0] sm:$0xff]
        %v581 = vld [vmem:[%s0 + $0x8] sm:$0xff]
        %v582 = vld [vmem:[%s0 + $0x10] sm:$0xff]
        %v583 = vld [vmem:[%s0 + $0x18] sm:$0xf]
        %v584 = vld [vmem:[%s0 + $0x1c] sm:$0xff]
        %v585 = vld [vmem:[%s0 + $0x24] sm:$0xff]
        %v586 = vld [vmem:[%s0 + $0x2c] sm:$0xff]
        %v587 = vld [vmem:[%s0 + $0x34] sm:$0xf]
        %v588 = vld [vmem:[%s0 + $0x38] sm:$0xff]
        %v589 = vld [vmem:[%s0 + $0x40] sm:$0xff]
        %v590 = vld [vmem:[%s0 + $0x48] sm:$0xff]
        %v591 = vld [vmem:[%s0 + $0x50] sm:$0xf]
        %v592 = vld [vmem:[%s0 + $0x54] sm:$0xff]
        %v593 = vld [vmem:[%s0 + $0x5c] sm:$0xff]
        %v594 = vld [vmem:[%s0 + $0x64] sm:$0xff]
        %v595 = vld [vmem:[%s0 + $0x6c] sm:$0xf]
        %v596 = vld [vmem:[%s0 + $0x70] sm:$0xff]
        %v597 = vld [vmem:[%s0 + $0x78] sm:$0xff]
        %v598 = vld [vmem:[%s0 + $0x80] sm:$0xff]
        %v599 = vld [vmem:[%s0 + $0x88] sm:$0xf]
        %v600 = vld [vmem:[%s0 + $0x8c] sm:$0xff]
        %v601 = vld [vmem:[%s0 + $0x94] sm:$0xff]
        %v602 = vld [vmem:[%s0 + $0x9c] sm:$0xff]
        %v603 = vld [vmem:[%s0 + $0xa4] sm:$0xf]
        %v604 = vld [vmem:[%s0 + $0xa8] sm:$0xff]
        %v605 = vld [vmem:[%s0 + $0xb0] sm:$0xff]
        %v606 = vld [vmem:[%s0 + $0xb8] sm:$0xff]
        %v607 = vld [vmem:[%s0 + $0xc0] sm:$0xf]
        %v608 = vld [vmem:[%s0 + $0xc4] sm:$0xff]
        %v609 = vld [vmem:[%s0 + $0xcc] sm:$0xff]
        %v610 = vld [vmem:[%s0 + $0xd4] sm:$0xff]
        %v611 = vld [vmem:[%s0 + $0xdc] sm:$0xf]
        %v612 = vld [vmem:[%s0 + $0xe0] sm:$0xff]
        %v613 = vld [vmem:[%s0 + $0xe8] sm:$0xff]
        %v614 = vld [vmem:[%s0 + $0xf0] sm:$0xff]
        %v615 = vld [vmem:[%s0 + $0xf8] sm:$0xf]
        %v616 = vld [vmem:[%s0 + $0xfc] sm:$0xff]
        %v617 = vld [vmem:[%s0 + $0x104] sm:$0xff]
        %v618 = vld [vmem:[%s0 + $0x10c] sm:$0xff]
        %v619 = vld [vmem:[%s0 + $0x114] sm:$0xf]
        %v620 = vld [vmem:[%s0 + $0x118] sm:$0xff]
        %v621 = vld [vmem:[%s0 + $0x120] sm:$0xff]
        %v622 = vld [vmem:[%s0 + $0x128] sm:$0xff]
        %v623 = vld [vmem:[%s0 + $0x130] sm:$0xf]
        %v624 = vld [vmem:[%s0 + $0x134] sm:$0xff]
        %v625 = vld [vmem:[%s0 + $0x13c] sm:$0xff]
        %v626 = vld [vmem:[%s0 + $0x144] sm:$0xff]
        %v627 = vld [vmem:[%s0 + $0x14c] sm:$0xf]
        %v628 = vld [vmem:[%s0 + $0x150] sm:$0xff]
        %v629 = vld [vmem:[%s0 + $0x158] sm:$0xff]
        %v630 = vld [vmem:[%s0 + $0x160] sm:$0xff]
        %v631 = vld [vmem:[%s0 + $0x168] sm:$0xf]
        %v632 = vld [vmem:[%s0 + $0x16c] sm:$0xff]
        %v633 = vld [vmem:[%s0 + $0x174] sm:$0xff]
        %v634 = vld [vmem:[%s0 + $0x17c] sm:$0xff]
        %v635 = vld [vmem:[%s0 + $0x184] sm:$0xf]
        %v636 = vld [vmem:[%s0 + $0x188] sm:$0xff]
        %v637 = vld [vmem:[%s0 + $0x190] sm:$0xff]
        %v638 = vld [vmem:[%s0 + $0x198] sm:$0xff]
        %v639 = vld [vmem:[%s0 + $0x1a0] sm:$0xf]
        %v640 = vld [vmem:[%s0 + $0x1a4] sm:$0xff]
        %v641 = vld [vmem:[%s0 + $0x1ac] sm:$0xff]
        %v642 = vld [vmem:[%s0 + $0x1b4] sm:$0xff]
        %v643 = vld [vmem:[%s0 + $0x1bc] sm:$0xf]
        %v644 = vld [vmem:[%s0 + $0x1c0] sm:$0xff]
        %v645 = vld [vmem:[%s0 + $0x1c8] sm:$0xff]
        %v646 = vld [vmem:[%s0 + $0x1d0] sm:$0xff]
        %v647 = vld [vmem:[%s0 + $0x1d8] sm:$0xf]
        %v648 = vld [vmem:[%s0 + $0x1dc] sm:$0xff]
        %v649 = vld [vmem:[%s0 + $0x1e4] sm:$0xff]
        %v650 = vld [vmem:[%s0 + $0x1ec] sm:$0xff]
        %v651 = vld [vmem:[%s0 + $0x1f4] sm:$0xf]
        %v652 = vld [vmem:[%s0 + $0x1f8] sm:$0xff]
        %v653 = vld [vmem:[%s0 + $0x200] sm:$0xff]
        %v654 = vld [vmem:[%s0 + $0x208] sm:$0xff]
        %v655 = vld [vmem:[%s0 + $0x210] sm:$0xf]
        %v656 = vld [vmem:[%s0 + $0x214] sm:$0xff]
        %v657 = vld [vmem:[%s0 + $0x21c] sm:$0xff]
        %v658 = vld [vmem:[%s0 + $0x224] sm:$0xff]
        %v659 = vld [vmem:[%s0 + $0x22c] sm:$0xf]
        %v660 = vld [vmem:[%s0 + $0x230] sm:$0xff]
        %v661 = vld [vmem:[%s0 + $0x238] sm:$0xff]
        %v662 = vld [vmem:[%s0 + $0x240] sm:$0xff]
        %v663 = vld [vmem:[%s0 + $0x248] sm:$0xf]
        %v664 = vld [vmem:[%s0 + $0x24c] sm:$0xff]
        %v665 = vld [vmem:[%s0 + $0x254] sm:$0xff]
        %v666 = vld [vmem:[%s0 + $0x25c] sm:$0xff]
        %v667 = vld [vmem:[%s0 + $0x264] sm:$0xf]
        %v668 = vld [vmem:[%s0 + $0x268] sm:$0xff]
        %v669 = vld [vmem:[%s0 + $0x270] sm:$0xff]
        %v670 = vld [vmem:[%s0 + $0x278] sm:$0xff]
        %v671 = vld [vmem:[%s0 + $0x280] sm:$0xf]
        %v672 = vld [vmem:[%s0 + $0x284] sm:$0xff]
        %v673 = vld [vmem:[%s0 + $0x28c] sm:$0xff]
        %v674 = vld [vmem:[%s0 + $0x294] sm:$0xff]
        %v675 = vld [vmem:[%s0 + $0x29c] sm:$0xf]
        %v676 = vld [vmem:[%s0 + $0x2a0] sm:$0xff]
        %v677 = vld [vmem:[%s0 + $0x2a8] sm:$0xff]
        %v678 = vld [vmem:[%s0 + $0x2b0] sm:$0xff]
        %v679 = vld [vmem:[%s0 + $0x2b8] sm:$0xf]
        %v680 = vld [vmem:[%s0 + $0x2bc] sm:$0xff]
        %v681 = vld [vmem:[%s0 + $0x2c4] sm:$0xff]
        %v682 = vld [vmem:[%s0 + $0x2cc] sm:$0xff]
        %v683 = vld [vmem:[%s0 + $0x2d4] sm:$0xf]
        %v684 = vld [vmem:[%s0 + $0x2d8] sm:$0xff]
        %v685 = vld [vmem:[%s0 + $0x2e0] sm:$0xff]
        %v686 = vld [vmem:[%s0 + $0x2e8] sm:$0xff]
        %v687 = vld [vmem:[%s0 + $0x2f0] sm:$0xf]
        %v688 = vld [vmem:[%s0 + $0x2f4] sm:$0xff]
        %v689 = vld [vmem:[%s0 + $0x2fc] sm:$0xff]
        %v690 = vld [vmem:[%s0 + $0x304] sm:$0xff]
        %v691 = vld [vmem:[%s0 + $0x30c] sm:$0xf]
        %v692 = vld [vmem:[%s0 + $0x310] sm:$0xff]
        %v693 = vld [vmem:[%s0 + $0x318] sm:$0xff]
        %v694 = vld [vmem:[%s0 + $0x320] sm:$0xff]
        %v695 = vld [vmem:[%s0 + $0x328] sm:$0xf]
        %v696 = vld [vmem:[%s0 + $0x32c] sm:$0xff]
        %v697 = vld [vmem:[%s0 + $0x334] sm:$0xff]
        %v698 = vld [vmem:[%s0 + $0x33c] sm:$0xff]
        %v699 = vld [vmem:[%s0 + $0x344] sm:$0xf]
        %v700 = vld [vmem:[%s0 + $0x348] sm:$0xff]
        %v701 = vld [vmem:[%s0 + $0x350] sm:$0xff]
        %v702 = vld [vmem:[%s0 + $0x358] sm:$0xff]
        %v703 = vld [vmem:[%s0 + $0x360] sm:$0xf]
        %v704 = vld [vmem:[%s0 + $0x364] sm:$0xff]
        %v705 = vld [vmem:[%s0 + $0x36c] sm:$0xff]
        %v706 = vld [vmem:[%s0 + $0x374] sm:$0xff]
        %v707 = vld [vmem:[%s0 + $0x37c] sm:$0xf]
        %v708 = vld [vmem:[%s488] sm:$0xff]
        %v709 = vld [vmem:[%s488 + $0x8] sm:$0xff]
        %v710 = vld [vmem:[%s488 + $0x10] sm:$0xff]
        %v711 = vld [vmem:[%s488 + $0x18] sm:$0xff]
        %v712 = vld [vmem:[%s488 + $0x20] sm:$0xff]
        %v713 = vld [vmem:[%s488 + $0x28] sm:$0xff]
        %v714 = vld [vmem:[%s488 + $0x30] sm:$0xff]
        %v715 = vld [vmem:[%s488 + $0x38] sm:$0xff]
        %v716 = vld [vmem:[%s488 + $0x40] sm:$0xff]
        %v717 = vld [vmem:[%s488 + $0x48] sm:$0xff]
        %v718 = vld [vmem:[%s488 + $0x50] sm:$0xff]
        %v719 = vld [vmem:[%s488 + $0x58] sm:$0xff]
        %v720 = vld [vmem:[%s488 + $0x60] sm:$0xff]
        %v721 = vld [vmem:[%s488 + $0x68] sm:$0xff]
        %v722 = vld [vmem:[%s488 + $0x70] sm:$0xff]
        %v723 = vld [vmem:[%s488 + $0x78] sm:$0xff]
        %v724 = vld [vmem:[%s488 + $0x80] sm:$0xff]
        %v725 = vld [vmem:[%s488 + $0x88] sm:$0xff]
        %v726 = vld [vmem:[%s488 + $0x90] sm:$0xff]
        %v727 = vld [vmem:[%s488 + $0x98] sm:$0xff]
        %v728 = vld [vmem:[%s488 + $0xa0] sm:$0xff]
        %v729 = vld [vmem:[%s488 + $0xa8] sm:$0xff]
        %v730 = vld [vmem:[%s488 + $0xb0] sm:$0xff]
        %v731 = vld [vmem:[%s488 + $0xb8] sm:$0xff]
        %v732 = vld [vmem:[%s488 + $0xc0] sm:$0xff]
        %v733 = vld [vmem:[%s488 + $0xc8] sm:$0xff]
        %v734 = vld [vmem:[%s488 + $0xd0] sm:$0xff]
        %v735 = vld [vmem:[%s488 + $0xd8] sm:$0xff]
        %v736 = vld [vmem:[%s488 + $0xe0] sm:$0xff]
        %v737 = vld [vmem:[%s488 + $0xe8] sm:$0xff]
        %v738 = vld [vmem:[%s488 + $0xf0] sm:$0xff]
        %v739 = vld [vmem:[%s488 + $0xf8] sm:$0xff]
        %v740 = vld [vmem:[%s488 + $0x100] sm:$0xff]
        %v741 = vld [vmem:[%s488 + $0x108] sm:$0xff]
        %v742 = vld [vmem:[%s488 + $0x110] sm:$0xff]
        %v743 = vld [vmem:[%s488 + $0x118] sm:$0xff]
        %v744 = vld [vmem:[%s488 + $0x120] sm:$0xff]
        %v745 = vld [vmem:[%s488 + $0x128] sm:$0xff]
        %v746 = vld [vmem:[%s488 + $0x130] sm:$0xff]
        %v747 = vld [vmem:[%s488 + $0x138] sm:$0xff]
        %v748 = vld [vmem:[%s488 + $0x140] sm:$0xff]
        %v749 = vld [vmem:[%s488 + $0x148] sm:$0xff]
        %v750 = vld [vmem:[%s488 + $0x150] sm:$0xff]
        %v751 = vld [vmem:[%s488 + $0x158] sm:$0xff]
        %v752 = vld [vmem:[%s488 + $0x160] sm:$0xff]
        %v753 = vld [vmem:[%s488 + $0x168] sm:$0xff]
        %v754 = vld [vmem:[%s488 + $0x170] sm:$0xff]
        %v755 = vld [vmem:[%s488 + $0x178] sm:$0xff]
        %v756 = vld [vmem:[%s488 + $0x180] sm:$0xff]
        %v757 = vld [vmem:[%s488 + $0x188] sm:$0xff]
        %v758 = vld [vmem:[%s488 + $0x190] sm:$0xff]
        %v759 = vld [vmem:[%s488 + $0x198] sm:$0xff]
        %v760 = vld [vmem:[%s488 + $0x1a0] sm:$0xff]
        %v761 = vld [vmem:[%s488 + $0x1a8] sm:$0xff]
        %v762 = vld [vmem:[%s488 + $0x1b0] sm:$0xff]
        %v763 = vld [vmem:[%s488 + $0x1b8] sm:$0xff]
        %v764 = vld [vmem:[%s488 + $0x1c0] sm:$0xff]
        %v765 = vld [vmem:[%s488 + $0x1c8] sm:$0xff]
        %v766 = vld [vmem:[%s488 + $0x1d0] sm:$0xff]
        %v767 = vld [vmem:[%s488 + $0x1d8] sm:$0xff]
        %v768 = vld [vmem:[%s488 + $0x1e0] sm:$0xff]
        %v769 = vld [vmem:[%s488 + $0x1e8] sm:$0xff]
        %v770 = vld [vmem:[%s488 + $0x1f0] sm:$0xff]
        %v771 = vld [vmem:[%s488 + $0x1f8] sm:$0xff]
        %v772 = vld [vmem:[%s488 + $0x200] sm:$0xff]
        %v773 = vld [vmem:[%s488 + $0x208] sm:$0xff]
        %v774 = vld [vmem:[%s488 + $0x210] sm:$0xff]
        %v775 = vld [vmem:[%s488 + $0x218] sm:$0xff]
        %v776 = vld [vmem:[%s488 + $0x220] sm:$0xff]
        %v777 = vld [vmem:[%s488 + $0x228] sm:$0xff]
        %v778 = vld [vmem:[%s488 + $0x230] sm:$0xff]
        %v779 = vld [vmem:[%s488 + $0x238] sm:$0xff]
        %v780 = vld [vmem:[%s488 + $0x240] sm:$0xff]
        %v781 = vld [vmem:[%s488 + $0x248] sm:$0xff]
        %v782 = vld [vmem:[%s488 + $0x250] sm:$0xff]
        %v783 = vld [vmem:[%s488 + $0x258] sm:$0xff]
        %v784 = vld [vmem:[%s488 + $0x260] sm:$0xff]
        %v785 = vld [vmem:[%s488 + $0x268] sm:$0xff]
        %v786 = vld [vmem:[%s488 + $0x270] sm:$0xff]
        %v787 = vld [vmem:[%s488 + $0x278] sm:$0xff]
        %v788 = vld [vmem:[%s488 + $0x280] sm:$0xff]
        %v789 = vld [vmem:[%s488 + $0x288] sm:$0xff]
        %v790 = vld [vmem:[%s488 + $0x290] sm:$0xff]
        %v791 = vld [vmem:[%s488 + $0x298] sm:$0xff]
        %v792 = vld [vmem:[%s488 + $0x2a0] sm:$0xff]
        %v793 = vld [vmem:[%s488 + $0x2a8] sm:$0xff]
        %v794 = vld [vmem:[%s488 + $0x2b0] sm:$0xff]
        %v795 = vld [vmem:[%s488 + $0x2b8] sm:$0xff]
        %v796 = vld [vmem:[%s488 + $0x2c0] sm:$0xff]
        %v797 = vld [vmem:[%s488 + $0x2c8] sm:$0xff]
        %v798 = vld [vmem:[%s488 + $0x2d0] sm:$0xff]
        %v799 = vld [vmem:[%s488 + $0x2d8] sm:$0xff]
        %v800 = vld [vmem:[%s488 + $0x2e0] sm:$0xff]
        %v801 = vld [vmem:[%s488 + $0x2e8] sm:$0xff]
        %v802 = vld [vmem:[%s488 + $0x2f0] sm:$0xff]
        %v803 = vld [vmem:[%s488 + $0x2f8] sm:$0xff]
        %v804 = vld [vmem:[%s488 + $0x300] sm:$0xff]
        %v805 = vld [vmem:[%s488 + $0x308] sm:$0xff]
        %v806 = vld [vmem:[%s488 + $0x310] sm:$0xff]
        %v807 = vld [vmem:[%s488 + $0x318] sm:$0xff]
        %v808 = vld [vmem:[%s488 + $0x320] sm:$0xff]
        %v809 = vld [vmem:[%s488 + $0x328] sm:$0xff]
        %v810 = vld [vmem:[%s488 + $0x330] sm:$0xff]
        %v811 = vld [vmem:[%s488 + $0x338] sm:$0xff]
        %v812 = vld [vmem:[%s488 + $0x340] sm:$0xff]
        %v813 = vld [vmem:[%s488 + $0x348] sm:$0xff]
        %v814 = vld [vmem:[%s488 + $0x350] sm:$0xff]
        %v815 = vld [vmem:[%s488 + $0x358] sm:$0xff]
        %v816 = vld [vmem:[%s488 + $0x360] sm:$0xff]
        %v817 = vld [vmem:[%s488 + $0x368] sm:$0xff]
        %v818 = vld [vmem:[%s488 + $0x370] sm:$0xff]
        %v819 = vld [vmem:[%s488 + $0x378] sm:$0xff]
        %v820 = vunpack.c.0.s8 %v708
        %v821 = vunpack.c.0.s8 %v709
        %v822 = vunpack.c.0.s8 %v710
        %v823 = vunpack.c.0.s8 %v711
        %v824 = vunpack.c.1.s8 %v708
        %v825 = vunpack.c.1.s8 %v709
        %v826 = vunpack.c.1.s8 %v710
        %v827 = vunpack.c.1.s8 %v711
        %v828 = vunpack.c.2.s8 %v708
        %v829 = vunpack.c.2.s8 %v709
        %v830 = vunpack.c.2.s8 %v710
        %v831 = vunpack.c.2.s8 %v711
        %v832 = vunpack.c.3.s8 %v708
        %v833 = vunpack.c.3.s8 %v709
        %v834 = vunpack.c.3.s8 %v710
        %v835 = vunpack.c.3.s8 %v711
        %v836 = vunpack.c.0.s8 %v712
        %v837 = vunpack.c.0.s8 %v713
        %v838 = vunpack.c.0.s8 %v714
        %v839 = vunpack.c.0.s8 %v715
        %v840 = vunpack.c.1.s8 %v712
        %v841 = vunpack.c.1.s8 %v713
        %v842 = vunpack.c.1.s8 %v714
        %v843 = vunpack.c.1.s8 %v715
        %v844 = vunpack.c.2.s8 %v712
        %v845 = vunpack.c.2.s8 %v713
        %v846 = vunpack.c.2.s8 %v714
        %v847 = vunpack.c.2.s8 %v715
        %v848 = vunpack.c.3.s8 %v712
        %v849 = vunpack.c.3.s8 %v713
        %v850 = vunpack.c.3.s8 %v714
        %v851 = vunpack.c.3.s8 %v715
        %v852 = vunpack.c.0.s8 %v716
        %v853 = vunpack.c.0.s8 %v717
        %v854 = vunpack.c.0.s8 %v718
        %v855 = vunpack.c.0.s8 %v719
        %v856 = vunpack.c.1.s8 %v716
        %v857 = vunpack.c.1.s8 %v717
        %v858 = vunpack.c.1.s8 %v718
        %v859 = vunpack.c.1.s8 %v719
        %v860 = vunpack.c.2.s8 %v716
        %v861 = vunpack.c.2.s8 %v717
        %v862 = vunpack.c.2.s8 %v718
        %v863 = vunpack.c.2.s8 %v719
        %v864 = vunpack.c.3.s8 %v716
        %v865 = vunpack.c.3.s8 %v717
        %v866 = vunpack.c.3.s8 %v718
        %v867 = vunpack.c.3.s8 %v719
        %v868 = vunpack.c.0.s8 %v720
        %v869 = vunpack.c.0.s8 %v721
        %v870 = vunpack.c.0.s8 %v722
        %v871 = vunpack.c.0.s8 %v723
        %v872 = vunpack.c.1.s8 %v720
        %v873 = vunpack.c.1.s8 %v721
        %v874 = vunpack.c.1.s8 %v722
        %v875 = vunpack.c.1.s8 %v723
        %v876 = vunpack.c.2.s8 %v720
        %v877 = vunpack.c.2.s8 %v721
        %v878 = vunpack.c.2.s8 %v722
        %v879 = vunpack.c.2.s8 %v723
        %v880 = vunpack.c.3.s8 %v720
        %v881 = vunpack.c.3.s8 %v721
        %v882 = vunpack.c.3.s8 %v722
        %v883 = vunpack.c.3.s8 %v723
        %v884 = vunpack.c.0.s8 %v724
        %v885 = vunpack.c.0.s8 %v725
        %v886 = vunpack.c.0.s8 %v726
        %v887 = vunpack.c.0.s8 %v727
        %v888 = vunpack.c.1.s8 %v724
        %v889 = vunpack.c.1.s8 %v725
        %v890 = vunpack.c.1.s8 %v726
        %v891 = vunpack.c.1.s8 %v727
        %v892 = vunpack.c.2.s8 %v724
        %v893 = vunpack.c.2.s8 %v725
        %v894 = vunpack.c.2.s8 %v726
        %v895 = vunpack.c.2.s8 %v727
        %v896 = vunpack.c.3.s8 %v724
        %v897 = vunpack.c.3.s8 %v725
        %v898 = vunpack.c.3.s8 %v726
        %v899 = vunpack.c.3.s8 %v727
        %v900 = vunpack.c.0.s8 %v728
        %v901 = vunpack.c.0.s8 %v729
        %v902 = vunpack.c.0.s8 %v730
        %v903 = vunpack.c.0.s8 %v731
        %v904 = vunpack.c.1.s8 %v728
        %v905 = vunpack.c.1.s8 %v729
        %v906 = vunpack.c.1.s8 %v730
        %v907 = vunpack.c.1.s8 %v731
        %v908 = vunpack.c.2.s8 %v728
        %v909 = vunpack.c.2.s8 %v729
        %v910 = vunpack.c.2.s8 %v730
        %v911 = vunpack.c.2.s8 %v731
        %v912 = vunpack.c.3.s8 %v728
        %v913 = vunpack.c.3.s8 %v729
        %v914 = vunpack.c.3.s8 %v730
        %v915 = vunpack.c.3.s8 %v731
        %v916 = vunpack.c.0.s8 %v732
        %v917 = vunpack.c.0.s8 %v733
        %v918 = vunpack.c.0.s8 %v734
        %v919 = vunpack.c.0.s8 %v735
        %v920 = vunpack.c.1.s8 %v732
        %v921 = vunpack.c.1.s8 %v733
        %v922 = vunpack.c.1.s8 %v734
        %v923 = vunpack.c.1.s8 %v735
        %v924 = vunpack.c.2.s8 %v732
        %v925 = vunpack.c.2.s8 %v733
        %v926 = vunpack.c.2.s8 %v734
        %v927 = vunpack.c.2.s8 %v735
        %v928 = vunpack.c.3.s8 %v732
        %v929 = vunpack.c.3.s8 %v733
        %v930 = vunpack.c.3.s8 %v734
        %v931 = vunpack.c.3.s8 %v735
        %v932 = vunpack.c.0.s8 %v736
        %v933 = vunpack.c.0.s8 %v737
        %v934 = vunpack.c.0.s8 %v738
        %v935 = vunpack.c.0.s8 %v739
        %v936 = vunpack.c.1.s8 %v736
        %v937 = vunpack.c.1.s8 %v737
        %v938 = vunpack.c.1.s8 %v738
        %v939 = vunpack.c.1.s8 %v739
        %v940 = vunpack.c.2.s8 %v736
        %v941 = vunpack.c.2.s8 %v737
        %v942 = vunpack.c.2.s8 %v738
        %v943 = vunpack.c.2.s8 %v739
        %v944 = vunpack.c.3.s8 %v736
        %v945 = vunpack.c.3.s8 %v737
        %v946 = vunpack.c.3.s8 %v738
        %v947 = vunpack.c.3.s8 %v739
        %v948 = vunpack.c.0.s8 %v740
        %v949 = vunpack.c.0.s8 %v741
        %v950 = vunpack.c.0.s8 %v742
        %v951 = vunpack.c.0.s8 %v743
        %v952 = vunpack.c.1.s8 %v740
        %v953 = vunpack.c.1.s8 %v741
        %v954 = vunpack.c.1.s8 %v742
        %v955 = vunpack.c.1.s8 %v743
        %v956 = vunpack.c.2.s8 %v740
        %v957 = vunpack.c.2.s8 %v741
        %v958 = vunpack.c.2.s8 %v742
        %v959 = vunpack.c.2.s8 %v743
        %v960 = vunpack.c.3.s8 %v740
        %v961 = vunpack.c.3.s8 %v741
        %v962 = vunpack.c.3.s8 %v742
        %v963 = vunpack.c.3.s8 %v743
        %v964 = vunpack.c.0.s8 %v744
        %v965 = vunpack.c.0.s8 %v745
        %v966 = vunpack.c.0.s8 %v746
        %v967 = vunpack.c.0.s8 %v747
        %v968 = vunpack.c.1.s8 %v744
        %v969 = vunpack.c.1.s8 %v745
        %v970 = vunpack.c.1.s8 %v746
        %v971 = vunpack.c.1.s8 %v747
        %v972 = vunpack.c.2.s8 %v744
        %v973 = vunpack.c.2.s8 %v745
        %v974 = vunpack.c.2.s8 %v746
        %v975 = vunpack.c.2.s8 %v747
        %v976 = vunpack.c.3.s8 %v744
        %v977 = vunpack.c.3.s8 %v745
        %v978 = vunpack.c.3.s8 %v746
        %v979 = vunpack.c.3.s8 %v747
        %v980 = vunpack.c.0.s8 %v748
        %v981 = vunpack.c.0.s8 %v749
        %v982 = vunpack.c.0.s8 %v750
        %v983 = vunpack.c.0.s8 %v751
        %v984 = vunpack.c.1.s8 %v748
        %v985 = vunpack.c.1.s8 %v749
        %v986 = vunpack.c.1.s8 %v750
        %v987 = vunpack.c.1.s8 %v751
        %v988 = vunpack.c.2.s8 %v748
        %v989 = vunpack.c.2.s8 %v749
        %v990 = vunpack.c.2.s8 %v750
        %v991 = vunpack.c.2.s8 %v751
        %v992 = vunpack.c.3.s8 %v748
        %v993 = vunpack.c.3.s8 %v749
        %v994 = vunpack.c.3.s8 %v750
        %v995 = vunpack.c.3.s8 %v751
        %v996 = vunpack.c.0.s8 %v752
        %v997 = vunpack.c.0.s8 %v753
        %v998 = vunpack.c.0.s8 %v754
        %v999 = vunpack.c.0.s8 %v755
        %v1000 = vunpack.c.1.s8 %v752
        %v1001 = vunpack.c.1.s8 %v753
        %v1002 = vunpack.c.1.s8 %v754
        %v1003 = vunpack.c.1.s8 %v755
        %v1004 = vunpack.c.2.s8 %v752
        %v1005 = vunpack.c.2.s8 %v753
        %v1006 = vunpack.c.2.s8 %v754
        %v1007 = vunpack.c.2.s8 %v755
        %v1008 = vunpack.c.3.s8 %v752
        %v1009 = vunpack.c.3.s8 %v753
        %v1010 = vunpack.c.3.s8 %v754
        %v1011 = vunpack.c.3.s8 %v755
        %v1012 = vunpack.c.0.s8 %v756
        %v1013 = vunpack.c.0.s8 %v757
        %v1014 = vunpack.c.0.s8 %v758
        %v1015 = vunpack.c.0.s8 %v759
        %v1016 = vunpack.c.1.s8 %v756
        %v1017 = vunpack.c.1.s8 %v757
        %v1018 = vunpack.c.1.s8 %v758
        %v1019 = vunpack.c.1.s8 %v759
        %v1020 = vunpack.c.2.s8 %v756
        %v1021 = vunpack.c.2.s8 %v757
        %v1022 = vunpack.c.2.s8 %v758
        %v1023 = vunpack.c.2.s8 %v759
        %v1024 = vunpack.c.3.s8 %v756
        %v1025 = vunpack.c.3.s8 %v757
        %v1026 = vunpack.c.3.s8 %v758
        %v1027 = vunpack.c.3.s8 %v759
        %v1028 = vunpack.c.0.s8 %v760
        %v1029 = vunpack.c.0.s8 %v761
        %v1030 = vunpack.c.0.s8 %v762
        %v1031 = vunpack.c.0.s8 %v763
        %v1032 = vunpack.c.1.s8 %v760
        %v1033 = vunpack.c.1.s8 %v761
        %v1034 = vunpack.c.1.s8 %v762
        %v1035 = vunpack.c.1.s8 %v763
        %v1036 = vunpack.c.2.s8 %v760
        %v1037 = vunpack.c.2.s8 %v761
        %v1038 = vunpack.c.2.s8 %v762
        %v1039 = vunpack.c.2.s8 %v763
        %v1040 = vunpack.c.3.s8 %v760
        %v1041 = vunpack.c.3.s8 %v761
        %v1042 = vunpack.c.3.s8 %v762
        %v1043 = vunpack.c.3.s8 %v763
        %v1044 = vunpack.c.0.s8 %v764
        %v1045 = vunpack.c.0.s8 %v765
        %v1046 = vunpack.c.0.s8 %v766
        %v1047 = vunpack.c.0.s8 %v767
        %v1048 = vunpack.c.1.s8 %v764
        %v1049 = vunpack.c.1.s8 %v765
        %v1050 = vunpack.c.1.s8 %v766
        %v1051 = vunpack.c.1.s8 %v767
        %v1052 = vunpack.c.2.s8 %v764
        %v1053 = vunpack.c.2.s8 %v765
        %v1054 = vunpack.c.2.s8 %v766
        %v1055 = vunpack.c.2.s8 %v767
        %v1056 = vunpack.c.3.s8 %v764
        %v1057 = vunpack.c.3.s8 %v765
        %v1058 = vunpack.c.3.s8 %v766
        %v1059 = vunpack.c.3.s8 %v767
        %v1060 = vunpack.c.0.s8 %v768
        %v1061 = vunpack.c.0.s8 %v769
        %v1062 = vunpack.c.0.s8 %v770
        %v1063 = vunpack.c.0.s8 %v771
        %v1064 = vunpack.c.1.s8 %v768
        %v1065 = vunpack.c.1.s8 %v769
        %v1066 = vunpack.c.1.s8 %v770
        %v1067 = vunpack.c.1.s8 %v771
        %v1068 = vunpack.c.2.s8 %v768
        %v1069 = vunpack.c.2.s8 %v769
        %v1070 = vunpack.c.2.s8 %v770
        %v1071 = vunpack.c.2.s8 %v771
        %v1072 = vunpack.c.3.s8 %v768
        %v1073 = vunpack.c.3.s8 %v769
        %v1074 = vunpack.c.3.s8 %v770
        %v1075 = vunpack.c.3.s8 %v771
        %v1076 = vunpack.c.0.s8 %v772
        %v1077 = vunpack.c.0.s8 %v773
        %v1078 = vunpack.c.0.s8 %v774
        %v1079 = vunpack.c.0.s8 %v775
        %v1080 = vunpack.c.1.s8 %v772
        %v1081 = vunpack.c.1.s8 %v773
        %v1082 = vunpack.c.1.s8 %v774
        %v1083 = vunpack.c.1.s8 %v775
        %v1084 = vunpack.c.2.s8 %v772
        %v1085 = vunpack.c.2.s8 %v773
        %v1086 = vunpack.c.2.s8 %v774
        %v1087 = vunpack.c.2.s8 %v775
        %v1088 = vunpack.c.3.s8 %v772
        %v1089 = vunpack.c.3.s8 %v773
        %v1090 = vunpack.c.3.s8 %v774
        %v1091 = vunpack.c.3.s8 %v775
        %v1092 = vunpack.c.0.s8 %v776
        %v1093 = vunpack.c.0.s8 %v777
        %v1094 = vunpack.c.0.s8 %v778
        %v1095 = vunpack.c.0.s8 %v779
        %v1096 = vunpack.c.1.s8 %v776
        %v1097 = vunpack.c.1.s8 %v777
        %v1098 = vunpack.c.1.s8 %v778
        %v1099 = vunpack.c.1.s8 %v779
        %v1100 = vunpack.c.2.s8 %v776
        %v1101 = vunpack.c.2.s8 %v777
        %v1102 = vunpack.c.2.s8 %v778
        %v1103 = vunpack.c.2.s8 %v779
        %v1104 = vunpack.c.3.s8 %v776
        %v1105 = vunpack.c.3.s8 %v777
        %v1106 = vunpack.c.3.s8 %v778
        %v1107 = vunpack.c.3.s8 %v779
        %v1108 = vunpack.c.0.s8 %v780
        %v1109 = vunpack.c.0.s8 %v781
        %v1110 = vunpack.c.0.s8 %v782
        %v1111 = vunpack.c.0.s8 %v783
        %v1112 = vunpack.c.1.s8 %v780
        %v1113 = vunpack.c.1.s8 %v781
        %v1114 = vunpack.c.1.s8 %v782
        %v1115 = vunpack.c.1.s8 %v783
        %v1116 = vunpack.c.2.s8 %v780
        %v1117 = vunpack.c.2.s8 %v781
        %v1118 = vunpack.c.2.s8 %v782
        %v1119 = vunpack.c.2.s8 %v783
        %v1120 = vunpack.c.3.s8 %v780
        %v1121 = vunpack.c.3.s8 %v781
        %v1122 = vunpack.c.3.s8 %v782
        %v1123 = vunpack.c.3.s8 %v783
        %v1124 = vunpack.c.0.s8 %v784
        %v1125 = vunpack.c.0.s8 %v785
        %v1126 = vunpack.c.0.s8 %v786
        %v1127 = vunpack.c.0.s8 %v787
        %v1128 = vunpack.c.1.s8 %v784
        %v1129 = vunpack.c.1.s8 %v785
        %v1130 = vunpack.c.1.s8 %v786
        %v1131 = vunpack.c.1.s8 %v787
        %v1132 = vunpack.c.2.s8 %v784
        %v1133 = vunpack.c.2.s8 %v785
        %v1134 = vunpack.c.2.s8 %v786
        %v1135 = vunpack.c.2.s8 %v787
        %v1136 = vunpack.c.3.s8 %v784
        %v1137 = vunpack.c.3.s8 %v785
        %v1138 = vunpack.c.3.s8 %v786
        %v1139 = vunpack.c.3.s8 %v787
        %v1140 = vunpack.c.0.s8 %v788
        %v1141 = vunpack.c.0.s8 %v789
        %v1142 = vunpack.c.0.s8 %v790
        %v1143 = vunpack.c.0.s8 %v791
        %v1144 = vunpack.c.1.s8 %v788
        %v1145 = vunpack.c.1.s8 %v789
        %v1146 = vunpack.c.1.s8 %v790
        %v1147 = vunpack.c.1.s8 %v791
        %v1148 = vunpack.c.2.s8 %v788
        %v1149 = vunpack.c.2.s8 %v789
        %v1150 = vunpack.c.2.s8 %v790
        %v1151 = vunpack.c.2.s8 %v791
        %v1152 = vunpack.c.3.s8 %v788
        %v1153 = vunpack.c.3.s8 %v789
        %v1154 = vunpack.c.3.s8 %v790
        %v1155 = vunpack.c.3.s8 %v791
        %v1156 = vunpack.c.0.s8 %v792
        %v1157 = vunpack.c.0.s8 %v793
        %v1158 = vunpack.c.0.s8 %v794
        %v1159 = vunpack.c.0.s8 %v795
        %v1160 = vunpack.c.1.s8 %v792
        %v1161 = vunpack.c.1.s8 %v793
        %v1162 = vunpack.c.1.s8 %v794
        %v1163 = vunpack.c.1.s8 %v795
        %v1164 = vunpack.c.2.s8 %v792
        %v1165 = vunpack.c.2.s8 %v793
        %v1166 = vunpack.c.2.s8 %v794
        %v1167 = vunpack.c.2.s8 %v795
        %v1168 = vunpack.c.3.s8 %v792
        %v1169 = vunpack.c.3.s8 %v793
        %v1170 = vunpack.c.3.s8 %v794
        %v1171 = vunpack.c.3.s8 %v795
        %v1172 = vunpack.c.0.s8 %v796
        %v1173 = vunpack.c.0.s8 %v797
        %v1174 = vunpack.c.0.s8 %v798
        %v1175 = vunpack.c.0.s8 %v799
        %v1176 = vunpack.c.1.s8 %v796
        %v1177 = vunpack.c.1.s8 %v797
        %v1178 = vunpack.c.1.s8 %v798
        %v1179 = vunpack.c.1.s8 %v799
        %v1180 = vunpack.c.2.s8 %v796
        %v1181 = vunpack.c.2.s8 %v797
        %v1182 = vunpack.c.2.s8 %v798
        %v1183 = vunpack.c.2.s8 %v799
        %v1184 = vunpack.c.3.s8 %v796
        %v1185 = vunpack.c.3.s8 %v797
        %v1186 = vunpack.c.3.s8 %v798
        %v1187 = vunpack.c.3.s8 %v799
        %v1188 = vunpack.c.0.s8 %v800
        %v1189 = vunpack.c.0.s8 %v801
        %v1190 = vunpack.c.0.s8 %v802
        %v1191 = vunpack.c.0.s8 %v803
        %v1192 = vunpack.c.1.s8 %v800
        %v1193 = vunpack.c.1.s8 %v801
        %v1194 = vunpack.c.1.s8 %v802
        %v1195 = vunpack.c.1.s8 %v803
        %v1196 = vunpack.c.2.s8 %v800
        %v1197 = vunpack.c.2.s8 %v801
        %v1198 = vunpack.c.2.s8 %v802
        %v1199 = vunpack.c.2.s8 %v803
        %v1200 = vunpack.c.3.s8 %v800
        %v1201 = vunpack.c.3.s8 %v801
        %v1202 = vunpack.c.3.s8 %v802
        %v1203 = vunpack.c.3.s8 %v803
        %v1204 = vunpack.c.0.s8 %v804
        %v1205 = vunpack.c.0.s8 %v805
        %v1206 = vunpack.c.0.s8 %v806
        %v1207 = vunpack.c.0.s8 %v807
        %v1208 = vunpack.c.1.s8 %v804
        %v1209 = vunpack.c.1.s8 %v805
        %v1210 = vunpack.c.1.s8 %v806
        %v1211 = vunpack.c.1.s8 %v807
        %v1212 = vunpack.c.2.s8 %v804
        %v1213 = vunpack.c.2.s8 %v805
        %v1214 = vunpack.c.2.s8 %v806
        %v1215 = vunpack.c.2.s8 %v807
        %v1216 = vunpack.c.3.s8 %v804
        %v1217 = vunpack.c.3.s8 %v805
        %v1218 = vunpack.c.3.s8 %v806
        %v1219 = vunpack.c.3.s8 %v807
        %v1220 = vunpack.c.0.s8 %v808
        %v1221 = vunpack.c.0.s8 %v809
        %v1222 = vunpack.c.0.s8 %v810
        %v1223 = vunpack.c.0.s8 %v811
        %v1224 = vunpack.c.1.s8 %v808
        %v1225 = vunpack.c.1.s8 %v809
        %v1226 = vunpack.c.1.s8 %v810
        %v1227 = vunpack.c.1.s8 %v811
        %v1228 = vunpack.c.2.s8 %v808
        %v1229 = vunpack.c.2.s8 %v809
        %v1230 = vunpack.c.2.s8 %v810
        %v1231 = vunpack.c.2.s8 %v811
        %v1232 = vunpack.c.3.s8 %v808
        %v1233 = vunpack.c.3.s8 %v809
        %v1234 = vunpack.c.3.s8 %v810
        %v1235 = vunpack.c.3.s8 %v811
        %v1236 = vunpack.c.0.s8 %v812
        %v1237 = vunpack.c.0.s8 %v813
        %v1238 = vunpack.c.0.s8 %v814
        %v1239 = vunpack.c.0.s8 %v815
        %v1240 = vunpack.c.1.s8 %v812
        %v1241 = vunpack.c.1.s8 %v813
        %v1242 = vunpack.c.1.s8 %v814
        %v1243 = vunpack.c.1.s8 %v815
        %v1244 = vunpack.c.2.s8 %v812
        %v1245 = vunpack.c.2.s8 %v813
        %v1246 = vunpack.c.2.s8 %v814
        %v1247 = vunpack.c.2.s8 %v815
        %v1248 = vunpack.c.3.s8 %v812
        %v1249 = vunpack.c.3.s8 %v813
        %v1250 = vunpack.c.3.s8 %v814
        %v1251 = vunpack.c.3.s8 %v815
        %v1252 = vunpack.c.0.s8 %v816
        %v1253 = vunpack.c.0.s8 %v817
        %v1254 = vunpack.c.0.s8 %v818
        %v1255 = vunpack.c.0.s8 %v819
        %v1256 = vunpack.c.1.s8 %v816
        %v1257 = vunpack.c.1.s8 %v817
        %v1258 = vunpack.c.1.s8 %v818
        %v1259 = vunpack.c.1.s8 %v819
        %v1260 = vunpack.c.2.s8 %v816
        %v1261 = vunpack.c.2.s8 %v817
        %v1262 = vunpack.c.2.s8 %v818
        %v1263 = vunpack.c.2.s8 %v819
        %v1264 = vunpack.c.3.s8 %v816
        %v1265 = vunpack.c.3.s8 %v817
        %v1266 = vunpack.c.3.s8 %v818
        %v1267 = vunpack.c.3.s8 %v819
        %v1268 = vcvt.s32.f32 %v820
        %v1269 = vcvt.s32.f32 %v821
        %v1270 = vcvt.s32.f32 %v822
        %v1271 = vcvt.s32.f32 %v823
        %v1272 = vcvt.s32.f32 %v824
        %v1273 = vcvt.s32.f32 %v825
        %v1274 = vcvt.s32.f32 %v826
        %v1275 = vcvt.s32.f32 %v827
        %v1276 = vcvt.s32.f32 %v828
        %v1277 = vcvt.s32.f32 %v829
        %v1278 = vcvt.s32.f32 %v830
        %v1279 = vcvt.s32.f32 %v831
        %v1280 = vcvt.s32.f32 %v832
        %v1281 = vcvt.s32.f32 %v833
        %v1282 = vcvt.s32.f32 %v834
        %v1283 = vcvt.s32.f32 %v835
        %v1284 = vcvt.s32.f32 %v836
        %v1285 = vcvt.s32.f32 %v837
        %v1286 = vcvt.s32.f32 %v838
        %v1287 = vcvt.s32.f32 %v839
        %v1288 = vcvt.s32.f32 %v840
        %v1289 = vcvt.s32.f32 %v841
        %v1290 = vcvt.s32.f32 %v842
        %v1291 = vcvt.s32.f32 %v843
        %v1292 = vcvt.s32.f32 %v844
        %v1293 = vcvt.s32.f32 %v845
        %v1294 = vcvt.s32.f32 %v846
        %v1295 = vcvt.s32.f32 %v847
        %v1296 = vcvt.s32.f32 %v848
        %v1297 = vcvt.s32.f32 %v849
        %v1298 = vcvt.s32.f32 %v850
        %v1299 = vcvt.s32.f32 %v851
        %v1300 = vcvt.s32.f32 %v852
        %v1301 = vcvt.s32.f32 %v853
        %v1302 = vcvt.s32.f32 %v854
        %v1303 = vcvt.s32.f32 %v855
        %v1304 = vcvt.s32.f32 %v856
        %v1305 = vcvt.s32.f32 %v857
        %v1306 = vcvt.s32.f32 %v858
        %v1307 = vcvt.s32.f32 %v859
        %v1308 = vcvt.s32.f32 %v860
        %v1309 = vcvt.s32.f32 %v861
        %v1310 = vcvt.s32.f32 %v862
        %v1311 = vcvt.s32.f32 %v863
        %v1312 = vcvt.s32.f32 %v864
        %v1313 = vcvt.s32.f32 %v865
        %v1314 = vcvt.s32.f32 %v866
        %v1315 = vcvt.s32.f32 %v867
        %v1316 = vcvt.s32.f32 %v868
        %v1317 = vcvt.s32.f32 %v869
        %v1318 = vcvt.s32.f32 %v870
        %v1319 = vcvt.s32.f32 %v871
        %v1320 = vcvt.s32.f32 %v872
        %v1321 = vcvt.s32.f32 %v873
        %v1322 = vcvt.s32.f32 %v874
        %v1323 = vcvt.s32.f32 %v875
        %v1324 = vcvt.s32.f32 %v876
        %v1325 = vcvt.s32.f32 %v877
        %v1326 = vcvt.s32.f32 %v878
        %v1327 = vcvt.s32.f32 %v879
        %v1328 = vcvt.s32.f32 %v880
        %v1329 = vcvt.s32.f32 %v881
        %v1330 = vcvt.s32.f32 %v882
        %v1331 = vcvt.s32.f32 %v883
        %v1332 = vcvt.s32.f32 %v884
        %v1333 = vcvt.s32.f32 %v885
        %v1334 = vcvt.s32.f32 %v886
        %v1335 = vcvt.s32.f32 %v887
        %v1336 = vcvt.s32.f32 %v888
        %v1337 = vcvt.s32.f32 %v889
        %v1338 = vcvt.s32.f32 %v890
        %v1339 = vcvt.s32.f32 %v891
        %v1340 = vcvt.s32.f32 %v892
        %v1341 = vcvt.s32.f32 %v893
        %v1342 = vcvt.s32.f32 %v894
        %v1343 = vcvt.s32.f32 %v895
        %v1344 = vcvt.s32.f32 %v896
        %v1345 = vcvt.s32.f32 %v897
        %v1346 = vcvt.s32.f32 %v898
        %v1347 = vcvt.s32.f32 %v899
        %v1348 = vcvt.s32.f32 %v900
        %v1349 = vcvt.s32.f32 %v901
        %v1350 = vcvt.s32.f32 %v902
        %v1351 = vcvt.s32.f32 %v903
        %v1352 = vcvt.s32.f32 %v904
        %v1353 = vcvt.s32.f32 %v905
        %v1354 = vcvt.s32.f32 %v906
        %v1355 = vcvt.s32.f32 %v907
        %v1356 = vcvt.s32.f32 %v908
        %v1357 = vcvt.s32.f32 %v909
        %v1358 = vcvt.s32.f32 %v910
        %v1359 = vcvt.s32.f32 %v911
        %v1360 = vcvt.s32.f32 %v912
        %v1361 = vcvt.s32.f32 %v913
        %v1362 = vcvt.s32.f32 %v914
        %v1363 = vcvt.s32.f32 %v915
        %v1364 = vcvt.s32.f32 %v916
        %v1365 = vcvt.s32.f32 %v917
        %v1366 = vcvt.s32.f32 %v918
        %v1367 = vcvt.s32.f32 %v919
        %v1368 = vcvt.s32.f32 %v920
        %v1369 = vcvt.s32.f32 %v921
        %v1370 = vcvt.s32.f32 %v922
        %v1371 = vcvt.s32.f32 %v923
        %v1372 = vcvt.s32.f32 %v924
        %v1373 = vcvt.s32.f32 %v925
        %v1374 = vcvt.s32.f32 %v926
        %v1375 = vcvt.s32.f32 %v927
        %v1376 = vcvt.s32.f32 %v928
        %v1377 = vcvt.s32.f32 %v929
        %v1378 = vcvt.s32.f32 %v930
        %v1379 = vcvt.s32.f32 %v931
        %v1380 = vcvt.s32.f32 %v932
        %v1381 = vcvt.s32.f32 %v933
        %v1382 = vcvt.s32.f32 %v934
        %v1383 = vcvt.s32.f32 %v935
        %v1384 = vcvt.s32.f32 %v936
        %v1385 = vcvt.s32.f32 %v937
        %v1386 = vcvt.s32.f32 %v938
        %v1387 = vcvt.s32.f32 %v939
        %v1388 = vcvt.s32.f32 %v940
        %v1389 = vcvt.s32.f32 %v941
        %v1390 = vcvt.s32.f32 %v942
        %v1391 = vcvt.s32.f32 %v943
        %v1392 = vcvt.s32.f32 %v944
        %v1393 = vcvt.s32.f32 %v945
        %v1394 = vcvt.s32.f32 %v946
        %v1395 = vcvt.s32.f32 %v947
        %v1396 = vcvt.s32.f32 %v948
        %v1397 = vcvt.s32.f32 %v949
        %v1398 = vcvt.s32.f32 %v950
        %v1399 = vcvt.s32.f32 %v951
        %v1400 = vcvt.s32.f32 %v952
        %v1401 = vcvt.s32.f32 %v953
        %v1402 = vcvt.s32.f32 %v954
        %v1403 = vcvt.s32.f32 %v955
        %v1404 = vcvt.s32.f32 %v956
        %v1405 = vcvt.s32.f32 %v957
        %v1406 = vcvt.s32.f32 %v958
        %v1407 = vcvt.s32.f32 %v959
        %v1408 = vcvt.s32.f32 %v960
        %v1409 = vcvt.s32.f32 %v961
        %v1410 = vcvt.s32.f32 %v962
        %v1411 = vcvt.s32.f32 %v963
        %v1412 = vcvt.s32.f32 %v964
        %v1413 = vcvt.s32.f32 %v965
        %v1414 = vcvt.s32.f32 %v966
        %v1415 = vcvt.s32.f32 %v967
        %v1416 = vcvt.s32.f32 %v968
        %v1417 = vcvt.s32.f32 %v969
        %v1418 = vcvt.s32.f32 %v970
        %v1419 = vcvt.s32.f32 %v971
        %v1420 = vcvt.s32.f32 %v972
        %v1421 = vcvt.s32.f32 %v973
        %v1422 = vcvt.s32.f32 %v974
        %v1423 = vcvt.s32.f32 %v975
        %v1424 = vcvt.s32.f32 %v976
        %v1425 = vcvt.s32.f32 %v977
        %v1426 = vcvt.s32.f32 %v978
        %v1427 = vcvt.s32.f32 %v979
        %v1428 = vcvt.s32.f32 %v980
        %v1429 = vcvt.s32.f32 %v981
        %v1430 = vcvt.s32.f32 %v982
        %v1431 = vcvt.s32.f32 %v983
        %v1432 = vcvt.s32.f32 %v984
        %v1433 = vcvt.s32.f32 %v985
        %v1434 = vcvt.s32.f32 %v986
        %v1435 = vcvt.s32.f32 %v987
        %v1436 = vcvt.s32.f32 %v988
        %v1437 = vcvt.s32.f32 %v989
        %v1438 = vcvt.s32.f32 %v990
        %v1439 = vcvt.s32.f32 %v991
        %v1440 = vcvt.s32.f32 %v992
        %v1441 = vcvt.s32.f32 %v993
        %v1442 = vcvt.s32.f32 %v994
        %v1443 = vcvt.s32.f32 %v995
        %v1444 = vcvt.s32.f32 %v996
        %v1445 = vcvt.s32.f32 %v997
        %v1446 = vcvt.s32.f32 %v998
        %v1447 = vcvt.s32.f32 %v999
        %v1448 = vcvt.s32.f32 %v1000
        %v1449 = vcvt.s32.f32 %v1001
        %v1450 = vcvt.s32.f32 %v1002
        %v1451 = vcvt.s32.f32 %v1003
        %v1452 = vcvt.s32.f32 %v1004
        %v1453 = vcvt.s32.f32 %v1005
        %v1454 = vcvt.s32.f32 %v1006
        %v1455 = vcvt.s32.f32 %v1007
        %v1456 = vcvt.s32.f32 %v1008
        %v1457 = vcvt.s32.f32 %v1009
        %v1458 = vcvt.s32.f32 %v1010
        %v1459 = vcvt.s32.f32 %v1011
        %v1460 = vcvt.s32.f32 %v1012
        %v1461 = vcvt.s32.f32 %v1013
        %v1462 = vcvt.s32.f32 %v1014
        %v1463 = vcvt.s32.f32 %v1015
        %v1464 = vcvt.s32.f32 %v1016
        %v1465 = vcvt.s32.f32 %v1017
        %v1466 = vcvt.s32.f32 %v1018
        %v1467 = vcvt.s32.f32 %v1019
        %v1468 = vcvt.s32.f32 %v1020
        %v1469 = vcvt.s32.f32 %v1021
        %v1470 = vcvt.s32.f32 %v1022
        %v1471 = vcvt.s32.f32 %v1023
        %v1472 = vcvt.s32.f32 %v1024
        %v1473 = vcvt.s32.f32 %v1025
        %v1474 = vcvt.s32.f32 %v1026
        %v1475 = vcvt.s32.f32 %v1027
        %v1476 = vcvt.s32.f32 %v1028
        %v1477 = vcvt.s32.f32 %v1029
        %v1478 = vcvt.s32.f32 %v1030
        %v1479 = vcvt.s32.f32 %v1031
        %v1480 = vcvt.s32.f32 %v1032
        %v1481 = vcvt.s32.f32 %v1033
        %v1482 = vcvt.s32.f32 %v1034
        %v1483 = vcvt.s32.f32 %v1035
        %v1484 = vcvt.s32.f32 %v1036
        %v1485 = vcvt.s32.f32 %v1037
        %v1486 = vcvt.s32.f32 %v1038
        %v1487 = vcvt.s32.f32 %v1039
        %v1488 = vcvt.s32.f32 %v1040
        %v1489 = vcvt.s32.f32 %v1041
        %v1490 = vcvt.s32.f32 %v1042
        %v1491 = vcvt.s32.f32 %v1043
        %v1492 = vcvt.s32.f32 %v1044
        %v1493 = vcvt.s32.f32 %v1045
        %v1494 = vcvt.s32.f32 %v1046
        %v1495 = vcvt.s32.f32 %v1047
        %v1496 = vcvt.s32.f32 %v1048
        %v1497 = vcvt.s32.f32 %v1049
        %v1498 = vcvt.s32.f32 %v1050
        %v1499 = vcvt.s32.f32 %v1051
        %v1500 = vcvt.s32.f32 %v1052
        %v1501 = vcvt.s32.f32 %v1053
        %v1502 = vcvt.s32.f32 %v1054
        %v1503 = vcvt.s32.f32 %v1055
        %v1504 = vcvt.s32.f32 %v1056
        %v1505 = vcvt.s32.f32 %v1057
        %v1506 = vcvt.s32.f32 %v1058
        %v1507 = vcvt.s32.f32 %v1059
        %v1508 = vcvt.s32.f32 %v1060
        %v1509 = vcvt.s32.f32 %v1061
        %v1510 = vcvt.s32.f32 %v1062
        %v1511 = vcvt.s32.f32 %v1063
        %v1512 = vcvt.s32.f32 %v1064
        %v1513 = vcvt.s32.f32 %v1065
        %v1514 = vcvt.s32.f32 %v1066
        %v1515 = vcvt.s32.f32 %v1067
        %v1516 = vcvt.s32.f32 %v1068
        %v1517 = vcvt.s32.f32 %v1069
        %v1518 = vcvt.s32.f32 %v1070
        %v1519 = vcvt.s32.f32 %v1071
        %v1520 = vcvt.s32.f32 %v1072
        %v1521 = vcvt.s32.f32 %v1073
        %v1522 = vcvt.s32.f32 %v1074
        %v1523 = vcvt.s32.f32 %v1075
        %v1524 = vcvt.s32.f32 %v1076
        %v1525 = vcvt.s32.f32 %v1077
        %v1526 = vcvt.s32.f32 %v1078
        %v1527 = vcvt.s32.f32 %v1079
        %v1528 = vcvt.s32.f32 %v1080
        %v1529 = vcvt.s32.f32 %v1081
        %v1530 = vcvt.s32.f32 %v1082
        %v1531 = vcvt.s32.f32 %v1083
        %v1532 = vcvt.s32.f32 %v1084
        %v1533 = vcvt.s32.f32 %v1085
        %v1534 = vcvt.s32.f32 %v1086
        %v1535 = vcvt.s32.f32 %v1087
        %v1536 = vcvt.s32.f32 %v1088
        %v1537 = vcvt.s32.f32 %v1089
        %v1538 = vcvt.s32.f32 %v1090
        %v1539 = vcvt.s32.f32 %v1091
        %v1540 = vcvt.s32.f32 %v1092
        %v1541 = vcvt.s32.f32 %v1093
        %v1542 = vcvt.s32.f32 %v1094
        %v1543 = vcvt.s32.f32 %v1095
        %v1544 = vcvt.s32.f32 %v1096
        %v1545 = vcvt.s32.f32 %v1097
        %v1546 = vcvt.s32.f32 %v1098
        %v1547 = vcvt.s32.f32 %v1099
        %v1548 = vcvt.s32.f32 %v1100
        %v1549 = vcvt.s32.f32 %v1101
        %v1550 = vcvt.s32.f32 %v1102
        %v1551 = vcvt.s32.f32 %v1103
        %v1552 = vcvt.s32.f32 %v1104
        %v1553 = vcvt.s32.f32 %v1105
        %v1554 = vcvt.s32.f32 %v1106
        %v1555 = vcvt.s32.f32 %v1107
        %v1556 = vcvt.s32.f32 %v1108
        %v1557 = vcvt.s32.f32 %v1109
        %v1558 = vcvt.s32.f32 %v1110
        %v1559 = vcvt.s32.f32 %v1111
        %v1560 = vcvt.s32.f32 %v1112
        %v1561 = vcvt.s32.f32 %v1113
        %v1562 = vcvt.s32.f32 %v1114
        %v1563 = vcvt.s32.f32 %v1115
        %v1564 = vcvt.s32.f32 %v1116
        %v1565 = vcvt.s32.f32 %v1117
        %v1566 = vcvt.s32.f32 %v1118
        %v1567 = vcvt.s32.f32 %v1119
        %v1568 = vcvt.s32.f32 %v1120
        %v1569 = vcvt.s32.f32 %v1121
        %v1570 = vcvt.s32.f32 %v1122
        %v1571 = vcvt.s32.f32 %v1123
        %v1572 = vcvt.s32.f32 %v1124
        %v1573 = vcvt.s32.f32 %v1125
        %v1574 = vcvt.s32.f32 %v1126
        %v1575 = vcvt.s32.f32 %v1127
        %v1576 = vcvt.s32.f32 %v1128
        %v1577 = vcvt.s32.f32 %v1129
        %v1578 = vcvt.s32.f32 %v1130
        %v1579 = vcvt.s32.f32 %v1131
        %v1580 = vcvt.s32.f32 %v1132
        %v1581 = vcvt.s32.f32 %v1133
        %v1582 = vcvt.s32.f32 %v1134
        %v1583 = vcvt.s32.f32 %v1135
        %v1584 = vcvt.s32.f32 %v1136
        %v1585 = vcvt.s32.f32 %v1137
        %v1586 = vcvt.s32.f32 %v1138
        %v1587 = vcvt.s32.f32 %v1139
        %v1588 = vcvt.s32.f32 %v1140
        %v1589 = vcvt.s32.f32 %v1141
        %v1590 = vcvt.s32.f32 %v1142
        %v1591 = vcvt.s32.f32 %v1143
        %v1592 = vcvt.s32.f32 %v1144
        %v1593 = vcvt.s32.f32 %v1145
        %v1594 = vcvt.s32.f32 %v1146
        %v1595 = vcvt.s32.f32 %v1147
        %v1596 = vcvt.s32.f32 %v1148
        %v1597 = vcvt.s32.f32 %v1149
        %v1598 = vcvt.s32.f32 %v1150
        %v1599 = vcvt.s32.f32 %v1151
        %v1600 = vcvt.s32.f32 %v1152
        %v1601 = vcvt.s32.f32 %v1153
        %v1602 = vcvt.s32.f32 %v1154
        %v1603 = vcvt.s32.f32 %v1155
        %v1604 = vcvt.s32.f32 %v1156
        %v1605 = vcvt.s32.f32 %v1157
        %v1606 = vcvt.s32.f32 %v1158
        %v1607 = vcvt.s32.f32 %v1159
        %v1608 = vcvt.s32.f32 %v1160
        %v1609 = vcvt.s32.f32 %v1161
        %v1610 = vcvt.s32.f32 %v1162
        %v1611 = vcvt.s32.f32 %v1163
        %v1612 = vcvt.s32.f32 %v1164
        %v1613 = vcvt.s32.f32 %v1165
        %v1614 = vcvt.s32.f32 %v1166
        %v1615 = vcvt.s32.f32 %v1167
        %v1616 = vcvt.s32.f32 %v1168
        %v1617 = vcvt.s32.f32 %v1169
        %v1618 = vcvt.s32.f32 %v1170
        %v1619 = vcvt.s32.f32 %v1171
        %v1620 = vcvt.s32.f32 %v1172
        %v1621 = vcvt.s32.f32 %v1173
        %v1622 = vcvt.s32.f32 %v1174
        %v1623 = vcvt.s32.f32 %v1175
        %v1624 = vcvt.s32.f32 %v1176
        %v1625 = vcvt.s32.f32 %v1177
        %v1626 = vcvt.s32.f32 %v1178
        %v1627 = vcvt.s32.f32 %v1179
        %v1628 = vcvt.s32.f32 %v1180
        %v1629 = vcvt.s32.f32 %v1181
        %v1630 = vcvt.s32.f32 %v1182
        %v1631 = vcvt.s32.f32 %v1183
        %v1632 = vcvt.s32.f32 %v1184
        %v1633 = vcvt.s32.f32 %v1185
        %v1634 = vcvt.s32.f32 %v1186
        %v1635 = vcvt.s32.f32 %v1187
        %v1636 = vcvt.s32.f32 %v1188
        %v1637 = vcvt.s32.f32 %v1189
        %v1638 = vcvt.s32.f32 %v1190
        %v1639 = vcvt.s32.f32 %v1191
        %v1640 = vcvt.s32.f32 %v1192
        %v1641 = vcvt.s32.f32 %v1193
        %v1642 = vcvt.s32.f32 %v1194
        %v1643 = vcvt.s32.f32 %v1195
        %v1644 = vcvt.s32.f32 %v1196
        %v1645 = vcvt.s32.f32 %v1197
        %v1646 = vcvt.s32.f32 %v1198
        %v1647 = vcvt.s32.f32 %v1199
        %v1648 = vcvt.s32.f32 %v1200
        %v1649 = vcvt.s32.f32 %v1201
        %v1650 = vcvt.s32.f32 %v1202
        %v1651 = vcvt.s32.f32 %v1203
        %v1652 = vcvt.s32.f32 %v1204
        %v1653 = vcvt.s32.f32 %v1205
        %v1654 = vcvt.s32.f32 %v1206
        %v1655 = vcvt.s32.f32 %v1207
        %v1656 = vcvt.s32.f32 %v1208
        %v1657 = vcvt.s32.f32 %v1209
        %v1658 = vcvt.s32.f32 %v1210
        %v1659 = vcvt.s32.f32 %v1211
        %v1660 = vcvt.s32.f32 %v1212
        %v1661 = vcvt.s32.f32 %v1213
        %v1662 = vcvt.s32.f32 %v1214
        %v1663 = vcvt.s32.f32 %v1215
        %v1664 = vcvt.s32.f32 %v1216
        %v1665 = vcvt.s32.f32 %v1217
        %v1666 = vcvt.s32.f32 %v1218
        %v1667 = vcvt.s32.f32 %v1219
        %v1668 = vcvt.s32.f32 %v1220
        %v1669 = vcvt.s32.f32 %v1221
        %v1670 = vcvt.s32.f32 %v1222
        %v1671 = vcvt.s32.f32 %v1223
        %v1672 = vcvt.s32.f32 %v1224
        %v1673 = vcvt.s32.f32 %v1225
        %v1674 = vcvt.s32.f32 %v1226
        %v1675 = vcvt.s32.f32 %v1227
        %v1676 = vcvt.s32.f32 %v1228
        %v1677 = vcvt.s32.f32 %v1229
        %v1678 = vcvt.s32.f32 %v1230
        %v1679 = vcvt.s32.f32 %v1231
        %v1680 = vcvt.s32.f32 %v1232
        %v1681 = vcvt.s32.f32 %v1233
        %v1682 = vcvt.s32.f32 %v1234
        %v1683 = vcvt.s32.f32 %v1235
        %v1684 = vcvt.s32.f32 %v1236
        %v1685 = vcvt.s32.f32 %v1237
        %v1686 = vcvt.s32.f32 %v1238
        %v1687 = vcvt.s32.f32 %v1239
        %v1688 = vcvt.s32.f32 %v1240
        %v1689 = vcvt.s32.f32 %v1241
        %v1690 = vcvt.s32.f32 %v1242
        %v1691 = vcvt.s32.f32 %v1243
        %v1692 = vcvt.s32.f32 %v1244
        %v1693 = vcvt.s32.f32 %v1245
        %v1694 = vcvt.s32.f32 %v1246
        %v1695 = vcvt.s32.f32 %v1247
        %v1696 = vcvt.s32.f32 %v1248
        %v1697 = vcvt.s32.f32 %v1249
        %v1698 = vcvt.s32.f32 %v1250
        %v1699 = vcvt.s32.f32 %v1251
        %v1700 = vcvt.s32.f32 %v1252
        %v1701 = vcvt.s32.f32 %v1253
        %v1702 = vcvt.s32.f32 %v1254
        %v1703 = vcvt.s32.f32 %v1255
        %v1704 = vcvt.s32.f32 %v1256
        %v1705 = vcvt.s32.f32 %v1257
        %v1706 = vcvt.s32.f32 %v1258
        %v1707 = vcvt.s32.f32 %v1259
        %v1708 = vcvt.s32.f32 %v1260
        %v1709 = vcvt.s32.f32 %v1261
        %v1710 = vcvt.s32.f32 %v1262
        %v1711 = vcvt.s32.f32 %v1263
        %v1712 = vcvt.s32.f32 %v1264
        %v1713 = vcvt.s32.f32 %v1265
        %v1714 = vcvt.s32.f32 %v1266
        %v1715 = vcvt.s32.f32 %v1267
        %v1716 = vpack.c.bf16 %v1272, %v1268
        %v1717 = vpack.c.bf16 %v1273, %v1269
        %v1718 = vpack.c.bf16 %v1274, %v1270
        %v1719 = vpack.c.bf16 %v1275, %v1271
        %v1720 = vpack.c.bf16 %v1280, %v1276
        %v1721 = vpack.c.bf16 %v1281, %v1277
        %v1722 = vpack.c.bf16 %v1282, %v1278
        %v1723 = vpack.c.bf16 %v1283, %v1279
        %v1724 = vpack.c.bf16 %v1288, %v1284
        %v1725 = vpack.c.bf16 %v1289, %v1285
        %v1726 = vpack.c.bf16 %v1290, %v1286
        %v1727 = vpack.c.bf16 %v1291, %v1287
        %v1728 = vpack.c.bf16 %v1296, %v1292
        %v1729 = vpack.c.bf16 %v1297, %v1293
        %v1730 = vpack.c.bf16 %v1298, %v1294
        %v1731 = vpack.c.bf16 %v1299, %v1295
        %v1732 = vpack.c.bf16 %v1304, %v1300
        %v1733 = vpack.c.bf16 %v1305, %v1301
        %v1734 = vpack.c.bf16 %v1306, %v1302
        %v1735 = vpack.c.bf16 %v1307, %v1303
        %v1736 = vpack.c.bf16 %v1312, %v1308
        %v1737 = vpack.c.bf16 %v1313, %v1309
        %v1738 = vpack.c.bf16 %v1314, %v1310
        %v1739 = vpack.c.bf16 %v1315, %v1311
        %v1740 = vpack.c.bf16 %v1320, %v1316
        %v1741 = vpack.c.bf16 %v1321, %v1317
        %v1742 = vpack.c.bf16 %v1322, %v1318
        %v1743 = vpack.c.bf16 %v1323, %v1319
        %v1744 = vpack.c.bf16 %v1328, %v1324
        %v1745 = vpack.c.bf16 %v1329, %v1325
        %v1746 = vpack.c.bf16 %v1330, %v1326
        %v1747 = vpack.c.bf16 %v1331, %v1327
        %v1748 = vpack.c.bf16 %v1336, %v1332
        %v1749 = vpack.c.bf16 %v1337, %v1333
        %v1750 = vpack.c.bf16 %v1338, %v1334
        %v1751 = vpack.c.bf16 %v1339, %v1335
        %v1752 = vpack.c.bf16 %v1344, %v1340
        %v1753 = vpack.c.bf16 %v1345, %v1341
        %v1754 = vpack.c.bf16 %v1346, %v1342
        %v1755 = vpack.c.bf16 %v1347, %v1343
        %v1756 = vpack.c.bf16 %v1352, %v1348
        %v1757 = vpack.c.bf16 %v1353, %v1349
        %v1758 = vpack.c.bf16 %v1354, %v1350
        %v1759 = vpack.c.bf16 %v1355, %v1351
        %v1760 = vpack.c.bf16 %v1360, %v1356
        %v1761 = vpack.c.bf16 %v1361, %v1357
        %v1762 = vpack.c.bf16 %v1362, %v1358
        %v1763 = vpack.c.bf16 %v1363, %v1359
        %v1764 = vpack.c.bf16 %v1368, %v1364
        %v1765 = vpack.c.bf16 %v1369, %v1365
        %v1766 = vpack.c.bf16 %v1370, %v1366
        %v1767 = vpack.c.bf16 %v1371, %v1367
        %v1768 = vpack.c.bf16 %v1376, %v1372
        %v1769 = vpack.c.bf16 %v1377, %v1373
        %v1770 = vpack.c.bf16 %v1378, %v1374
        %v1771 = vpack.c.bf16 %v1379, %v1375
        %v1772 = vpack.c.bf16 %v1384, %v1380
        %v1773 = vpack.c.bf16 %v1385, %v1381
        %v1774 = vpack.c.bf16 %v1386, %v1382
        %v1775 = vpack.c.bf16 %v1387, %v1383
        %v1776 = vpack.c.bf16 %v1392, %v1388
        %v1777 = vpack.c.bf16 %v1393, %v1389
        %v1778 = vpack.c.bf16 %v1394, %v1390
        %v1779 = vpack.c.bf16 %v1395, %v1391
        %v1780 = vpack.c.bf16 %v1400, %v1396
        %v1781 = vpack.c.bf16 %v1401, %v1397
        %v1782 = vpack.c.bf16 %v1402, %v1398
        %v1783 = vpack.c.bf16 %v1403, %v1399
        %v1784 = vpack.c.bf16 %v1408, %v1404
        %v1785 = vpack.c.bf16 %v1409, %v1405
        %v1786 = vpack.c.bf16 %v1410, %v1406
        %v1787 = vpack.c.bf16 %v1411, %v1407
        %v1788 = vpack.c.bf16 %v1416, %v1412
        %v1789 = vpack.c.bf16 %v1417, %v1413
        %v1790 = vpack.c.bf16 %v1418, %v1414
        %v1791 = vpack.c.bf16 %v1419, %v1415
        %v1792 = vpack.c.bf16 %v1424, %v1420
        %v1793 = vpack.c.bf16 %v1425, %v1421
        %v1794 = vpack.c.bf16 %v1426, %v1422
        %v1795 = vpack.c.bf16 %v1427, %v1423
        %v1796 = vpack.c.bf16 %v1432, %v1428
        %v1797 = vpack.c.bf16 %v1433, %v1429
        %v1798 = vpack.c.bf16 %v1434, %v1430
        %v1799 = vpack.c.bf16 %v1435, %v1431
        %v1800 = vpack.c.bf16 %v1440, %v1436
        %v1801 = vpack.c.bf16 %v1441, %v1437
        %v1802 = vpack.c.bf16 %v1442, %v1438
        %v1803 = vpack.c.bf16 %v1443, %v1439
        %v1804 = vpack.c.bf16 %v1448, %v1444
        %v1805 = vpack.c.bf16 %v1449, %v1445
        %v1806 = vpack.c.bf16 %v1450, %v1446
        %v1807 = vpack.c.bf16 %v1451, %v1447
        %v1808 = vpack.c.bf16 %v1456, %v1452
        %v1809 = vpack.c.bf16 %v1457, %v1453
        %v1810 = vpack.c.bf16 %v1458, %v1454
        %v1811 = vpack.c.bf16 %v1459, %v1455
        %v1812 = vpack.c.bf16 %v1464, %v1460
        %v1813 = vpack.c.bf16 %v1465, %v1461
        %v1814 = vpack.c.bf16 %v1466, %v1462
        %v1815 = vpack.c.bf16 %v1467, %v1463
        %v1816 = vpack.c.bf16 %v1472, %v1468
        %v1817 = vpack.c.bf16 %v1473, %v1469
        %v1818 = vpack.c.bf16 %v1474, %v1470
        %v1819 = vpack.c.bf16 %v1475, %v1471
        %v1820 = vpack.c.bf16 %v1480, %v1476
        %v1821 = vpack.c.bf16 %v1481, %v1477
        %v1822 = vpack.c.bf16 %v1482, %v1478
        %v1823 = vpack.c.bf16 %v1483, %v1479
        %v1824 = vpack.c.bf16 %v1488, %v1484
        %v1825 = vpack.c.bf16 %v1489, %v1485
        %v1826 = vpack.c.bf16 %v1490, %v1486
        %v1827 = vpack.c.bf16 %v1491, %v1487
        %v1828 = vpack.c.bf16 %v1496, %v1492
        %v1829 = vpack.c.bf16 %v1497, %v1493
        %v1830 = vpack.c.bf16 %v1498, %v1494
        %v1831 = vpack.c.bf16 %v1499, %v1495
        %v1832 = vpack.c.bf16 %v1504, %v1500
        %v1833 = vpack.c.bf16 %v1505, %v1501
        %v1834 = vpack.c.bf16 %v1506, %v1502
        %v1835 = vpack.c.bf16 %v1507, %v1503
        %v1836 = vpack.c.bf16 %v1512, %v1508
        %v1837 = vpack.c.bf16 %v1513, %v1509
        %v1838 = vpack.c.bf16 %v1514, %v1510
        %v1839 = vpack.c.bf16 %v1515, %v1511
        %v1840 = vpack.c.bf16 %v1520, %v1516
        %v1841 = vpack.c.bf16 %v1521, %v1517
        %v1842 = vpack.c.bf16 %v1522, %v1518
        %v1843 = vpack.c.bf16 %v1523, %v1519
        %v1844 = vpack.c.bf16 %v1528, %v1524
        %v1845 = vpack.c.bf16 %v1529, %v1525
        %v1846 = vpack.c.bf16 %v1530, %v1526
        %v1847 = vpack.c.bf16 %v1531, %v1527
        %v1848 = vpack.c.bf16 %v1536, %v1532
        %v1849 = vpack.c.bf16 %v1537, %v1533
        %v1850 = vpack.c.bf16 %v1538, %v1534
        %v1851 = vpack.c.bf16 %v1539, %v1535
        %v1852 = vpack.c.bf16 %v1544, %v1540
        %v1853 = vpack.c.bf16 %v1545, %v1541
        %v1854 = vpack.c.bf16 %v1546, %v1542
        %v1855 = vpack.c.bf16 %v1547, %v1543
        %v1856 = vpack.c.bf16 %v1552, %v1548
        %v1857 = vpack.c.bf16 %v1553, %v1549
        %v1858 = vpack.c.bf16 %v1554, %v1550
        %v1859 = vpack.c.bf16 %v1555, %v1551
        %v1860 = vpack.c.bf16 %v1560, %v1556
        %v1861 = vpack.c.bf16 %v1561, %v1557
        %v1862 = vpack.c.bf16 %v1562, %v1558
        %v1863 = vpack.c.bf16 %v1563, %v1559
        %v1864 = vpack.c.bf16 %v1568, %v1564
        %v1865 = vpack.c.bf16 %v1569, %v1565
        %v1866 = vpack.c.bf16 %v1570, %v1566
        %v1867 = vpack.c.bf16 %v1571, %v1567
        %v1868 = vpack.c.bf16 %v1576, %v1572
        %v1869 = vpack.c.bf16 %v1577, %v1573
        %v1870 = vpack.c.bf16 %v1578, %v1574
        %v1871 = vpack.c.bf16 %v1579, %v1575
        %v1872 = vpack.c.bf16 %v1584, %v1580
        %v1873 = vpack.c.bf16 %v1585, %v1581
        %v1874 = vpack.c.bf16 %v1586, %v1582
        %v1875 = vpack.c.bf16 %v1587, %v1583
        %v1876 = vpack.c.bf16 %v1592, %v1588
        %v1877 = vpack.c.bf16 %v1593, %v1589
        %v1878 = vpack.c.bf16 %v1594, %v1590
        %v1879 = vpack.c.bf16 %v1595, %v1591
        %v1880 = vpack.c.bf16 %v1600, %v1596
        %v1881 = vpack.c.bf16 %v1601, %v1597
        %v1882 = vpack.c.bf16 %v1602, %v1598
        %v1883 = vpack.c.bf16 %v1603, %v1599
        %v1884 = vpack.c.bf16 %v1608, %v1604
        %v1885 = vpack.c.bf16 %v1609, %v1605
        %v1886 = vpack.c.bf16 %v1610, %v1606
        %v1887 = vpack.c.bf16 %v1611, %v1607
        %v1888 = vpack.c.bf16 %v1616, %v1612
        %v1889 = vpack.c.bf16 %v1617, %v1613
        %v1890 = vpack.c.bf16 %v1618, %v1614
        %v1891 = vpack.c.bf16 %v1619, %v1615
        %v1892 = vpack.c.bf16 %v1624, %v1620
        %v1893 = vpack.c.bf16 %v1625, %v1621
        %v1894 = vpack.c.bf16 %v1626, %v1622
        %v1895 = vpack.c.bf16 %v1627, %v1623
        %v1896 = vpack.c.bf16 %v1632, %v1628
        %v1897 = vpack.c.bf16 %v1633, %v1629
        %v1898 = vpack.c.bf16 %v1634, %v1630
        %v1899 = vpack.c.bf16 %v1635, %v1631
        %v1900 = vpack.c.bf16 %v1640, %v1636
        %v1901 = vpack.c.bf16 %v1641, %v1637
        %v1902 = vpack.c.bf16 %v1642, %v1638
        %v1903 = vpack.c.bf16 %v1643, %v1639
        %v1904 = vpack.c.bf16 %v1648, %v1644
        %v1905 = vpack.c.bf16 %v1649, %v1645
        %v1906 = vpack.c.bf16 %v1650, %v1646
        %v1907 = vpack.c.bf16 %v1651, %v1647
        %v1908 = vpack.c.bf16 %v1656, %v1652
        %v1909 = vpack.c.bf16 %v1657, %v1653
        %v1910 = vpack.c.bf16 %v1658, %v1654
        %v1911 = vpack.c.bf16 %v1659, %v1655
        %v1912 = vpack.c.bf16 %v1664, %v1660
        %v1913 = vpack.c.bf16 %v1665, %v1661
        %v1914 = vpack.c.bf16 %v1666, %v1662
        %v1915 = vpack.c.bf16 %v1667, %v1663
        %v1916 = vpack.c.bf16 %v1672, %v1668
        %v1917 = vpack.c.bf16 %v1673, %v1669
        %v1918 = vpack.c.bf16 %v1674, %v1670
        %v1919 = vpack.c.bf16 %v1675, %v1671
        %v1920 = vpack.c.bf16 %v1680, %v1676
        %v1921 = vpack.c.bf16 %v1681, %v1677
        %v1922 = vpack.c.bf16 %v1682, %v1678
        %v1923 = vpack.c.bf16 %v1683, %v1679
        %v1924 = vpack.c.bf16 %v1688, %v1684
        %v1925 = vpack.c.bf16 %v1689, %v1685
        %v1926 = vpack.c.bf16 %v1690, %v1686
        %v1927 = vpack.c.bf16 %v1691, %v1687
        %v1928 = vpack.c.bf16 %v1696, %v1692
        %v1929 = vpack.c.bf16 %v1697, %v1693
        %v1930 = vpack.c.bf16 %v1698, %v1694
        %v1931 = vpack.c.bf16 %v1699, %v1695
        %v1932 = vpack.c.bf16 %v1704, %v1700
        %v1933 = vpack.c.bf16 %v1705, %v1701
        %v1934 = vpack.c.bf16 %v1706, %v1702
        %v1935 = vpack.c.bf16 %v1707, %v1703
        %v1936 = vpack.c.bf16 %v1712, %v1708
        %v1937 = vpack.c.bf16 %v1713, %v1709
        %v1938 = vpack.c.bf16 %v1714, %v1710
        %v1939 = vpack.c.bf16 %v1715, %v1711
        %v2068 = vunpack.c.l.b16 %v580
        %v2069 = vunpack.c.h.b16 %v580
        %v2070 = vunpack.c.l.b16 %v581
        %v2071 = vunpack.c.h.b16 %v581
        %v2072 = vunpack.c.l.b16 %v582
        %v2073 = vunpack.c.h.b16 %v582
        %v2074 = vunpack.c.l.b16 %v583
        %v2075 = vunpack.c.l.b16 %v584
        %v2076 = vunpack.c.h.b16 %v584
        %v2077 = vunpack.c.l.b16 %v585
        %v2078 = vunpack.c.h.b16 %v585
        %v2079 = vunpack.c.l.b16 %v586
        %v2080 = vunpack.c.h.b16 %v586
        %v2081 = vunpack.c.l.b16 %v587
        %v2082 = vunpack.c.l.b16 %v588
        %v2083 = vunpack.c.h.b16 %v588
        %v2084 = vunpack.c.l.b16 %v589
        %v2085 = vunpack.c.h.b16 %v589
        %v2086 = vunpack.c.l.b16 %v590
        %v2087 = vunpack.c.h.b16 %v590
        %v2088 = vunpack.c.l.b16 %v591
        %v2089 = vunpack.c.l.b16 %v592
        %v2090 = vunpack.c.h.b16 %v592
        %v2091 = vunpack.c.l.b16 %v593
        %v2092 = vunpack.c.h.b16 %v593
        %v2093 = vunpack.c.l.b16 %v594
        %v2094 = vunpack.c.h.b16 %v594
        %v2095 = vunpack.c.l.b16 %v595
        %v2096 = vunpack.c.l.b16 %v596
        %v2097 = vunpack.c.h.b16 %v596
        %v2098 = vunpack.c.l.b16 %v597
        %v2099 = vunpack.c.h.b16 %v597
        %v2100 = vunpack.c.l.b16 %v598
        %v2101 = vunpack.c.h.b16 %v598
        %v2102 = vunpack.c.l.b16 %v599
        %v2103 = vunpack.c.l.b16 %v600
        %v2104 = vunpack.c.h.b16 %v600
        %v2105 = vunpack.c.l.b16 %v601
        %v2106 = vunpack.c.h.b16 %v601
        %v2107 = vunpack.c.l.b16 %v602
        %v2108 = vunpack.c.h.b16 %v602
        %v2109 = vunpack.c.l.b16 %v603
        %v2110 = vunpack.c.l.b16 %v604
        %v2111 = vunpack.c.h.b16 %v604
        %v2112 = vunpack.c.l.b16 %v605
        %v2113 = vunpack.c.h.b16 %v605
        %v2114 = vunpack.c.l.b16 %v606
        %v2115 = vunpack.c.h.b16 %v606
        %v2116 = vunpack.c.l.b16 %v607
        %v2117 = vunpack.c.l.b16 %v608
        %v2118 = vunpack.c.h.b16 %v608
        %v2119 = vunpack.c.l.b16 %v609
        %v2120 = vunpack.c.h.b16 %v609
        %v2121 = vunpack.c.l.b16 %v610
        %v2122 = vunpack.c.h.b16 %v610
        %v2123 = vunpack.c.l.b16 %v611
        %v2124 = vunpack.c.l.b16 %v612
        %v2125 = vunpack.c.h.b16 %v612
        %v2126 = vunpack.c.l.b16 %v613
        %v2127 = vunpack.c.h.b16 %v613
        %v2128 = vunpack.c.l.b16 %v614
        %v2129 = vunpack.c.h.b16 %v614
        %v2130 = vunpack.c.l.b16 %v615
        %v2131 = vunpack.c.l.b16 %v616
        %v2132 = vunpack.c.h.b16 %v616
        %v2133 = vunpack.c.l.b16 %v617
        %v2134 = vunpack.c.h.b16 %v617
        %v2135 = vunpack.c.l.b16 %v618
        %v2136 = vunpack.c.h.b16 %v618
        %v2137 = vunpack.c.l.b16 %v619
        %v2138 = vunpack.c.l.b16 %v620
        %v2139 = vunpack.c.h.b16 %v620
        %v2140 = vunpack.c.l.b16 %v621
        %v2141 = vunpack.c.h.b16 %v621
        %v2142 = vunpack.c.l.b16 %v622
        %v2143 = vunpack.c.h.b16 %v622
        %v2144 = vunpack.c.l.b16 %v623
        %v2145 = vunpack.c.l.b16 %v624
        %v2146 = vunpack.c.h.b16 %v624
        %v2147 = vunpack.c.l.b16 %v625
        %v2148 = vunpack.c.h.b16 %v625
        %v2149 = vunpack.c.l.b16 %v626
        %v2150 = vunpack.c.h.b16 %v626
        %v2151 = vunpack.c.l.b16 %v627
        %v2152 = vunpack.c.l.b16 %v628
        %v2153 = vunpack.c.h.b16 %v628
        %v2154 = vunpack.c.l.b16 %v629
        %v2155 = vunpack.c.h.b16 %v629
        %v2156 = vunpack.c.l.b16 %v630
        %v2157 = vunpack.c.h.b16 %v630
        %v2158 = vunpack.c.l.b16 %v631
        %v2159 = vunpack.c.l.b16 %v632
        %v2160 = vunpack.c.h.b16 %v632
        %v2161 = vunpack.c.l.b16 %v633
        %v2162 = vunpack.c.h.b16 %v633
        %v2163 = vunpack.c.l.b16 %v634
        %v2164 = vunpack.c.h.b16 %v634
        %v2165 = vunpack.c.l.b16 %v635
        %v2166 = vunpack.c.l.b16 %v636
        %v2167 = vunpack.c.h.b16 %v636
        %v2168 = vunpack.c.l.b16 %v637
        %v2169 = vunpack.c.h.b16 %v637
        %v2170 = vunpack.c.l.b16 %v638
        %v2171 = vunpack.c.h.b16 %v638
        %v2172 = vunpack.c.l.b16 %v639
        %v2173 = vunpack.c.l.b16 %v640
        %v2174 = vunpack.c.h.b16 %v640
        %v2175 = vunpack.c.l.b16 %v641
        %v2176 = vunpack.c.h.b16 %v641
        %v2177 = vunpack.c.l.b16 %v642
        %v2178 = vunpack.c.h.b16 %v642
        %v2179 = vunpack.c.l.b16 %v643
        %v2180 = vunpack.c.l.b16 %v644
        %v2181 = vunpack.c.h.b16 %v644
        %v2182 = vunpack.c.l.b16 %v645
        %v2183 = vunpack.c.h.b16 %v645
        %v2184 = vunpack.c.l.b16 %v646
        %v2185 = vunpack.c.h.b16 %v646
        %v2186 = vunpack.c.l.b16 %v647
        %v2187 = vunpack.c.l.b16 %v648
        %v2188 = vunpack.c.h.b16 %v648
        %v2189 = vunpack.c.l.b16 %v649
        %v2190 = vunpack.c.h.b16 %v649
        %v2191 = vunpack.c.l.b16 %v650
        %v2192 = vunpack.c.h.b16 %v650
        %v2193 = vunpack.c.l.b16 %v651
        %v2194 = vunpack.c.l.b16 %v652
        %v2195 = vunpack.c.h.b16 %v652
        %v2196 = vunpack.c.l.b16 %v653
        %v2197 = vunpack.c.h.b16 %v653
        %v2198 = vunpack.c.l.b16 %v654
        %v2199 = vunpack.c.h.b16 %v654
        %v2200 = vunpack.c.l.b16 %v655
        %v2201 = vunpack.c.l.b16 %v656
        %v2202 = vunpack.c.h.b16 %v656
        %v2203 = vunpack.c.l.b16 %v657
        %v2204 = vunpack.c.h.b16 %v657
        %v2205 = vunpack.c.l.b16 %v658
        %v2206 = vunpack.c.h.b16 %v658
        %v2207 = vunpack.c.l.b16 %v659
        %v2208 = vunpack.c.l.b16 %v660
        %v2209 = vunpack.c.h.b16 %v660
        %v2210 = vunpack.c.l.b16 %v661
        %v2211 = vunpack.c.h.b16 %v661
        %v2212 = vunpack.c.l.b16 %v662
        %v2213 = vunpack.c.h.b16 %v662
        %v2214 = vunpack.c.l.b16 %v663
        %v2215 = vunpack.c.l.b16 %v664
        %v2216 = vunpack.c.h.b16 %v664
        %v2217 = vunpack.c.l.b16 %v665
        %v2218 = vunpack.c.h.b16 %v665
        %v2219 = vunpack.c.l.b16 %v666
        %v2220 = vunpack.c.h.b16 %v666
        %v2221 = vunpack.c.l.b16 %v667
        %v2222 = vunpack.c.l.b16 %v668
        %v2223 = vunpack.c.h.b16 %v668
        %v2224 = vunpack.c.l.b16 %v669
        %v2225 = vunpack.c.h.b16 %v669
        %v2226 = vunpack.c.l.b16 %v670
        %v2227 = vunpack.c.h.b16 %v670
        %v2228 = vunpack.c.l.b16 %v671
        %v2229 = vunpack.c.l.b16 %v672
        %v2230 = vunpack.c.h.b16 %v672
        %v2231 = vunpack.c.l.b16 %v673
        %v2232 = vunpack.c.h.b16 %v673
        %v2233 = vunpack.c.l.b16 %v674
        %v2234 = vunpack.c.h.b16 %v674
        %v2235 = vunpack.c.l.b16 %v675
        %v2236 = vunpack.c.l.b16 %v676
        %v2237 = vunpack.c.h.b16 %v676
        %v2238 = vunpack.c.l.b16 %v677
        %v2239 = vunpack.c.h.b16 %v677
        %v2240 = vunpack.c.l.b16 %v678
        %v2241 = vunpack.c.h.b16 %v678
        %v2242 = vunpack.c.l.b16 %v679
        %v2243 = vunpack.c.l.b16 %v680
        %v2244 = vunpack.c.h.b16 %v680
        %v2245 = vunpack.c.l.b16 %v681
        %v2246 = vunpack.c.h.b16 %v681
        %v2247 = vunpack.c.l.b16 %v682
        %v2248 = vunpack.c.h.b16 %v682
        %v2249 = vunpack.c.l.b16 %v683
        %v2250 = vunpack.c.l.b16 %v684
        %v2251 = vunpack.c.h.b16 %v684
        %v2252 = vunpack.c.l.b16 %v685
        %v2253 = vunpack.c.h.b16 %v685
        %v2254 = vunpack.c.l.b16 %v686
        %v2255 = vunpack.c.h.b16 %v686
        %v2256 = vunpack.c.l.b16 %v687
        %v2257 = vunpack.c.l.b16 %v688
        %v2258 = vunpack.c.h.b16 %v688
        %v2259 = vunpack.c.l.b16 %v689
        %v2260 = vunpack.c.h.b16 %v689
        %v2261 = vunpack.c.l.b16 %v690
        %v2262 = vunpack.c.h.b16 %v690
        %v2263 = vunpack.c.l.b16 %v691
        %v2264 = vunpack.c.l.b16 %v692
        %v2265 = vunpack.c.h.b16 %v692
        %v2266 = vunpack.c.l.b16 %v693
        %v2267 = vunpack.c.h.b16 %v693
        %v2268 = vunpack.c.l.b16 %v694
        %v2269 = vunpack.c.h.b16 %v694
        %v2270 = vunpack.c.l.b16 %v695
        %v2271 = vunpack.c.l.b16 %v696
        %v2272 = vunpack.c.h.b16 %v696
        %v2273 = vunpack.c.l.b16 %v697
        %v2274 = vunpack.c.h.b16 %v697
        %v2275 = vunpack.c.l.b16 %v698
        %v2276 = vunpack.c.h.b16 %v698
        %v2277 = vunpack.c.l.b16 %v699
        %v2278 = vunpack.c.l.b16 %v700
        %v2279 = vunpack.c.h.b16 %v700
        %v2280 = vunpack.c.l.b16 %v701
        %v2281 = vunpack.c.h.b16 %v701
        %v2282 = vunpack.c.l.b16 %v702
        %v2283 = vunpack.c.h.b16 %v702
        %v2284 = vunpack.c.l.b16 %v703
        %v2285 = vunpack.c.l.b16 %v704
        %v2286 = vunpack.c.h.b16 %v704
        %v2287 = vunpack.c.l.b16 %v705
        %v2288 = vunpack.c.h.b16 %v705
        %v2289 = vunpack.c.l.b16 %v706
        %v2290 = vunpack.c.h.b16 %v706
        %v2291 = vunpack.c.l.b16 %v707
        %v2292 = vpack.c.b16 %v2075, %v2068
        %v2293 = vpack.c.b16 %v2076, %v2069
        %v2294 = vpack.c.b16 %v2077, %v2070
        %v2295 = vpack.c.b16 %v2078, %v2071
        %v2296 = vpack.c.b16 %v2079, %v2072
        %v2297 = vpack.c.b16 %v2080, %v2073
        %v2298 = vpack.c.b16 %v2081, %v2074
        %v2299 = vpack.c.b16 %v2089, %v2082
        %v2300 = vpack.c.b16 %v2090, %v2083
        %v2301 = vpack.c.b16 %v2091, %v2084
        %v2302 = vpack.c.b16 %v2092, %v2085
        %v2303 = vpack.c.b16 %v2093, %v2086
        %v2304 = vpack.c.b16 %v2094, %v2087
        %v2305 = vpack.c.b16 %v2095, %v2088
        %v2306 = vpack.c.b16 %v2103, %v2096
        %v2307 = vpack.c.b16 %v2104, %v2097
        %v2308 = vpack.c.b16 %v2105, %v2098
        %v2309 = vpack.c.b16 %v2106, %v2099
        %v2310 = vpack.c.b16 %v2107, %v2100
        %v2311 = vpack.c.b16 %v2108, %v2101
        %v2312 = vpack.c.b16 %v2109, %v2102
        %v2313 = vpack.c.b16 %v2117, %v2110
        %v2314 = vpack.c.b16 %v2118, %v2111
        %v2315 = vpack.c.b16 %v2119, %v2112
        %v2316 = vpack.c.b16 %v2120, %v2113
        %v2317 = vpack.c.b16 %v2121, %v2114
        %v2318 = vpack.c.b16 %v2122, %v2115
        %v2319 = vpack.c.b16 %v2123, %v2116
        %v2320 = vpack.c.b16 %v2131, %v2124
        %v2321 = vpack.c.b16 %v2132, %v2125
        %v2322 = vpack.c.b16 %v2133, %v2126
        %v2323 = vpack.c.b16 %v2134, %v2127
        %v2324 = vpack.c.b16 %v2135, %v2128
        %v2325 = vpack.c.b16 %v2136, %v2129
        %v2326 = vpack.c.b16 %v2137, %v2130
        %v2327 = vpack.c.b16 %v2145, %v2138
        %v2328 = vpack.c.b16 %v2146, %v2139
        %v2329 = vpack.c.b16 %v2147, %v2140
        %v2330 = vpack.c.b16 %v2148, %v2141
        %v2331 = vpack.c.b16 %v2149, %v2142
        %v2332 = vpack.c.b16 %v2150, %v2143
        %v2333 = vpack.c.b16 %v2151, %v2144
        %v2334 = vpack.c.b16 %v2159, %v2152
        %v2335 = vpack.c.b16 %v2160, %v2153
        %v2336 = vpack.c.b16 %v2161, %v2154
        %v2337 = vpack.c.b16 %v2162, %v2155
        %v2338 = vpack.c.b16 %v2163, %v2156
        %v2339 = vpack.c.b16 %v2164, %v2157
        %v2340 = vpack.c.b16 %v2165, %v2158
        %v2341 = vpack.c.b16 %v2173, %v2166
        %v2342 = vpack.c.b16 %v2174, %v2167
        %v2343 = vpack.c.b16 %v2175, %v2168
        %v2344 = vpack.c.b16 %v2176, %v2169
        %v2345 = vpack.c.b16 %v2177, %v2170
        %v2346 = vpack.c.b16 %v2178, %v2171
        %v2347 = vpack.c.b16 %v2179, %v2172
        %v2348 = vpack.c.b16 %v2187, %v2180
        %v2349 = vpack.c.b16 %v2188, %v2181
        %v2350 = vpack.c.b16 %v2189, %v2182
        %v2351 = vpack.c.b16 %v2190, %v2183
        %v2352 = vpack.c.b16 %v2191, %v2184
        %v2353 = vpack.c.b16 %v2192, %v2185
        %v2354 = vpack.c.b16 %v2193, %v2186
        %v2355 = vpack.c.b16 %v2201, %v2194
        %v2356 = vpack.c.b16 %v2202, %v2195
        %v2357 = vpack.c.b16 %v2203, %v2196
        %v2358 = vpack.c.b16 %v2204, %v2197
        %v2359 = vpack.c.b16 %v2205, %v2198
        %v2360 = vpack.c.b16 %v2206, %v2199
        %v2361 = vpack.c.b16 %v2207, %v2200
        %v2362 = vpack.c.b16 %v2215, %v2208
        %v2363 = vpack.c.b16 %v2216, %v2209
        %v2364 = vpack.c.b16 %v2217, %v2210
        %v2365 = vpack.c.b16 %v2218, %v2211
        %v2366 = vpack.c.b16 %v2219, %v2212
        %v2367 = vpack.c.b16 %v2220, %v2213
        %v2368 = vpack.c.b16 %v2221, %v2214
        %v2369 = vpack.c.b16 %v2229, %v2222
        %v2370 = vpack.c.b16 %v2230, %v2223
        %v2371 = vpack.c.b16 %v2231, %v2224
        %v2372 = vpack.c.b16 %v2232, %v2225
        %v2373 = vpack.c.b16 %v2233, %v2226
        %v2374 = vpack.c.b16 %v2234, %v2227
        %v2375 = vpack.c.b16 %v2235, %v2228
        %v2376 = vpack.c.b16 %v2243, %v2236
        %v2377 = vpack.c.b16 %v2244, %v2237
        %v2378 = vpack.c.b16 %v2245, %v2238
        %v2379 = vpack.c.b16 %v2246, %v2239
        %v2380 = vpack.c.b16 %v2247, %v2240
        %v2381 = vpack.c.b16 %v2248, %v2241
        %v2382 = vpack.c.b16 %v2249, %v2242
        %v2383 = vpack.c.b16 %v2257, %v2250
        %v2384 = vpack.c.b16 %v2258, %v2251
        %v2385 = vpack.c.b16 %v2259, %v2252
        %v2386 = vpack.c.b16 %v2260, %v2253
        %v2387 = vpack.c.b16 %v2261, %v2254
        %v2388 = vpack.c.b16 %v2262, %v2255
        %v2389 = vpack.c.b16 %v2263, %v2256
        %v2390 = vpack.c.b16 %v2271, %v2264
        %v2391 = vpack.c.b16 %v2272, %v2265
        %v2392 = vpack.c.b16 %v2273, %v2266
        %v2393 = vpack.c.b16 %v2274, %v2267
        %v2394 = vpack.c.b16 %v2275, %v2268
        %v2395 = vpack.c.b16 %v2276, %v2269
        %v2396 = vpack.c.b16 %v2277, %v2270
        %v2397 = vpack.c.b16 %v2285, %v2278
        %v2398 = vpack.c.b16 %v2286, %v2279
        %v2399 = vpack.c.b16 %v2287, %v2280
        %v2400 = vpack.c.b16 %v2288, %v2281
        %v2401 = vpack.c.b16 %v2289, %v2282
        %v2402 = vpack.c.b16 %v2290, %v2283
        %v2403 = vpack.c.b16 %v2291, %v2284
        %2516 = vmatpush.bf16.msra.mxu0 %v1744
        %2517 = vmatpush.bf16.msra.mxu0 %v1740
        %2518 = vmatpush.bf16.msra.mxu0 %v1736
        %2519 = vmatpush.bf16.msra.mxu0 %v1732
        %2520 = vmatpush.bf16.msra.mxu0 %v1728
        %2521 = vmatpush.bf16.msra.mxu0 %v1724
        %2522 = vmatpush.bf16.msra.mxu0 %v1720
        %2523 = vmatpush.bf16.msra.mxu0 %v1716
        %2524 = vmatmul.bf16.gmra.mxu0 %v2292
        %v2525 = vpop.f32.mrf.mxu0
        %v2526 = vadd.f32 0.0, %v2525
        %v2527 = vpop.f32.mrf.mxu0
        %v2528 = vadd.f32 0.0, %v2527
        %2529 = vmatmul.bf16.gmra.mxu0 %v2299
        %v2530 = vpop.f32.mrf.mxu0
        %v2531 = vadd.f32 0.0, %v2530
        %v2532 = vpop.f32.mrf.mxu0
        %v2533 = vadd.f32 0.0, %v2532
        %2534 = vmatmul.bf16.gmra.mxu0 %v2306
        %v2535 = vpop.f32.mrf.mxu0
        %v2536 = vadd.f32 0.0, %v2535
        %v2537 = vpop.f32.mrf.mxu0
        %v2538 = vadd.f32 0.0, %v2537
        %2539 = vmatmul.bf16.gmra.mxu0 %v2313
        %v2540 = vpop.f32.mrf.mxu0
        %v2541 = vadd.f32 0.0, %v2540
        %v2542 = vpop.f32.mrf.mxu0
        %v2543 = vadd.f32 0.0, %v2542
        %2544 = vmatmul.bf16.gmra.mxu0 %v2320
        %v2545 = vpop.f32.mrf.mxu0
        %v2546 = vadd.f32 0.0, %v2545
        %v2547 = vpop.f32.mrf.mxu0
        %v2548 = vadd.f32 0.0, %v2547
        %2549 = vmatmul.bf16.gmra.mxu0 %v2327
        %v2550 = vpop.f32.mrf.mxu0
        %v2551 = vadd.f32 0.0, %v2550
        %v2552 = vpop.f32.mrf.mxu0
        %v2553 = vadd.f32 0.0, %v2552
        %2554 = vmatmul.bf16.gmra.mxu0 %v2334
        %v2555 = vpop.f32.mrf.mxu0
        %v2556 = vadd.f32 0.0, %v2555
        %v2557 = vpop.f32.mrf.mxu0
        %v2558 = vadd.f32 0.0, %v2557
        %2559 = vmatmul.bf16.gmra.mxu0 %v2341
        %v2560 = vpop.f32.mrf.mxu0
        %v2561 = vadd.f32 0.0, %v2560
        %v2562 = vpop.f32.mrf.mxu0
        %v2563 = vadd.f32 0.0, %v2562
        %2564 = vmatmul.bf16.gmra.mxu0 %v2348
        %v2565 = vpop.f32.mrf.mxu0
        %v2566 = vadd.f32 0.0, %v2565
        %v2567 = vpop.f32.mrf.mxu0
        %v2568 = vadd.f32 0.0, %v2567
        %2569 = vmatmul.bf16.gmra.mxu0 %v2355
        %v2570 = vpop.f32.mrf.mxu0
        %v2571 = vadd.f32 0.0, %v2570
        %v2572 = vpop.f32.mrf.mxu0
        %v2573 = vadd.f32 0.0, %v2572
        %2574 = vmatmul.bf16.gmra.mxu0 %v2362
        %v2575 = vpop.f32.mrf.mxu0
        %v2576 = vadd.f32 0.0, %v2575
        %v2577 = vpop.f32.mrf.mxu0
        %v2578 = vadd.f32 0.0, %v2577
        %2579 = vmatmul.bf16.gmra.mxu0 %v2369
        %v2580 = vpop.f32.mrf.mxu0
        %v2581 = vadd.f32 0.0, %v2580
        %v2582 = vpop.f32.mrf.mxu0
        %v2583 = vadd.f32 0.0, %v2582
        %2584 = vmatmul.bf16.gmra.mxu0 %v2376
        %v2585 = vpop.f32.mrf.mxu0
        %v2586 = vadd.f32 0.0, %v2585
        %v2587 = vpop.f32.mrf.mxu0
        %v2588 = vadd.f32 0.0, %v2587
        %2589 = vmatmul.bf16.gmra.mxu0 %v2383
        %v2590 = vpop.f32.mrf.mxu0
        %v2591 = vadd.f32 0.0, %v2590
        %v2592 = vpop.f32.mrf.mxu0
        %v2593 = vadd.f32 0.0, %v2592
        %2594 = vmatmul.bf16.gmra.mxu0 %v2390
        %v2595 = vpop.f32.mrf.mxu0
        %v2596 = vadd.f32 0.0, %v2595
        %v2597 = vpop.f32.mrf.mxu0
        %v2598 = vadd.f32 0.0, %v2597
        %2599 = vmatmul.bf16.gmra.mxu0 %v2397
        %v2600 = vpop.f32.mrf.mxu0
        %v2601 = vadd.f32 0.0, %v2600
        %v2602 = vpop.f32.mrf.mxu0
        %v2603 = vadd.f32 0.0, %v2602
        %2604 = vdwg.mxu0
        %2605 = vmatpush.bf16.msra.mxu0 %v1776
        %2606 = vmatpush.bf16.msra.mxu0 %v1772
        %2607 = vmatpush.bf16.msra.mxu0 %v1768
        %2608 = vmatpush.bf16.msra.mxu0 %v1764
        %2609 = vmatpush.bf16.msra.mxu0 %v1760
        %2610 = vmatpush.bf16.msra.mxu0 %v1756
        %2611 = vmatpush.bf16.msra.mxu0 %v1752
        %2612 = vmatpush.bf16.msra.mxu0 %v1748
        %2613 = vmatmul.bf16.gmra.mxu0 %v2293
        %v2614 = vpop.f32.mrf.mxu0
        %v2615 = vadd.f32 %v2526, %v2614
        %v2616 = vpop.f32.mrf.mxu0
        %v2617 = vadd.f32 %v2528, %v2616
        %2618 = vmatmul.bf16.gmra.mxu0 %v2300
        %v2619 = vpop.f32.mrf.mxu0
        %v2620 = vadd.f32 %v2531, %v2619
        %v2621 = vpop.f32.mrf.mxu0
        %v2622 = vadd.f32 %v2533, %v2621
        %2623 = vmatmul.bf16.gmra.mxu0 %v2307
        %v2624 = vpop.f32.mrf.mxu0
        %v2625 = vadd.f32 %v2536, %v2624
        %v2626 = vpop.f32.mrf.mxu0
        %v2627 = vadd.f32 %v2538, %v2626
        %2628 = vmatmul.bf16.gmra.mxu0 %v2314
        %v2629 = vpop.f32.mrf.mxu0
        %v2630 = vadd.f32 %v2541, %v2629
        %v2631 = vpop.f32.mrf.mxu0
        %v2632 = vadd.f32 %v2543, %v2631
        %2633 = vmatmul.bf16.gmra.mxu0 %v2321
        %v2634 = vpop.f32.mrf.mxu0
        %v2635 = vadd.f32 %v2546, %v2634
        %v2636 = vpop.f32.mrf.mxu0
        %v2637 = vadd.f32 %v2548, %v2636
        %2638 = vmatmul.bf16.gmra.mxu0 %v2328
        %v2639 = vpop.f32.mrf.mxu0
        %v2640 = vadd.f32 %v2551, %v2639
        %v2641 = vpop.f32.mrf.mxu0
        %v2642 = vadd.f32 %v2553, %v2641
        %2643 = vmatmul.bf16.gmra.mxu0 %v2335
        %v2644 = vpop.f32.mrf.mxu0
        %v2645 = vadd.f32 %v2556, %v2644
        %v2646 = vpop.f32.mrf.mxu0
        %v2647 = vadd.f32 %v2558, %v2646
        %2648 = vmatmul.bf16.gmra.mxu0 %v2342
        %v2649 = vpop.f32.mrf.mxu0
        %v2650 = vadd.f32 %v2561, %v2649
        %v2651 = vpop.f32.mrf.mxu0
        %v2652 = vadd.f32 %v2563, %v2651
        %2653 = vmatmul.bf16.gmra.mxu0 %v2349
        %v2654 = vpop.f32.mrf.mxu0
        %v2655 = vadd.f32 %v2566, %v2654
        %v2656 = vpop.f32.mrf.mxu0
        %v2657 = vadd.f32 %v2568, %v2656
        %2658 = vmatmul.bf16.gmra.mxu0 %v2356
        %v2659 = vpop.f32.mrf.mxu0
        %v2660 = vadd.f32 %v2571, %v2659
        %v2661 = vpop.f32.mrf.mxu0
        %v2662 = vadd.f32 %v2573, %v2661
        %2663 = vmatmul.bf16.gmra.mxu0 %v2363
        %v2664 = vpop.f32.mrf.mxu0
        %v2665 = vadd.f32 %v2576, %v2664
        %v2666 = vpop.f32.mrf.mxu0
        %v2667 = vadd.f32 %v2578, %v2666
        %2668 = vmatmul.bf16.gmra.mxu0 %v2370
        %v2669 = vpop.f32.mrf.mxu0
        %v2670 = vadd.f32 %v2581, %v2669
        %v2671 = vpop.f32.mrf.mxu0
        %v2672 = vadd.f32 %v2583, %v2671
        %2673 = vmatmul.bf16.gmra.mxu0 %v2377
        %v2674 = vpop.f32.mrf.mxu0
        %v2675 = vadd.f32 %v2586, %v2674
        %v2676 = vpop.f32.mrf.mxu0
        %v2677 = vadd.f32 %v2588, %v2676
        %2678 = vmatmul.bf16.gmra.mxu0 %v2384
        %v2679 = vpop.f32.mrf.mxu0
        %v2680 = vadd.f32 %v2591, %v2679
        %v2681 = vpop.f32.mrf.mxu0
        %v2682 = vadd.f32 %v2593, %v2681
        %2683 = vmatmul.bf16.gmra.mxu0 %v2391
        %v2684 = vpop.f32.mrf.mxu0
        %v2685 = vadd.f32 %v2596, %v2684
        %v2686 = vpop.f32.mrf.mxu0
        %v2687 = vadd.f32 %v2598, %v2686
        %2688 = vmatmul.bf16.gmra.mxu0 %v2398
        %v2689 = vpop.f32.mrf.mxu0
        %v2690 = vadd.f32 %v2601, %v2689
        %v2691 = vpop.f32.mrf.mxu0
        %v2692 = vadd.f32 %v2603, %v2691
        %2693 = vdwg.mxu0
        %2694 = vmatpush.bf16.msra.mxu0 %v1808
        %2695 = vmatpush.bf16.msra.mxu0 %v1804
        %2696 = vmatpush.bf16.msra.mxu0 %v1800
        %2697 = vmatpush.bf16.msra.mxu0 %v1796
        %2698 = vmatpush.bf16.msra.mxu0 %v1792
        %2699 = vmatpush.bf16.msra.mxu0 %v1788
        %2700 = vmatpush.bf16.msra.mxu0 %v1784
        %2701 = vmatpush.bf16.msra.mxu0 %v1780
        %2702 = vmatmul.bf16.gmra.mxu0 %v2294
        %v2703 = vpop.f32.mrf.mxu0
        %v2704 = vadd.f32 %v2615, %v2703
        %v2705 = vpop.f32.mrf.mxu0
        %v2706 = vadd.f32 %v2617, %v2705
        %2707 = vmatmul.bf16.gmra.mxu0 %v2301
        %v2708 = vpop.f32.mrf.mxu0
        %v2709 = vadd.f32 %v2620, %v2708
        %v2710 = vpop.f32.mrf.mxu0
        %v2711 = vadd.f32 %v2622, %v2710
        %2712 = vmatmul.bf16.gmra.mxu0 %v2308
        %v2713 = vpop.f32.mrf.mxu0
        %v2714 = vadd.f32 %v2625, %v2713
        %v2715 = vpop.f32.mrf.mxu0
        %v2716 = vadd.f32 %v2627, %v2715
        %2717 = vmatmul.bf16.gmra.mxu0 %v2315
        %v2718 = vpop.f32.mrf.mxu0
        %v2719 = vadd.f32 %v2630, %v2718
        %v2720 = vpop.f32.mrf.mxu0
        %v2721 = vadd.f32 %v2632, %v2720
        %2722 = vmatmul.bf16.gmra.mxu0 %v2322
        %v2723 = vpop.f32.mrf.mxu0
        %v2724 = vadd.f32 %v2635, %v2723
        %v2725 = vpop.f32.mrf.mxu0
        %v2726 = vadd.f32 %v2637, %v2725
        %2727 = vmatmul.bf16.gmra.mxu0 %v2329
        %v2728 = vpop.f32.mrf.mxu0
        %v2729 = vadd.f32 %v2640, %v2728
        %v2730 = vpop.f32.mrf.mxu0
        %v2731 = vadd.f32 %v2642, %v2730
        %2732 = vmatmul.bf16.gmra.mxu0 %v2336
        %v2733 = vpop.f32.mrf.mxu0
        %v2734 = vadd.f32 %v2645, %v2733
        %v2735 = vpop.f32.mrf.mxu0
        %v2736 = vadd.f32 %v2647, %v2735
        %2737 = vmatmul.bf16.gmra.mxu0 %v2343
        %v2738 = vpop.f32.mrf.mxu0
        %v2739 = vadd.f32 %v2650, %v2738
        %v2740 = vpop.f32.mrf.mxu0
        %v2741 = vadd.f32 %v2652, %v2740
        %2742 = vmatmul.bf16.gmra.mxu0 %v2350
        %v2743 = vpop.f32.mrf.mxu0
        %v2744 = vadd.f32 %v2655, %v2743
        %v2745 = vpop.f32.mrf.mxu0
        %v2746 = vadd.f32 %v2657, %v2745
        %2747 = vmatmul.bf16.gmra.mxu0 %v2357
        %v2748 = vpop.f32.mrf.mxu0
        %v2749 = vadd.f32 %v2660, %v2748
        %v2750 = vpop.f32.mrf.mxu0
        %v2751 = vadd.f32 %v2662, %v2750
        %2752 = vmatmul.bf16.gmra.mxu0 %v2364
        %v2753 = vpop.f32.mrf.mxu0
        %v2754 = vadd.f32 %v2665, %v2753
        %v2755 = vpop.f32.mrf.mxu0
        %v2756 = vadd.f32 %v2667, %v2755
        %2757 = vmatmul.bf16.gmra.mxu0 %v2371
        %v2758 = vpop.f32.mrf.mxu0
        %v2759 = vadd.f32 %v2670, %v2758
        %v2760 = vpop.f32.mrf.mxu0
        %v2761 = vadd.f32 %v2672, %v2760
        %2762 = vmatmul.bf16.gmra.mxu0 %v2378
        %v2763 = vpop.f32.mrf.mxu0
        %v2764 = vadd.f32 %v2675, %v2763
        %v2765 = vpop.f32.mrf.mxu0
        %v2766 = vadd.f32 %v2677, %v2765
        %2767 = vmatmul.bf16.gmra.mxu0 %v2385
        %v2768 = vpop.f32.mrf.mxu0
        %v2769 = vadd.f32 %v2680, %v2768
        %v2770 = vpop.f32.mrf.mxu0
        %v2771 = vadd.f32 %v2682, %v2770
        %2772 = vmatmul.bf16.gmra.mxu0 %v2392
        %v2773 = vpop.f32.mrf.mxu0
        %v2774 = vadd.f32 %v2685, %v2773
        %v2775 = vpop.f32.mrf.mxu0
        %v2776 = vadd.f32 %v2687, %v2775
        %2777 = vmatmul.bf16.gmra.mxu0 %v2399
        %v2778 = vpop.f32.mrf.mxu0
        %v2779 = vadd.f32 %v2690, %v2778
        %v2780 = vpop.f32.mrf.mxu0
        %v2781 = vadd.f32 %v2692, %v2780
        %2782 = vdwg.mxu0
        %2783 = vmatpush.bf16.msra.mxu0 %v1840
        %2784 = vmatpush.bf16.msra.mxu0 %v1836
        %2785 = vmatpush.bf16.msra.mxu0 %v1832
        %2786 = vmatpush.bf16.msra.mxu0 %v1828
        %2787 = vmatpush.bf16.msra.mxu0 %v1824
        %2788 = vmatpush.bf16.msra.mxu0 %v1820
        %2789 = vmatpush.bf16.msra.mxu0 %v1816
        %2790 = vmatpush.bf16.msra.mxu0 %v1812
        %2791 = vmatmul.bf16.gmra.mxu0 %v2295
        %v2792 = vpop.f32.mrf.mxu0
        %v2793 = vadd.f32 %v2704, %v2792
        %v2794 = vpop.f32.mrf.mxu0
        %v2795 = vadd.f32 %v2706, %v2794
        %2796 = vmatmul.bf16.gmra.mxu0 %v2302
        %v2797 = vpop.f32.mrf.mxu0
        %v2798 = vadd.f32 %v2709, %v2797
        %v2799 = vpop.f32.mrf.mxu0
        %v2800 = vadd.f32 %v2711, %v2799
        %2801 = vmatmul.bf16.gmra.mxu0 %v2309
        %v2802 = vpop.f32.mrf.mxu0
        %v2803 = vadd.f32 %v2714, %v2802
        %v2804 = vpop.f32.mrf.mxu0
        %v2805 = vadd.f32 %v2716, %v2804
        %2806 = vmatmul.bf16.gmra.mxu0 %v2316
        %v2807 = vpop.f32.mrf.mxu0
        %v2808 = vadd.f32 %v2719, %v2807
        %v2809 = vpop.f32.mrf.mxu0
        %v2810 = vadd.f32 %v2721, %v2809
        %2811 = vmatmul.bf16.gmra.mxu0 %v2323
        %v2812 = vpop.f32.mrf.mxu0
        %v2813 = vadd.f32 %v2724, %v2812
        %v2814 = vpop.f32.mrf.mxu0
        %v2815 = vadd.f32 %v2726, %v2814
        %2816 = vmatmul.bf16.gmra.mxu0 %v2330
        %v2817 = vpop.f32.mrf.mxu0
        %v2818 = vadd.f32 %v2729, %v2817
        %v2819 = vpop.f32.mrf.mxu0
        %v2820 = vadd.f32 %v2731, %v2819
        %2821 = vmatmul.bf16.gmra.mxu0 %v2337
        %v2822 = vpop.f32.mrf.mxu0
        %v2823 = vadd.f32 %v2734, %v2822
        %v2824 = vpop.f32.mrf.mxu0
        %v2825 = vadd.f32 %v2736, %v2824
        %2826 = vmatmul.bf16.gmra.mxu0 %v2344
        %v2827 = vpop.f32.mrf.mxu0
        %v2828 = vadd.f32 %v2739, %v2827
        %v2829 = vpop.f32.mrf.mxu0
        %v2830 = vadd.f32 %v2741, %v2829
        %2831 = vmatmul.bf16.gmra.mxu0 %v2351
        %v2832 = vpop.f32.mrf.mxu0
        %v2833 = vadd.f32 %v2744, %v2832
        %v2834 = vpop.f32.mrf.mxu0
        %v2835 = vadd.f32 %v2746, %v2834
        %2836 = vmatmul.bf16.gmra.mxu0 %v2358
        %v2837 = vpop.f32.mrf.mxu0
        %v2838 = vadd.f32 %v2749, %v2837
        %v2839 = vpop.f32.mrf.mxu0
        %v2840 = vadd.f32 %v2751, %v2839
        %2841 = vmatmul.bf16.gmra.mxu0 %v2365
        %v2842 = vpop.f32.mrf.mxu0
        %v2843 = vadd.f32 %v2754, %v2842
        %v2844 = vpop.f32.mrf.mxu0
        %v2845 = vadd.f32 %v2756, %v2844
        %2846 = vmatmul.bf16.gmra.mxu0 %v2372
        %v2847 = vpop.f32.mrf.mxu0
        %v2848 = vadd.f32 %v2759, %v2847
        %v2849 = vpop.f32.mrf.mxu0
        %v2850 = vadd.f32 %v2761, %v2849
        %2851 = vmatmul.bf16.gmra.mxu0 %v2379
        %v2852 = vpop.f32.mrf.mxu0
        %v2853 = vadd.f32 %v2764, %v2852
        %v2854 = vpop.f32.mrf.mxu0
        %v2855 = vadd.f32 %v2766, %v2854
        %2856 = vmatmul.bf16.gmra.mxu0 %v2386
        %v2857 = vpop.f32.mrf.mxu0
        %v2858 = vadd.f32 %v2769, %v2857
        %v2859 = vpop.f32.mrf.mxu0
        %v2860 = vadd.f32 %v2771, %v2859
        %2861 = vmatmul.bf16.gmra.mxu0 %v2393
        %v2862 = vpop.f32.mrf.mxu0
        %v2863 = vadd.f32 %v2774, %v2862
        %v2864 = vpop.f32.mrf.mxu0
        %v2865 = vadd.f32 %v2776, %v2864
        %2866 = vmatmul.bf16.gmra.mxu0 %v2400
        %v2867 = vpop.f32.mrf.mxu0
        %v2868 = vadd.f32 %v2779, %v2867
        %v2869 = vpop.f32.mrf.mxu0
        %v2870 = vadd.f32 %v2781, %v2869
        %2871 = vdwg.mxu0
        %2872 = vmatpush.bf16.msra.mxu0 %v1872
        %2873 = vmatpush.bf16.msra.mxu0 %v1868
        %2874 = vmatpush.bf16.msra.mxu0 %v1864
        %2875 = vmatpush.bf16.msra.mxu0 %v1860
        %2876 = vmatpush.bf16.msra.mxu0 %v1856
        %2877 = vmatpush.bf16.msra.mxu0 %v1852
        %2878 = vmatpush.bf16.msra.mxu0 %v1848
        %2879 = vmatpush.bf16.msra.mxu0 %v1844
        %2880 = vmatmul.bf16.gmra.mxu0 %v2296
        %v2881 = vpop.f32.mrf.mxu0
        %v2882 = vadd.f32 %v2793, %v2881
        %v2883 = vpop.f32.mrf.mxu0
        %v2884 = vadd.f32 %v2795, %v2883
        %2885 = vmatmul.bf16.gmra.mxu0 %v2303
        %v2886 = vpop.f32.mrf.mxu0
        %v2887 = vadd.f32 %v2798, %v2886
        %v2888 = vpop.f32.mrf.mxu0
        %v2889 = vadd.f32 %v2800, %v2888
        %2890 = vmatmul.bf16.gmra.mxu0 %v2310
        %v2891 = vpop.f32.mrf.mxu0
        %v2892 = vadd.f32 %v2803, %v2891
        %v2893 = vpop.f32.mrf.mxu0
        %v2894 = vadd.f32 %v2805, %v2893
        %2895 = vmatmul.bf16.gmra.mxu0 %v2317
        %v2896 = vpop.f32.mrf.mxu0
        %v2897 = vadd.f32 %v2808, %v2896
        %v2898 = vpop.f32.mrf.mxu0
        %v2899 = vadd.f32 %v2810, %v2898
        %2900 = vmatmul.bf16.gmra.mxu0 %v2324
        %v2901 = vpop.f32.mrf.mxu0
        %v2902 = vadd.f32 %v2813, %v2901
        %v2903 = vpop.f32.mrf.mxu0
        %v2904 = vadd.f32 %v2815, %v2903
        %2905 = vmatmul.bf16.gmra.mxu0 %v2331
        %v2906 = vpop.f32.mrf.mxu0
        %v2907 = vadd.f32 %v2818, %v2906
        %v2908 = vpop.f32.mrf.mxu0
        %v2909 = vadd.f32 %v2820, %v2908
        %2910 = vmatmul.bf16.gmra.mxu0 %v2338
        %v2911 = vpop.f32.mrf.mxu0
        %v2912 = vadd.f32 %v2823, %v2911
        %v2913 = vpop.f32.mrf.mxu0
        %v2914 = vadd.f32 %v2825, %v2913
        %2915 = vmatmul.bf16.gmra.mxu0 %v2345
        %v2916 = vpop.f32.mrf.mxu0
        %v2917 = vadd.f32 %v2828, %v2916
        %v2918 = vpop.f32.mrf.mxu0
        %v2919 = vadd.f32 %v2830, %v2918
        %2920 = vmatmul.bf16.gmra.mxu0 %v2352
        %v2921 = vpop.f32.mrf.mxu0
        %v2922 = vadd.f32 %v2833, %v2921
        %v2923 = vpop.f32.mrf.mxu0
        %v2924 = vadd.f32 %v2835, %v2923
        %2925 = vmatmul.bf16.gmra.mxu0 %v2359
        %v2926 = vpop.f32.mrf.mxu0
        %v2927 = vadd.f32 %v2838, %v2926
        %v2928 = vpop.f32.mrf.mxu0
        %v2929 = vadd.f32 %v2840, %v2928
        %2930 = vmatmul.bf16.gmra.mxu0 %v2366
        %v2931 = vpop.f32.mrf.mxu0
        %v2932 = vadd.f32 %v2843, %v2931
        %v2933 = vpop.f32.mrf.mxu0
        %v2934 = vadd.f32 %v2845, %v2933
        %2935 = vmatmul.bf16.gmra.mxu0 %v2373
        %v2936 = vpop.f32.mrf.mxu0
        %v2937 = vadd.f32 %v2848, %v2936
        %v2938 = vpop.f32.mrf.mxu0
        %v2939 = vadd.f32 %v2850, %v2938
        %2940 = vmatmul.bf16.gmra.mxu0 %v2380
        %v2941 = vpop.f32.mrf.mxu0
        %v2942 = vadd.f32 %v2853, %v2941
        %v2943 = vpop.f32.mrf.mxu0
        %v2944 = vadd.f32 %v2855, %v2943
        %2945 = vmatmul.bf16.gmra.mxu0 %v2387
        %v2946 = vpop.f32.mrf.mxu0
        %v2947 = vadd.f32 %v2858, %v2946
        %v2948 = vpop.f32.mrf.mxu0
        %v2949 = vadd.f32 %v2860, %v2948
        %2950 = vmatmul.bf16.gmra.mxu0 %v2394
        %v2951 = vpop.f32.mrf.mxu0
        %v2952 = vadd.f32 %v2863, %v2951
        %v2953 = vpop.f32.mrf.mxu0
        %v2954 = vadd.f32 %v2865, %v2953
        %2955 = vmatmul.bf16.gmra.mxu0 %v2401
        %v2956 = vpop.f32.mrf.mxu0
        %v2957 = vadd.f32 %v2868, %v2956
        %v2958 = vpop.f32.mrf.mxu0
        %v2959 = vadd.f32 %v2870, %v2958
        %2960 = vdwg.mxu0
        %2961 = vmatpush.bf16.msra.mxu0 %v1904
        %2962 = vmatpush.bf16.msra.mxu0 %v1900
        %2963 = vmatpush.bf16.msra.mxu0 %v1896
        %2964 = vmatpush.bf16.msra.mxu0 %v1892
        %2965 = vmatpush.bf16.msra.mxu0 %v1888
        %2966 = vmatpush.bf16.msra.mxu0 %v1884
        %2967 = vmatpush.bf16.msra.mxu0 %v1880
        %2968 = vmatpush.bf16.msra.mxu0 %v1876
        %2969 = vmatmul.bf16.gmra.mxu0 %v2297
        %v2970 = vpop.f32.mrf.mxu0
        %v2971 = vadd.f32 %v2882, %v2970
        %v2972 = vpop.f32.mrf.mxu0
        %v2973 = vadd.f32 %v2884, %v2972
        %2974 = vmatmul.bf16.gmra.mxu0 %v2304
        %v2975 = vpop.f32.mrf.mxu0
        %v2976 = vadd.f32 %v2887, %v2975
        %v2977 = vpop.f32.mrf.mxu0
        %v2978 = vadd.f32 %v2889, %v2977
        %2979 = vmatmul.bf16.gmra.mxu0 %v2311
        %v2980 = vpop.f32.mrf.mxu0
        %v2981 = vadd.f32 %v2892, %v2980
        %v2982 = vpop.f32.mrf.mxu0
        %v2983 = vadd.f32 %v2894, %v2982
        %2984 = vmatmul.bf16.gmra.mxu0 %v2318
        %v2985 = vpop.f32.mrf.mxu0
        %v2986 = vadd.f32 %v2897, %v2985
        %v2987 = vpop.f32.mrf.mxu0
        %v2988 = vadd.f32 %v2899, %v2987
        %2989 = vmatmul.bf16.gmra.mxu0 %v2325
        %v2990 = vpop.f32.mrf.mxu0
        %v2991 = vadd.f32 %v2902, %v2990
        %v2992 = vpop.f32.mrf.mxu0
        %v2993 = vadd.f32 %v2904, %v2992
        %2994 = vmatmul.bf16.gmra.mxu0 %v2332
        %v2995 = vpop.f32.mrf.mxu0
        %v2996 = vadd.f32 %v2907, %v2995
        %v2997 = vpop.f32.mrf.mxu0
        %v2998 = vadd.f32 %v2909, %v2997
        %2999 = vmatmul.bf16.gmra.mxu0 %v2339
        %v3000 = vpop.f32.mrf.mxu0
        %v3001 = vadd.f32 %v2912, %v3000
        %v3002 = vpop.f32.mrf.mxu0
        %v3003 = vadd.f32 %v2914, %v3002
        %3004 = vmatmul.bf16.gmra.mxu0 %v2346
        %v3005 = vpop.f32.mrf.mxu0
        %v3006 = vadd.f32 %v2917, %v3005
        %v3007 = vpop.f32.mrf.mxu0
        %v3008 = vadd.f32 %v2919, %v3007
        %3009 = vmatmul.bf16.gmra.mxu0 %v2353
        %v3010 = vpop.f32.mrf.mxu0
        %v3011 = vadd.f32 %v2922, %v3010
        %v3012 = vpop.f32.mrf.mxu0
        %v3013 = vadd.f32 %v2924, %v3012
        %3014 = vmatmul.bf16.gmra.mxu0 %v2360
        %v3015 = vpop.f32.mrf.mxu0
        %v3016 = vadd.f32 %v2927, %v3015
        %v3017 = vpop.f32.mrf.mxu0
        %v3018 = vadd.f32 %v2929, %v3017
        %3019 = vmatmul.bf16.gmra.mxu0 %v2367
        %v3020 = vpop.f32.mrf.mxu0
        %v3021 = vadd.f32 %v2932, %v3020
        %v3022 = vpop.f32.mrf.mxu0
        %v3023 = vadd.f32 %v2934, %v3022
        %3024 = vmatmul.bf16.gmra.mxu0 %v2374
        %v3025 = vpop.f32.mrf.mxu0
        %v3026 = vadd.f32 %v2937, %v3025
        %v3027 = vpop.f32.mrf.mxu0
        %v3028 = vadd.f32 %v2939, %v3027
        %3029 = vmatmul.bf16.gmra.mxu0 %v2381
        %v3030 = vpop.f32.mrf.mxu0
        %v3031 = vadd.f32 %v2942, %v3030
        %v3032 = vpop.f32.mrf.mxu0
        %v3033 = vadd.f32 %v2944, %v3032
        %3034 = vmatmul.bf16.gmra.mxu0 %v2388
        %v3035 = vpop.f32.mrf.mxu0
        %v3036 = vadd.f32 %v2947, %v3035
        %v3037 = vpop.f32.mrf.mxu0
        %v3038 = vadd.f32 %v2949, %v3037
        %3039 = vmatmul.bf16.gmra.mxu0 %v2395
        %v3040 = vpop.f32.mrf.mxu0
        %v3041 = vadd.f32 %v2952, %v3040
        %v3042 = vpop.f32.mrf.mxu0
        %v3043 = vadd.f32 %v2954, %v3042
        %3044 = vmatmul.bf16.gmra.mxu0 %v2402
        %v3045 = vpop.f32.mrf.mxu0
        %v3046 = vadd.f32 %v2957, %v3045
        %v3047 = vpop.f32.mrf.mxu0
        %v3048 = vadd.f32 %v2959, %v3047
        %3049 = vdwg.mxu0
        %3050 = vmatpush.bf16.msra.mxu0 %v1936
        %3051 = vmatpush.bf16.msra.mxu0 %v1932
        %3052 = vmatpush.bf16.msra.mxu0 %v1928
        %3053 = vmatpush.bf16.msra.mxu0 %v1924
        %3054 = vmatpush.bf16.msra.mxu0 %v1920
        %3055 = vmatpush.bf16.msra.mxu0 %v1916
        %3056 = vmatpush.bf16.msra.mxu0 %v1912
        %3057 = vmatpush.bf16.msra.mxu0 %v1908
        %3058 = vmatmul.bf16.gmra.mxu0 %v2298
        %v3059 = vpop.f32.mrf.mxu0
        %v3060 = vadd.f32 %v2971, %v3059
        %v3061 = vpop.f32.mrf.mxu0
        %v3062 = vadd.f32 %v2973, %v3061
        %3063 = vmatmul.bf16.gmra.mxu0 %v2305
        %v3064 = vpop.f32.mrf.mxu0
        %v3065 = vadd.f32 %v2976, %v3064
        %v3066 = vpop.f32.mrf.mxu0
        %v3067 = vadd.f32 %v2978, %v3066
        %3068 = vmatmul.bf16.gmra.mxu0 %v2312
        %v3069 = vpop.f32.mrf.mxu0
        %v3070 = vadd.f32 %v2981, %v3069
        %v3071 = vpop.f32.mrf.mxu0
        %v3072 = vadd.f32 %v2983, %v3071
        %3073 = vmatmul.bf16.gmra.mxu0 %v2319
        %v3074 = vpop.f32.mrf.mxu0
        %v3075 = vadd.f32 %v2986, %v3074
        %v3076 = vpop.f32.mrf.mxu0
        %v3077 = vadd.f32 %v2988, %v3076
        %3078 = vmatmul.bf16.gmra.mxu0 %v2326
        %v3079 = vpop.f32.mrf.mxu0
        %v3080 = vadd.f32 %v2991, %v3079
        %v3081 = vpop.f32.mrf.mxu0
        %v3082 = vadd.f32 %v2993, %v3081
        %3083 = vmatmul.bf16.gmra.mxu0 %v2333
        %v3084 = vpop.f32.mrf.mxu0
        %v3085 = vadd.f32 %v2996, %v3084
        %v3086 = vpop.f32.mrf.mxu0
        %v3087 = vadd.f32 %v2998, %v3086
        %3088 = vmatmul.bf16.gmra.mxu0 %v2340
        %v3089 = vpop.f32.mrf.mxu0
        %v3090 = vadd.f32 %v3001, %v3089
        %v3091 = vpop.f32.mrf.mxu0
        %v3092 = vadd.f32 %v3003, %v3091
        %3093 = vmatmul.bf16.gmra.mxu0 %v2347
        %v3094 = vpop.f32.mrf.mxu0
        %v3095 = vadd.f32 %v3006, %v3094
        %v3096 = vpop.f32.mrf.mxu0
        %v3097 = vadd.f32 %v3008, %v3096
        %3098 = vmatmul.bf16.gmra.mxu0 %v2354
        %v3099 = vpop.f32.mrf.mxu0
        %v3100 = vadd.f32 %v3011, %v3099
        %v3101 = vpop.f32.mrf.mxu0
        %v3102 = vadd.f32 %v3013, %v3101
        %3103 = vmatmul.bf16.gmra.mxu0 %v2361
        %v3104 = vpop.f32.mrf.mxu0
        %v3105 = vadd.f32 %v3016, %v3104
        %v3106 = vpop.f32.mrf.mxu0
        %v3107 = vadd.f32 %v3018, %v3106
        %3108 = vmatmul.bf16.gmra.mxu0 %v2368
        %v3109 = vpop.f32.mrf.mxu0
        %v3110 = vadd.f32 %v3021, %v3109
        %v3111 = vpop.f32.mrf.mxu0
        %v3112 = vadd.f32 %v3023, %v3111
        %3113 = vmatmul.bf16.gmra.mxu0 %v2375
        %v3114 = vpop.f32.mrf.mxu0
        %v3115 = vadd.f32 %v3026, %v3114
        %v3116 = vpop.f32.mrf.mxu0
        %v3117 = vadd.f32 %v3028, %v3116
        %3118 = vmatmul.bf16.gmra.mxu0 %v2382
        %v3119 = vpop.f32.mrf.mxu0
        %v3120 = vadd.f32 %v3031, %v3119
        %v3121 = vpop.f32.mrf.mxu0
        %v3122 = vadd.f32 %v3033, %v3121
        %3123 = vmatmul.bf16.gmra.mxu0 %v2389
        %v3124 = vpop.f32.mrf.mxu0
        %v3125 = vadd.f32 %v3036, %v3124
        %v3126 = vpop.f32.mrf.mxu0
        %v3127 = vadd.f32 %v3038, %v3126
        %3128 = vmatmul.bf16.gmra.mxu0 %v2396
        %v3129 = vpop.f32.mrf.mxu0
        %v3130 = vadd.f32 %v3041, %v3129
        %v3131 = vpop.f32.mrf.mxu0
        %v3132 = vadd.f32 %v3043, %v3131
        %3133 = vmatmul.bf16.gmra.mxu0 %v2403
        %v3134 = vpop.f32.mrf.mxu0
        %v3135 = vadd.f32 %v3046, %v3134
        %v3136 = vpop.f32.mrf.mxu0
        %v3137 = vadd.f32 %v3048, %v3136
        %3138 = vdwg.mxu0
        %3139 = vmatpush.bf16.msra.mxu0 %v1745
        %3140 = vmatpush.bf16.msra.mxu0 %v1741
        %3141 = vmatpush.bf16.msra.mxu0 %v1737
        %3142 = vmatpush.bf16.msra.mxu0 %v1733
        %3143 = vmatpush.bf16.msra.mxu0 %v1729
        %3144 = vmatpush.bf16.msra.mxu0 %v1725
        %3145 = vmatpush.bf16.msra.mxu0 %v1721
        %3146 = vmatpush.bf16.msra.mxu0 %v1717
        %3147 = vmatmul.bf16.gmra.mxu0 %v2292
        %v3148 = vpop.f32.mrf.mxu0
        %v3149 = vadd.f32 0.0, %v3148
        %v3150 = vpop.f32.mrf.mxu0
        %v3151 = vadd.f32 0.0, %v3150
        %3152 = vmatmul.bf16.gmra.mxu0 %v2299
        %v3153 = vpop.f32.mrf.mxu0
        %v3154 = vadd.f32 0.0, %v3153
        %v3155 = vpop.f32.mrf.mxu0
        %v3156 = vadd.f32 0.0, %v3155
        %3157 = vmatmul.bf16.gmra.mxu0 %v2306
        %v3158 = vpop.f32.mrf.mxu0
        %v3159 = vadd.f32 0.0, %v3158
        %v3160 = vpop.f32.mrf.mxu0
        %v3161 = vadd.f32 0.0, %v3160
        %3162 = vmatmul.bf16.gmra.mxu0 %v2313
        %v3163 = vpop.f32.mrf.mxu0
        %v3164 = vadd.f32 0.0, %v3163
        %v3165 = vpop.f32.mrf.mxu0
        %v3166 = vadd.f32 0.0, %v3165
        %3167 = vmatmul.bf16.gmra.mxu0 %v2320
        %v3168 = vpop.f32.mrf.mxu0
        %v3169 = vadd.f32 0.0, %v3168
        %v3170 = vpop.f32.mrf.mxu0
        %v3171 = vadd.f32 0.0, %v3170
        %3172 = vmatmul.bf16.gmra.mxu0 %v2327
        %v3173 = vpop.f32.mrf.mxu0
        %v3174 = vadd.f32 0.0, %v3173
        %v3175 = vpop.f32.mrf.mxu0
        %v3176 = vadd.f32 0.0, %v3175
        %3177 = vmatmul.bf16.gmra.mxu0 %v2334
        %v3178 = vpop.f32.mrf.mxu0
        %v3179 = vadd.f32 0.0, %v3178
        %v3180 = vpop.f32.mrf.mxu0
        %v3181 = vadd.f32 0.0, %v3180
        %3182 = vmatmul.bf16.gmra.mxu0 %v2341
        %v3183 = vpop.f32.mrf.mxu0
        %v3184 = vadd.f32 0.0, %v3183
        %v3185 = vpop.f32.mrf.mxu0
        %v3186 = vadd.f32 0.0, %v3185
        %3187 = vmatmul.bf16.gmra.mxu0 %v2348
        %v3188 = vpop.f32.mrf.mxu0
        %v3189 = vadd.f32 0.0, %v3188
        %v3190 = vpop.f32.mrf.mxu0
        %v3191 = vadd.f32 0.0, %v3190
        %3192 = vmatmul.bf16.gmra.mxu0 %v2355
        %v3193 = vpop.f32.mrf.mxu0
        %v3194 = vadd.f32 0.0, %v3193
        %v3195 = vpop.f32.mrf.mxu0
        %v3196 = vadd.f32 0.0, %v3195
        %3197 = vmatmul.bf16.gmra.mxu0 %v2362
        %v3198 = vpop.f32.mrf.mxu0
        %v3199 = vadd.f32 0.0, %v3198
        %v3200 = vpop.f32.mrf.mxu0
        %v3201 = vadd.f32 0.0, %v3200
        %3202 = vmatmul.bf16.gmra.mxu0 %v2369
        %v3203 = vpop.f32.mrf.mxu0
        %v3204 = vadd.f32 0.0, %v3203
        %v3205 = vpop.f32.mrf.mxu0
        %v3206 = vadd.f32 0.0, %v3205
        %3207 = vmatmul.bf16.gmra.mxu0 %v2376
        %v3208 = vpop.f32.mrf.mxu0
        %v3209 = vadd.f32 0.0, %v3208
        %v3210 = vpop.f32.mrf.mxu0
        %v3211 = vadd.f32 0.0, %v3210
        %3212 = vmatmul.bf16.gmra.mxu0 %v2383
        %v3213 = vpop.f32.mrf.mxu0
        %v3214 = vadd.f32 0.0, %v3213
        %v3215 = vpop.f32.mrf.mxu0
        %v3216 = vadd.f32 0.0, %v3215
        %3217 = vmatmul.bf16.gmra.mxu0 %v2390
        %v3218 = vpop.f32.mrf.mxu0
        %v3219 = vadd.f32 0.0, %v3218
        %v3220 = vpop.f32.mrf.mxu0
        %v3221 = vadd.f32 0.0, %v3220
        %3222 = vmatmul.bf16.gmra.mxu0 %v2397
        %v3223 = vpop.f32.mrf.mxu0
        %v3224 = vadd.f32 0.0, %v3223
        %v3225 = vpop.f32.mrf.mxu0
        %v3226 = vadd.f32 0.0, %v3225
        %3227 = vdwg.mxu0
        %3228 = vmatpush.bf16.msra.mxu0 %v1777
        %3229 = vmatpush.bf16.msra.mxu0 %v1773
        %3230 = vmatpush.bf16.msra.mxu0 %v1769
        %3231 = vmatpush.bf16.msra.mxu0 %v1765
        %3232 = vmatpush.bf16.msra.mxu0 %v1761
        %3233 = vmatpush.bf16.msra.mxu0 %v1757
        %3234 = vmatpush.bf16.msra.mxu0 %v1753
        %3235 = vmatpush.bf16.msra.mxu0 %v1749
        %3236 = vmatmul.bf16.gmra.mxu0 %v2293
        %v3237 = vpop.f32.mrf.mxu0
        %v3238 = vadd.f32 %v3149, %v3237
        %v3239 = vpop.f32.mrf.mxu0
        %v3240 = vadd.f32 %v3151, %v3239
        %3241 = vmatmul.bf16.gmra.mxu0 %v2300
        %v3242 = vpop.f32.mrf.mxu0
        %v3243 = vadd.f32 %v3154, %v3242
        %v3244 = vpop.f32.mrf.mxu0
        %v3245 = vadd.f32 %v3156, %v3244
        %3246 = vmatmul.bf16.gmra.mxu0 %v2307
        %v3247 = vpop.f32.mrf.mxu0
        %v3248 = vadd.f32 %v3159, %v3247
        %v3249 = vpop.f32.mrf.mxu0
        %v3250 = vadd.f32 %v3161, %v3249
        %3251 = vmatmul.bf16.gmra.mxu0 %v2314
        %v3252 = vpop.f32.mrf.mxu0
        %v3253 = vadd.f32 %v3164, %v3252
        %v3254 = vpop.f32.mrf.mxu0
        %v3255 = vadd.f32 %v3166, %v3254
        %3256 = vmatmul.bf16.gmra.mxu0 %v2321
        %v3257 = vpop.f32.mrf.mxu0
        %v3258 = vadd.f32 %v3169, %v3257
        %v3259 = vpop.f32.mrf.mxu0
        %v3260 = vadd.f32 %v3171, %v3259
        %3261 = vmatmul.bf16.gmra.mxu0 %v2328
        %v3262 = vpop.f32.mrf.mxu0
        %v3263 = vadd.f32 %v3174, %v3262
        %v3264 = vpop.f32.mrf.mxu0
        %v3265 = vadd.f32 %v3176, %v3264
        %3266 = vmatmul.bf16.gmra.mxu0 %v2335
        %v3267 = vpop.f32.mrf.mxu0
        %v3268 = vadd.f32 %v3179, %v3267
        %v3269 = vpop.f32.mrf.mxu0
        %v3270 = vadd.f32 %v3181, %v3269
        %3271 = vmatmul.bf16.gmra.mxu0 %v2342
        %v3272 = vpop.f32.mrf.mxu0
        %v3273 = vadd.f32 %v3184, %v3272
        %v3274 = vpop.f32.mrf.mxu0
        %v3275 = vadd.f32 %v3186, %v3274
        %3276 = vmatmul.bf16.gmra.mxu0 %v2349
        %v3277 = vpop.f32.mrf.mxu0
        %v3278 = vadd.f32 %v3189, %v3277
        %v3279 = vpop.f32.mrf.mxu0
        %v3280 = vadd.f32 %v3191, %v3279
        %3281 = vmatmul.bf16.gmra.mxu0 %v2356
        %v3282 = vpop.f32.mrf.mxu0
        %v3283 = vadd.f32 %v3194, %v3282
        %v3284 = vpop.f32.mrf.mxu0
        %v3285 = vadd.f32 %v3196, %v3284
        %3286 = vmatmul.bf16.gmra.mxu0 %v2363
        %v3287 = vpop.f32.mrf.mxu0
        %v3288 = vadd.f32 %v3199, %v3287
        %v3289 = vpop.f32.mrf.mxu0
        %v3290 = vadd.f32 %v3201, %v3289
        %3291 = vmatmul.bf16.gmra.mxu0 %v2370
        %v3292 = vpop.f32.mrf.mxu0
        %v3293 = vadd.f32 %v3204, %v3292
        %v3294 = vpop.f32.mrf.mxu0
        %v3295 = vadd.f32 %v3206, %v3294
        %3296 = vmatmul.bf16.gmra.mxu0 %v2377
        %v3297 = vpop.f32.mrf.mxu0
        %v3298 = vadd.f32 %v3209, %v3297
        %v3299 = vpop.f32.mrf.mxu0
        %v3300 = vadd.f32 %v3211, %v3299
        %3301 = vmatmul.bf16.gmra.mxu0 %v2384
        %v3302 = vpop.f32.mrf.mxu0
        %v3303 = vadd.f32 %v3214, %v3302
        %v3304 = vpop.f32.mrf.mxu0
        %v3305 = vadd.f32 %v3216, %v3304
        %3306 = vmatmul.bf16.gmra.mxu0 %v2391
        %v3307 = vpop.f32.mrf.mxu0
        %v3308 = vadd.f32 %v3219, %v3307
        %v3309 = vpop.f32.mrf.mxu0
        %v3310 = vadd.f32 %v3221, %v3309
        %3311 = vmatmul.bf16.gmra.mxu0 %v2398
        %v3312 = vpop.f32.mrf.mxu0
        %v3313 = vadd.f32 %v3224, %v3312
        %v3314 = vpop.f32.mrf.mxu0
        %v3315 = vadd.f32 %v3226, %v3314
        %3316 = vdwg.mxu0
        %3317 = vmatpush.bf16.msra.mxu0 %v1809
        %3318 = vmatpush.bf16.msra.mxu0 %v1805
        %3319 = vmatpush.bf16.msra.mxu0 %v1801
        %3320 = vmatpush.bf16.msra.mxu0 %v1797
        %3321 = vmatpush.bf16.msra.mxu0 %v1793
        %3322 = vmatpush.bf16.msra.mxu0 %v1789
        %3323 = vmatpush.bf16.msra.mxu0 %v1785
        %3324 = vmatpush.bf16.msra.mxu0 %v1781
        %3325 = vmatmul.bf16.gmra.mxu0 %v2294
        %v3326 = vpop.f32.mrf.mxu0
        %v3327 = vadd.f32 %v3238, %v3326
        %v3328 = vpop.f32.mrf.mxu0
        %v3329 = vadd.f32 %v3240, %v3328
        %3330 = vmatmul.bf16.gmra.mxu0 %v2301
        %v3331 = vpop.f32.mrf.mxu0
        %v3332 = vadd.f32 %v3243, %v3331
        %v3333 = vpop.f32.mrf.mxu0
        %v3334 = vadd.f32 %v3245, %v3333
        %3335 = vmatmul.bf16.gmra.mxu0 %v2308
        %v3336 = vpop.f32.mrf.mxu0
        %v3337 = vadd.f32 %v3248, %v3336
        %v3338 = vpop.f32.mrf.mxu0
        %v3339 = vadd.f32 %v3250, %v3338
        %3340 = vmatmul.bf16.gmra.mxu0 %v2315
        %v3341 = vpop.f32.mrf.mxu0
        %v3342 = vadd.f32 %v3253, %v3341
        %v3343 = vpop.f32.mrf.mxu0
        %v3344 = vadd.f32 %v3255, %v3343
        %3345 = vmatmul.bf16.gmra.mxu0 %v2322
        %v3346 = vpop.f32.mrf.mxu0
        %v3347 = vadd.f32 %v3258, %v3346
        %v3348 = vpop.f32.mrf.mxu0
        %v3349 = vadd.f32 %v3260, %v3348
        %3350 = vmatmul.bf16.gmra.mxu0 %v2329
        %v3351 = vpop.f32.mrf.mxu0
        %v3352 = vadd.f32 %v3263, %v3351
        %v3353 = vpop.f32.mrf.mxu0
        %v3354 = vadd.f32 %v3265, %v3353
        %3355 = vmatmul.bf16.gmra.mxu0 %v2336
        %v3356 = vpop.f32.mrf.mxu0
        %v3357 = vadd.f32 %v3268, %v3356
        %v3358 = vpop.f32.mrf.mxu0
        %v3359 = vadd.f32 %v3270, %v3358
        %3360 = vmatmul.bf16.gmra.mxu0 %v2343
        %v3361 = vpop.f32.mrf.mxu0
        %v3362 = vadd.f32 %v3273, %v3361
        %v3363 = vpop.f32.mrf.mxu0
        %v3364 = vadd.f32 %v3275, %v3363
        %3365 = vmatmul.bf16.gmra.mxu0 %v2350
        %v3366 = vpop.f32.mrf.mxu0
        %v3367 = vadd.f32 %v3278, %v3366
        %v3368 = vpop.f32.mrf.mxu0
        %v3369 = vadd.f32 %v3280, %v3368
        %3370 = vmatmul.bf16.gmra.mxu0 %v2357
        %v3371 = vpop.f32.mrf.mxu0
        %v3372 = vadd.f32 %v3283, %v3371
        %v3373 = vpop.f32.mrf.mxu0
        %v3374 = vadd.f32 %v3285, %v3373
        %3375 = vmatmul.bf16.gmra.mxu0 %v2364
        %v3376 = vpop.f32.mrf.mxu0
        %v3377 = vadd.f32 %v3288, %v3376
        %v3378 = vpop.f32.mrf.mxu0
        %v3379 = vadd.f32 %v3290, %v3378
        %3380 = vmatmul.bf16.gmra.mxu0 %v2371
        %v3381 = vpop.f32.mrf.mxu0
        %v3382 = vadd.f32 %v3293, %v3381
        %v3383 = vpop.f32.mrf.mxu0
        %v3384 = vadd.f32 %v3295, %v3383
        %3385 = vmatmul.bf16.gmra.mxu0 %v2378
        %v3386 = vpop.f32.mrf.mxu0
        %v3387 = vadd.f32 %v3298, %v3386
        %v3388 = vpop.f32.mrf.mxu0
        %v3389 = vadd.f32 %v3300, %v3388
        %3390 = vmatmul.bf16.gmra.mxu0 %v2385
        %v3391 = vpop.f32.mrf.mxu0
        %v3392 = vadd.f32 %v3303, %v3391
        %v3393 = vpop.f32.mrf.mxu0
        %v3394 = vadd.f32 %v3305, %v3393
        %3395 = vmatmul.bf16.gmra.mxu0 %v2392
        %v3396 = vpop.f32.mrf.mxu0
        %v3397 = vadd.f32 %v3308, %v3396
        %v3398 = vpop.f32.mrf.mxu0
        %v3399 = vadd.f32 %v3310, %v3398
        %3400 = vmatmul.bf16.gmra.mxu0 %v2399
        %v3401 = vpop.f32.mrf.mxu0
        %v3402 = vadd.f32 %v3313, %v3401
        %v3403 = vpop.f32.mrf.mxu0
        %v3404 = vadd.f32 %v3315, %v3403
        %3405 = vdwg.mxu0
        %3406 = vmatpush.bf16.msra.mxu0 %v1841
        %3407 = vmatpush.bf16.msra.mxu0 %v1837
        %3408 = vmatpush.bf16.msra.mxu0 %v1833
        %3409 = vmatpush.bf16.msra.mxu0 %v1829
        %3410 = vmatpush.bf16.msra.mxu0 %v1825
        %3411 = vmatpush.bf16.msra.mxu0 %v1821
        %3412 = vmatpush.bf16.msra.mxu0 %v1817
        %3413 = vmatpush.bf16.msra.mxu0 %v1813
        %3414 = vmatmul.bf16.gmra.mxu0 %v2295
        %v3415 = vpop.f32.mrf.mxu0
        %v3416 = vadd.f32 %v3327, %v3415
        %v3417 = vpop.f32.mrf.mxu0
        %v3418 = vadd.f32 %v3329, %v3417
        %3419 = vmatmul.bf16.gmra.mxu0 %v2302
        %v3420 = vpop.f32.mrf.mxu0
        %v3421 = vadd.f32 %v3332, %v3420
        %v3422 = vpop.f32.mrf.mxu0
        %v3423 = vadd.f32 %v3334, %v3422
        %3424 = vmatmul.bf16.gmra.mxu0 %v2309
        %v3425 = vpop.f32.mrf.mxu0
        %v3426 = vadd.f32 %v3337, %v3425
        %v3427 = vpop.f32.mrf.mxu0
        %v3428 = vadd.f32 %v3339, %v3427
        %3429 = vmatmul.bf16.gmra.mxu0 %v2316
        %v3430 = vpop.f32.mrf.mxu0
        %v3431 = vadd.f32 %v3342, %v3430
        %v3432 = vpop.f32.mrf.mxu0
        %v3433 = vadd.f32 %v3344, %v3432
        %3434 = vmatmul.bf16.gmra.mxu0 %v2323
        %v3435 = vpop.f32.mrf.mxu0
        %v3436 = vadd.f32 %v3347, %v3435
        %v3437 = vpop.f32.mrf.mxu0
        %v3438 = vadd.f32 %v3349, %v3437
        %3439 = vmatmul.bf16.gmra.mxu0 %v2330
        %v3440 = vpop.f32.mrf.mxu0
        %v3441 = vadd.f32 %v3352, %v3440
        %v3442 = vpop.f32.mrf.mxu0
        %v3443 = vadd.f32 %v3354, %v3442
        %3444 = vmatmul.bf16.gmra.mxu0 %v2337
        %v3445 = vpop.f32.mrf.mxu0
        %v3446 = vadd.f32 %v3357, %v3445
        %v3447 = vpop.f32.mrf.mxu0
        %v3448 = vadd.f32 %v3359, %v3447
        %3449 = vmatmul.bf16.gmra.mxu0 %v2344
        %v3450 = vpop.f32.mrf.mxu0
        %v3451 = vadd.f32 %v3362, %v3450
        %v3452 = vpop.f32.mrf.mxu0
        %v3453 = vadd.f32 %v3364, %v3452
        %3454 = vmatmul.bf16.gmra.mxu0 %v2351
        %v3455 = vpop.f32.mrf.mxu0
        %v3456 = vadd.f32 %v3367, %v3455
        %v3457 = vpop.f32.mrf.mxu0
        %v3458 = vadd.f32 %v3369, %v3457
        %3459 = vmatmul.bf16.gmra.mxu0 %v2358
        %v3460 = vpop.f32.mrf.mxu0
        %v3461 = vadd.f32 %v3372, %v3460
        %v3462 = vpop.f32.mrf.mxu0
        %v3463 = vadd.f32 %v3374, %v3462
        %3464 = vmatmul.bf16.gmra.mxu0 %v2365
        %v3465 = vpop.f32.mrf.mxu0
        %v3466 = vadd.f32 %v3377, %v3465
        %v3467 = vpop.f32.mrf.mxu0
        %v3468 = vadd.f32 %v3379, %v3467
        %3469 = vmatmul.bf16.gmra.mxu0 %v2372
        %v3470 = vpop.f32.mrf.mxu0
        %v3471 = vadd.f32 %v3382, %v3470
        %v3472 = vpop.f32.mrf.mxu0
        %v3473 = vadd.f32 %v3384, %v3472
        %3474 = vmatmul.bf16.gmra.mxu0 %v2379
        %v3475 = vpop.f32.mrf.mxu0
        %v3476 = vadd.f32 %v3387, %v3475
        %v3477 = vpop.f32.mrf.mxu0
        %v3478 = vadd.f32 %v3389, %v3477
        %3479 = vmatmul.bf16.gmra.mxu0 %v2386
        %v3480 = vpop.f32.mrf.mxu0
        %v3481 = vadd.f32 %v3392, %v3480
        %v3482 = vpop.f32.mrf.mxu0
        %v3483 = vadd.f32 %v3394, %v3482
        %3484 = vmatmul.bf16.gmra.mxu0 %v2393
        %v3485 = vpop.f32.mrf.mxu0
        %v3486 = vadd.f32 %v3397, %v3485
        %v3487 = vpop.f32.mrf.mxu0
        %v3488 = vadd.f32 %v3399, %v3487
        %3489 = vmatmul.bf16.gmra.mxu0 %v2400
        %v3490 = vpop.f32.mrf.mxu0
        %v3491 = vadd.f32 %v3402, %v3490
        %v3492 = vpop.f32.mrf.mxu0
        %v3493 = vadd.f32 %v3404, %v3492
        %3494 = vdwg.mxu0
        %3495 = vmatpush.bf16.msra.mxu0 %v1873
        %3496 = vmatpush.bf16.msra.mxu0 %v1869
        %3497 = vmatpush.bf16.msra.mxu0 %v1865
        %3498 = vmatpush.bf16.msra.mxu0 %v1861
        %3499 = vmatpush.bf16.msra.mxu0 %v1857
        %3500 = vmatpush.bf16.msra.mxu0 %v1853
        %3501 = vmatpush.bf16.msra.mxu0 %v1849
        %3502 = vmatpush.bf16.msra.mxu0 %v1845
        %3503 = vmatmul.bf16.gmra.mxu0 %v2296
        %v3504 = vpop.f32.mrf.mxu0
        %v3505 = vadd.f32 %v3416, %v3504
        %v3506 = vpop.f32.mrf.mxu0
        %v3507 = vadd.f32 %v3418, %v3506
        %3508 = vmatmul.bf16.gmra.mxu0 %v2303
        %v3509 = vpop.f32.mrf.mxu0
        %v3510 = vadd.f32 %v3421, %v3509
        %v3511 = vpop.f32.mrf.mxu0
        %v3512 = vadd.f32 %v3423, %v3511
        %3513 = vmatmul.bf16.gmra.mxu0 %v2310
        %v3514 = vpop.f32.mrf.mxu0
        %v3515 = vadd.f32 %v3426, %v3514
        %v3516 = vpop.f32.mrf.mxu0
        %v3517 = vadd.f32 %v3428, %v3516
        %3518 = vmatmul.bf16.gmra.mxu0 %v2317
        %v3519 = vpop.f32.mrf.mxu0
        %v3520 = vadd.f32 %v3431, %v3519
        %v3521 = vpop.f32.mrf.mxu0
        %v3522 = vadd.f32 %v3433, %v3521
        %3523 = vmatmul.bf16.gmra.mxu0 %v2324
        %v3524 = vpop.f32.mrf.mxu0
        %v3525 = vadd.f32 %v3436, %v3524
        %v3526 = vpop.f32.mrf.mxu0
        %v3527 = vadd.f32 %v3438, %v3526
        %3528 = vmatmul.bf16.gmra.mxu0 %v2331
        %v3529 = vpop.f32.mrf.mxu0
        %v3530 = vadd.f32 %v3441, %v3529
        %v3531 = vpop.f32.mrf.mxu0
        %v3532 = vadd.f32 %v3443, %v3531
        %3533 = vmatmul.bf16.gmra.mxu0 %v2338
        %v3534 = vpop.f32.mrf.mxu0
        %v3535 = vadd.f32 %v3446, %v3534
        %v3536 = vpop.f32.mrf.mxu0
        %v3537 = vadd.f32 %v3448, %v3536
        %3538 = vmatmul.bf16.gmra.mxu0 %v2345
        %v3539 = vpop.f32.mrf.mxu0
        %v3540 = vadd.f32 %v3451, %v3539
        %v3541 = vpop.f32.mrf.mxu0
        %v3542 = vadd.f32 %v3453, %v3541
        %3543 = vmatmul.bf16.gmra.mxu0 %v2352
        %v3544 = vpop.f32.mrf.mxu0
        %v3545 = vadd.f32 %v3456, %v3544
        %v3546 = vpop.f32.mrf.mxu0
        %v3547 = vadd.f32 %v3458, %v3546
        %3548 = vmatmul.bf16.gmra.mxu0 %v2359
        %v3549 = vpop.f32.mrf.mxu0
        %v3550 = vadd.f32 %v3461, %v3549
        %v3551 = vpop.f32.mrf.mxu0
        %v3552 = vadd.f32 %v3463, %v3551
        %3553 = vmatmul.bf16.gmra.mxu0 %v2366
        %v3554 = vpop.f32.mrf.mxu0
        %v3555 = vadd.f32 %v3466, %v3554
        %v3556 = vpop.f32.mrf.mxu0
        %v3557 = vadd.f32 %v3468, %v3556
        %3558 = vmatmul.bf16.gmra.mxu0 %v2373
        %v3559 = vpop.f32.mrf.mxu0
        %v3560 = vadd.f32 %v3471, %v3559
        %v3561 = vpop.f32.mrf.mxu0
        %v3562 = vadd.f32 %v3473, %v3561
        %3563 = vmatmul.bf16.gmra.mxu0 %v2380
        %v3564 = vpop.f32.mrf.mxu0
        %v3565 = vadd.f32 %v3476, %v3564
        %v3566 = vpop.f32.mrf.mxu0
        %v3567 = vadd.f32 %v3478, %v3566
        %3568 = vmatmul.bf16.gmra.mxu0 %v2387
        %v3569 = vpop.f32.mrf.mxu0
        %v3570 = vadd.f32 %v3481, %v3569
        %v3571 = vpop.f32.mrf.mxu0
        %v3572 = vadd.f32 %v3483, %v3571
        %3573 = vmatmul.bf16.gmra.mxu0 %v2394
        %v3574 = vpop.f32.mrf.mxu0
        %v3575 = vadd.f32 %v3486, %v3574
        %v3576 = vpop.f32.mrf.mxu0
        %v3577 = vadd.f32 %v3488, %v3576
        %3578 = vmatmul.bf16.gmra.mxu0 %v2401
        %v3579 = vpop.f32.mrf.mxu0
        %v3580 = vadd.f32 %v3491, %v3579
        %v3581 = vpop.f32.mrf.mxu0
        %v3582 = vadd.f32 %v3493, %v3581
        %3583 = vdwg.mxu0
        %3584 = vmatpush.bf16.msra.mxu0 %v1905
        %3585 = vmatpush.bf16.msra.mxu0 %v1901
        %3586 = vmatpush.bf16.msra.mxu0 %v1897
        %3587 = vmatpush.bf16.msra.mxu0 %v1893
        %3588 = vmatpush.bf16.msra.mxu0 %v1889
        %3589 = vmatpush.bf16.msra.mxu0 %v1885
        %3590 = vmatpush.bf16.msra.mxu0 %v1881
        %3591 = vmatpush.bf16.msra.mxu0 %v1877
        %3592 = vmatmul.bf16.gmra.mxu0 %v2297
        %v3593 = vpop.f32.mrf.mxu0
        %v3594 = vadd.f32 %v3505, %v3593
        %v3595 = vpop.f32.mrf.mxu0
        %v3596 = vadd.f32 %v3507, %v3595
        %3597 = vmatmul.bf16.gmra.mxu0 %v2304
        %v3598 = vpop.f32.mrf.mxu0
        %v3599 = vadd.f32 %v3510, %v3598
        %v3600 = vpop.f32.mrf.mxu0
        %v3601 = vadd.f32 %v3512, %v3600
        %3602 = vmatmul.bf16.gmra.mxu0 %v2311
        %v3603 = vpop.f32.mrf.mxu0
        %v3604 = vadd.f32 %v3515, %v3603
        %v3605 = vpop.f32.mrf.mxu0
        %v3606 = vadd.f32 %v3517, %v3605
        %3607 = vmatmul.bf16.gmra.mxu0 %v2318
        %v3608 = vpop.f32.mrf.mxu0
        %v3609 = vadd.f32 %v3520, %v3608
        %v3610 = vpop.f32.mrf.mxu0
        %v3611 = vadd.f32 %v3522, %v3610
        %3612 = vmatmul.bf16.gmra.mxu0 %v2325
        %v3613 = vpop.f32.mrf.mxu0
        %v3614 = vadd.f32 %v3525, %v3613
        %v3615 = vpop.f32.mrf.mxu0
        %v3616 = vadd.f32 %v3527, %v3615
        %3617 = vmatmul.bf16.gmra.mxu0 %v2332
        %v3618 = vpop.f32.mrf.mxu0
        %v3619 = vadd.f32 %v3530, %v3618
        %v3620 = vpop.f32.mrf.mxu0
        %v3621 = vadd.f32 %v3532, %v3620
        %3622 = vmatmul.bf16.gmra.mxu0 %v2339
        %v3623 = vpop.f32.mrf.mxu0
        %v3624 = vadd.f32 %v3535, %v3623
        %v3625 = vpop.f32.mrf.mxu0
        %v3626 = vadd.f32 %v3537, %v3625
        %3627 = vmatmul.bf16.gmra.mxu0 %v2346
        %v3628 = vpop.f32.mrf.mxu0
        %v3629 = vadd.f32 %v3540, %v3628
        %v3630 = vpop.f32.mrf.mxu0
        %v3631 = vadd.f32 %v3542, %v3630
        %3632 = vmatmul.bf16.gmra.mxu0 %v2353
        %v3633 = vpop.f32.mrf.mxu0
        %v3634 = vadd.f32 %v3545, %v3633
        %v3635 = vpop.f32.mrf.mxu0
        %v3636 = vadd.f32 %v3547, %v3635
        %3637 = vmatmul.bf16.gmra.mxu0 %v2360
        %v3638 = vpop.f32.mrf.mxu0
        %v3639 = vadd.f32 %v3550, %v3638
        %v3640 = vpop.f32.mrf.mxu0
        %v3641 = vadd.f32 %v3552, %v3640
        %3642 = vmatmul.bf16.gmra.mxu0 %v2367
        %v3643 = vpop.f32.mrf.mxu0
        %v3644 = vadd.f32 %v3555, %v3643
        %v3645 = vpop.f32.mrf.mxu0
        %v3646 = vadd.f32 %v3557, %v3645
        %3647 = vmatmul.bf16.gmra.mxu0 %v2374
        %v3648 = vpop.f32.mrf.mxu0
        %v3649 = vadd.f32 %v3560, %v3648
        %v3650 = vpop.f32.mrf.mxu0
        %v3651 = vadd.f32 %v3562, %v3650
        %3652 = vmatmul.bf16.gmra.mxu0 %v2381
        %v3653 = vpop.f32.mrf.mxu0
        %v3654 = vadd.f32 %v3565, %v3653
        %v3655 = vpop.f32.mrf.mxu0
        %v3656 = vadd.f32 %v3567, %v3655
        %3657 = vmatmul.bf16.gmra.mxu0 %v2388
        %v3658 = vpop.f32.mrf.mxu0
        %v3659 = vadd.f32 %v3570, %v3658
        %v3660 = vpop.f32.mrf.mxu0
        %v3661 = vadd.f32 %v3572, %v3660
        %3662 = vmatmul.bf16.gmra.mxu0 %v2395
        %v3663 = vpop.f32.mrf.mxu0
        %v3664 = vadd.f32 %v3575, %v3663
        %v3665 = vpop.f32.mrf.mxu0
        %v3666 = vadd.f32 %v3577, %v3665
        %3667 = vmatmul.bf16.gmra.mxu0 %v2402
        %v3668 = vpop.f32.mrf.mxu0
        %v3669 = vadd.f32 %v3580, %v3668
        %v3670 = vpop.f32.mrf.mxu0
        %v3671 = vadd.f32 %v3582, %v3670
        %3672 = vdwg.mxu0
        %3673 = vmatpush.bf16.msra.mxu0 %v1937
        %3674 = vmatpush.bf16.msra.mxu0 %v1933
        %3675 = vmatpush.bf16.msra.mxu0 %v1929
        %3676 = vmatpush.bf16.msra.mxu0 %v1925
        %3677 = vmatpush.bf16.msra.mxu0 %v1921
        %3678 = vmatpush.bf16.msra.mxu0 %v1917
        %3679 = vmatpush.bf16.msra.mxu0 %v1913
        %3680 = vmatpush.bf16.msra.mxu0 %v1909
        %3681 = vmatmul.bf16.gmra.mxu0 %v2298
        %v3682 = vpop.f32.mrf.mxu0
        %v3683 = vadd.f32 %v3594, %v3682
        %v3684 = vpop.f32.mrf.mxu0
        %v3685 = vadd.f32 %v3596, %v3684
        %3686 = vmatmul.bf16.gmra.mxu0 %v2305
        %v3687 = vpop.f32.mrf.mxu0
        %v3688 = vadd.f32 %v3599, %v3687
        %v3689 = vpop.f32.mrf.mxu0
        %v3690 = vadd.f32 %v3601, %v3689
        %3691 = vmatmul.bf16.gmra.mxu0 %v2312
        %v3692 = vpop.f32.mrf.mxu0
        %v3693 = vadd.f32 %v3604, %v3692
        %v3694 = vpop.f32.mrf.mxu0
        %v3695 = vadd.f32 %v3606, %v3694
        %3696 = vmatmul.bf16.gmra.mxu0 %v2319
        %v3697 = vpop.f32.mrf.mxu0
        %v3698 = vadd.f32 %v3609, %v3697
        %v3699 = vpop.f32.mrf.mxu0
        %v3700 = vadd.f32 %v3611, %v3699
        %3701 = vmatmul.bf16.gmra.mxu0 %v2326
        %v3702 = vpop.f32.mrf.mxu0
        %v3703 = vadd.f32 %v3614, %v3702
        %v3704 = vpop.f32.mrf.mxu0
        %v3705 = vadd.f32 %v3616, %v3704
        %3706 = vmatmul.bf16.gmra.mxu0 %v2333
        %v3707 = vpop.f32.mrf.mxu0
        %v3708 = vadd.f32 %v3619, %v3707
        %v3709 = vpop.f32.mrf.mxu0
        %v3710 = vadd.f32 %v3621, %v3709
        %3711 = vmatmul.bf16.gmra.mxu0 %v2340
        %v3712 = vpop.f32.mrf.mxu0
        %v3713 = vadd.f32 %v3624, %v3712
        %v3714 = vpop.f32.mrf.mxu0
        %v3715 = vadd.f32 %v3626, %v3714
        %3716 = vmatmul.bf16.gmra.mxu0 %v2347
        %v3717 = vpop.f32.mrf.mxu0
        %v3718 = vadd.f32 %v3629, %v3717
        %v3719 = vpop.f32.mrf.mxu0
        %v3720 = vadd.f32 %v3631, %v3719
        %3721 = vmatmul.bf16.gmra.mxu0 %v2354
        %v3722 = vpop.f32.mrf.mxu0
        %v3723 = vadd.f32 %v3634, %v3722
        %v3724 = vpop.f32.mrf.mxu0
        %v3725 = vadd.f32 %v3636, %v3724
        %3726 = vmatmul.bf16.gmra.mxu0 %v2361
        %v3727 = vpop.f32.mrf.mxu0
        %v3728 = vadd.f32 %v3639, %v3727
        %v3729 = vpop.f32.mrf.mxu0
        %v3730 = vadd.f32 %v3641, %v3729
        %3731 = vmatmul.bf16.gmra.mxu0 %v2368
        %v3732 = vpop.f32.mrf.mxu0
        %v3733 = vadd.f32 %v3644, %v3732
        %v3734 = vpop.f32.mrf.mxu0
        %v3735 = vadd.f32 %v3646, %v3734
        %3736 = vmatmul.bf16.gmra.mxu0 %v2375
        %v3737 = vpop.f32.mrf.mxu0
        %v3738 = vadd.f32 %v3649, %v3737
        %v3739 = vpop.f32.mrf.mxu0
        %v3740 = vadd.f32 %v3651, %v3739
        %3741 = vmatmul.bf16.gmra.mxu0 %v2382
        %v3742 = vpop.f32.mrf.mxu0
        %v3743 = vadd.f32 %v3654, %v3742
        %v3744 = vpop.f32.mrf.mxu0
        %v3745 = vadd.f32 %v3656, %v3744
        %3746 = vmatmul.bf16.gmra.mxu0 %v2389
        %v3747 = vpop.f32.mrf.mxu0
        %v3748 = vadd.f32 %v3659, %v3747
        %v3749 = vpop.f32.mrf.mxu0
        %v3750 = vadd.f32 %v3661, %v3749
        %3751 = vmatmul.bf16.gmra.mxu0 %v2396
        %v3752 = vpop.f32.mrf.mxu0
        %v3753 = vadd.f32 %v3664, %v3752
        %v3754 = vpop.f32.mrf.mxu0
        %v3755 = vadd.f32 %v3666, %v3754
        %3756 = vmatmul.bf16.gmra.mxu0 %v2403
        %v3757 = vpop.f32.mrf.mxu0
        %v3758 = vadd.f32 %v3669, %v3757
        %v3759 = vpop.f32.mrf.mxu0
        %v3760 = vadd.f32 %v3671, %v3759
        %3761 = vdwg.mxu0
        %3762 = vmatpush.bf16.msra.mxu0 %v1746
        %3763 = vmatpush.bf16.msra.mxu0 %v1742
        %3764 = vmatpush.bf16.msra.mxu0 %v1738
        %3765 = vmatpush.bf16.msra.mxu0 %v1734
        %3766 = vmatpush.bf16.msra.mxu0 %v1730
        %3767 = vmatpush.bf16.msra.mxu0 %v1726
        %3768 = vmatpush.bf16.msra.mxu0 %v1722
        %3769 = vmatpush.bf16.msra.mxu0 %v1718
        %3770 = vmatmul.bf16.gmra.mxu0 %v2292
        %v3771 = vpop.f32.mrf.mxu0
        %v3772 = vadd.f32 0.0, %v3771
        %v3773 = vpop.f32.mrf.mxu0
        %v3774 = vadd.f32 0.0, %v3773
        %3775 = vmatmul.bf16.gmra.mxu0 %v2299
        %v3776 = vpop.f32.mrf.mxu0
        %v3777 = vadd.f32 0.0, %v3776
        %v3778 = vpop.f32.mrf.mxu0
        %v3779 = vadd.f32 0.0, %v3778
        %3780 = vmatmul.bf16.gmra.mxu0 %v2306
        %v3781 = vpop.f32.mrf.mxu0
        %v3782 = vadd.f32 0.0, %v3781
        %v3783 = vpop.f32.mrf.mxu0
        %v3784 = vadd.f32 0.0, %v3783
        %3785 = vmatmul.bf16.gmra.mxu0 %v2313
        %v3786 = vpop.f32.mrf.mxu0
        %v3787 = vadd.f32 0.0, %v3786
        %v3788 = vpop.f32.mrf.mxu0
        %v3789 = vadd.f32 0.0, %v3788
        %3790 = vmatmul.bf16.gmra.mxu0 %v2320
        %v3791 = vpop.f32.mrf.mxu0
        %v3792 = vadd.f32 0.0, %v3791
        %v3793 = vpop.f32.mrf.mxu0
        %v3794 = vadd.f32 0.0, %v3793
        %3795 = vmatmul.bf16.gmra.mxu0 %v2327
        %v3796 = vpop.f32.mrf.mxu0
        %v3797 = vadd.f32 0.0, %v3796
        %v3798 = vpop.f32.mrf.mxu0
        %v3799 = vadd.f32 0.0, %v3798
        %3800 = vmatmul.bf16.gmra.mxu0 %v2334
        %v3801 = vpop.f32.mrf.mxu0
        %v3802 = vadd.f32 0.0, %v3801
        %v3803 = vpop.f32.mrf.mxu0
        %v3804 = vadd.f32 0.0, %v3803
        %3805 = vmatmul.bf16.gmra.mxu0 %v2341
        %v3806 = vpop.f32.mrf.mxu0
        %v3807 = vadd.f32 0.0, %v3806
        %v3808 = vpop.f32.mrf.mxu0
        %v3809 = vadd.f32 0.0, %v3808
        %3810 = vmatmul.bf16.gmra.mxu0 %v2348
        %v3811 = vpop.f32.mrf.mxu0
        %v3812 = vadd.f32 0.0, %v3811
        %v3813 = vpop.f32.mrf.mxu0
        %v3814 = vadd.f32 0.0, %v3813
        %3815 = vmatmul.bf16.gmra.mxu0 %v2355
        %v3816 = vpop.f32.mrf.mxu0
        %v3817 = vadd.f32 0.0, %v3816
        %v3818 = vpop.f32.mrf.mxu0
        %v3819 = vadd.f32 0.0, %v3818
        %3820 = vmatmul.bf16.gmra.mxu0 %v2362
        %v3821 = vpop.f32.mrf.mxu0
        %v3822 = vadd.f32 0.0, %v3821
        %v3823 = vpop.f32.mrf.mxu0
        %v3824 = vadd.f32 0.0, %v3823
        %3825 = vmatmul.bf16.gmra.mxu0 %v2369
        %v3826 = vpop.f32.mrf.mxu0
        %v3827 = vadd.f32 0.0, %v3826
        %v3828 = vpop.f32.mrf.mxu0
        %v3829 = vadd.f32 0.0, %v3828
        %3830 = vmatmul.bf16.gmra.mxu0 %v2376
        %v3831 = vpop.f32.mrf.mxu0
        %v3832 = vadd.f32 0.0, %v3831
        %v3833 = vpop.f32.mrf.mxu0
        %v3834 = vadd.f32 0.0, %v3833
        %3835 = vmatmul.bf16.gmra.mxu0 %v2383
        %v3836 = vpop.f32.mrf.mxu0
        %v3837 = vadd.f32 0.0, %v3836
        %v3838 = vpop.f32.mrf.mxu0
        %v3839 = vadd.f32 0.0, %v3838
        %3840 = vmatmul.bf16.gmra.mxu0 %v2390
        %v3841 = vpop.f32.mrf.mxu0
        %v3842 = vadd.f32 0.0, %v3841
        %v3843 = vpop.f32.mrf.mxu0
        %v3844 = vadd.f32 0.0, %v3843
        %3845 = vmatmul.bf16.gmra.mxu0 %v2397
        %v3846 = vpop.f32.mrf.mxu0
        %v3847 = vadd.f32 0.0, %v3846
        %v3848 = vpop.f32.mrf.mxu0
        %v3849 = vadd.f32 0.0, %v3848
        %3850 = vdwg.mxu0
        %3851 = vmatpush.bf16.msra.mxu0 %v1778
        %3852 = vmatpush.bf16.msra.mxu0 %v1774
        %3853 = vmatpush.bf16.msra.mxu0 %v1770
        %3854 = vmatpush.bf16.msra.mxu0 %v1766
        %3855 = vmatpush.bf16.msra.mxu0 %v1762
        %3856 = vmatpush.bf16.msra.mxu0 %v1758
        %3857 = vmatpush.bf16.msra.mxu0 %v1754
        %3858 = vmatpush.bf16.msra.mxu0 %v1750
        %3859 = vmatmul.bf16.gmra.mxu0 %v2293
        %v3860 = vpop.f32.mrf.mxu0
        %v3861 = vadd.f32 %v3772, %v3860
        %v3862 = vpop.f32.mrf.mxu0
        %v3863 = vadd.f32 %v3774, %v3862
        %3864 = vmatmul.bf16.gmra.mxu0 %v2300
        %v3865 = vpop.f32.mrf.mxu0
        %v3866 = vadd.f32 %v3777, %v3865
        %v3867 = vpop.f32.mrf.mxu0
        %v3868 = vadd.f32 %v3779, %v3867
        %3869 = vmatmul.bf16.gmra.mxu0 %v2307
        %v3870 = vpop.f32.mrf.mxu0
        %v3871 = vadd.f32 %v3782, %v3870
        %v3872 = vpop.f32.mrf.mxu0
        %v3873 = vadd.f32 %v3784, %v3872
        %3874 = vmatmul.bf16.gmra.mxu0 %v2314
        %v3875 = vpop.f32.mrf.mxu0
        %v3876 = vadd.f32 %v3787, %v3875
        %v3877 = vpop.f32.mrf.mxu0
        %v3878 = vadd.f32 %v3789, %v3877
        %3879 = vmatmul.bf16.gmra.mxu0 %v2321
        %v3880 = vpop.f32.mrf.mxu0
        %v3881 = vadd.f32 %v3792, %v3880
        %v3882 = vpop.f32.mrf.mxu0
        %v3883 = vadd.f32 %v3794, %v3882
        %3884 = vmatmul.bf16.gmra.mxu0 %v2328
        %v3885 = vpop.f32.mrf.mxu0
        %v3886 = vadd.f32 %v3797, %v3885
        %v3887 = vpop.f32.mrf.mxu0
        %v3888 = vadd.f32 %v3799, %v3887
        %3889 = vmatmul.bf16.gmra.mxu0 %v2335
        %v3890 = vpop.f32.mrf.mxu0
        %v3891 = vadd.f32 %v3802, %v3890
        %v3892 = vpop.f32.mrf.mxu0
        %v3893 = vadd.f32 %v3804, %v3892
        %3894 = vmatmul.bf16.gmra.mxu0 %v2342
        %v3895 = vpop.f32.mrf.mxu0
        %v3896 = vadd.f32 %v3807, %v3895
        %v3897 = vpop.f32.mrf.mxu0
        %v3898 = vadd.f32 %v3809, %v3897
        %3899 = vmatmul.bf16.gmra.mxu0 %v2349
        %v3900 = vpop.f32.mrf.mxu0
        %v3901 = vadd.f32 %v3812, %v3900
        %v3902 = vpop.f32.mrf.mxu0
        %v3903 = vadd.f32 %v3814, %v3902
        %3904 = vmatmul.bf16.gmra.mxu0 %v2356
        %v3905 = vpop.f32.mrf.mxu0
        %v3906 = vadd.f32 %v3817, %v3905
        %v3907 = vpop.f32.mrf.mxu0
        %v3908 = vadd.f32 %v3819, %v3907
        %3909 = vmatmul.bf16.gmra.mxu0 %v2363
        %v3910 = vpop.f32.mrf.mxu0
        %v3911 = vadd.f32 %v3822, %v3910
        %v3912 = vpop.f32.mrf.mxu0
        %v3913 = vadd.f32 %v3824, %v3912
        %3914 = vmatmul.bf16.gmra.mxu0 %v2370
        %v3915 = vpop.f32.mrf.mxu0
        %v3916 = vadd.f32 %v3827, %v3915
        %v3917 = vpop.f32.mrf.mxu0
        %v3918 = vadd.f32 %v3829, %v3917
        %3919 = vmatmul.bf16.gmra.mxu0 %v2377
        %v3920 = vpop.f32.mrf.mxu0
        %v3921 = vadd.f32 %v3832, %v3920
        %v3922 = vpop.f32.mrf.mxu0
        %v3923 = vadd.f32 %v3834, %v3922
        %3924 = vmatmul.bf16.gmra.mxu0 %v2384
        %v3925 = vpop.f32.mrf.mxu0
        %v3926 = vadd.f32 %v3837, %v3925
        %v3927 = vpop.f32.mrf.mxu0
        %v3928 = vadd.f32 %v3839, %v3927
        %3929 = vmatmul.bf16.gmra.mxu0 %v2391
        %v3930 = vpop.f32.mrf.mxu0
        %v3931 = vadd.f32 %v3842, %v3930
        %v3932 = vpop.f32.mrf.mxu0
        %v3933 = vadd.f32 %v3844, %v3932
        %3934 = vmatmul.bf16.gmra.mxu0 %v2398
        %v3935 = vpop.f32.mrf.mxu0
        %v3936 = vadd.f32 %v3847, %v3935
        %v3937 = vpop.f32.mrf.mxu0
        %v3938 = vadd.f32 %v3849, %v3937
        %3939 = vdwg.mxu0
        %3940 = vmatpush.bf16.msra.mxu0 %v1810
        %3941 = vmatpush.bf16.msra.mxu0 %v1806
        %3942 = vmatpush.bf16.msra.mxu0 %v1802
        %3943 = vmatpush.bf16.msra.mxu0 %v1798
        %3944 = vmatpush.bf16.msra.mxu0 %v1794
        %3945 = vmatpush.bf16.msra.mxu0 %v1790
        %3946 = vmatpush.bf16.msra.mxu0 %v1786
        %3947 = vmatpush.bf16.msra.mxu0 %v1782
        %3948 = vmatmul.bf16.gmra.mxu0 %v2294
        %v3949 = vpop.f32.mrf.mxu0
        %v3950 = vadd.f32 %v3861, %v3949
        %v3951 = vpop.f32.mrf.mxu0
        %v3952 = vadd.f32 %v3863, %v3951
        %3953 = vmatmul.bf16.gmra.mxu0 %v2301
        %v3954 = vpop.f32.mrf.mxu0
        %v3955 = vadd.f32 %v3866, %v3954
        %v3956 = vpop.f32.mrf.mxu0
        %v3957 = vadd.f32 %v3868, %v3956
        %3958 = vmatmul.bf16.gmra.mxu0 %v2308
        %v3959 = vpop.f32.mrf.mxu0
        %v3960 = vadd.f32 %v3871, %v3959
        %v3961 = vpop.f32.mrf.mxu0
        %v3962 = vadd.f32 %v3873, %v3961
        %3963 = vmatmul.bf16.gmra.mxu0 %v2315
        %v3964 = vpop.f32.mrf.mxu0
        %v3965 = vadd.f32 %v3876, %v3964
        %v3966 = vpop.f32.mrf.mxu0
        %v3967 = vadd.f32 %v3878, %v3966
        %3968 = vmatmul.bf16.gmra.mxu0 %v2322
        %v3969 = vpop.f32.mrf.mxu0
        %v3970 = vadd.f32 %v3881, %v3969
        %v3971 = vpop.f32.mrf.mxu0
        %v3972 = vadd.f32 %v3883, %v3971
        %3973 = vmatmul.bf16.gmra.mxu0 %v2329
        %v3974 = vpop.f32.mrf.mxu0
        %v3975 = vadd.f32 %v3886, %v3974
        %v3976 = vpop.f32.mrf.mxu0
        %v3977 = vadd.f32 %v3888, %v3976
        %3978 = vmatmul.bf16.gmra.mxu0 %v2336
        %v3979 = vpop.f32.mrf.mxu0
        %v3980 = vadd.f32 %v3891, %v3979
        %v3981 = vpop.f32.mrf.mxu0
        %v3982 = vadd.f32 %v3893, %v3981
        %3983 = vmatmul.bf16.gmra.mxu0 %v2343
        %v3984 = vpop.f32.mrf.mxu0
        %v3985 = vadd.f32 %v3896, %v3984
        %v3986 = vpop.f32.mrf.mxu0
        %v3987 = vadd.f32 %v3898, %v3986
        %3988 = vmatmul.bf16.gmra.mxu0 %v2350
        %v3989 = vpop.f32.mrf.mxu0
        %v3990 = vadd.f32 %v3901, %v3989
        %v3991 = vpop.f32.mrf.mxu0
        %v3992 = vadd.f32 %v3903, %v3991
        %3993 = vmatmul.bf16.gmra.mxu0 %v2357
        %v3994 = vpop.f32.mrf.mxu0
        %v3995 = vadd.f32 %v3906, %v3994
        %v3996 = vpop.f32.mrf.mxu0
        %v3997 = vadd.f32 %v3908, %v3996
        %3998 = vmatmul.bf16.gmra.mxu0 %v2364
        %v3999 = vpop.f32.mrf.mxu0
        %v4000 = vadd.f32 %v3911, %v3999
        %v4001 = vpop.f32.mrf.mxu0
        %v4002 = vadd.f32 %v3913, %v4001
        %4003 = vmatmul.bf16.gmra.mxu0 %v2371
        %v4004 = vpop.f32.mrf.mxu0
        %v4005 = vadd.f32 %v3916, %v4004
        %v4006 = vpop.f32.mrf.mxu0
        %v4007 = vadd.f32 %v3918, %v4006
        %4008 = vmatmul.bf16.gmra.mxu0 %v2378
        %v4009 = vpop.f32.mrf.mxu0
        %v4010 = vadd.f32 %v3921, %v4009
        %v4011 = vpop.f32.mrf.mxu0
        %v4012 = vadd.f32 %v3923, %v4011
        %4013 = vmatmul.bf16.gmra.mxu0 %v2385
        %v4014 = vpop.f32.mrf.mxu0
        %v4015 = vadd.f32 %v3926, %v4014
        %v4016 = vpop.f32.mrf.mxu0
        %v4017 = vadd.f32 %v3928, %v4016
        %4018 = vmatmul.bf16.gmra.mxu0 %v2392
        %v4019 = vpop.f32.mrf.mxu0
        %v4020 = vadd.f32 %v3931, %v4019
        %v4021 = vpop.f32.mrf.mxu0
        %v4022 = vadd.f32 %v3933, %v4021
        %4023 = vmatmul.bf16.gmra.mxu0 %v2399
        %v4024 = vpop.f32.mrf.mxu0
        %v4025 = vadd.f32 %v3936, %v4024
        %v4026 = vpop.f32.mrf.mxu0
        %v4027 = vadd.f32 %v3938, %v4026
        %4028 = vdwg.mxu0
        %4029 = vmatpush.bf16.msra.mxu0 %v1842
        %4030 = vmatpush.bf16.msra.mxu0 %v1838
        %4031 = vmatpush.bf16.msra.mxu0 %v1834
        %4032 = vmatpush.bf16.msra.mxu0 %v1830
        %4033 = vmatpush.bf16.msra.mxu0 %v1826
        %4034 = vmatpush.bf16.msra.mxu0 %v1822
        %4035 = vmatpush.bf16.msra.mxu0 %v1818
        %4036 = vmatpush.bf16.msra.mxu0 %v1814
        %4037 = vmatmul.bf16.gmra.mxu0 %v2295
        %v4038 = vpop.f32.mrf.mxu0
        %v4039 = vadd.f32 %v3950, %v4038
        %v4040 = vpop.f32.mrf.mxu0
        %v4041 = vadd.f32 %v3952, %v4040
        %4042 = vmatmul.bf16.gmra.mxu0 %v2302
        %v4043 = vpop.f32.mrf.mxu0
        %v4044 = vadd.f32 %v3955, %v4043
        %v4045 = vpop.f32.mrf.mxu0
        %v4046 = vadd.f32 %v3957, %v4045
        %4047 = vmatmul.bf16.gmra.mxu0 %v2309
        %v4048 = vpop.f32.mrf.mxu0
        %v4049 = vadd.f32 %v3960, %v4048
        %v4050 = vpop.f32.mrf.mxu0
        %v4051 = vadd.f32 %v3962, %v4050
        %4052 = vmatmul.bf16.gmra.mxu0 %v2316
        %v4053 = vpop.f32.mrf.mxu0
        %v4054 = vadd.f32 %v3965, %v4053
        %v4055 = vpop.f32.mrf.mxu0
        %v4056 = vadd.f32 %v3967, %v4055
        %4057 = vmatmul.bf16.gmra.mxu0 %v2323
        %v4058 = vpop.f32.mrf.mxu0
        %v4059 = vadd.f32 %v3970, %v4058
        %v4060 = vpop.f32.mrf.mxu0
        %v4061 = vadd.f32 %v3972, %v4060
        %4062 = vmatmul.bf16.gmra.mxu0 %v2330
        %v4063 = vpop.f32.mrf.mxu0
        %v4064 = vadd.f32 %v3975, %v4063
        %v4065 = vpop.f32.mrf.mxu0
        %v4066 = vadd.f32 %v3977, %v4065
        %4067 = vmatmul.bf16.gmra.mxu0 %v2337
        %v4068 = vpop.f32.mrf.mxu0
        %v4069 = vadd.f32 %v3980, %v4068
        %v4070 = vpop.f32.mrf.mxu0
        %v4071 = vadd.f32 %v3982, %v4070
        %4072 = vmatmul.bf16.gmra.mxu0 %v2344
        %v4073 = vpop.f32.mrf.mxu0
        %v4074 = vadd.f32 %v3985, %v4073
        %v4075 = vpop.f32.mrf.mxu0
        %v4076 = vadd.f32 %v3987, %v4075
        %4077 = vmatmul.bf16.gmra.mxu0 %v2351
        %v4078 = vpop.f32.mrf.mxu0
        %v4079 = vadd.f32 %v3990, %v4078
        %v4080 = vpop.f32.mrf.mxu0
        %v4081 = vadd.f32 %v3992, %v4080
        %4082 = vmatmul.bf16.gmra.mxu0 %v2358
        %v4083 = vpop.f32.mrf.mxu0
        %v4084 = vadd.f32 %v3995, %v4083
        %v4085 = vpop.f32.mrf.mxu0
        %v4086 = vadd.f32 %v3997, %v4085
        %4087 = vmatmul.bf16.gmra.mxu0 %v2365
        %v4088 = vpop.f32.mrf.mxu0
        %v4089 = vadd.f32 %v4000, %v4088
        %v4090 = vpop.f32.mrf.mxu0
        %v4091 = vadd.f32 %v4002, %v4090
        %4092 = vmatmul.bf16.gmra.mxu0 %v2372
        %v4093 = vpop.f32.mrf.mxu0
        %v4094 = vadd.f32 %v4005, %v4093
        %v4095 = vpop.f32.mrf.mxu0
        %v4096 = vadd.f32 %v4007, %v4095
        %4097 = vmatmul.bf16.gmra.mxu0 %v2379
        %v4098 = vpop.f32.mrf.mxu0
        %v4099 = vadd.f32 %v4010, %v4098
        %v4100 = vpop.f32.mrf.mxu0
        %v4101 = vadd.f32 %v4012, %v4100
        %4102 = vmatmul.bf16.gmra.mxu0 %v2386
        %v4103 = vpop.f32.mrf.mxu0
        %v4104 = vadd.f32 %v4015, %v4103
        %v4105 = vpop.f32.mrf.mxu0
        %v4106 = vadd.f32 %v4017, %v4105
        %4107 = vmatmul.bf16.gmra.mxu0 %v2393
        %v4108 = vpop.f32.mrf.mxu0
        %v4109 = vadd.f32 %v4020, %v4108
        %v4110 = vpop.f32.mrf.mxu0
        %v4111 = vadd.f32 %v4022, %v4110
        %4112 = vmatmul.bf16.gmra.mxu0 %v2400
        %v4113 = vpop.f32.mrf.mxu0
        %v4114 = vadd.f32 %v4025, %v4113
        %v4115 = vpop.f32.mrf.mxu0
        %v4116 = vadd.f32 %v4027, %v4115
        %4117 = vdwg.mxu0
        %4118 = vmatpush.bf16.msra.mxu0 %v1874
        %4119 = vmatpush.bf16.msra.mxu0 %v1870
        %4120 = vmatpush.bf16.msra.mxu0 %v1866
        %4121 = vmatpush.bf16.msra.mxu0 %v1862
        %4122 = vmatpush.bf16.msra.mxu0 %v1858
        %4123 = vmatpush.bf16.msra.mxu0 %v1854
        %4124 = vmatpush.bf16.msra.mxu0 %v1850
        %4125 = vmatpush.bf16.msra.mxu0 %v1846
        %4126 = vmatmul.bf16.gmra.mxu0 %v2296
        %v4127 = vpop.f32.mrf.mxu0
        %v4128 = vadd.f32 %v4039, %v4127
        %v4129 = vpop.f32.mrf.mxu0
        %v4130 = vadd.f32 %v4041, %v4129
        %4131 = vmatmul.bf16.gmra.mxu0 %v2303
        %v4132 = vpop.f32.mrf.mxu0
        %v4133 = vadd.f32 %v4044, %v4132
        %v4134 = vpop.f32.mrf.mxu0
        %v4135 = vadd.f32 %v4046, %v4134
        %4136 = vmatmul.bf16.gmra.mxu0 %v2310
        %v4137 = vpop.f32.mrf.mxu0
        %v4138 = vadd.f32 %v4049, %v4137
        %v4139 = vpop.f32.mrf.mxu0
        %v4140 = vadd.f32 %v4051, %v4139
        %4141 = vmatmul.bf16.gmra.mxu0 %v2317
        %v4142 = vpop.f32.mrf.mxu0
        %v4143 = vadd.f32 %v4054, %v4142
        %v4144 = vpop.f32.mrf.mxu0
        %v4145 = vadd.f32 %v4056, %v4144
        %4146 = vmatmul.bf16.gmra.mxu0 %v2324
        %v4147 = vpop.f32.mrf.mxu0
        %v4148 = vadd.f32 %v4059, %v4147
        %v4149 = vpop.f32.mrf.mxu0
        %v4150 = vadd.f32 %v4061, %v4149
        %4151 = vmatmul.bf16.gmra.mxu0 %v2331
        %v4152 = vpop.f32.mrf.mxu0
        %v4153 = vadd.f32 %v4064, %v4152
        %v4154 = vpop.f32.mrf.mxu0
        %v4155 = vadd.f32 %v4066, %v4154
        %4156 = vmatmul.bf16.gmra.mxu0 %v2338
        %v4157 = vpop.f32.mrf.mxu0
        %v4158 = vadd.f32 %v4069, %v4157
        %v4159 = vpop.f32.mrf.mxu0
        %v4160 = vadd.f32 %v4071, %v4159
        %4161 = vmatmul.bf16.gmra.mxu0 %v2345
        %v4162 = vpop.f32.mrf.mxu0
        %v4163 = vadd.f32 %v4074, %v4162
        %v4164 = vpop.f32.mrf.mxu0
        %v4165 = vadd.f32 %v4076, %v4164
        %4166 = vmatmul.bf16.gmra.mxu0 %v2352
        %v4167 = vpop.f32.mrf.mxu0
        %v4168 = vadd.f32 %v4079, %v4167
        %v4169 = vpop.f32.mrf.mxu0
        %v4170 = vadd.f32 %v4081, %v4169
        %4171 = vmatmul.bf16.gmra.mxu0 %v2359
        %v4172 = vpop.f32.mrf.mxu0
        %v4173 = vadd.f32 %v4084, %v4172
        %v4174 = vpop.f32.mrf.mxu0
        %v4175 = vadd.f32 %v4086, %v4174
        %4176 = vmatmul.bf16.gmra.mxu0 %v2366
        %v4177 = vpop.f32.mrf.mxu0
        %v4178 = vadd.f32 %v4089, %v4177
        %v4179 = vpop.f32.mrf.mxu0
        %v4180 = vadd.f32 %v4091, %v4179
        %4181 = vmatmul.bf16.gmra.mxu0 %v2373
        %v4182 = vpop.f32.mrf.mxu0
        %v4183 = vadd.f32 %v4094, %v4182
        %v4184 = vpop.f32.mrf.mxu0
        %v4185 = vadd.f32 %v4096, %v4184
        %4186 = vmatmul.bf16.gmra.mxu0 %v2380
        %v4187 = vpop.f32.mrf.mxu0
        %v4188 = vadd.f32 %v4099, %v4187
        %v4189 = vpop.f32.mrf.mxu0
        %v4190 = vadd.f32 %v4101, %v4189
        %4191 = vmatmul.bf16.gmra.mxu0 %v2387
        %v4192 = vpop.f32.mrf.mxu0
        %v4193 = vadd.f32 %v4104, %v4192
        %v4194 = vpop.f32.mrf.mxu0
        %v4195 = vadd.f32 %v4106, %v4194
        %4196 = vmatmul.bf16.gmra.mxu0 %v2394
        %v4197 = vpop.f32.mrf.mxu0
        %v4198 = vadd.f32 %v4109, %v4197
        %v4199 = vpop.f32.mrf.mxu0
        %v4200 = vadd.f32 %v4111, %v4199
        %4201 = vmatmul.bf16.gmra.mxu0 %v2401
        %v4202 = vpop.f32.mrf.mxu0
        %v4203 = vadd.f32 %v4114, %v4202
        %v4204 = vpop.f32.mrf.mxu0
        %v4205 = vadd.f32 %v4116, %v4204
        %4206 = vdwg.mxu0
        %4207 = vmatpush.bf16.msra.mxu0 %v1906
        %4208 = vmatpush.bf16.msra.mxu0 %v1902
        %4209 = vmatpush.bf16.msra.mxu0 %v1898
        %4210 = vmatpush.bf16.msra.mxu0 %v1894
        %4211 = vmatpush.bf16.msra.mxu0 %v1890
        %4212 = vmatpush.bf16.msra.mxu0 %v1886
        %4213 = vmatpush.bf16.msra.mxu0 %v1882
        %4214 = vmatpush.bf16.msra.mxu0 %v1878
        %4215 = vmatmul.bf16.gmra.mxu0 %v2297
        %v4216 = vpop.f32.mrf.mxu0
        %v4217 = vadd.f32 %v4128, %v4216
        %v4218 = vpop.f32.mrf.mxu0
        %v4219 = vadd.f32 %v4130, %v4218
        %4220 = vmatmul.bf16.gmra.mxu0 %v2304
        %v4221 = vpop.f32.mrf.mxu0
        %v4222 = vadd.f32 %v4133, %v4221
        %v4223 = vpop.f32.mrf.mxu0
        %v4224 = vadd.f32 %v4135, %v4223
        %4225 = vmatmul.bf16.gmra.mxu0 %v2311
        %v4226 = vpop.f32.mrf.mxu0
        %v4227 = vadd.f32 %v4138, %v4226
        %v4228 = vpop.f32.mrf.mxu0
        %v4229 = vadd.f32 %v4140, %v4228
        %4230 = vmatmul.bf16.gmra.mxu0 %v2318
        %v4231 = vpop.f32.mrf.mxu0
        %v4232 = vadd.f32 %v4143, %v4231
        %v4233 = vpop.f32.mrf.mxu0
        %v4234 = vadd.f32 %v4145, %v4233
        %4235 = vmatmul.bf16.gmra.mxu0 %v2325
        %v4236 = vpop.f32.mrf.mxu0
        %v4237 = vadd.f32 %v4148, %v4236
        %v4238 = vpop.f32.mrf.mxu0
        %v4239 = vadd.f32 %v4150, %v4238
        %4240 = vmatmul.bf16.gmra.mxu0 %v2332
        %v4241 = vpop.f32.mrf.mxu0
        %v4242 = vadd.f32 %v4153, %v4241
        %v4243 = vpop.f32.mrf.mxu0
        %v4244 = vadd.f32 %v4155, %v4243
        %4245 = vmatmul.bf16.gmra.mxu0 %v2339
        %v4246 = vpop.f32.mrf.mxu0
        %v4247 = vadd.f32 %v4158, %v4246
        %v4248 = vpop.f32.mrf.mxu0
        %v4249 = vadd.f32 %v4160, %v4248
        %4250 = vmatmul.bf16.gmra.mxu0 %v2346
        %v4251 = vpop.f32.mrf.mxu0
        %v4252 = vadd.f32 %v4163, %v4251
        %v4253 = vpop.f32.mrf.mxu0
        %v4254 = vadd.f32 %v4165, %v4253
        %4255 = vmatmul.bf16.gmra.mxu0 %v2353
        %v4256 = vpop.f32.mrf.mxu0
        %v4257 = vadd.f32 %v4168, %v4256
        %v4258 = vpop.f32.mrf.mxu0
        %v4259 = vadd.f32 %v4170, %v4258
        %4260 = vmatmul.bf16.gmra.mxu0 %v2360
        %v4261 = vpop.f32.mrf.mxu0
        %v4262 = vadd.f32 %v4173, %v4261
        %v4263 = vpop.f32.mrf.mxu0
        %v4264 = vadd.f32 %v4175, %v4263
        %4265 = vmatmul.bf16.gmra.mxu0 %v2367
        %v4266 = vpop.f32.mrf.mxu0
        %v4267 = vadd.f32 %v4178, %v4266
        %v4268 = vpop.f32.mrf.mxu0
        %v4269 = vadd.f32 %v4180, %v4268
        %4270 = vmatmul.bf16.gmra.mxu0 %v2374
        %v4271 = vpop.f32.mrf.mxu0
        %v4272 = vadd.f32 %v4183, %v4271
        %v4273 = vpop.f32.mrf.mxu0
        %v4274 = vadd.f32 %v4185, %v4273
        %4275 = vmatmul.bf16.gmra.mxu0 %v2381
        %v4276 = vpop.f32.mrf.mxu0
        %v4277 = vadd.f32 %v4188, %v4276
        %v4278 = vpop.f32.mrf.mxu0
        %v4279 = vadd.f32 %v4190, %v4278
        %4280 = vmatmul.bf16.gmra.mxu0 %v2388
        %v4281 = vpop.f32.mrf.mxu0
        %v4282 = vadd.f32 %v4193, %v4281
        %v4283 = vpop.f32.mrf.mxu0
        %v4284 = vadd.f32 %v4195, %v4283
        %4285 = vmatmul.bf16.gmra.mxu0 %v2395
        %v4286 = vpop.f32.mrf.mxu0
        %v4287 = vadd.f32 %v4198, %v4286
        %v4288 = vpop.f32.mrf.mxu0
        %v4289 = vadd.f32 %v4200, %v4288
        %4290 = vmatmul.bf16.gmra.mxu0 %v2402
        %v4291 = vpop.f32.mrf.mxu0
        %v4292 = vadd.f32 %v4203, %v4291
        %v4293 = vpop.f32.mrf.mxu0
        %v4294 = vadd.f32 %v4205, %v4293
        %4295 = vdwg.mxu0
        %4296 = vmatpush.bf16.msra.mxu0 %v1938
        %4297 = vmatpush.bf16.msra.mxu0 %v1934
        %4298 = vmatpush.bf16.msra.mxu0 %v1930
        %4299 = vmatpush.bf16.msra.mxu0 %v1926
        %4300 = vmatpush.bf16.msra.mxu0 %v1922
        %4301 = vmatpush.bf16.msra.mxu0 %v1918
        %4302 = vmatpush.bf16.msra.mxu0 %v1914
        %4303 = vmatpush.bf16.msra.mxu0 %v1910
        %4304 = vmatmul.bf16.gmra.mxu0 %v2298
        %v4305 = vpop.f32.mrf.mxu0
        %v4306 = vadd.f32 %v4217, %v4305
        %v4307 = vpop.f32.mrf.mxu0
        %v4308 = vadd.f32 %v4219, %v4307
        %4309 = vmatmul.bf16.gmra.mxu0 %v2305
        %v4310 = vpop.f32.mrf.mxu0
        %v4311 = vadd.f32 %v4222, %v4310
        %v4312 = vpop.f32.mrf.mxu0
        %v4313 = vadd.f32 %v4224, %v4312
        %4314 = vmatmul.bf16.gmra.mxu0 %v2312
        %v4315 = vpop.f32.mrf.mxu0
        %v4316 = vadd.f32 %v4227, %v4315
        %v4317 = vpop.f32.mrf.mxu0
        %v4318 = vadd.f32 %v4229, %v4317
        %4319 = vmatmul.bf16.gmra.mxu0 %v2319
        %v4320 = vpop.f32.mrf.mxu0
        %v4321 = vadd.f32 %v4232, %v4320
        %v4322 = vpop.f32.mrf.mxu0
        %v4323 = vadd.f32 %v4234, %v4322
        %4324 = vmatmul.bf16.gmra.mxu0 %v2326
        %v4325 = vpop.f32.mrf.mxu0
        %v4326 = vadd.f32 %v4237, %v4325
        %v4327 = vpop.f32.mrf.mxu0
        %v4328 = vadd.f32 %v4239, %v4327
        %4329 = vmatmul.bf16.gmra.mxu0 %v2333
        %v4330 = vpop.f32.mrf.mxu0
        %v4331 = vadd.f32 %v4242, %v4330
        %v4332 = vpop.f32.mrf.mxu0
        %v4333 = vadd.f32 %v4244, %v4332
        %4334 = vmatmul.bf16.gmra.mxu0 %v2340
        %v4335 = vpop.f32.mrf.mxu0
        %v4336 = vadd.f32 %v4247, %v4335
        %v4337 = vpop.f32.mrf.mxu0
        %v4338 = vadd.f32 %v4249, %v4337
        %4339 = vmatmul.bf16.gmra.mxu0 %v2347
        %v4340 = vpop.f32.mrf.mxu0
        %v4341 = vadd.f32 %v4252, %v4340
        %v4342 = vpop.f32.mrf.mxu0
        %v4343 = vadd.f32 %v4254, %v4342
        %4344 = vmatmul.bf16.gmra.mxu0 %v2354
        %v4345 = vpop.f32.mrf.mxu0
        %v4346 = vadd.f32 %v4257, %v4345
        %v4347 = vpop.f32.mrf.mxu0
        %v4348 = vadd.f32 %v4259, %v4347
        %4349 = vmatmul.bf16.gmra.mxu0 %v2361
        %v4350 = vpop.f32.mrf.mxu0
        %v4351 = vadd.f32 %v4262, %v4350
        %v4352 = vpop.f32.mrf.mxu0
        %v4353 = vadd.f32 %v4264, %v4352
        %4354 = vmatmul.bf16.gmra.mxu0 %v2368
        %v4355 = vpop.f32.mrf.mxu0
        %v4356 = vadd.f32 %v4267, %v4355
        %v4357 = vpop.f32.mrf.mxu0
        %v4358 = vadd.f32 %v4269, %v4357
        %4359 = vmatmul.bf16.gmra.mxu0 %v2375
        %v4360 = vpop.f32.mrf.mxu0
        %v4361 = vadd.f32 %v4272, %v4360
        %v4362 = vpop.f32.mrf.mxu0
        %v4363 = vadd.f32 %v4274, %v4362
        %4364 = vmatmul.bf16.gmra.mxu0 %v2382
        %v4365 = vpop.f32.mrf.mxu0
        %v4366 = vadd.f32 %v4277, %v4365
        %v4367 = vpop.f32.mrf.mxu0
        %v4368 = vadd.f32 %v4279, %v4367
        %4369 = vmatmul.bf16.gmra.mxu0 %v2389
        %v4370 = vpop.f32.mrf.mxu0
        %v4371 = vadd.f32 %v4282, %v4370
        %v4372 = vpop.f32.mrf.mxu0
        %v4373 = vadd.f32 %v4284, %v4372
        %4374 = vmatmul.bf16.gmra.mxu0 %v2396
        %v4375 = vpop.f32.mrf.mxu0
        %v4376 = vadd.f32 %v4287, %v4375
        %v4377 = vpop.f32.mrf.mxu0
        %v4378 = vadd.f32 %v4289, %v4377
        %4379 = vmatmul.bf16.gmra.mxu0 %v2403
        %v4380 = vpop.f32.mrf.mxu0
        %v4381 = vadd.f32 %v4292, %v4380
        %v4382 = vpop.f32.mrf.mxu0
        %v4383 = vadd.f32 %v4294, %v4382
        %4384 = vdwg.mxu0
        %4385 = vmatpush.bf16.msra.mxu0 %v1747
        %4386 = vmatpush.bf16.msra.mxu0 %v1743
        %4387 = vmatpush.bf16.msra.mxu0 %v1739
        %4388 = vmatpush.bf16.msra.mxu0 %v1735
        %4389 = vmatpush.bf16.msra.mxu0 %v1731
        %4390 = vmatpush.bf16.msra.mxu0 %v1727
        %4391 = vmatpush.bf16.msra.mxu0 %v1723
        %4392 = vmatpush.bf16.msra.mxu0 %v1719
        %4393 = vmatmul.bf16.gmra.mxu0 %v2292
        %v4394 = vpop.f32.mrf.mxu0
        %v4395 = vadd.f32 0.0, %v4394
        %v4396 = vpop.f32.mrf.mxu0
        %v4397 = vadd.f32 0.0, %v4396
        %4398 = vmatmul.bf16.gmra.mxu0 %v2299
        %v4399 = vpop.f32.mrf.mxu0
        %v4400 = vadd.f32 0.0, %v4399
        %v4401 = vpop.f32.mrf.mxu0
        %v4402 = vadd.f32 0.0, %v4401
        %4403 = vmatmul.bf16.gmra.mxu0 %v2306
        %v4404 = vpop.f32.mrf.mxu0
        %v4405 = vadd.f32 0.0, %v4404
        %v4406 = vpop.f32.mrf.mxu0
        %v4407 = vadd.f32 0.0, %v4406
        %4408 = vmatmul.bf16.gmra.mxu0 %v2313
        %v4409 = vpop.f32.mrf.mxu0
        %v4410 = vadd.f32 0.0, %v4409
        %v4411 = vpop.f32.mrf.mxu0
        %v4412 = vadd.f32 0.0, %v4411
        %4413 = vmatmul.bf16.gmra.mxu0 %v2320
        %v4414 = vpop.f32.mrf.mxu0
        %v4415 = vadd.f32 0.0, %v4414
        %v4416 = vpop.f32.mrf.mxu0
        %v4417 = vadd.f32 0.0, %v4416
        %4418 = vmatmul.bf16.gmra.mxu0 %v2327
        %v4419 = vpop.f32.mrf.mxu0
        %v4420 = vadd.f32 0.0, %v4419
        %v4421 = vpop.f32.mrf.mxu0
        %v4422 = vadd.f32 0.0, %v4421
        %4423 = vmatmul.bf16.gmra.mxu0 %v2334
        %v4424 = vpop.f32.mrf.mxu0
        %v4425 = vadd.f32 0.0, %v4424
        %v4426 = vpop.f32.mrf.mxu0
        %v4427 = vadd.f32 0.0, %v4426
        %4428 = vmatmul.bf16.gmra.mxu0 %v2341
        %v4429 = vpop.f32.mrf.mxu0
        %v4430 = vadd.f32 0.0, %v4429
        %v4431 = vpop.f32.mrf.mxu0
        %v4432 = vadd.f32 0.0, %v4431
        %4433 = vmatmul.bf16.gmra.mxu0 %v2348
        %v4434 = vpop.f32.mrf.mxu0
        %v4435 = vadd.f32 0.0, %v4434
        %v4436 = vpop.f32.mrf.mxu0
        %v4437 = vadd.f32 0.0, %v4436
        %4438 = vmatmul.bf16.gmra.mxu0 %v2355
        %v4439 = vpop.f32.mrf.mxu0
        %v4440 = vadd.f32 0.0, %v4439
        %v4441 = vpop.f32.mrf.mxu0
        %v4442 = vadd.f32 0.0, %v4441
        %4443 = vmatmul.bf16.gmra.mxu0 %v2362
        %v4444 = vpop.f32.mrf.mxu0
        %v4445 = vadd.f32 0.0, %v4444
        %v4446 = vpop.f32.mrf.mxu0
        %v4447 = vadd.f32 0.0, %v4446
        %4448 = vmatmul.bf16.gmra.mxu0 %v2369
        %v4449 = vpop.f32.mrf.mxu0
        %v4450 = vadd.f32 0.0, %v4449
        %v4451 = vpop.f32.mrf.mxu0
        %v4452 = vadd.f32 0.0, %v4451
        %4453 = vmatmul.bf16.gmra.mxu0 %v2376
        %v4454 = vpop.f32.mrf.mxu0
        %v4455 = vadd.f32 0.0, %v4454
        %v4456 = vpop.f32.mrf.mxu0
        %v4457 = vadd.f32 0.0, %v4456
        %4458 = vmatmul.bf16.gmra.mxu0 %v2383
        %v4459 = vpop.f32.mrf.mxu0
        %v4460 = vadd.f32 0.0, %v4459
        %v4461 = vpop.f32.mrf.mxu0
        %v4462 = vadd.f32 0.0, %v4461
        %4463 = vmatmul.bf16.gmra.mxu0 %v2390
        %v4464 = vpop.f32.mrf.mxu0
        %v4465 = vadd.f32 0.0, %v4464
        %v4466 = vpop.f32.mrf.mxu0
        %v4467 = vadd.f32 0.0, %v4466
        %4468 = vmatmul.bf16.gmra.mxu0 %v2397
        %v4469 = vpop.f32.mrf.mxu0
        %v4470 = vadd.f32 0.0, %v4469
        %v4471 = vpop.f32.mrf.mxu0
        %v4472 = vadd.f32 0.0, %v4471
        %4473 = vdwg.mxu0
        %4474 = vmatpush.bf16.msra.mxu0 %v1779
        %4475 = vmatpush.bf16.msra.mxu0 %v1775
        %4476 = vmatpush.bf16.msra.mxu0 %v1771
        %4477 = vmatpush.bf16.msra.mxu0 %v1767
        %4478 = vmatpush.bf16.msra.mxu0 %v1763
        %4479 = vmatpush.bf16.msra.mxu0 %v1759
        %4480 = vmatpush.bf16.msra.mxu0 %v1755
        %4481 = vmatpush.bf16.msra.mxu0 %v1751
        %4482 = vmatmul.bf16.gmra.mxu0 %v2293
        %v4483 = vpop.f32.mrf.mxu0
        %v4484 = vadd.f32 %v4395, %v4483
        %v4485 = vpop.f32.mrf.mxu0
        %v4486 = vadd.f32 %v4397, %v4485
        %4487 = vmatmul.bf16.gmra.mxu0 %v2300
        %v4488 = vpop.f32.mrf.mxu0
        %v4489 = vadd.f32 %v4400, %v4488
        %v4490 = vpop.f32.mrf.mxu0
        %v4491 = vadd.f32 %v4402, %v4490
        %4492 = vmatmul.bf16.gmra.mxu0 %v2307
        %v4493 = vpop.f32.mrf.mxu0
        %v4494 = vadd.f32 %v4405, %v4493
        %v4495 = vpop.f32.mrf.mxu0
        %v4496 = vadd.f32 %v4407, %v4495
        %4497 = vmatmul.bf16.gmra.mxu0 %v2314
        %v4498 = vpop.f32.mrf.mxu0
        %v4499 = vadd.f32 %v4410, %v4498
        %v4500 = vpop.f32.mrf.mxu0
        %v4501 = vadd.f32 %v4412, %v4500
        %4502 = vmatmul.bf16.gmra.mxu0 %v2321
        %v4503 = vpop.f32.mrf.mxu0
        %v4504 = vadd.f32 %v4415, %v4503
        %v4505 = vpop.f32.mrf.mxu0
        %v4506 = vadd.f32 %v4417, %v4505
        %4507 = vmatmul.bf16.gmra.mxu0 %v2328
        %v4508 = vpop.f32.mrf.mxu0
        %v4509 = vadd.f32 %v4420, %v4508
        %v4510 = vpop.f32.mrf.mxu0
        %v4511 = vadd.f32 %v4422, %v4510
        %4512 = vmatmul.bf16.gmra.mxu0 %v2335
        %v4513 = vpop.f32.mrf.mxu0
        %v4514 = vadd.f32 %v4425, %v4513
        %v4515 = vpop.f32.mrf.mxu0
        %v4516 = vadd.f32 %v4427, %v4515
        %4517 = vmatmul.bf16.gmra.mxu0 %v2342
        %v4518 = vpop.f32.mrf.mxu0
        %v4519 = vadd.f32 %v4430, %v4518
        %v4520 = vpop.f32.mrf.mxu0
        %v4521 = vadd.f32 %v4432, %v4520
        %4522 = vmatmul.bf16.gmra.mxu0 %v2349
        %v4523 = vpop.f32.mrf.mxu0
        %v4524 = vadd.f32 %v4435, %v4523
        %v4525 = vpop.f32.mrf.mxu0
        %v4526 = vadd.f32 %v4437, %v4525
        %4527 = vmatmul.bf16.gmra.mxu0 %v2356
        %v4528 = vpop.f32.mrf.mxu0
        %v4529 = vadd.f32 %v4440, %v4528
        %v4530 = vpop.f32.mrf.mxu0
        %v4531 = vadd.f32 %v4442, %v4530
        %4532 = vmatmul.bf16.gmra.mxu0 %v2363
        %v4533 = vpop.f32.mrf.mxu0
        %v4534 = vadd.f32 %v4445, %v4533
        %v4535 = vpop.f32.mrf.mxu0
        %v4536 = vadd.f32 %v4447, %v4535
        %4537 = vmatmul.bf16.gmra.mxu0 %v2370
        %v4538 = vpop.f32.mrf.mxu0
        %v4539 = vadd.f32 %v4450, %v4538
        %v4540 = vpop.f32.mrf.mxu0
        %v4541 = vadd.f32 %v4452, %v4540
        %4542 = vmatmul.bf16.gmra.mxu0 %v2377
        %v4543 = vpop.f32.mrf.mxu0
        %v4544 = vadd.f32 %v4455, %v4543
        %v4545 = vpop.f32.mrf.mxu0
        %v4546 = vadd.f32 %v4457, %v4545
        %4547 = vmatmul.bf16.gmra.mxu0 %v2384
        %v4548 = vpop.f32.mrf.mxu0
        %v4549 = vadd.f32 %v4460, %v4548
        %v4550 = vpop.f32.mrf.mxu0
        %v4551 = vadd.f32 %v4462, %v4550
        %4552 = vmatmul.bf16.gmra.mxu0 %v2391
        %v4553 = vpop.f32.mrf.mxu0
        %v4554 = vadd.f32 %v4465, %v4553
        %v4555 = vpop.f32.mrf.mxu0
        %v4556 = vadd.f32 %v4467, %v4555
        %4557 = vmatmul.bf16.gmra.mxu0 %v2398
        %v4558 = vpop.f32.mrf.mxu0
        %v4559 = vadd.f32 %v4470, %v4558
        %v4560 = vpop.f32.mrf.mxu0
        %v4561 = vadd.f32 %v4472, %v4560
        %4562 = vdwg.mxu0
        %4563 = vmatpush.bf16.msra.mxu0 %v1811
        %4564 = vmatpush.bf16.msra.mxu0 %v1807
        %4565 = vmatpush.bf16.msra.mxu0 %v1803
        %4566 = vmatpush.bf16.msra.mxu0 %v1799
        %4567 = vmatpush.bf16.msra.mxu0 %v1795
        %4568 = vmatpush.bf16.msra.mxu0 %v1791
        %4569 = vmatpush.bf16.msra.mxu0 %v1787
        %4570 = vmatpush.bf16.msra.mxu0 %v1783
        %4571 = vmatmul.bf16.gmra.mxu0 %v2294
        %v4572 = vpop.f32.mrf.mxu0
        %v4573 = vadd.f32 %v4484, %v4572
        %v4574 = vpop.f32.mrf.mxu0
        %v4575 = vadd.f32 %v4486, %v4574
        %4576 = vmatmul.bf16.gmra.mxu0 %v2301
        %v4577 = vpop.f32.mrf.mxu0
        %v4578 = vadd.f32 %v4489, %v4577
        %v4579 = vpop.f32.mrf.mxu0
        %v4580 = vadd.f32 %v4491, %v4579
        %4581 = vmatmul.bf16.gmra.mxu0 %v2308
        %v4582 = vpop.f32.mrf.mxu0
        %v4583 = vadd.f32 %v4494, %v4582
        %v4584 = vpop.f32.mrf.mxu0
        %v4585 = vadd.f32 %v4496, %v4584
        %4586 = vmatmul.bf16.gmra.mxu0 %v2315
        %v4587 = vpop.f32.mrf.mxu0
        %v4588 = vadd.f32 %v4499, %v4587
        %v4589 = vpop.f32.mrf.mxu0
        %v4590 = vadd.f32 %v4501, %v4589
        %4591 = vmatmul.bf16.gmra.mxu0 %v2322
        %v4592 = vpop.f32.mrf.mxu0
        %v4593 = vadd.f32 %v4504, %v4592
        %v4594 = vpop.f32.mrf.mxu0
        %v4595 = vadd.f32 %v4506, %v4594
        %4596 = vmatmul.bf16.gmra.mxu0 %v2329
        %v4597 = vpop.f32.mrf.mxu0
        %v4598 = vadd.f32 %v4509, %v4597
        %v4599 = vpop.f32.mrf.mxu0
        %v4600 = vadd.f32 %v4511, %v4599
        %4601 = vmatmul.bf16.gmra.mxu0 %v2336
        %v4602 = vpop.f32.mrf.mxu0
        %v4603 = vadd.f32 %v4514, %v4602
        %v4604 = vpop.f32.mrf.mxu0
        %v4605 = vadd.f32 %v4516, %v4604
        %4606 = vmatmul.bf16.gmra.mxu0 %v2343
        %v4607 = vpop.f32.mrf.mxu0
        %v4608 = vadd.f32 %v4519, %v4607
        %v4609 = vpop.f32.mrf.mxu0
        %v4610 = vadd.f32 %v4521, %v4609
        %4611 = vmatmul.bf16.gmra.mxu0 %v2350
        %v4612 = vpop.f32.mrf.mxu0
        %v4613 = vadd.f32 %v4524, %v4612
        %v4614 = vpop.f32.mrf.mxu0
        %v4615 = vadd.f32 %v4526, %v4614
        %4616 = vmatmul.bf16.gmra.mxu0 %v2357
        %v4617 = vpop.f32.mrf.mxu0
        %v4618 = vadd.f32 %v4529, %v4617
        %v4619 = vpop.f32.mrf.mxu0
        %v4620 = vadd.f32 %v4531, %v4619
        %4621 = vmatmul.bf16.gmra.mxu0 %v2364
        %v4622 = vpop.f32.mrf.mxu0
        %v4623 = vadd.f32 %v4534, %v4622
        %v4624 = vpop.f32.mrf.mxu0
        %v4625 = vadd.f32 %v4536, %v4624
        %4626 = vmatmul.bf16.gmra.mxu0 %v2371
        %v4627 = vpop.f32.mrf.mxu0
        %v4628 = vadd.f32 %v4539, %v4627
        %v4629 = vpop.f32.mrf.mxu0
        %v4630 = vadd.f32 %v4541, %v4629
        %4631 = vmatmul.bf16.gmra.mxu0 %v2378
        %v4632 = vpop.f32.mrf.mxu0
        %v4633 = vadd.f32 %v4544, %v4632
        %v4634 = vpop.f32.mrf.mxu0
        %v4635 = vadd.f32 %v4546, %v4634
        %4636 = vmatmul.bf16.gmra.mxu0 %v2385
        %v4637 = vpop.f32.mrf.mxu0
        %v4638 = vadd.f32 %v4549, %v4637
        %v4639 = vpop.f32.mrf.mxu0
        %v4640 = vadd.f32 %v4551, %v4639
        %4641 = vmatmul.bf16.gmra.mxu0 %v2392
        %v4642 = vpop.f32.mrf.mxu0
        %v4643 = vadd.f32 %v4554, %v4642
        %v4644 = vpop.f32.mrf.mxu0
        %v4645 = vadd.f32 %v4556, %v4644
        %4646 = vmatmul.bf16.gmra.mxu0 %v2399
        %v4647 = vpop.f32.mrf.mxu0
        %v4648 = vadd.f32 %v4559, %v4647
        %v4649 = vpop.f32.mrf.mxu0
        %v4650 = vadd.f32 %v4561, %v4649
        %4651 = vdwg.mxu0
        %4652 = vmatpush.bf16.msra.mxu0 %v1843
        %4653 = vmatpush.bf16.msra.mxu0 %v1839
        %4654 = vmatpush.bf16.msra.mxu0 %v1835
        %4655 = vmatpush.bf16.msra.mxu0 %v1831
        %4656 = vmatpush.bf16.msra.mxu0 %v1827
        %4657 = vmatpush.bf16.msra.mxu0 %v1823
        %4658 = vmatpush.bf16.msra.mxu0 %v1819
        %4659 = vmatpush.bf16.msra.mxu0 %v1815
        %4660 = vmatmul.bf16.gmra.mxu0 %v2295
        %v4661 = vpop.f32.mrf.mxu0
        %v4662 = vadd.f32 %v4573, %v4661
        %v4663 = vpop.f32.mrf.mxu0
        %v4664 = vadd.f32 %v4575, %v4663
        %4665 = vmatmul.bf16.gmra.mxu0 %v2302
        %v4666 = vpop.f32.mrf.mxu0
        %v4667 = vadd.f32 %v4578, %v4666
        %v4668 = vpop.f32.mrf.mxu0
        %v4669 = vadd.f32 %v4580, %v4668
        %4670 = vmatmul.bf16.gmra.mxu0 %v2309
        %v4671 = vpop.f32.mrf.mxu0
        %v4672 = vadd.f32 %v4583, %v4671
        %v4673 = vpop.f32.mrf.mxu0
        %v4674 = vadd.f32 %v4585, %v4673
        %4675 = vmatmul.bf16.gmra.mxu0 %v2316
        %v4676 = vpop.f32.mrf.mxu0
        %v4677 = vadd.f32 %v4588, %v4676
        %v4678 = vpop.f32.mrf.mxu0
        %v4679 = vadd.f32 %v4590, %v4678
        %4680 = vmatmul.bf16.gmra.mxu0 %v2323
        %v4681 = vpop.f32.mrf.mxu0
        %v4682 = vadd.f32 %v4593, %v4681
        %v4683 = vpop.f32.mrf.mxu0
        %v4684 = vadd.f32 %v4595, %v4683
        %4685 = vmatmul.bf16.gmra.mxu0 %v2330
        %v4686 = vpop.f32.mrf.mxu0
        %v4687 = vadd.f32 %v4598, %v4686
        %v4688 = vpop.f32.mrf.mxu0
        %v4689 = vadd.f32 %v4600, %v4688
        %4690 = vmatmul.bf16.gmra.mxu0 %v2337
        %v4691 = vpop.f32.mrf.mxu0
        %v4692 = vadd.f32 %v4603, %v4691
        %v4693 = vpop.f32.mrf.mxu0
        %v4694 = vadd.f32 %v4605, %v4693
        %4695 = vmatmul.bf16.gmra.mxu0 %v2344
        %v4696 = vpop.f32.mrf.mxu0
        %v4697 = vadd.f32 %v4608, %v4696
        %v4698 = vpop.f32.mrf.mxu0
        %v4699 = vadd.f32 %v4610, %v4698
        %4700 = vmatmul.bf16.gmra.mxu0 %v2351
        %v4701 = vpop.f32.mrf.mxu0
        %v4702 = vadd.f32 %v4613, %v4701
        %v4703 = vpop.f32.mrf.mxu0
        %v4704 = vadd.f32 %v4615, %v4703
        %4705 = vmatmul.bf16.gmra.mxu0 %v2358
        %v4706 = vpop.f32.mrf.mxu0
        %v4707 = vadd.f32 %v4618, %v4706
        %v4708 = vpop.f32.mrf.mxu0
        %v4709 = vadd.f32 %v4620, %v4708
        %4710 = vmatmul.bf16.gmra.mxu0 %v2365
        %v4711 = vpop.f32.mrf.mxu0
        %v4712 = vadd.f32 %v4623, %v4711
        %v4713 = vpop.f32.mrf.mxu0
        %v4714 = vadd.f32 %v4625, %v4713
        %4715 = vmatmul.bf16.gmra.mxu0 %v2372
        %v4716 = vpop.f32.mrf.mxu0
        %v4717 = vadd.f32 %v4628, %v4716
        %v4718 = vpop.f32.mrf.mxu0
        %v4719 = vadd.f32 %v4630, %v4718
        %4720 = vmatmul.bf16.gmra.mxu0 %v2379
        %v4721 = vpop.f32.mrf.mxu0
        %v4722 = vadd.f32 %v4633, %v4721
        %v4723 = vpop.f32.mrf.mxu0
        %v4724 = vadd.f32 %v4635, %v4723
        %4725 = vmatmul.bf16.gmra.mxu0 %v2386
        %v4726 = vpop.f32.mrf.mxu0
        %v4727 = vadd.f32 %v4638, %v4726
        %v4728 = vpop.f32.mrf.mxu0
        %v4729 = vadd.f32 %v4640, %v4728
        %4730 = vmatmul.bf16.gmra.mxu0 %v2393
        %v4731 = vpop.f32.mrf.mxu0
        %v4732 = vadd.f32 %v4643, %v4731
        %v4733 = vpop.f32.mrf.mxu0
        %v4734 = vadd.f32 %v4645, %v4733
        %4735 = vmatmul.bf16.gmra.mxu0 %v2400
        %v4736 = vpop.f32.mrf.mxu0
        %v4737 = vadd.f32 %v4648, %v4736
        %v4738 = vpop.f32.mrf.mxu0
        %v4739 = vadd.f32 %v4650, %v4738
        %4740 = vdwg.mxu0
        %4741 = vmatpush.bf16.msra.mxu0 %v1875
        %4742 = vmatpush.bf16.msra.mxu0 %v1871
        %4743 = vmatpush.bf16.msra.mxu0 %v1867
        %4744 = vmatpush.bf16.msra.mxu0 %v1863
        %4745 = vmatpush.bf16.msra.mxu0 %v1859
        %4746 = vmatpush.bf16.msra.mxu0 %v1855
        %4747 = vmatpush.bf16.msra.mxu0 %v1851
        %4748 = vmatpush.bf16.msra.mxu0 %v1847
        %4749 = vmatmul.bf16.gmra.mxu0 %v2296
        %v4750 = vpop.f32.mrf.mxu0
        %v4751 = vadd.f32 %v4662, %v4750
        %v4752 = vpop.f32.mrf.mxu0
        %v4753 = vadd.f32 %v4664, %v4752
        %4754 = vmatmul.bf16.gmra.mxu0 %v2303
        %v4755 = vpop.f32.mrf.mxu0
        %v4756 = vadd.f32 %v4667, %v4755
        %v4757 = vpop.f32.mrf.mxu0
        %v4758 = vadd.f32 %v4669, %v4757
        %4759 = vmatmul.bf16.gmra.mxu0 %v2310
        %v4760 = vpop.f32.mrf.mxu0
        %v4761 = vadd.f32 %v4672, %v4760
        %v4762 = vpop.f32.mrf.mxu0
        %v4763 = vadd.f32 %v4674, %v4762
        %4764 = vmatmul.bf16.gmra.mxu0 %v2317
        %v4765 = vpop.f32.mrf.mxu0
        %v4766 = vadd.f32 %v4677, %v4765
        %v4767 = vpop.f32.mrf.mxu0
        %v4768 = vadd.f32 %v4679, %v4767
        %4769 = vmatmul.bf16.gmra.mxu0 %v2324
        %v4770 = vpop.f32.mrf.mxu0
        %v4771 = vadd.f32 %v4682, %v4770
        %v4772 = vpop.f32.mrf.mxu0
        %v4773 = vadd.f32 %v4684, %v4772
        %4774 = vmatmul.bf16.gmra.mxu0 %v2331
        %v4775 = vpop.f32.mrf.mxu0
        %v4776 = vadd.f32 %v4687, %v4775
        %v4777 = vpop.f32.mrf.mxu0
        %v4778 = vadd.f32 %v4689, %v4777
        %4779 = vmatmul.bf16.gmra.mxu0 %v2338
        %v4780 = vpop.f32.mrf.mxu0
        %v4781 = vadd.f32 %v4692, %v4780
        %v4782 = vpop.f32.mrf.mxu0
        %v4783 = vadd.f32 %v4694, %v4782
        %4784 = vmatmul.bf16.gmra.mxu0 %v2345
        %v4785 = vpop.f32.mrf.mxu0
        %v4786 = vadd.f32 %v4697, %v4785
        %v4787 = vpop.f32.mrf.mxu0
        %v4788 = vadd.f32 %v4699, %v4787
        %4789 = vmatmul.bf16.gmra.mxu0 %v2352
        %v4790 = vpop.f32.mrf.mxu0
        %v4791 = vadd.f32 %v4702, %v4790
        %v4792 = vpop.f32.mrf.mxu0
        %v4793 = vadd.f32 %v4704, %v4792
        %4794 = vmatmul.bf16.gmra.mxu0 %v2359
        %v4795 = vpop.f32.mrf.mxu0
        %v4796 = vadd.f32 %v4707, %v4795
        %v4797 = vpop.f32.mrf.mxu0
        %v4798 = vadd.f32 %v4709, %v4797
        %4799 = vmatmul.bf16.gmra.mxu0 %v2366
        %v4800 = vpop.f32.mrf.mxu0
        %v4801 = vadd.f32 %v4712, %v4800
        %v4802 = vpop.f32.mrf.mxu0
        %v4803 = vadd.f32 %v4714, %v4802
        %4804 = vmatmul.bf16.gmra.mxu0 %v2373
        %v4805 = vpop.f32.mrf.mxu0
        %v4806 = vadd.f32 %v4717, %v4805
        %v4807 = vpop.f32.mrf.mxu0
        %v4808 = vadd.f32 %v4719, %v4807
        %4809 = vmatmul.bf16.gmra.mxu0 %v2380
        %v4810 = vpop.f32.mrf.mxu0
        %v4811 = vadd.f32 %v4722, %v4810
        %v4812 = vpop.f32.mrf.mxu0
        %v4813 = vadd.f32 %v4724, %v4812
        %4814 = vmatmul.bf16.gmra.mxu0 %v2387
        %v4815 = vpop.f32.mrf.mxu0
        %v4816 = vadd.f32 %v4727, %v4815
        %v4817 = vpop.f32.mrf.mxu0
        %v4818 = vadd.f32 %v4729, %v4817
        %4819 = vmatmul.bf16.gmra.mxu0 %v2394
        %v4820 = vpop.f32.mrf.mxu0
        %v4821 = vadd.f32 %v4732, %v4820
        %v4822 = vpop.f32.mrf.mxu0
        %v4823 = vadd.f32 %v4734, %v4822
        %4824 = vmatmul.bf16.gmra.mxu0 %v2401
        %v4825 = vpop.f32.mrf.mxu0
        %v4826 = vadd.f32 %v4737, %v4825
        %v4827 = vpop.f32.mrf.mxu0
        %v4828 = vadd.f32 %v4739, %v4827
        %4829 = vdwg.mxu0
        %4830 = vmatpush.bf16.msra.mxu0 %v1907
        %4831 = vmatpush.bf16.msra.mxu0 %v1903
        %4832 = vmatpush.bf16.msra.mxu0 %v1899
        %4833 = vmatpush.bf16.msra.mxu0 %v1895
        %4834 = vmatpush.bf16.msra.mxu0 %v1891
        %4835 = vmatpush.bf16.msra.mxu0 %v1887
        %4836 = vmatpush.bf16.msra.mxu0 %v1883
        %4837 = vmatpush.bf16.msra.mxu0 %v1879
        %4838 = vmatmul.bf16.gmra.mxu0 %v2297
        %v4839 = vpop.f32.mrf.mxu0
        %v4840 = vadd.f32 %v4751, %v4839
        %v4841 = vpop.f32.mrf.mxu0
        %v4842 = vadd.f32 %v4753, %v4841
        %4843 = vmatmul.bf16.gmra.mxu0 %v2304
        %v4844 = vpop.f32.mrf.mxu0
        %v4845 = vadd.f32 %v4756, %v4844
        %v4846 = vpop.f32.mrf.mxu0
        %v4847 = vadd.f32 %v4758, %v4846
        %4848 = vmatmul.bf16.gmra.mxu0 %v2311
        %v4849 = vpop.f32.mrf.mxu0
        %v4850 = vadd.f32 %v4761, %v4849
        %v4851 = vpop.f32.mrf.mxu0
        %v4852 = vadd.f32 %v4763, %v4851
        %4853 = vmatmul.bf16.gmra.mxu0 %v2318
        %v4854 = vpop.f32.mrf.mxu0
        %v4855 = vadd.f32 %v4766, %v4854
        %v4856 = vpop.f32.mrf.mxu0
        %v4857 = vadd.f32 %v4768, %v4856
        %4858 = vmatmul.bf16.gmra.mxu0 %v2325
        %v4859 = vpop.f32.mrf.mxu0
        %v4860 = vadd.f32 %v4771, %v4859
        %v4861 = vpop.f32.mrf.mxu0
        %v4862 = vadd.f32 %v4773, %v4861
        %4863 = vmatmul.bf16.gmra.mxu0 %v2332
        %v4864 = vpop.f32.mrf.mxu0
        %v4865 = vadd.f32 %v4776, %v4864
        %v4866 = vpop.f32.mrf.mxu0
        %v4867 = vadd.f32 %v4778, %v4866
        %4868 = vmatmul.bf16.gmra.mxu0 %v2339
        %v4869 = vpop.f32.mrf.mxu0
        %v4870 = vadd.f32 %v4781, %v4869
        %v4871 = vpop.f32.mrf.mxu0
        %v4872 = vadd.f32 %v4783, %v4871
        %4873 = vmatmul.bf16.gmra.mxu0 %v2346
        %v4874 = vpop.f32.mrf.mxu0
        %v4875 = vadd.f32 %v4786, %v4874
        %v4876 = vpop.f32.mrf.mxu0
        %v4877 = vadd.f32 %v4788, %v4876
        %4878 = vmatmul.bf16.gmra.mxu0 %v2353
        %v4879 = vpop.f32.mrf.mxu0
        %v4880 = vadd.f32 %v4791, %v4879
        %v4881 = vpop.f32.mrf.mxu0
        %v4882 = vadd.f32 %v4793, %v4881
        %4883 = vmatmul.bf16.gmra.mxu0 %v2360
        %v4884 = vpop.f32.mrf.mxu0
        %v4885 = vadd.f32 %v4796, %v4884
        %v4886 = vpop.f32.mrf.mxu0
        %v4887 = vadd.f32 %v4798, %v4886
        %4888 = vmatmul.bf16.gmra.mxu0 %v2367
        %v4889 = vpop.f32.mrf.mxu0
        %v4890 = vadd.f32 %v4801, %v4889
        %v4891 = vpop.f32.mrf.mxu0
        %v4892 = vadd.f32 %v4803, %v4891
        %4893 = vmatmul.bf16.gmra.mxu0 %v2374
        %v4894 = vpop.f32.mrf.mxu0
        %v4895 = vadd.f32 %v4806, %v4894
        %v4896 = vpop.f32.mrf.mxu0
        %v4897 = vadd.f32 %v4808, %v4896
        %4898 = vmatmul.bf16.gmra.mxu0 %v2381
        %v4899 = vpop.f32.mrf.mxu0
        %v4900 = vadd.f32 %v4811, %v4899
        %v4901 = vpop.f32.mrf.mxu0
        %v4902 = vadd.f32 %v4813, %v4901
        %4903 = vmatmul.bf16.gmra.mxu0 %v2388
        %v4904 = vpop.f32.mrf.mxu0
        %v4905 = vadd.f32 %v4816, %v4904
        %v4906 = vpop.f32.mrf.mxu0
        %v4907 = vadd.f32 %v4818, %v4906
        %4908 = vmatmul.bf16.gmra.mxu0 %v2395
        %v4909 = vpop.f32.mrf.mxu0
        %v4910 = vadd.f32 %v4821, %v4909
        %v4911 = vpop.f32.mrf.mxu0
        %v4912 = vadd.f32 %v4823, %v4911
        %4913 = vmatmul.bf16.gmra.mxu0 %v2402
        %v4914 = vpop.f32.mrf.mxu0
        %v4915 = vadd.f32 %v4826, %v4914
        %v4916 = vpop.f32.mrf.mxu0
        %v4917 = vadd.f32 %v4828, %v4916
        %4918 = vdwg.mxu0
        %4919 = vmatpush.bf16.msra.mxu0 %v1939
        %4920 = vmatpush.bf16.msra.mxu0 %v1935
        %4921 = vmatpush.bf16.msra.mxu0 %v1931
        %4922 = vmatpush.bf16.msra.mxu0 %v1927
        %4923 = vmatpush.bf16.msra.mxu0 %v1923
        %4924 = vmatpush.bf16.msra.mxu0 %v1919
        %4925 = vmatpush.bf16.msra.mxu0 %v1915
        %4926 = vmatpush.bf16.msra.mxu0 %v1911
        %4927 = vmatmul.bf16.gmra.mxu0 %v2298
        %v4928 = vpop.f32.mrf.mxu0
        %v4929 = vadd.f32 %v4840, %v4928
        %v4930 = vpop.f32.mrf.mxu0
        %v4931 = vadd.f32 %v4842, %v4930
        %4932 = vmatmul.bf16.gmra.mxu0 %v2305
        %v4933 = vpop.f32.mrf.mxu0
        %v4934 = vadd.f32 %v4845, %v4933
        %v4935 = vpop.f32.mrf.mxu0
        %v4936 = vadd.f32 %v4847, %v4935
        %4937 = vmatmul.bf16.gmra.mxu0 %v2312
        %v4938 = vpop.f32.mrf.mxu0
        %v4939 = vadd.f32 %v4850, %v4938
        %v4940 = vpop.f32.mrf.mxu0
        %v4941 = vadd.f32 %v4852, %v4940
        %4942 = vmatmul.bf16.gmra.mxu0 %v2319
        %v4943 = vpop.f32.mrf.mxu0
        %v4944 = vadd.f32 %v4855, %v4943
        %v4945 = vpop.f32.mrf.mxu0
        %v4946 = vadd.f32 %v4857, %v4945
        %4947 = vmatmul.bf16.gmra.mxu0 %v2326
        %v4948 = vpop.f32.mrf.mxu0
        %v4949 = vadd.f32 %v4860, %v4948
        %v4950 = vpop.f32.mrf.mxu0
        %v4951 = vadd.f32 %v4862, %v4950
        %4952 = vmatmul.bf16.gmra.mxu0 %v2333
        %v4953 = vpop.f32.mrf.mxu0
        %v4954 = vadd.f32 %v4865, %v4953
        %v4955 = vpop.f32.mrf.mxu0
        %v4956 = vadd.f32 %v4867, %v4955
        %4957 = vmatmul.bf16.gmra.mxu0 %v2340
        %v4958 = vpop.f32.mrf.mxu0
        %v4959 = vadd.f32 %v4870, %v4958
        %v4960 = vpop.f32.mrf.mxu0
        %v4961 = vadd.f32 %v4872, %v4960
        %4962 = vmatmul.bf16.gmra.mxu0 %v2347
        %v4963 = vpop.f32.mrf.mxu0
        %v4964 = vadd.f32 %v4875, %v4963
        %v4965 = vpop.f32.mrf.mxu0
        %v4966 = vadd.f32 %v4877, %v4965
        %4967 = vmatmul.bf16.gmra.mxu0 %v2354
        %v4968 = vpop.f32.mrf.mxu0
        %v4969 = vadd.f32 %v4880, %v4968
        %v4970 = vpop.f32.mrf.mxu0
        %v4971 = vadd.f32 %v4882, %v4970
        %4972 = vmatmul.bf16.gmra.mxu0 %v2361
        %v4973 = vpop.f32.mrf.mxu0
        %v4974 = vadd.f32 %v4885, %v4973
        %v4975 = vpop.f32.mrf.mxu0
        %v4976 = vadd.f32 %v4887, %v4975
        %4977 = vmatmul.bf16.gmra.mxu0 %v2368
        %v4978 = vpop.f32.mrf.mxu0
        %v4979 = vadd.f32 %v4890, %v4978
        %v4980 = vpop.f32.mrf.mxu0
        %v4981 = vadd.f32 %v4892, %v4980
        %4982 = vmatmul.bf16.gmra.mxu0 %v2375
        %v4983 = vpop.f32.mrf.mxu0
        %v4984 = vadd.f32 %v4895, %v4983
        %v4985 = vpop.f32.mrf.mxu0
        %v4986 = vadd.f32 %v4897, %v4985
        %4987 = vmatmul.bf16.gmra.mxu0 %v2382
        %v4988 = vpop.f32.mrf.mxu0
        %v4989 = vadd.f32 %v4900, %v4988
        %v4990 = vpop.f32.mrf.mxu0
        %v4991 = vadd.f32 %v4902, %v4990
        %4992 = vmatmul.bf16.gmra.mxu0 %v2389
        %v4993 = vpop.f32.mrf.mxu0
        %v4994 = vadd.f32 %v4905, %v4993
        %v4995 = vpop.f32.mrf.mxu0
        %v4996 = vadd.f32 %v4907, %v4995
        %4997 = vmatmul.bf16.gmra.mxu0 %v2396
        %v4998 = vpop.f32.mrf.mxu0
        %v4999 = vadd.f32 %v4910, %v4998
        %v5000 = vpop.f32.mrf.mxu0
        %v5001 = vadd.f32 %v4912, %v5000
        %5002 = vmatmul.bf16.gmra.mxu0 %v2403
        %v5003 = vpop.f32.mrf.mxu0
        %v5004 = vadd.f32 %v4915, %v5003
        %v5005 = vpop.f32.mrf.mxu0
        %v5006 = vadd.f32 %v4917, %v5005
        %5007 = vdwg.mxu0
        %v5008 = vadd.f32 %v3060, %v3062
        %v5009 = vadd.f32 %v5008, %v3065
        %v5010 = vadd.f32 %v5009, %v3067
        %v5011 = vadd.f32 %v5010, %v3070
        %v5012 = vadd.f32 %v5011, %v3072
        %v5013 = vadd.f32 %v5012, %v3075
        %v5014 = vadd.f32 %v5013, %v3077
        %v5015 = vadd.f32 %v5014, %v3080
        %v5016 = vadd.f32 %v5015, %v3082
        %v5017 = vadd.f32 %v5016, %v3085
        %v5018 = vadd.f32 %v5017, %v3087
        %v5019 = vadd.f32 %v5018, %v3090
        %v5020 = vadd.f32 %v5019, %v3092
        %v5021 = vadd.f32 %v5020, %v3095
        %v5022 = vadd.f32 %v5021, %v3097
        %v5023 = vadd.f32 %v5022, %v3100
        %v5024 = vadd.f32 %v5023, %v3102
        %v5025 = vadd.f32 %v5024, %v3105
        %v5026 = vadd.f32 %v5025, %v3107
        %v5027 = vadd.f32 %v5026, %v3110
        %v5028 = vadd.f32 %v5027, %v3112
        %v5029 = vadd.f32 %v5028, %v3115
        %v5030 = vadd.f32 %v5029, %v3117
        %v5031 = vadd.f32 %v5030, %v3120
        %v5032 = vadd.f32 %v5031, %v3122
        %v5033 = vadd.f32 %v5032, %v3125
        %v5034 = vadd.f32 %v5033, %v3127
        %v5035 = vadd.f32 %v5034, %v3130
        %v5036 = vadd.f32 %v5035, %v3132
        %v5037 = vadd.f32 %v5036, %v3135
        %v5038 = vadd.f32 %v5037, %v3137
        %v5039 = vrot.slane %v5038, 4
        %v5040 = vadd.f32 %v5038, %v5039
        %v5041 = vrot.slane %v5040, 2
        %v5042 = vadd.f32 %v5040, %v5041
        %v5043 = vrot.slane %v5042, 1
        %v5044 = vadd.f32 %v5042, %v5043
        %v5045 = vadd.f32 %v3683, %v3685
        %v5046 = vadd.f32 %v5045, %v3688
        %v5047 = vadd.f32 %v5046, %v3690
        %v5048 = vadd.f32 %v5047, %v3693
        %v5049 = vadd.f32 %v5048, %v3695
        %v5050 = vadd.f32 %v5049, %v3698
        %v5051 = vadd.f32 %v5050, %v3700
        %v5052 = vadd.f32 %v5051, %v3703
        %v5053 = vadd.f32 %v5052, %v3705
        %v5054 = vadd.f32 %v5053, %v3708
        %v5055 = vadd.f32 %v5054, %v3710
        %v5056 = vadd.f32 %v5055, %v3713
        %v5057 = vadd.f32 %v5056, %v3715
        %v5058 = vadd.f32 %v5057, %v3718
        %v5059 = vadd.f32 %v5058, %v3720
        %v5060 = vadd.f32 %v5059, %v3723
        %v5061 = vadd.f32 %v5060, %v3725
        %v5062 = vadd.f32 %v5061, %v3728
        %v5063 = vadd.f32 %v5062, %v3730
        %v5064 = vadd.f32 %v5063, %v3733
        %v5065 = vadd.f32 %v5064, %v3735
        %v5066 = vadd.f32 %v5065, %v3738
        %v5067 = vadd.f32 %v5066, %v3740
        %v5068 = vadd.f32 %v5067, %v3743
        %v5069 = vadd.f32 %v5068, %v3745
        %v5070 = vadd.f32 %v5069, %v3748
        %v5071 = vadd.f32 %v5070, %v3750
        %v5072 = vadd.f32 %v5071, %v3753
        %v5073 = vadd.f32 %v5072, %v3755
        %v5074 = vadd.f32 %v5073, %v3758
        %v5075 = vadd.f32 %v5074, %v3760
        %v5076 = vrot.slane %v5075, 4
        %v5077 = vadd.f32 %v5075, %v5076
        %v5078 = vrot.slane %v5077, 2
        %v5079 = vadd.f32 %v5077, %v5078
        %v5080 = vrot.slane %v5079, 1
        %v5081 = vadd.f32 %v5079, %v5080
        %v5082 = vadd.f32 %v4306, %v4308
        %v5083 = vadd.f32 %v5082, %v4311
        %v5084 = vadd.f32 %v5083, %v4313
        %v5085 = vadd.f32 %v5084, %v4316
        %v5086 = vadd.f32 %v5085, %v4318
        %v5087 = vadd.f32 %v5086, %v4321
        %v5088 = vadd.f32 %v5087, %v4323
        %v5089 = vadd.f32 %v5088, %v4326
        %v5090 = vadd.f32 %v5089, %v4328
        %v5091 = vadd.f32 %v5090, %v4331
        %v5092 = vadd.f32 %v5091, %v4333
        %v5093 = vadd.f32 %v5092, %v4336
        %v5094 = vadd.f32 %v5093, %v4338
        %v5095 = vadd.f32 %v5094, %v4341
        %v5096 = vadd.f32 %v5095, %v4343
        %v5097 = vadd.f32 %v5096, %v4346
        %v5098 = vadd.f32 %v5097, %v4348
        %v5099 = vadd.f32 %v5098, %v4351
        %v5100 = vadd.f32 %v5099, %v4353
        %v5101 = vadd.f32 %v5100, %v4356
        %v5102 = vadd.f32 %v5101, %v4358
        %v5103 = vadd.f32 %v5102, %v4361
        %v5104 = vadd.f32 %v5103, %v4363
        %v5105 = vadd.f32 %v5104, %v4366
        %v5106 = vadd.f32 %v5105, %v4368
        %v5107 = vadd.f32 %v5106, %v4371
        %v5108 = vadd.f32 %v5107, %v4373
        %v5109 = vadd.f32 %v5108, %v4376
        %v5110 = vadd.f32 %v5109, %v4378
        %v5111 = vadd.f32 %v5110, %v4381
        %v5112 = vadd.f32 %v5111, %v4383
        %v5113 = vrot.slane %v5112, 4
        %v5114 = vadd.f32 %v5112, %v5113
        %v5115 = vrot.slane %v5114, 2
        %v5116 = vadd.f32 %v5114, %v5115
        %v5117 = vrot.slane %v5116, 1
        %v5118 = vadd.f32 %v5116, %v5117
        %v5119 = vadd.f32 %v4929, %v4931
        %v5120 = vadd.f32 %v5119, %v4934
        %v5121 = vadd.f32 %v5120, %v4936
        %v5122 = vadd.f32 %v5121, %v4939
        %v5123 = vadd.f32 %v5122, %v4941
        %v5124 = vadd.f32 %v5123, %v4944
        %v5125 = vadd.f32 %v5124, %v4946
        %v5126 = vadd.f32 %v5125, %v4949
        %v5127 = vadd.f32 %v5126, %v4951
        %v5128 = vadd.f32 %v5127, %v4954
        %v5129 = vadd.f32 %v5128, %v4956
        %v5130 = vadd.f32 %v5129, %v4959
        %v5131 = vadd.f32 %v5130, %v4961
        %v5132 = vadd.f32 %v5131, %v4964
        %v5133 = vadd.f32 %v5132, %v4966
        %v5134 = vadd.f32 %v5133, %v4969
        %v5135 = vadd.f32 %v5134, %v4971
        %v5136 = vadd.f32 %v5135, %v4974
        %v5137 = vadd.f32 %v5136, %v4976
        %v5138 = vadd.f32 %v5137, %v4979
        %v5139 = vadd.f32 %v5138, %v4981
        %v5140 = vadd.f32 %v5139, %v4984
        %v5141 = vadd.f32 %v5140, %v4986
        %v5142 = vadd.f32 %v5141, %v4989
        %v5143 = vadd.f32 %v5142, %v4991
        %v5144 = vadd.f32 %v5143, %v4994
        %v5145 = vadd.f32 %v5144, %v4996
        %v5146 = vadd.f32 %v5145, %v4999
        %v5147 = vadd.f32 %v5146, %v5001
        %v5148 = vadd.f32 %v5147, %v5004
        %v5149 = vadd.f32 %v5148, %v5006
        %v5150 = vrot.slane %v5149, 4
        %v5151 = vadd.f32 %v5149, %v5150
        %v5152 = vrot.slane %v5151, 2
        %v5153 = vadd.f32 %v5151, %v5152
        %v5154 = vrot.slane %v5153, 1
        %v5155 = vadd.f32 %v5153, %v5154
        %v5156 = vmul.f32 %v5044, 0.00390625
        %v5157 = vmul.f32 %v5081, 0.00390625
        %v5158 = vmul.f32 %v5118, 0.00390625
        %v5159 = vmul.f32 %v5155, 0.00390625
        %v5160 = vmul.f32 %v3060, %v3060
        %v5161 = vmul.f32 %v3683, %v3683
        %v5162 = vmul.f32 %v4306, %v4306
        %v5163 = vmul.f32 %v4929, %v4929
        %v5164 = vmul.f32 %v3062, %v3062
        %v5165 = vmul.f32 %v3685, %v3685
        %v5166 = vmul.f32 %v4308, %v4308
        %v5167 = vmul.f32 %v4931, %v4931
        %v5168 = vmul.f32 %v3065, %v3065
        %v5169 = vmul.f32 %v3688, %v3688
        %v5170 = vmul.f32 %v4311, %v4311
        %v5171 = vmul.f32 %v4934, %v4934
        %v5172 = vmul.f32 %v3067, %v3067
        %v5173 = vmul.f32 %v3690, %v3690
        %v5174 = vmul.f32 %v4313, %v4313
        %v5175 = vmul.f32 %v4936, %v4936
        %v5176 = vmul.f32 %v3070, %v3070
        %v5177 = vmul.f32 %v3693, %v3693
        %v5178 = vmul.f32 %v4316, %v4316
        %v5179 = vmul.f32 %v4939, %v4939
        %v5180 = vmul.f32 %v3072, %v3072
        %v5181 = vmul.f32 %v3695, %v3695
        %v5182 = vmul.f32 %v4318, %v4318
        %v5183 = vmul.f32 %v4941, %v4941
        %v5184 = vmul.f32 %v3075, %v3075
        %v5185 = vmul.f32 %v3698, %v3698
        %v5186 = vmul.f32 %v4321, %v4321
        %v5187 = vmul.f32 %v4944, %v4944
        %v5188 = vmul.f32 %v3077, %v3077
        %v5189 = vmul.f32 %v3700, %v3700
        %v5190 = vmul.f32 %v4323, %v4323
        %v5191 = vmul.f32 %v4946, %v4946
        %v5192 = vmul.f32 %v3080, %v3080
        %v5193 = vmul.f32 %v3703, %v3703
        %v5194 = vmul.f32 %v4326, %v4326
        %v5195 = vmul.f32 %v4949, %v4949
        %v5196 = vmul.f32 %v3082, %v3082
        %v5197 = vmul.f32 %v3705, %v3705
        %v5198 = vmul.f32 %v4328, %v4328
        %v5199 = vmul.f32 %v4951, %v4951
        %v5200 = vmul.f32 %v3085, %v3085
        %v5201 = vmul.f32 %v3708, %v3708
        %v5202 = vmul.f32 %v4331, %v4331
        %v5203 = vmul.f32 %v4954, %v4954
        %v5204 = vmul.f32 %v3087, %v3087
        %v5205 = vmul.f32 %v3710, %v3710
        %v5206 = vmul.f32 %v4333, %v4333
        %v5207 = vmul.f32 %v4956, %v4956
        %v5208 = vmul.f32 %v3090, %v3090
        %v5209 = vmul.f32 %v3713, %v3713
        %v5210 = vmul.f32 %v4336, %v4336
        %v5211 = vmul.f32 %v4959, %v4959
        %v5212 = vmul.f32 %v3092, %v3092
        %v5213 = vmul.f32 %v3715, %v3715
        %v5214 = vmul.f32 %v4338, %v4338
        %v5215 = vmul.f32 %v4961, %v4961
        %v5216 = vmul.f32 %v3095, %v3095
        %v5217 = vmul.f32 %v3718, %v3718
        %v5218 = vmul.f32 %v4341, %v4341
        %v5219 = vmul.f32 %v4964, %v4964
        %v5220 = vmul.f32 %v3097, %v3097
        %v5221 = vmul.f32 %v3720, %v3720
        %v5222 = vmul.f32 %v4343, %v4343
        %v5223 = vmul.f32 %v4966, %v4966
        %v5224 = vmul.f32 %v3100, %v3100
        %v5225 = vmul.f32 %v3723, %v3723
        %v5226 = vmul.f32 %v4346, %v4346
        %v5227 = vmul.f32 %v4969, %v4969
        %v5228 = vmul.f32 %v3102, %v3102
        %v5229 = vmul.f32 %v3725, %v3725
        %v5230 = vmul.f32 %v4348, %v4348
        %v5231 = vmul.f32 %v4971, %v4971
        %v5232 = vmul.f32 %v3105, %v3105
        %v5233 = vmul.f32 %v3728, %v3728
        %v5234 = vmul.f32 %v4351, %v4351
        %v5235 = vmul.f32 %v4974, %v4974
        %v5236 = vmul.f32 %v3107, %v3107
        %v5237 = vmul.f32 %v3730, %v3730
        %v5238 = vmul.f32 %v4353, %v4353
        %v5239 = vmul.f32 %v4976, %v4976
        %v5240 = vmul.f32 %v3110, %v3110
        %v5241 = vmul.f32 %v3733, %v3733
        %v5242 = vmul.f32 %v4356, %v4356
        %v5243 = vmul.f32 %v4979, %v4979
        %v5244 = vmul.f32 %v3112, %v3112
        %v5245 = vmul.f32 %v3735, %v3735
        %v5246 = vmul.f32 %v4358, %v4358
        %v5247 = vmul.f32 %v4981, %v4981
        %v5248 = vmul.f32 %v3115, %v3115
        %v5249 = vmul.f32 %v3738, %v3738
        %v5250 = vmul.f32 %v4361, %v4361
        %v5251 = vmul.f32 %v4984, %v4984
        %v5252 = vmul.f32 %v3117, %v3117
        %v5253 = vmul.f32 %v3740, %v3740
        %v5254 = vmul.f32 %v4363, %v4363
        %v5255 = vmul.f32 %v4986, %v4986
        %v5256 = vmul.f32 %v3120, %v3120
        %v5257 = vmul.f32 %v3743, %v3743
        %v5258 = vmul.f32 %v4366, %v4366
        %v5259 = vmul.f32 %v4989, %v4989
        %v5260 = vmul.f32 %v3122, %v3122
        %v5261 = vmul.f32 %v3745, %v3745
        %v5262 = vmul.f32 %v4368, %v4368
        %v5263 = vmul.f32 %v4991, %v4991
        %v5264 = vmul.f32 %v3125, %v3125
        %v5265 = vmul.f32 %v3748, %v3748
        %v5266 = vmul.f32 %v4371, %v4371
        %v5267 = vmul.f32 %v4994, %v4994
        %v5268 = vmul.f32 %v3127, %v3127
        %v5269 = vmul.f32 %v3750, %v3750
        %v5270 = vmul.f32 %v4373, %v4373
        %v5271 = vmul.f32 %v4996, %v4996
        %v5272 = vmul.f32 %v3130, %v3130
        %v5273 = vmul.f32 %v3753, %v3753
        %v5274 = vmul.f32 %v4376, %v4376
        %v5275 = vmul.f32 %v4999, %v4999
        %v5276 = vmul.f32 %v3132, %v3132
        %v5277 = vmul.f32 %v3755, %v3755
        %v5278 = vmul.f32 %v4378, %v4378
        %v5279 = vmul.f32 %v5001, %v5001
        %v5280 = vmul.f32 %v3135, %v3135
        %v5281 = vmul.f32 %v3758, %v3758
        %v5282 = vmul.f32 %v4381, %v4381
        %v5283 = vmul.f32 %v5004, %v5004
        %v5284 = vmul.f32 %v3137, %v3137
        %v5285 = vmul.f32 %v3760, %v3760
        %v5286 = vmul.f32 %v4383, %v4383
        %v5287 = vmul.f32 %v5006, %v5006
        %v5288 = vadd.f32 %v5160, %v5164
        %v5289 = vadd.f32 %v5288, %v5168
        %v5290 = vadd.f32 %v5289, %v5172
        %v5291 = vadd.f32 %v5290, %v5176
        %v5292 = vadd.f32 %v5291, %v5180
        %v5293 = vadd.f32 %v5292, %v5184
        %v5294 = vadd.f32 %v5293, %v5188
        %v5295 = vadd.f32 %v5294, %v5192
        %v5296 = vadd.f32 %v5295, %v5196
        %v5297 = vadd.f32 %v5296, %v5200
        %v5298 = vadd.f32 %v5297, %v5204
        %v5299 = vadd.f32 %v5298, %v5208
        %v5300 = vadd.f32 %v5299, %v5212
        %v5301 = vadd.f32 %v5300, %v5216
        %v5302 = vadd.f32 %v5301, %v5220
        %v5303 = vadd.f32 %v5302, %v5224
        %v5304 = vadd.f32 %v5303, %v5228
        %v5305 = vadd.f32 %v5304, %v5232
        %v5306 = vadd.f32 %v5305, %v5236
        %v5307 = vadd.f32 %v5306, %v5240
        %v5308 = vadd.f32 %v5307, %v5244
        %v5309 = vadd.f32 %v5308, %v5248
        %v5310 = vadd.f32 %v5309, %v5252
        %v5311 = vadd.f32 %v5310, %v5256
        %v5312 = vadd.f32 %v5311, %v5260
        %v5313 = vadd.f32 %v5312, %v5264
        %v5314 = vadd.f32 %v5313, %v5268
        %v5315 = vadd.f32 %v5314, %v5272
        %v5316 = vadd.f32 %v5315, %v5276
        %v5317 = vadd.f32 %v5316, %v5280
        %v5318 = vadd.f32 %v5317, %v5284
        %v5319 = vrot.slane %v5318, 4
        %v5320 = vadd.f32 %v5318, %v5319
        %v5321 = vrot.slane %v5320, 2
        %v5322 = vadd.f32 %v5320, %v5321
        %v5323 = vrot.slane %v5322, 1
        %v5324 = vadd.f32 %v5322, %v5323
        %v5325 = vadd.f32 %v5161, %v5165
        %v5326 = vadd.f32 %v5325, %v5169
        %v5327 = vadd.f32 %v5326, %v5173
        %v5328 = vadd.f32 %v5327, %v5177
        %v5329 = vadd.f32 %v5328, %v5181
        %v5330 = vadd.f32 %v5329, %v5185
        %v5331 = vadd.f32 %v5330, %v5189
        %v5332 = vadd.f32 %v5331, %v5193
        %v5333 = vadd.f32 %v5332, %v5197
        %v5334 = vadd.f32 %v5333, %v5201
        %v5335 = vadd.f32 %v5334, %v5205
        %v5336 = vadd.f32 %v5335, %v5209
        %v5337 = vadd.f32 %v5336, %v5213
        %v5338 = vadd.f32 %v5337, %v5217
        %v5339 = vadd.f32 %v5338, %v5221
        %v5340 = vadd.f32 %v5339, %v5225
        %v5341 = vadd.f32 %v5340, %v5229
        %v5342 = vadd.f32 %v5341, %v5233
        %v5343 = vadd.f32 %v5342, %v5237
        %v5344 = vadd.f32 %v5343, %v5241
        %v5345 = vadd.f32 %v5344, %v5245
        %v5346 = vadd.f32 %v5345, %v5249
        %v5347 = vadd.f32 %v5346, %v5253
        %v5348 = vadd.f32 %v5347, %v5257
        %v5349 = vadd.f32 %v5348, %v5261
        %v5350 = vadd.f32 %v5349, %v5265
        %v5351 = vadd.f32 %v5350, %v5269
        %v5352 = vadd.f32 %v5351, %v5273
        %v5353 = vadd.f32 %v5352, %v5277
        %v5354 = vadd.f32 %v5353, %v5281
        %v5355 = vadd.f32 %v5354, %v5285
        %v5356 = vrot.slane %v5355, 4
        %v5357 = vadd.f32 %v5355, %v5356
        %v5358 = vrot.slane %v5357, 2
        %v5359 = vadd.f32 %v5357, %v5358
        %v5360 = vrot.slane %v5359, 1
        %v5361 = vadd.f32 %v5359, %v5360
        %v5362 = vadd.f32 %v5162, %v5166
        %v5363 = vadd.f32 %v5362, %v5170
        %v5364 = vadd.f32 %v5363, %v5174
        %v5365 = vadd.f32 %v5364, %v5178
        %v5366 = vadd.f32 %v5365, %v5182
        %v5367 = vadd.f32 %v5366, %v5186
        %v5368 = vadd.f32 %v5367, %v5190
        %v5369 = vadd.f32 %v5368, %v5194
        %v5370 = vadd.f32 %v5369, %v5198
        %v5371 = vadd.f32 %v5370, %v5202
        %v5372 = vadd.f32 %v5371, %v5206
        %v5373 = vadd.f32 %v5372, %v5210
        %v5374 = vadd.f32 %v5373, %v5214
        %v5375 = vadd.f32 %v5374, %v5218
        %v5376 = vadd.f32 %v5375, %v5222
        %v5377 = vadd.f32 %v5376, %v5226
        %v5378 = vadd.f32 %v5377, %v5230
        %v5379 = vadd.f32 %v5378, %v5234
        %v5380 = vadd.f32 %v5379, %v5238
        %v5381 = vadd.f32 %v5380, %v5242
        %v5382 = vadd.f32 %v5381, %v5246
        %v5383 = vadd.f32 %v5382, %v5250
        %v5384 = vadd.f32 %v5383, %v5254
        %v5385 = vadd.f32 %v5384, %v5258
        %v5386 = vadd.f32 %v5385, %v5262
        %v5387 = vadd.f32 %v5386, %v5266
        %v5388 = vadd.f32 %v5387, %v5270
        %v5389 = vadd.f32 %v5388, %v5274
        %v5390 = vadd.f32 %v5389, %v5278
        %v5391 = vadd.f32 %v5390, %v5282
        %v5392 = vadd.f32 %v5391, %v5286
        %v5393 = vrot.slane %v5392, 4
        %v5394 = vadd.f32 %v5392, %v5393
        %v5395 = vrot.slane %v5394, 2
        %v5396 = vadd.f32 %v5394, %v5395
        %v5397 = vrot.slane %v5396, 1
        %v5398 = vadd.f32 %v5396, %v5397
        %v5399 = vadd.f32 %v5163, %v5167
        %v5400 = vadd.f32 %v5399, %v5171
        %v5401 = vadd.f32 %v5400, %v5175
        %v5402 = vadd.f32 %v5401, %v5179
        %v5403 = vadd.f32 %v5402, %v5183
        %v5404 = vadd.f32 %v5403, %v5187
        %v5405 = vadd.f32 %v5404, %v5191
        %v5406 = vadd.f32 %v5405, %v5195
        %v5407 = vadd.f32 %v5406, %v5199
        %v5408 = vadd.f32 %v5407, %v5203
        %v5409 = vadd.f32 %v5408, %v5207
        %v5410 = vadd.f32 %v5409, %v5211
        %v5411 = vadd.f32 %v5410, %v5215
        %v5412 = vadd.f32 %v5411, %v5219
        %v5413 = vadd.f32 %v5412, %v5223
        %v5414 = vadd.f32 %v5413, %v5227
        %v5415 = vadd.f32 %v5414, %v5231
        %v5416 = vadd.f32 %v5415, %v5235
        %v5417 = vadd.f32 %v5416, %v5239
        %v5418 = vadd.f32 %v5417, %v5243
        %v5419 = vadd.f32 %v5418, %v5247
        %v5420 = vadd.f32 %v5419, %v5251
        %v5421 = vadd.f32 %v5420, %v5255
        %v5422 = vadd.f32 %v5421, %v5259
        %v5423 = vadd.f32 %v5422, %v5263
        %v5424 = vadd.f32 %v5423, %v5267
        %v5425 = vadd.f32 %v5424, %v5271
        %v5426 = vadd.f32 %v5425, %v5275
        %v5427 = vadd.f32 %v5426, %v5279
        %v5428 = vadd.f32 %v5427, %v5283
        %v5429 = vadd.f32 %v5428, %v5287
        %v5430 = vrot.slane %v5429, 4
        %v5431 = vadd.f32 %v5429, %v5430
        %v5432 = vrot.slane %v5431, 2
        %v5433 = vadd.f32 %v5431, %v5432
        %v5434 = vrot.slane %v5433, 1
        %v5435 = vadd.f32 %v5433, %v5434
        %v5436 = vmul.f32 %v5324, 0.00390625
        %v5437 = vmul.f32 %v5361, 0.00390625
        %v5438 = vmul.f32 %v5398, 0.00390625
        %v5439 = vmul.f32 %v5435, 0.00390625
        %v5440 = vmul.f32 %v5156, %v5156
        %v5441 = vmul.f32 %v5157, %v5157
        %v5442 = vmul.f32 %v5158, %v5158
        %v5443 = vmul.f32 %v5159, %v5159
        %v5444 = vsub.f32 %v5436, %v5440
        %v5445 = vsub.f32 %v5437, %v5441
        %v5446 = vsub.f32 %v5438, %v5442
        %v5447 = vsub.f32 %v5439, %v5443
        %v5448 = vmax.f32 %v5444, 0.0
        %v5449 = vmax.f32 %v5445, 0.0
        %v5450 = vmax.f32 %v5446, 0.0
        %v5451 = vmax.f32 %v5447, 0.0
        %v5452 = vld [vmem:[%s527] sm:$0xf]
        %v5453 = vadd.f32 %v5448, 1e-05
        %v5454 = vadd.f32 %v5449, 1e-05
        %v5455 = vadd.f32 %v5450, 1e-05
        %v5456 = vadd.f32 %v5451, 1e-05
        %v5457 = vrsqrt.pop %v5453
        %v5458 = vmul.f32 %v5457, %v5453
        %v5459 = vmul.f32 %v5458, %v5457
        %v5460 = vmul.f32 0.5, %v5459
        %v5461 = vsub.f32 1.5, %v5460
        %v5462 = vmul.f32 %v5457, %v5461
        %vm5463 = vweird.f32 %v5453
        %vm5464 = vweird.f32 %v5457
        %vm5465 = vmor %vm5463, %vm5464
        %v5466 = vsel %vm5465, %v5457, %v5462
        %v5467 = vrsqrt.pop %v5454
        %v5468 = vmul.f32 %v5467, %v5454
        %v5469 = vmul.f32 %v5468, %v5467
        %v5470 = vmul.f32 0.5, %v5469
        %v5471 = vsub.f32 1.5, %v5470
        %v5472 = vmul.f32 %v5467, %v5471
        %vm5473 = vweird.f32 %v5454
        %vm5474 = vweird.f32 %v5467
        %vm5475 = vmor %vm5473, %vm5474
        %v5476 = vsel %vm5475, %v5467, %v5472
        %v5477 = vrsqrt.pop %v5455
        %v5478 = vmul.f32 %v5477, %v5455
        %v5479 = vmul.f32 %v5478, %v5477
        %v5480 = vmul.f32 0.5, %v5479
        %v5481 = vsub.f32 1.5, %v5480
        %v5482 = vmul.f32 %v5477, %v5481
        %vm5483 = vweird.f32 %v5455
        %vm5484 = vweird.f32 %v5477
        %vm5485 = vmor %vm5483, %vm5484
        %v5486 = vsel %vm5485, %v5477, %v5482
        %v5487 = vrsqrt.pop %v5456
        %v5488 = vmul.f32 %v5487, %v5456
        %v5489 = vmul.f32 %v5488, %v5487
        %v5490 = vmul.f32 0.5, %v5489
        %v5491 = vsub.f32 1.5, %v5490
        %v5492 = vmul.f32 %v5487, %v5491
        %vm5493 = vweird.f32 %v5456
        %vm5494 = vweird.f32 %v5487
        %vm5495 = vmor %vm5493, %vm5494
        %v5496 = vsel %vm5495, %v5487, %v5492
        %v5501 = vrot.slane %v5476, 7
        %v5502 = vrot.slane %v5486, 6
        %v5503 = vrot.slane %v5496, 5
        %vm5504 = vcmask 1040384
        %v5505 = vsel %vm5504, %v5466, %v5501
        %vm5506 = vcmask 1042434
        %v5507 = vsel %vm5506, %v5502, %v5503
        %vm5508 = vcmask 1041408
        %v5509 = vsel %vm5508, %v5505, %v5507
        %v5511 = vmul.f32 %v5452, %v5509
        %v5512 = vld [vmem:[%s532] sm:$0xf]
        %v5514 = vperm.slane %v5511, 0
        %v5515 = vperm.slane %v5511, 1
        %v5516 = vperm.slane %v5511, 2
        %v5517 = vperm.slane %v5511, 3
        %v5522 = vmul.f32 %v5156, %v5514
        %v5523 = vmul.f32 %v5157, %v5515
        %v5524 = vmul.f32 %v5158, %v5516
        %v5525 = vmul.f32 %v5159, %v5517
        %v5530 = vrot.slane %v5523, 7
        %v5531 = vrot.slane %v5524, 6
        %v5532 = vrot.slane %v5525, 5
        %v5533 = vsel %vm5504, %v5522, %v5530
        %v5534 = vsel %vm5506, %v5531, %v5532
        %v5535 = vsel %vm5508, %v5533, %v5534
        %v5537 = vsub.f32 %v5512, %v5535
        %v5538 = vmul.f32 %v3060, %v5514
        %v5539 = vmul.f32 %v3683, %v5515
        %v5540 = vmul.f32 %v4306, %v5516
        %v5541 = vmul.f32 %v4929, %v5517
        %v5542 = vmul.f32 %v3062, %v5514
        %v5543 = vmul.f32 %v3685, %v5515
        %v5544 = vmul.f32 %v4308, %v5516
        %v5545 = vmul.f32 %v4931, %v5517
        %v5546 = vmul.f32 %v3065, %v5514
        %v5547 = vmul.f32 %v3688, %v5515
        %v5548 = vmul.f32 %v4311, %v5516
        %v5549 = vmul.f32 %v4934, %v5517
        %v5550 = vmul.f32 %v3067, %v5514
        %v5551 = vmul.f32 %v3690, %v5515
        %v5552 = vmul.f32 %v4313, %v5516
        %v5553 = vmul.f32 %v4936, %v5517
        %v5554 = vmul.f32 %v3070, %v5514
        %v5555 = vmul.f32 %v3693, %v5515
        %v5556 = vmul.f32 %v4316, %v5516
        %v5557 = vmul.f32 %v4939, %v5517
        %v5558 = vmul.f32 %v3072, %v5514
        %v5559 = vmul.f32 %v3695, %v5515
        %v5560 = vmul.f32 %v4318, %v5516
        %v5561 = vmul.f32 %v4941, %v5517
        %v5562 = vmul.f32 %v3075, %v5514
        %v5563 = vmul.f32 %v3698, %v5515
        %v5564 = vmul.f32 %v4321, %v5516
        %v5565 = vmul.f32 %v4944, %v5517
        %v5566 = vmul.f32 %v3077, %v5514
        %v5567 = vmul.f32 %v3700, %v5515
        %v5568 = vmul.f32 %v4323, %v5516
        %v5569 = vmul.f32 %v4946, %v5517
        %v5570 = vmul.f32 %v3080, %v5514
        %v5571 = vmul.f32 %v3703, %v5515
        %v5572 = vmul.f32 %v4326, %v5516
        %v5573 = vmul.f32 %v4949, %v5517
        %v5574 = vmul.f32 %v3082, %v5514
        %v5575 = vmul.f32 %v3705, %v5515
        %v5576 = vmul.f32 %v4328, %v5516
        %v5577 = vmul.f32 %v4951, %v5517
        %v5578 = vmul.f32 %v3085, %v5514
        %v5579 = vmul.f32 %v3708, %v5515
        %v5580 = vmul.f32 %v4331, %v5516
        %v5581 = vmul.f32 %v4954, %v5517
        %v5582 = vmul.f32 %v3087, %v5514
        %v5583 = vmul.f32 %v3710, %v5515
        %v5584 = vmul.f32 %v4333, %v5516
        %v5585 = vmul.f32 %v4956, %v5517
        %v5586 = vmul.f32 %v3090, %v5514
        %v5587 = vmul.f32 %v3713, %v5515
        %v5588 = vmul.f32 %v4336, %v5516
        %v5589 = vmul.f32 %v4959, %v5517
        %v5590 = vmul.f32 %v3092, %v5514
        %v5591 = vmul.f32 %v3715, %v5515
        %v5592 = vmul.f32 %v4338, %v5516
        %v5593 = vmul.f32 %v4961, %v5517
        %v5594 = vmul.f32 %v3095, %v5514
        %v5595 = vmul.f32 %v3718, %v5515
        %v5596 = vmul.f32 %v4341, %v5516
        %v5597 = vmul.f32 %v4964, %v5517
        %v5598 = vmul.f32 %v3097, %v5514
        %v5599 = vmul.f32 %v3720, %v5515
        %v5600 = vmul.f32 %v4343, %v5516
        %v5601 = vmul.f32 %v4966, %v5517
        %v5602 = vmul.f32 %v3100, %v5514
        %v5603 = vmul.f32 %v3723, %v5515
        %v5604 = vmul.f32 %v4346, %v5516
        %v5605 = vmul.f32 %v4969, %v5517
        %v5606 = vmul.f32 %v3102, %v5514
        %v5607 = vmul.f32 %v3725, %v5515
        %v5608 = vmul.f32 %v4348, %v5516
        %v5609 = vmul.f32 %v4971, %v5517
        %v5610 = vmul.f32 %v3105, %v5514
        %v5611 = vmul.f32 %v3728, %v5515
        %v5612 = vmul.f32 %v4351, %v5516
        %v5613 = vmul.f32 %v4974, %v5517
        %v5614 = vmul.f32 %v3107, %v5514
        %v5615 = vmul.f32 %v3730, %v5515
        %v5616 = vmul.f32 %v4353, %v5516
        %v5617 = vmul.f32 %v4976, %v5517
        %v5618 = vmul.f32 %v3110, %v5514
        %v5619 = vmul.f32 %v3733, %v5515
        %v5620 = vmul.f32 %v4356, %v5516
        %v5621 = vmul.f32 %v4979, %v5517
        %v5622 = vmul.f32 %v3112, %v5514
        %v5623 = vmul.f32 %v3735, %v5515
        %v5624 = vmul.f32 %v4358, %v5516
        %v5625 = vmul.f32 %v4981, %v5517
        %v5626 = vmul.f32 %v3115, %v5514
        %v5627 = vmul.f32 %v3738, %v5515
        %v5628 = vmul.f32 %v4361, %v5516
        %v5629 = vmul.f32 %v4984, %v5517
        %v5630 = vmul.f32 %v3117, %v5514
        %v5631 = vmul.f32 %v3740, %v5515
        %v5632 = vmul.f32 %v4363, %v5516
        %v5633 = vmul.f32 %v4986, %v5517
        %v5634 = vmul.f32 %v3120, %v5514
        %v5635 = vmul.f32 %v3743, %v5515
        %v5636 = vmul.f32 %v4366, %v5516
        %v5637 = vmul.f32 %v4989, %v5517
        %v5638 = vmul.f32 %v3122, %v5514
        %v5639 = vmul.f32 %v3745, %v5515
        %v5640 = vmul.f32 %v4368, %v5516
        %v5641 = vmul.f32 %v4991, %v5517
        %v5642 = vmul.f32 %v3125, %v5514
        %v5643 = vmul.f32 %v3748, %v5515
        %v5644 = vmul.f32 %v4371, %v5516
        %v5645 = vmul.f32 %v4994, %v5517
        %v5646 = vmul.f32 %v3127, %v5514
        %v5647 = vmul.f32 %v3750, %v5515
        %v5648 = vmul.f32 %v4373, %v5516
        %v5649 = vmul.f32 %v4996, %v5517
        %v5650 = vmul.f32 %v3130, %v5514
        %v5651 = vmul.f32 %v3753, %v5515
        %v5652 = vmul.f32 %v4376, %v5516
        %v5653 = vmul.f32 %v4999, %v5517
        %v5654 = vmul.f32 %v3132, %v5514
        %v5655 = vmul.f32 %v3755, %v5515
        %v5656 = vmul.f32 %v4378, %v5516
        %v5657 = vmul.f32 %v5001, %v5517
        %v5658 = vmul.f32 %v3135, %v5514
        %v5659 = vmul.f32 %v3758, %v5515
        %v5660 = vmul.f32 %v4381, %v5516
        %v5661 = vmul.f32 %v5004, %v5517
        %v5662 = vmul.f32 %v3137, %v5514
        %v5663 = vmul.f32 %v3760, %v5515
        %v5664 = vmul.f32 %v4383, %v5516
        %v5665 = vmul.f32 %v5006, %v5517
        %v5667 = vperm.slane %v5537, 0
        %v5668 = vperm.slane %v5537, 1
        %v5669 = vperm.slane %v5537, 2
        %v5670 = vperm.slane %v5537, 3
        %v5675 = vadd.f32 %v5538, %v5667
        %v5676 = vadd.f32 %v5539, %v5668
        %v5677 = vadd.f32 %v5540, %v5669
        %v5678 = vadd.f32 %v5541, %v5670
        %v5679 = vadd.f32 %v5542, %v5667
        %v5680 = vadd.f32 %v5543, %v5668
        %v5681 = vadd.f32 %v5544, %v5669
        %v5682 = vadd.f32 %v5545, %v5670
        %v5683 = vadd.f32 %v5546, %v5667
        %v5684 = vadd.f32 %v5547, %v5668
        %v5685 = vadd.f32 %v5548, %v5669
        %v5686 = vadd.f32 %v5549, %v5670
        %v5687 = vadd.f32 %v5550, %v5667
        %v5688 = vadd.f32 %v5551, %v5668
        %v5689 = vadd.f32 %v5552, %v5669
        %v5690 = vadd.f32 %v5553, %v5670
        %v5691 = vadd.f32 %v5554, %v5667
        %v5692 = vadd.f32 %v5555, %v5668
        %v5693 = vadd.f32 %v5556, %v5669
        %v5694 = vadd.f32 %v5557, %v5670
        %v5695 = vadd.f32 %v5558, %v5667
        %v5696 = vadd.f32 %v5559, %v5668
        %v5697 = vadd.f32 %v5560, %v5669
        %v5698 = vadd.f32 %v5561, %v5670
        %v5699 = vadd.f32 %v5562, %v5667
        %v5700 = vadd.f32 %v5563, %v5668
        %v5701 = vadd.f32 %v5564, %v5669
        %v5702 = vadd.f32 %v5565, %v5670
        %v5703 = vadd.f32 %v5566, %v5667
        %v5704 = vadd.f32 %v5567, %v5668
        %v5705 = vadd.f32 %v5568, %v5669
        %v5706 = vadd.f32 %v5569, %v5670
        %v5707 = vadd.f32 %v5570, %v5667
        %v5708 = vadd.f32 %v5571, %v5668
        %v5709 = vadd.f32 %v5572, %v5669
        %v5710 = vadd.f32 %v5573, %v5670
        %v5711 = vadd.f32 %v5574, %v5667
        %v5712 = vadd.f32 %v5575, %v5668
        %v5713 = vadd.f32 %v5576, %v5669
        %v5714 = vadd.f32 %v5577, %v5670
        %v5715 = vadd.f32 %v5578, %v5667
        %v5716 = vadd.f32 %v5579, %v5668
        %v5717 = vadd.f32 %v5580, %v5669
        %v5718 = vadd.f32 %v5581, %v5670
        %v5719 = vadd.f32 %v5582, %v5667
        %v5720 = vadd.f32 %v5583, %v5668
        %v5721 = vadd.f32 %v5584, %v5669
        %v5722 = vadd.f32 %v5585, %v5670
        %v5723 = vadd.f32 %v5586, %v5667
        %v5724 = vadd.f32 %v5587, %v5668
        %v5725 = vadd.f32 %v5588, %v5669
        %v5726 = vadd.f32 %v5589, %v5670
        %v5727 = vadd.f32 %v5590, %v5667
        %v5728 = vadd.f32 %v5591, %v5668
        %v5729 = vadd.f32 %v5592, %v5669
        %v5730 = vadd.f32 %v5593, %v5670
        %v5731 = vadd.f32 %v5594, %v5667
        %v5732 = vadd.f32 %v5595, %v5668
        %v5733 = vadd.f32 %v5596, %v5669
        %v5734 = vadd.f32 %v5597, %v5670
        %v5735 = vadd.f32 %v5598, %v5667
        %v5736 = vadd.f32 %v5599, %v5668
        %v5737 = vadd.f32 %v5600, %v5669
        %v5738 = vadd.f32 %v5601, %v5670
        %v5739 = vadd.f32 %v5602, %v5667
        %v5740 = vadd.f32 %v5603, %v5668
        %v5741 = vadd.f32 %v5604, %v5669
        %v5742 = vadd.f32 %v5605, %v5670
        %v5743 = vadd.f32 %v5606, %v5667
        %v5744 = vadd.f32 %v5607, %v5668
        %v5745 = vadd.f32 %v5608, %v5669
        %v5746 = vadd.f32 %v5609, %v5670
        %v5747 = vadd.f32 %v5610, %v5667
        %v5748 = vadd.f32 %v5611, %v5668
        %v5749 = vadd.f32 %v5612, %v5669
        %v5750 = vadd.f32 %v5613, %v5670
        %v5751 = vadd.f32 %v5614, %v5667
        %v5752 = vadd.f32 %v5615, %v5668
        %v5753 = vadd.f32 %v5616, %v5669
        %v5754 = vadd.f32 %v5617, %v5670
        %v5755 = vadd.f32 %v5618, %v5667
        %v5756 = vadd.f32 %v5619, %v5668
        %v5757 = vadd.f32 %v5620, %v5669
        %v5758 = vadd.f32 %v5621, %v5670
        %v5759 = vadd.f32 %v5622, %v5667
        %v5760 = vadd.f32 %v5623, %v5668
        %v5761 = vadd.f32 %v5624, %v5669
        %v5762 = vadd.f32 %v5625, %v5670
        %v5763 = vadd.f32 %v5626, %v5667
        %v5764 = vadd.f32 %v5627, %v5668
        %v5765 = vadd.f32 %v5628, %v5669
        %v5766 = vadd.f32 %v5629, %v5670
        %v5767 = vadd.f32 %v5630, %v5667
        %v5768 = vadd.f32 %v5631, %v5668
        %v5769 = vadd.f32 %v5632, %v5669
        %v5770 = vadd.f32 %v5633, %v5670
        %v5771 = vadd.f32 %v5634, %v5667
        %v5772 = vadd.f32 %v5635, %v5668
        %v5773 = vadd.f32 %v5636, %v5669
        %v5774 = vadd.f32 %v5637, %v5670
        %v5775 = vadd.f32 %v5638, %v5667
        %v5776 = vadd.f32 %v5639, %v5668
        %v5777 = vadd.f32 %v5640, %v5669
        %v5778 = vadd.f32 %v5641, %v5670
        %v5779 = vadd.f32 %v5642, %v5667
        %v5780 = vadd.f32 %v5643, %v5668
        %v5781 = vadd.f32 %v5644, %v5669
        %v5782 = vadd.f32 %v5645, %v5670
        %v5783 = vadd.f32 %v5646, %v5667
        %v5784 = vadd.f32 %v5647, %v5668
        %v5785 = vadd.f32 %v5648, %v5669
        %v5786 = vadd.f32 %v5649, %v5670
        %v5787 = vadd.f32 %v5650, %v5667
        %v5788 = vadd.f32 %v5651, %v5668
        %v5789 = vadd.f32 %v5652, %v5669
        %v5790 = vadd.f32 %v5653, %v5670
        %v5791 = vadd.f32 %v5654, %v5667
        %v5792 = vadd.f32 %v5655, %v5668
        %v5793 = vadd.f32 %v5656, %v5669
        %v5794 = vadd.f32 %v5657, %v5670
        %v5795 = vadd.f32 %v5658, %v5667
        %v5796 = vadd.f32 %v5659, %v5668
        %v5797 = vadd.f32 %v5660, %v5669
        %v5798 = vadd.f32 %v5661, %v5670
        %v5799 = vadd.f32 %v5662, %v5667
        %v5800 = vadd.f32 %v5663, %v5668
        %v5801 = vadd.f32 %v5664, %v5669
        %v5802 = vadd.f32 %v5665, %v5670
        %v5803 = vmax.f32 %v5675, 0.0
        %v5804 = vmax.f32 %v5676, 0.0
        %v5805 = vmax.f32 %v5677, 0.0
        %v5806 = vmax.f32 %v5678, 0.0
        %v5807 = vmax.f32 %v5679, 0.0
        %v5808 = vmax.f32 %v5680, 0.0
        %v5809 = vmax.f32 %v5681, 0.0
        %v5810 = vmax.f32 %v5682, 0.0
        %v5811 = vmax.f32 %v5683, 0.0
        %v5812 = vmax.f32 %v5684, 0.0
        %v5813 = vmax.f32 %v5685, 0.0
        %v5814 = vmax.f32 %v5686, 0.0
        %v5815 = vmax.f32 %v5687, 0.0
        %v5816 = vmax.f32 %v5688, 0.0
        %v5817 = vmax.f32 %v5689, 0.0
        %v5818 = vmax.f32 %v5690, 0.0
        %v5819 = vmax.f32 %v5691, 0.0
        %v5820 = vmax.f32 %v5692, 0.0
        %v5821 = vmax.f32 %v5693, 0.0
        %v5822 = vmax.f32 %v5694, 0.0
        %v5823 = vmax.f32 %v5695, 0.0
        %v5824 = vmax.f32 %v5696, 0.0
        %v5825 = vmax.f32 %v5697, 0.0
        %v5826 = vmax.f32 %v5698, 0.0
        %v5827 = vmax.f32 %v5699, 0.0
        %v5828 = vmax.f32 %v5700, 0.0
        %v5829 = vmax.f32 %v5701, 0.0
        %v5830 = vmax.f32 %v5702, 0.0
        %v5831 = vmax.f32 %v5703, 0.0
        %v5832 = vmax.f32 %v5704, 0.0
        %v5833 = vmax.f32 %v5705, 0.0
        %v5834 = vmax.f32 %v5706, 0.0
        %v5835 = vmax.f32 %v5707, 0.0
        %v5836 = vmax.f32 %v5708, 0.0
        %v5837 = vmax.f32 %v5709, 0.0
        %v5838 = vmax.f32 %v5710, 0.0
        %v5839 = vmax.f32 %v5711, 0.0
        %v5840 = vmax.f32 %v5712, 0.0
        %v5841 = vmax.f32 %v5713, 0.0
        %v5842 = vmax.f32 %v5714, 0.0
        %v5843 = vmax.f32 %v5715, 0.0
        %v5844 = vmax.f32 %v5716, 0.0
        %v5845 = vmax.f32 %v5717, 0.0
        %v5846 = vmax.f32 %v5718, 0.0
        %v5847 = vmax.f32 %v5719, 0.0
        %v5848 = vmax.f32 %v5720, 0.0
        %v5849 = vmax.f32 %v5721, 0.0
        %v5850 = vmax.f32 %v5722, 0.0
        %v5851 = vmax.f32 %v5723, 0.0
        %v5852 = vmax.f32 %v5724, 0.0
        %v5853 = vmax.f32 %v5725, 0.0
        %v5854 = vmax.f32 %v5726, 0.0
        %v5855 = vmax.f32 %v5727, 0.0
        %v5856 = vmax.f32 %v5728, 0.0
        %v5857 = vmax.f32 %v5729, 0.0
        %v5858 = vmax.f32 %v5730, 0.0
        %v5859 = vmax.f32 %v5731, 0.0
        %v5860 = vmax.f32 %v5732, 0.0
        %v5861 = vmax.f32 %v5733, 0.0
        %v5862 = vmax.f32 %v5734, 0.0
        %v5863 = vmax.f32 %v5735, 0.0
        %v5864 = vmax.f32 %v5736, 0.0
        %v5865 = vmax.f32 %v5737, 0.0
        %v5866 = vmax.f32 %v5738, 0.0
        %v5867 = vmax.f32 %v5739, 0.0
        %v5868 = vmax.f32 %v5740, 0.0
        %v5869 = vmax.f32 %v5741, 0.0
        %v5870 = vmax.f32 %v5742, 0.0
        %v5871 = vmax.f32 %v5743, 0.0
        %v5872 = vmax.f32 %v5744, 0.0
        %v5873 = vmax.f32 %v5745, 0.0
        %v5874 = vmax.f32 %v5746, 0.0
        %v5875 = vmax.f32 %v5747, 0.0
        %v5876 = vmax.f32 %v5748, 0.0
        %v5877 = vmax.f32 %v5749, 0.0
        %v5878 = vmax.f32 %v5750, 0.0
        %v5879 = vmax.f32 %v5751, 0.0
        %v5880 = vmax.f32 %v5752, 0.0
        %v5881 = vmax.f32 %v5753, 0.0
        %v5882 = vmax.f32 %v5754, 0.0
        %v5883 = vmax.f32 %v5755, 0.0
        %v5884 = vmax.f32 %v5756, 0.0
        %v5885 = vmax.f32 %v5757, 0.0
        %v5886 = vmax.f32 %v5758, 0.0
        %v5887 = vmax.f32 %v5759, 0.0
        %v5888 = vmax.f32 %v5760, 0.0
        %v5889 = vmax.f32 %v5761, 0.0
        %v5890 = vmax.f32 %v5762, 0.0
        %v5891 = vmax.f32 %v5763, 0.0
        %v5892 = vmax.f32 %v5764, 0.0
        %v5893 = vmax.f32 %v5765, 0.0
        %v5894 = vmax.f32 %v5766, 0.0
        %v5895 = vmax.f32 %v5767, 0.0
        %v5896 = vmax.f32 %v5768, 0.0
        %v5897 = vmax.f32 %v5769, 0.0
        %v5898 = vmax.f32 %v5770, 0.0
        %v5899 = vmax.f32 %v5771, 0.0
        %v5900 = vmax.f32 %v5772, 0.0
        %v5901 = vmax.f32 %v5773, 0.0
        %v5902 = vmax.f32 %v5774, 0.0
        %v5903 = vmax.f32 %v5775, 0.0
        %v5904 = vmax.f32 %v5776, 0.0
        %v5905 = vmax.f32 %v5777, 0.0
        %v5906 = vmax.f32 %v5778, 0.0
        %v5907 = vmax.f32 %v5779, 0.0
        %v5908 = vmax.f32 %v5780, 0.0
        %v5909 = vmax.f32 %v5781, 0.0
        %v5910 = vmax.f32 %v5782, 0.0
        %v5911 = vmax.f32 %v5783, 0.0
        %v5912 = vmax.f32 %v5784, 0.0
        %v5913 = vmax.f32 %v5785, 0.0
        %v5914 = vmax.f32 %v5786, 0.0
        %v5915 = vmax.f32 %v5787, 0.0
        %v5916 = vmax.f32 %v5788, 0.0
        %v5917 = vmax.f32 %v5789, 0.0
        %v5918 = vmax.f32 %v5790, 0.0
        %v5919 = vmax.f32 %v5791, 0.0
        %v5920 = vmax.f32 %v5792, 0.0
        %v5921 = vmax.f32 %v5793, 0.0
        %v5922 = vmax.f32 %v5794, 0.0
        %v5923 = vmax.f32 %v5795, 0.0
        %v5924 = vmax.f32 %v5796, 0.0
        %v5925 = vmax.f32 %v5797, 0.0
        %v5926 = vmax.f32 %v5798, 0.0
        %v5927 = vmax.f32 %v5799, 0.0
        %v5928 = vmax.f32 %v5800, 0.0
        %v5929 = vmax.f32 %v5801, 0.0
        %v5930 = vmax.f32 %v5802, 0.0
        %v5931 = vld [vmem:[%s538] sm:$0xff]
        %v5932 = vld [vmem:[%s538 + $0x8] sm:$0xff]
        %v5933 = vld [vmem:[%s538 + $0x10] sm:$0xff]
        %v5934 = vld [vmem:[%s538 + $0x18] sm:$0xff]
        %v5935 = vld [vmem:[%s538 + $0x20] sm:$0xff]
        %v5936 = vld [vmem:[%s538 + $0x28] sm:$0xff]
        %v5937 = vld [vmem:[%s538 + $0x30] sm:$0xff]
        %v5938 = vld [vmem:[%s538 + $0x38] sm:$0xff]
        %v5939 = vld [vmem:[%s538 + $0x40] sm:$0xff]
        %v5940 = vld [vmem:[%s538 + $0x48] sm:$0xff]
        %v5941 = vld [vmem:[%s538 + $0x50] sm:$0xff]
        %v5942 = vld [vmem:[%s538 + $0x58] sm:$0xff]
        %v5943 = vld [vmem:[%s538 + $0x60] sm:$0xff]
        %v5944 = vld [vmem:[%s538 + $0x68] sm:$0xff]
        %v5945 = vld [vmem:[%s538 + $0x70] sm:$0xff]
        %v5946 = vld [vmem:[%s538 + $0x78] sm:$0xff]
        %v5947 = vunpack.c.0.s8 %v5931
        %v5948 = vunpack.c.1.s8 %v5931
        %v5949 = vunpack.c.2.s8 %v5931
        %v5950 = vunpack.c.3.s8 %v5931
        %v5951 = vunpack.c.0.s8 %v5932
        %v5952 = vunpack.c.1.s8 %v5932
        %v5953 = vunpack.c.2.s8 %v5932
        %v5954 = vunpack.c.3.s8 %v5932
        %v5955 = vunpack.c.0.s8 %v5933
        %v5956 = vunpack.c.1.s8 %v5933
        %v5957 = vunpack.c.2.s8 %v5933
        %v5958 = vunpack.c.3.s8 %v5933
        %v5959 = vunpack.c.0.s8 %v5934
        %v5960 = vunpack.c.1.s8 %v5934
        %v5961 = vunpack.c.2.s8 %v5934
        %v5962 = vunpack.c.3.s8 %v5934
        %v5963 = vunpack.c.0.s8 %v5935
        %v5964 = vunpack.c.1.s8 %v5935
        %v5965 = vunpack.c.2.s8 %v5935
        %v5966 = vunpack.c.3.s8 %v5935
        %v5967 = vunpack.c.0.s8 %v5936
        %v5968 = vunpack.c.1.s8 %v5936
        %v5969 = vunpack.c.2.s8 %v5936
        %v5970 = vunpack.c.3.s8 %v5936
        %v5971 = vunpack.c.0.s8 %v5937
        %v5972 = vunpack.c.1.s8 %v5937
        %v5973 = vunpack.c.2.s8 %v5937
        %v5974 = vunpack.c.3.s8 %v5937
        %v5975 = vunpack.c.0.s8 %v5938
        %v5976 = vunpack.c.1.s8 %v5938
        %v5977 = vunpack.c.2.s8 %v5938
        %v5978 = vunpack.c.3.s8 %v5938
        %v5979 = vunpack.c.0.s8 %v5939
        %v5980 = vunpack.c.1.s8 %v5939
        %v5981 = vunpack.c.2.s8 %v5939
        %v5982 = vunpack.c.3.s8 %v5939
        %v5983 = vunpack.c.0.s8 %v5940
        %v5984 = vunpack.c.1.s8 %v5940
        %v5985 = vunpack.c.2.s8 %v5940
        %v5986 = vunpack.c.3.s8 %v5940
        %v5987 = vunpack.c.0.s8 %v5941
        %v5988 = vunpack.c.1.s8 %v5941
        %v5989 = vunpack.c.2.s8 %v5941
        %v5990 = vunpack.c.3.s8 %v5941
        %v5991 = vunpack.c.0.s8 %v5942
        %v5992 = vunpack.c.1.s8 %v5942
        %v5993 = vunpack.c.2.s8 %v5942
        %v5994 = vunpack.c.3.s8 %v5942
        %v5995 = vunpack.c.0.s8 %v5943
        %v5996 = vunpack.c.1.s8 %v5943
        %v5997 = vunpack.c.2.s8 %v5943
        %v5998 = vunpack.c.3.s8 %v5943
        %v5999 = vunpack.c.0.s8 %v5944
        %v6000 = vunpack.c.1.s8 %v5944
        %v6001 = vunpack.c.2.s8 %v5944
        %v6002 = vunpack.c.3.s8 %v5944
        %v6003 = vunpack.c.0.s8 %v5945
        %v6004 = vunpack.c.1.s8 %v5945
        %v6005 = vunpack.c.2.s8 %v5945
        %v6006 = vunpack.c.3.s8 %v5945
        %v6007 = vunpack.c.0.s8 %v5946
        %v6008 = vunpack.c.1.s8 %v5946
        %v6009 = vunpack.c.2.s8 %v5946
        %v6010 = vunpack.c.3.s8 %v5946
        %v6011 = vcvt.s32.f32 %v5947
        %v6012 = vcvt.s32.f32 %v5948
        %v6013 = vcvt.s32.f32 %v5949
        %v6014 = vcvt.s32.f32 %v5950
        %v6015 = vcvt.s32.f32 %v5951
        %v6016 = vcvt.s32.f32 %v5952
        %v6017 = vcvt.s32.f32 %v5953
        %v6018 = vcvt.s32.f32 %v5954
        %v6019 = vcvt.s32.f32 %v5955
        %v6020 = vcvt.s32.f32 %v5956
        %v6021 = vcvt.s32.f32 %v5957
        %v6022 = vcvt.s32.f32 %v5958
        %v6023 = vcvt.s32.f32 %v5959
        %v6024 = vcvt.s32.f32 %v5960
        %v6025 = vcvt.s32.f32 %v5961
        %v6026 = vcvt.s32.f32 %v5962
        %v6027 = vcvt.s32.f32 %v5963
        %v6028 = vcvt.s32.f32 %v5964
        %v6029 = vcvt.s32.f32 %v5965
        %v6030 = vcvt.s32.f32 %v5966
        %v6031 = vcvt.s32.f32 %v5967
        %v6032 = vcvt.s32.f32 %v5968
        %v6033 = vcvt.s32.f32 %v5969
        %v6034 = vcvt.s32.f32 %v5970
        %v6035 = vcvt.s32.f32 %v5971
        %v6036 = vcvt.s32.f32 %v5972
        %v6037 = vcvt.s32.f32 %v5973
        %v6038 = vcvt.s32.f32 %v5974
        %v6039 = vcvt.s32.f32 %v5975
        %v6040 = vcvt.s32.f32 %v5976
        %v6041 = vcvt.s32.f32 %v5977
        %v6042 = vcvt.s32.f32 %v5978
        %v6043 = vcvt.s32.f32 %v5979
        %v6044 = vcvt.s32.f32 %v5980
        %v6045 = vcvt.s32.f32 %v5981
        %v6046 = vcvt.s32.f32 %v5982
        %v6047 = vcvt.s32.f32 %v5983
        %v6048 = vcvt.s32.f32 %v5984
        %v6049 = vcvt.s32.f32 %v5985
        %v6050 = vcvt.s32.f32 %v5986
        %v6051 = vcvt.s32.f32 %v5987
        %v6052 = vcvt.s32.f32 %v5988
        %v6053 = vcvt.s32.f32 %v5989
        %v6054 = vcvt.s32.f32 %v5990
        %v6055 = vcvt.s32.f32 %v5991
        %v6056 = vcvt.s32.f32 %v5992
        %v6057 = vcvt.s32.f32 %v5993
        %v6058 = vcvt.s32.f32 %v5994
        %v6059 = vcvt.s32.f32 %v5995
        %v6060 = vcvt.s32.f32 %v5996
        %v6061 = vcvt.s32.f32 %v5997
        %v6062 = vcvt.s32.f32 %v5998
        %v6063 = vcvt.s32.f32 %v5999
        %v6064 = vcvt.s32.f32 %v6000
        %v6065 = vcvt.s32.f32 %v6001
        %v6066 = vcvt.s32.f32 %v6002
        %v6067 = vcvt.s32.f32 %v6003
        %v6068 = vcvt.s32.f32 %v6004
        %v6069 = vcvt.s32.f32 %v6005
        %v6070 = vcvt.s32.f32 %v6006
        %v6071 = vcvt.s32.f32 %v6007
        %v6072 = vcvt.s32.f32 %v6008
        %v6073 = vcvt.s32.f32 %v6009
        %v6074 = vcvt.s32.f32 %v6010
        %v6075 = vpack.c.bf16 %v6012, %v6011
        %v6076 = vpack.c.bf16 %v6014, %v6013
        %v6077 = vpack.c.bf16 %v6016, %v6015
        %v6078 = vpack.c.bf16 %v6018, %v6017
        %v6079 = vpack.c.bf16 %v6020, %v6019
        %v6080 = vpack.c.bf16 %v6022, %v6021
        %v6081 = vpack.c.bf16 %v6024, %v6023
        %v6082 = vpack.c.bf16 %v6026, %v6025
        %v6083 = vpack.c.bf16 %v6028, %v6027
        %v6084 = vpack.c.bf16 %v6030, %v6029
        %v6085 = vpack.c.bf16 %v6032, %v6031
        %v6086 = vpack.c.bf16 %v6034, %v6033
        %v6087 = vpack.c.bf16 %v6036, %v6035
        %v6088 = vpack.c.bf16 %v6038, %v6037
        %v6089 = vpack.c.bf16 %v6040, %v6039
        %v6090 = vpack.c.bf16 %v6042, %v6041
        %v6091 = vpack.c.bf16 %v6044, %v6043
        %v6092 = vpack.c.bf16 %v6046, %v6045
        %v6093 = vpack.c.bf16 %v6048, %v6047
        %v6094 = vpack.c.bf16 %v6050, %v6049
        %v6095 = vpack.c.bf16 %v6052, %v6051
        %v6096 = vpack.c.bf16 %v6054, %v6053
        %v6097 = vpack.c.bf16 %v6056, %v6055
        %v6098 = vpack.c.bf16 %v6058, %v6057
        %v6099 = vpack.c.bf16 %v6060, %v6059
        %v6100 = vpack.c.bf16 %v6062, %v6061
        %v6101 = vpack.c.bf16 %v6064, %v6063
        %v6102 = vpack.c.bf16 %v6066, %v6065
        %v6103 = vpack.c.bf16 %v6068, %v6067
        %v6104 = vpack.c.bf16 %v6070, %v6069
        %v6105 = vpack.c.bf16 %v6072, %v6071
        %v6106 = vpack.c.bf16 %v6074, %v6073
        %v6107 = vld [vmem:[%s6] sm:$0xff]
        %v6108 = vld [vmem:[%s6 + $0x8] sm:$0xff]
        %v6109 = vld [vmem:[%s6 + $0x10] sm:$0xff]
        %v6110 = vld [vmem:[%s6 + $0x18] sm:$0xff]
        %v6111 = vld [vmem:[%s6 + $0x20] sm:$0xff]
        %v6112 = vld [vmem:[%s6 + $0x28] sm:$0xff]
        %v6113 = vld [vmem:[%s6 + $0x30] sm:$0xff]
        %v6114 = vld [vmem:[%s6 + $0x38] sm:$0xff]
        %v6115 = vld [vmem:[%s6 + $0x40] sm:$0xff]
        %v6116 = vld [vmem:[%s6 + $0x48] sm:$0xff]
        %v6117 = vld [vmem:[%s6 + $0x50] sm:$0xff]
        %v6118 = vld [vmem:[%s6 + $0x58] sm:$0xff]
        %v6119 = vld [vmem:[%s6 + $0x60] sm:$0xff]
        %v6120 = vld [vmem:[%s6 + $0x68] sm:$0xff]
        %v6121 = vld [vmem:[%s6 + $0x70] sm:$0xff]
        %v6122 = vld [vmem:[%s6 + $0x78] sm:$0xff]
        %v6123 = vld [vmem:[%s6 + $0x80] sm:$0xff]
        %v6124 = vld [vmem:[%s6 + $0x88] sm:$0xff]
        %v6125 = vld [vmem:[%s6 + $0x90] sm:$0xff]
        %v6126 = vld [vmem:[%s6 + $0x98] sm:$0xff]
        %v6127 = vld [vmem:[%s6 + $0xa0] sm:$0xff]
        %v6128 = vld [vmem:[%s6 + $0xa8] sm:$0xff]
        %v6129 = vld [vmem:[%s6 + $0xb0] sm:$0xff]
        %v6130 = vld [vmem:[%s6 + $0xb8] sm:$0xff]
        %v6131 = vld [vmem:[%s6 + $0xc0] sm:$0xff]
        %v6132 = vld [vmem:[%s6 + $0xc8] sm:$0xff]
        %v6133 = vld [vmem:[%s6 + $0xd0] sm:$0xff]
        %v6134 = vld [vmem:[%s6 + $0xd8] sm:$0xff]
        %v6135 = vld [vmem:[%s6 + $0xe0] sm:$0xff]
        %v6136 = vld [vmem:[%s6 + $0xe8] sm:$0xff]
        %v6137 = vld [vmem:[%s6 + $0xf0] sm:$0xff]
        %v6138 = vld [vmem:[%s6 + $0xf8] sm:$0xff]
        %v6139 = vpack.c.bf16 %v5807, %v5803
        %v6140 = vpack.c.bf16 %v5808, %v5804
        %v6141 = vpack.c.bf16 %v5809, %v5805
        %v6142 = vpack.c.bf16 %v5810, %v5806
        %v6143 = vpack.c.bf16 %v5815, %v5811
        %v6144 = vpack.c.bf16 %v5816, %v5812
        %v6145 = vpack.c.bf16 %v5817, %v5813
        %v6146 = vpack.c.bf16 %v5818, %v5814
        %v6147 = vpack.c.bf16 %v5823, %v5819
        %v6148 = vpack.c.bf16 %v5824, %v5820
        %v6149 = vpack.c.bf16 %v5825, %v5821
        %v6150 = vpack.c.bf16 %v5826, %v5822
        %v6151 = vpack.c.bf16 %v5831, %v5827
        %v6152 = vpack.c.bf16 %v5832, %v5828
        %v6153 = vpack.c.bf16 %v5833, %v5829
        %v6154 = vpack.c.bf16 %v5834, %v5830
        %v6155 = vpack.c.bf16 %v5839, %v5835
        %v6156 = vpack.c.bf16 %v5840, %v5836
        %v6157 = vpack.c.bf16 %v5841, %v5837
        %v6158 = vpack.c.bf16 %v5842, %v5838
        %v6159 = vpack.c.bf16 %v5847, %v5843
        %v6160 = vpack.c.bf16 %v5848, %v5844
        %v6161 = vpack.c.bf16 %v5849, %v5845
        %v6162 = vpack.c.bf16 %v5850, %v5846
        %v6163 = vpack.c.bf16 %v5855, %v5851
        %v6164 = vpack.c.bf16 %v5856, %v5852
        %v6165 = vpack.c.bf16 %v5857, %v5853
        %v6166 = vpack.c.bf16 %v5858, %v5854
        %v6167 = vpack.c.bf16 %v5863, %v5859
        %v6168 = vpack.c.bf16 %v5864, %v5860
        %v6169 = vpack.c.bf16 %v5865, %v5861
        %v6170 = vpack.c.bf16 %v5866, %v5862
        %v6171 = vpack.c.bf16 %v5871, %v5867
        %v6172 = vpack.c.bf16 %v5872, %v5868
        %v6173 = vpack.c.bf16 %v5873, %v5869
        %v6174 = vpack.c.bf16 %v5874, %v5870
        %v6175 = vpack.c.bf16 %v5879, %v5875
        %v6176 = vpack.c.bf16 %v5880, %v5876
        %v6177 = vpack.c.bf16 %v5881, %v5877
        %v6178 = vpack.c.bf16 %v5882, %v5878
        %v6179 = vpack.c.bf16 %v5887, %v5883
        %v6180 = vpack.c.bf16 %v5888, %v5884
        %v6181 = vpack.c.bf16 %v5889, %v5885
        %v6182 = vpack.c.bf16 %v5890, %v5886
        %v6183 = vpack.c.bf16 %v5895, %v5891
        %v6184 = vpack.c.bf16 %v5896, %v5892
        %v6185 = vpack.c.bf16 %v5897, %v5893
        %v6186 = vpack.c.bf16 %v5898, %v5894
        %v6187 = vpack.c.bf16 %v5903, %v5899
        %v6188 = vpack.c.bf16 %v5904, %v5900
        %v6189 = vpack.c.bf16 %v5905, %v5901
        %v6190 = vpack.c.bf16 %v5906, %v5902
        %v6191 = vpack.c.bf16 %v5911, %v5907
        %v6192 = vpack.c.bf16 %v5912, %v5908
        %v6193 = vpack.c.bf16 %v5913, %v5909
        %v6194 = vpack.c.bf16 %v5914, %v5910
        %v6195 = vpack.c.bf16 %v5919, %v5915
        %v6196 = vpack.c.bf16 %v5920, %v5916
        %v6197 = vpack.c.bf16 %v5921, %v5917
        %v6198 = vpack.c.bf16 %v5922, %v5918
        %v6199 = vpack.c.bf16 %v5927, %v5923
        %v6200 = vpack.c.bf16 %v5928, %v5924
        %v6201 = vpack.c.bf16 %v5929, %v5925
        %v6202 = vpack.c.bf16 %v5930, %v5926
        %6203 = vmatpush.bf16.msra.mxu0 %v6082
        %6204 = vmatpush.bf16.msra.mxu0 %v6081
        %6205 = vmatpush.bf16.msra.mxu0 %v6080
        %6206 = vmatpush.bf16.msra.mxu0 %v6079
        %6207 = vmatpush.bf16.msra.mxu0 %v6078
        %6208 = vmatpush.bf16.msra.mxu0 %v6077
        %6209 = vmatpush.bf16.msra.mxu0 %v6076
        %6210 = vmatpush.bf16.msra.mxu0 %v6075
        %6211 = vmatmul.bf16.gmra.mxu0 %v6139
        %v6212 = vpop.f32.mrf.mxu0
        %v6213 = vadd.f32 0.0, %v6212
        %v6214 = vpop.f32.mrf.mxu0
        %v6215 = vadd.f32 0.0, %v6214
        %6216 = vmatmul.bf16.gmra.mxu0 %v6143
        %v6217 = vpop.f32.mrf.mxu0
        %v6218 = vadd.f32 0.0, %v6217
        %v6219 = vpop.f32.mrf.mxu0
        %v6220 = vadd.f32 0.0, %v6219
        %6221 = vmatmul.bf16.gmra.mxu0 %v6147
        %v6222 = vpop.f32.mrf.mxu0
        %v6223 = vadd.f32 0.0, %v6222
        %v6224 = vpop.f32.mrf.mxu0
        %v6225 = vadd.f32 0.0, %v6224
        %6226 = vmatmul.bf16.gmra.mxu0 %v6151
        %v6227 = vpop.f32.mrf.mxu0
        %v6228 = vadd.f32 0.0, %v6227
        %v6229 = vpop.f32.mrf.mxu0
        %v6230 = vadd.f32 0.0, %v6229
        %6231 = vmatmul.bf16.gmra.mxu0 %v6155
        %v6232 = vpop.f32.mrf.mxu0
        %v6233 = vadd.f32 0.0, %v6232
        %v6234 = vpop.f32.mrf.mxu0
        %v6235 = vadd.f32 0.0, %v6234
        %6236 = vmatmul.bf16.gmra.mxu0 %v6159
        %v6237 = vpop.f32.mrf.mxu0
        %v6238 = vadd.f32 0.0, %v6237
        %v6239 = vpop.f32.mrf.mxu0
        %v6240 = vadd.f32 0.0, %v6239
        %6241 = vmatmul.bf16.gmra.mxu0 %v6163
        %v6242 = vpop.f32.mrf.mxu0
        %v6243 = vadd.f32 0.0, %v6242
        %v6244 = vpop.f32.mrf.mxu0
        %v6245 = vadd.f32 0.0, %v6244
        %6246 = vmatmul.bf16.gmra.mxu0 %v6167
        %v6247 = vpop.f32.mrf.mxu0
        %v6248 = vadd.f32 0.0, %v6247
        %v6249 = vpop.f32.mrf.mxu0
        %v6250 = vadd.f32 0.0, %v6249
        %6251 = vmatmul.bf16.gmra.mxu0 %v6171
        %v6252 = vpop.f32.mrf.mxu0
        %v6253 = vadd.f32 0.0, %v6252
        %v6254 = vpop.f32.mrf.mxu0
        %v6255 = vadd.f32 0.0, %v6254
        %6256 = vmatmul.bf16.gmra.mxu0 %v6175
        %v6257 = vpop.f32.mrf.mxu0
        %v6258 = vadd.f32 0.0, %v6257
        %v6259 = vpop.f32.mrf.mxu0
        %v6260 = vadd.f32 0.0, %v6259
        %6261 = vmatmul.bf16.gmra.mxu0 %v6179
        %v6262 = vpop.f32.mrf.mxu0
        %v6263 = vadd.f32 0.0, %v6262
        %v6264 = vpop.f32.mrf.mxu0
        %v6265 = vadd.f32 0.0, %v6264
        %6266 = vmatmul.bf16.gmra.mxu0 %v6183
        %v6267 = vpop.f32.mrf.mxu0
        %v6268 = vadd.f32 0.0, %v6267
        %v6269 = vpop.f32.mrf.mxu0
        %v6270 = vadd.f32 0.0, %v6269
        %6271 = vmatmul.bf16.gmra.mxu0 %v6187
        %v6272 = vpop.f32.mrf.mxu0
        %v6273 = vadd.f32 0.0, %v6272
        %v6274 = vpop.f32.mrf.mxu0
        %v6275 = vadd.f32 0.0, %v6274
        %6276 = vmatmul.bf16.gmra.mxu0 %v6191
        %v6277 = vpop.f32.mrf.mxu0
        %v6278 = vadd.f32 0.0, %v6277
        %v6279 = vpop.f32.mrf.mxu0
        %v6280 = vadd.f32 0.0, %v6279
        %6281 = vmatmul.bf16.gmra.mxu0 %v6195
        %v6282 = vpop.f32.mrf.mxu0
        %v6283 = vadd.f32 0.0, %v6282
        %v6284 = vpop.f32.mrf.mxu0
        %v6285 = vadd.f32 0.0, %v6284
        %6286 = vmatmul.bf16.gmra.mxu0 %v6199
        %v6287 = vpop.f32.mrf.mxu0
        %v6288 = vadd.f32 0.0, %v6287
        %v6289 = vpop.f32.mrf.mxu0
        %v6290 = vadd.f32 0.0, %v6289
        %6291 = vdwg.mxu0
        %6292 = vmatpush.bf16.msra.mxu0 %v6090
        %6293 = vmatpush.bf16.msra.mxu0 %v6089
        %6294 = vmatpush.bf16.msra.mxu0 %v6088
        %6295 = vmatpush.bf16.msra.mxu0 %v6087
        %6296 = vmatpush.bf16.msra.mxu0 %v6086
        %6297 = vmatpush.bf16.msra.mxu0 %v6085
        %6298 = vmatpush.bf16.msra.mxu0 %v6084
        %6299 = vmatpush.bf16.msra.mxu0 %v6083
        %6300 = vmatmul.bf16.gmra.mxu0 %v6140
        %v6301 = vpop.f32.mrf.mxu0
        %v6302 = vadd.f32 %v6213, %v6301
        %v6303 = vpop.f32.mrf.mxu0
        %v6304 = vadd.f32 %v6215, %v6303
        %6305 = vmatmul.bf16.gmra.mxu0 %v6144
        %v6306 = vpop.f32.mrf.mxu0
        %v6307 = vadd.f32 %v6218, %v6306
        %v6308 = vpop.f32.mrf.mxu0
        %v6309 = vadd.f32 %v6220, %v6308
        %6310 = vmatmul.bf16.gmra.mxu0 %v6148
        %v6311 = vpop.f32.mrf.mxu0
        %v6312 = vadd.f32 %v6223, %v6311
        %v6313 = vpop.f32.mrf.mxu0
        %v6314 = vadd.f32 %v6225, %v6313
        %6315 = vmatmul.bf16.gmra.mxu0 %v6152
        %v6316 = vpop.f32.mrf.mxu0
        %v6317 = vadd.f32 %v6228, %v6316
        %v6318 = vpop.f32.mrf.mxu0
        %v6319 = vadd.f32 %v6230, %v6318
        %6320 = vmatmul.bf16.gmra.mxu0 %v6156
        %v6321 = vpop.f32.mrf.mxu0
        %v6322 = vadd.f32 %v6233, %v6321
        %v6323 = vpop.f32.mrf.mxu0
        %v6324 = vadd.f32 %v6235, %v6323
        %6325 = vmatmul.bf16.gmra.mxu0 %v6160
        %v6326 = vpop.f32.mrf.mxu0
        %v6327 = vadd.f32 %v6238, %v6326
        %v6328 = vpop.f32.mrf.mxu0
        %v6329 = vadd.f32 %v6240, %v6328
        %6330 = vmatmul.bf16.gmra.mxu0 %v6164
        %v6331 = vpop.f32.mrf.mxu0
        %v6332 = vadd.f32 %v6243, %v6331
        %v6333 = vpop.f32.mrf.mxu0
        %v6334 = vadd.f32 %v6245, %v6333
        %6335 = vmatmul.bf16.gmra.mxu0 %v6168
        %v6336 = vpop.f32.mrf.mxu0
        %v6337 = vadd.f32 %v6248, %v6336
        %v6338 = vpop.f32.mrf.mxu0
        %v6339 = vadd.f32 %v6250, %v6338
        %6340 = vmatmul.bf16.gmra.mxu0 %v6172
        %v6341 = vpop.f32.mrf.mxu0
        %v6342 = vadd.f32 %v6253, %v6341
        %v6343 = vpop.f32.mrf.mxu0
        %v6344 = vadd.f32 %v6255, %v6343
        %6345 = vmatmul.bf16.gmra.mxu0 %v6176
        %v6346 = vpop.f32.mrf.mxu0
        %v6347 = vadd.f32 %v6258, %v6346
        %v6348 = vpop.f32.mrf.mxu0
        %v6349 = vadd.f32 %v6260, %v6348
        %6350 = vmatmul.bf16.gmra.mxu0 %v6180
        %v6351 = vpop.f32.mrf.mxu0
        %v6352 = vadd.f32 %v6263, %v6351
        %v6353 = vpop.f32.mrf.mxu0
        %v6354 = vadd.f32 %v6265, %v6353
        %6355 = vmatmul.bf16.gmra.mxu0 %v6184
        %v6356 = vpop.f32.mrf.mxu0
        %v6357 = vadd.f32 %v6268, %v6356
        %v6358 = vpop.f32.mrf.mxu0
        %v6359 = vadd.f32 %v6270, %v6358
        %6360 = vmatmul.bf16.gmra.mxu0 %v6188
        %v6361 = vpop.f32.mrf.mxu0
        %v6362 = vadd.f32 %v6273, %v6361
        %v6363 = vpop.f32.mrf.mxu0
        %v6364 = vadd.f32 %v6275, %v6363
        %6365 = vmatmul.bf16.gmra.mxu0 %v6192
        %v6366 = vpop.f32.mrf.mxu0
        %v6367 = vadd.f32 %v6278, %v6366
        %v6368 = vpop.f32.mrf.mxu0
        %v6369 = vadd.f32 %v6280, %v6368
        %6370 = vmatmul.bf16.gmra.mxu0 %v6196
        %v6371 = vpop.f32.mrf.mxu0
        %v6372 = vadd.f32 %v6283, %v6371
        %v6373 = vpop.f32.mrf.mxu0
        %v6374 = vadd.f32 %v6285, %v6373
        %6375 = vmatmul.bf16.gmra.mxu0 %v6200
        %v6376 = vpop.f32.mrf.mxu0
        %v6377 = vadd.f32 %v6288, %v6376
        %v6378 = vpop.f32.mrf.mxu0
        %v6379 = vadd.f32 %v6290, %v6378
        %6380 = vdwg.mxu0
        %6381 = vmatpush.bf16.msra.mxu0 %v6098
        %6382 = vmatpush.bf16.msra.mxu0 %v6097
        %6383 = vmatpush.bf16.msra.mxu0 %v6096
        %6384 = vmatpush.bf16.msra.mxu0 %v6095
        %6385 = vmatpush.bf16.msra.mxu0 %v6094
        %6386 = vmatpush.bf16.msra.mxu0 %v6093
        %6387 = vmatpush.bf16.msra.mxu0 %v6092
        %6388 = vmatpush.bf16.msra.mxu0 %v6091
        %6389 = vmatmul.bf16.gmra.mxu0 %v6141
        %v6390 = vpop.f32.mrf.mxu0
        %v6391 = vadd.f32 %v6302, %v6390
        %v6392 = vpop.f32.mrf.mxu0
        %v6393 = vadd.f32 %v6304, %v6392
        %6394 = vmatmul.bf16.gmra.mxu0 %v6145
        %v6395 = vpop.f32.mrf.mxu0
        %v6396 = vadd.f32 %v6307, %v6395
        %v6397 = vpop.f32.mrf.mxu0
        %v6398 = vadd.f32 %v6309, %v6397
        %6399 = vmatmul.bf16.gmra.mxu0 %v6149
        %v6400 = vpop.f32.mrf.mxu0
        %v6401 = vadd.f32 %v6312, %v6400
        %v6402 = vpop.f32.mrf.mxu0
        %v6403 = vadd.f32 %v6314, %v6402
        %6404 = vmatmul.bf16.gmra.mxu0 %v6153
        %v6405 = vpop.f32.mrf.mxu0
        %v6406 = vadd.f32 %v6317, %v6405
        %v6407 = vpop.f32.mrf.mxu0
        %v6408 = vadd.f32 %v6319, %v6407
        %6409 = vmatmul.bf16.gmra.mxu0 %v6157
        %v6410 = vpop.f32.mrf.mxu0
        %v6411 = vadd.f32 %v6322, %v6410
        %v6412 = vpop.f32.mrf.mxu0
        %v6413 = vadd.f32 %v6324, %v6412
        %6414 = vmatmul.bf16.gmra.mxu0 %v6161
        %v6415 = vpop.f32.mrf.mxu0
        %v6416 = vadd.f32 %v6327, %v6415
        %v6417 = vpop.f32.mrf.mxu0
        %v6418 = vadd.f32 %v6329, %v6417
        %6419 = vmatmul.bf16.gmra.mxu0 %v6165
        %v6420 = vpop.f32.mrf.mxu0
        %v6421 = vadd.f32 %v6332, %v6420
        %v6422 = vpop.f32.mrf.mxu0
        %v6423 = vadd.f32 %v6334, %v6422
        %6424 = vmatmul.bf16.gmra.mxu0 %v6169
        %v6425 = vpop.f32.mrf.mxu0
        %v6426 = vadd.f32 %v6337, %v6425
        %v6427 = vpop.f32.mrf.mxu0
        %v6428 = vadd.f32 %v6339, %v6427
        %6429 = vmatmul.bf16.gmra.mxu0 %v6173
        %v6430 = vpop.f32.mrf.mxu0
        %v6431 = vadd.f32 %v6342, %v6430
        %v6432 = vpop.f32.mrf.mxu0
        %v6433 = vadd.f32 %v6344, %v6432
        %6434 = vmatmul.bf16.gmra.mxu0 %v6177
        %v6435 = vpop.f32.mrf.mxu0
        %v6436 = vadd.f32 %v6347, %v6435
        %v6437 = vpop.f32.mrf.mxu0
        %v6438 = vadd.f32 %v6349, %v6437
        %6439 = vmatmul.bf16.gmra.mxu0 %v6181
        %v6440 = vpop.f32.mrf.mxu0
        %v6441 = vadd.f32 %v6352, %v6440
        %v6442 = vpop.f32.mrf.mxu0
        %v6443 = vadd.f32 %v6354, %v6442
        %6444 = vmatmul.bf16.gmra.mxu0 %v6185
        %v6445 = vpop.f32.mrf.mxu0
        %v6446 = vadd.f32 %v6357, %v6445
        %v6447 = vpop.f32.mrf.mxu0
        %v6448 = vadd.f32 %v6359, %v6447
        %6449 = vmatmul.bf16.gmra.mxu0 %v6189
        %v6450 = vpop.f32.mrf.mxu0
        %v6451 = vadd.f32 %v6362, %v6450
        %v6452 = vpop.f32.mrf.mxu0
        %v6453 = vadd.f32 %v6364, %v6452
        %6454 = vmatmul.bf16.gmra.mxu0 %v6193
        %v6455 = vpop.f32.mrf.mxu0
        %v6456 = vadd.f32 %v6367, %v6455
        %v6457 = vpop.f32.mrf.mxu0
        %v6458 = vadd.f32 %v6369, %v6457
        %6459 = vmatmul.bf16.gmra.mxu0 %v6197
        %v6460 = vpop.f32.mrf.mxu0
        %v6461 = vadd.f32 %v6372, %v6460
        %v6462 = vpop.f32.mrf.mxu0
        %v6463 = vadd.f32 %v6374, %v6462
        %6464 = vmatmul.bf16.gmra.mxu0 %v6201
        %v6465 = vpop.f32.mrf.mxu0
        %v6466 = vadd.f32 %v6377, %v6465
        %v6467 = vpop.f32.mrf.mxu0
        %v6468 = vadd.f32 %v6379, %v6467
        %6469 = vdwg.mxu0
        %6470 = vmatpush.bf16.msra.mxu0 %v6106
        %6471 = vmatpush.bf16.msra.mxu0 %v6105
        %6472 = vmatpush.bf16.msra.mxu0 %v6104
        %6473 = vmatpush.bf16.msra.mxu0 %v6103
        %6474 = vmatpush.bf16.msra.mxu0 %v6102
        %6475 = vmatpush.bf16.msra.mxu0 %v6101
        %6476 = vmatpush.bf16.msra.mxu0 %v6100
        %6477 = vmatpush.bf16.msra.mxu0 %v6099
        %6478 = vmatmul.bf16.gmra.mxu0 %v6142
        %v6479 = vpop.f32.mrf.mxu0
        %v6480 = vadd.f32 %v6391, %v6479
        %v6481 = vpop.f32.mrf.mxu0
        %v6482 = vadd.f32 %v6393, %v6481
        %6483 = vmatmul.bf16.gmra.mxu0 %v6146
        %v6484 = vpop.f32.mrf.mxu0
        %v6485 = vadd.f32 %v6396, %v6484
        %v6486 = vpop.f32.mrf.mxu0
        %v6487 = vadd.f32 %v6398, %v6486
        %6488 = vmatmul.bf16.gmra.mxu0 %v6150
        %v6489 = vpop.f32.mrf.mxu0
        %v6490 = vadd.f32 %v6401, %v6489
        %v6491 = vpop.f32.mrf.mxu0
        %v6492 = vadd.f32 %v6403, %v6491
        %6493 = vmatmul.bf16.gmra.mxu0 %v6154
        %v6494 = vpop.f32.mrf.mxu0
        %v6495 = vadd.f32 %v6406, %v6494
        %v6496 = vpop.f32.mrf.mxu0
        %v6497 = vadd.f32 %v6408, %v6496
        %6498 = vmatmul.bf16.gmra.mxu0 %v6158
        %v6499 = vpop.f32.mrf.mxu0
        %v6500 = vadd.f32 %v6411, %v6499
        %v6501 = vpop.f32.mrf.mxu0
        %v6502 = vadd.f32 %v6413, %v6501
        %6503 = vmatmul.bf16.gmra.mxu0 %v6162
        %v6504 = vpop.f32.mrf.mxu0
        %v6505 = vadd.f32 %v6416, %v6504
        %v6506 = vpop.f32.mrf.mxu0
        %v6507 = vadd.f32 %v6418, %v6506
        %6508 = vmatmul.bf16.gmra.mxu0 %v6166
        %v6509 = vpop.f32.mrf.mxu0
        %v6510 = vadd.f32 %v6421, %v6509
        %v6511 = vpop.f32.mrf.mxu0
        %v6512 = vadd.f32 %v6423, %v6511
        %6513 = vmatmul.bf16.gmra.mxu0 %v6170
        %v6514 = vpop.f32.mrf.mxu0
        %v6515 = vadd.f32 %v6426, %v6514
        %v6516 = vpop.f32.mrf.mxu0
        %v6517 = vadd.f32 %v6428, %v6516
        %6518 = vmatmul.bf16.gmra.mxu0 %v6174
        %v6519 = vpop.f32.mrf.mxu0
        %v6520 = vadd.f32 %v6431, %v6519
        %v6521 = vpop.f32.mrf.mxu0
        %v6522 = vadd.f32 %v6433, %v6521
        %6523 = vmatmul.bf16.gmra.mxu0 %v6178
        %v6524 = vpop.f32.mrf.mxu0
        %v6525 = vadd.f32 %v6436, %v6524
        %v6526 = vpop.f32.mrf.mxu0
        %v6527 = vadd.f32 %v6438, %v6526
        %6528 = vmatmul.bf16.gmra.mxu0 %v6182
        %v6529 = vpop.f32.mrf.mxu0
        %v6530 = vadd.f32 %v6441, %v6529
        %v6531 = vpop.f32.mrf.mxu0
        %v6532 = vadd.f32 %v6443, %v6531
        %6533 = vmatmul.bf16.gmra.mxu0 %v6186
        %v6534 = vpop.f32.mrf.mxu0
        %v6535 = vadd.f32 %v6446, %v6534
        %v6536 = vpop.f32.mrf.mxu0
        %v6537 = vadd.f32 %v6448, %v6536
        %6538 = vmatmul.bf16.gmra.mxu0 %v6190
        %v6539 = vpop.f32.mrf.mxu0
        %v6540 = vadd.f32 %v6451, %v6539
        %v6541 = vpop.f32.mrf.mxu0
        %v6542 = vadd.f32 %v6453, %v6541
        %6543 = vmatmul.bf16.gmra.mxu0 %v6194
        %v6544 = vpop.f32.mrf.mxu0
        %v6545 = vadd.f32 %v6456, %v6544
        %v6546 = vpop.f32.mrf.mxu0
        %v6547 = vadd.f32 %v6458, %v6546
        %6548 = vmatmul.bf16.gmra.mxu0 %v6198
        %v6549 = vpop.f32.mrf.mxu0
        %v6550 = vadd.f32 %v6461, %v6549
        %v6551 = vpop.f32.mrf.mxu0
        %v6552 = vadd.f32 %v6463, %v6551
        %6553 = vmatmul.bf16.gmra.mxu0 %v6202
        %v6554 = vpop.f32.mrf.mxu0
        %v6555 = vadd.f32 %v6466, %v6554
        %v6556 = vpop.f32.mrf.mxu0
        %v6557 = vadd.f32 %v6468, %v6556
        %6558 = vdwg.mxu0
        %v6559 = vadd.f32 %v6107, %v6480
        %v6560 = vadd.f32 %v6108, %v6482
        %v6561 = vadd.f32 %v6109, %v6485
        %v6562 = vadd.f32 %v6110, %v6487
        %v6563 = vadd.f32 %v6111, %v6490
        %v6564 = vadd.f32 %v6112, %v6492
        %v6565 = vadd.f32 %v6113, %v6495
        %v6566 = vadd.f32 %v6114, %v6497
        %v6567 = vadd.f32 %v6115, %v6500
        %v6568 = vadd.f32 %v6116, %v6502
        %v6569 = vadd.f32 %v6117, %v6505
        %v6570 = vadd.f32 %v6118, %v6507
        %v6571 = vadd.f32 %v6119, %v6510
        %v6572 = vadd.f32 %v6120, %v6512
        %v6573 = vadd.f32 %v6121, %v6515
        %v6574 = vadd.f32 %v6122, %v6517
        %v6575 = vadd.f32 %v6123, %v6520
        %v6576 = vadd.f32 %v6124, %v6522
        %v6577 = vadd.f32 %v6125, %v6525
        %v6578 = vadd.f32 %v6126, %v6527
        %v6579 = vadd.f32 %v6127, %v6530
        %v6580 = vadd.f32 %v6128, %v6532
        %v6581 = vadd.f32 %v6129, %v6535
        %v6582 = vadd.f32 %v6130, %v6537
        %v6583 = vadd.f32 %v6131, %v6540
        %v6584 = vadd.f32 %v6132, %v6542
        %v6585 = vadd.f32 %v6133, %v6545
        %v6586 = vadd.f32 %v6134, %v6547
        %v6587 = vadd.f32 %v6135, %v6550
        %v6588 = vadd.f32 %v6136, %v6552
        %v6589 = vadd.f32 %v6137, %v6555
        %v6590 = vadd.f32 %v6138, %v6557
        %6591 = vst [vmem:[%s6] sm:$0xff] %v6559
        %6592 = vst [vmem:[%s6 + $0x8] sm:$0xff] %v6560
        %6593 = vst [vmem:[%s6 + $0x10] sm:$0xff] %v6561
        %6594 = vst [vmem:[%s6 + $0x18] sm:$0xff] %v6562
        %6595 = vst [vmem:[%s6 + $0x20] sm:$0xff] %v6563
        %6596 = vst [vmem:[%s6 + $0x28] sm:$0xff] %v6564
        %6597 = vst [vmem:[%s6 + $0x30] sm:$0xff] %v6565
        %6598 = vst [vmem:[%s6 + $0x38] sm:$0xff] %v6566
        %6599 = vst [vmem:[%s6 + $0x40] sm:$0xff] %v6567
        %6600 = vst [vmem:[%s6 + $0x48] sm:$0xff] %v6568
        %6601 = vst [vmem:[%s6 + $0x50] sm:$0xff] %v6569
        %6602 = vst [vmem:[%s6 + $0x58] sm:$0xff] %v6570
        %6603 = vst [vmem:[%s6 + $0x60] sm:$0xff] %v6571
        %6604 = vst [vmem:[%s6 + $0x68] sm:$0xff] %v6572
        %6605 = vst [vmem:[%s6 + $0x70] sm:$0xff] %v6573
        %6606 = vst [vmem:[%s6 + $0x78] sm:$0xff] %v6574
        %6607 = vst [vmem:[%s6 + $0x80] sm:$0xff] %v6575
        %6608 = vst [vmem:[%s6 + $0x88] sm:$0xff] %v6576
        %6609 = vst [vmem:[%s6 + $0x90] sm:$0xff] %v6577
        %6610 = vst [vmem:[%s6 + $0x98] sm:$0xff] %v6578
        %6611 = vst [vmem:[%s6 + $0xa0] sm:$0xff] %v6579
        %6612 = vst [vmem:[%s6 + $0xa8] sm:$0xff] %v6580
        %6613 = vst [vmem:[%s6 + $0xb0] sm:$0xff] %v6581
        %6614 = vst [vmem:[%s6 + $0xb8] sm:$0xff] %v6582
        %6615 = vst [vmem:[%s6 + $0xc0] sm:$0xff] %v6583
        %6616 = vst [vmem:[%s6 + $0xc8] sm:$0xff] %v6584
        %6617 = vst [vmem:[%s6 + $0xd0] sm:$0xff] %v6585
        %6618 = vst [vmem:[%s6 + $0xd8] sm:$0xff] %v6586
        %6619 = vst [vmem:[%s6 + $0xe0] sm:$0xff] %v6587
        %6620 = vst [vmem:[%s6 + $0xe8] sm:$0xff] %v6588
        %6621 = vst [vmem:[%s6 + $0xf0] sm:$0xff] %v6589
        %6622 = vst [vmem:[%s6 + $0xf8] sm:$0xff] %v6590
        // Predicated region
        $region72: #{bccls_forward.1} parent=62 // pred_check
          %p6623 = pneg %p176
        $region73: #{bccls_forward.1} parent=62 // pred_check_branch
          %6625 = sbr.rel (%p6623) target = $region75
        $region74: #{bccls_forward.1} parent=62 // pred_region
          _
        $region75: #{bccls_forward.1} parent=62 // pred_fallthru
          _
        // Predicated region
        $region76: #{bccls_forward.1} parent=62 // pred_check
          %p6626 = pneg %p176
        $region77: #{bccls_forward.1} parent=62 // pred_check_branch
          %6628 = sbr.rel (%p6626) target = $region79
        $region78: #{bccls_forward.1} parent=62 // pred_region
          _
        $region79: #{bccls_forward.1} parent=62 // pred_fallthru
          _
      $region63: #{bccls_forward.1} parent=5 // pred_fallthru
        _
      %p6629 = scmp.le.s32.totalorder 2, %s12
      // Predicated region
      $region80: #{bccls_forward.1} parent=5 // pred_check
        %p6630 = pneg %p6629
      $region81: #{bccls_forward.1} parent=5 // pred_check_branch
        %6632 = sbr.rel (%p6630) target = $region83
      $region82: #{bccls_forward.1} parent=5 // pred_region
        %s6633 = ssub.s32 %s12, 2
      $region83: #{bccls_forward.1} parent=5 // pred_fallthru
        _
    $region6: #{bccls_forward.1} parent=1 // loop_footer
      %s16 = sadd.s32 1, %s12
    $region7: #{bccls_forward.1} parent=1 // loop_footer_branch
      %11 = sbr.rel target = $region3
    $region8: #{bccls_forward.1} parent=1 // loop_exit
      _

</llo_original>
